<compile_context>
chip_gen: v6e
topology: v6e:2x2x1
jax: 0.10.0
libtpu: 0.0.40
codegen_flags: <defaults>
</compile_context>

<pallas_src>
import jax
import jax.numpy as jnp
from jax import lax
from jax.experimental import pallas as pl
from jax.experimental.pallas import tpu as pltpu


# (cin, cout, kernel, stride, dilation, padding) -- straight from TemporalConvNet.__init__
LAYER_CFGS = (
    (1,   32,  80, 10, 2,  79),
    (32,  64,  20, 5,  4,  38),
    (64,  128, 11, 2,  8,  40),
    (128, 128, 5,  1,  16, 32),   # TemporalBlock1
)

BN_EPS = 1e-5
LIF_DECAY = 0.5   # ParametricLIFNode: sigmoid(w), w = -log(init_tau - 1) = 0 -> 0.5
LIF_VTH = 1.0

# Layer-2 tap pruning (k=20, stride=5, dil=4, pad=38 on the 8x8 layer-1 output):
# output row oh only ever sees kernel taps L2_KSEL[oh], which land on input rows
# L2_HSEL[oh]; identically for columns.  (Derivation: h = 5*oh - 38 + 4*kh in [0, 8).)
L2_KSEL = ((10, 11), (9, 10))
L2_HSEL = ((2, 6), (3, 7))
# Layer 3: h = 2*oh - 40 + 8*kh in [0, 2)  ->  only tap kh = 5, input pixel 0.
L3_KSEL = 5
# Layer 4: h = oh - 32 + 16*kh in [0, 1)   ->  only tap kh = 2, input pixel 0.
L4_KSEL = 2


def _im2col_nhwc(x, k, stride, dilation, pad):
    """Gather-free dilated/strided patch extraction (used for layer 1 only).

    Returns (B*OH*OW, K*K*C) patches with columns flattened in (kh, kw, c) order,
    plus OH, OW.
    """
    B, H, W, C = x.shape
    OH = (H + 2 * pad - dilation * (k - 1) - 1) // stride + 1
    OW = (W + 2 * pad - dilation * (k - 1) - 1) // stride + 1
    xp = jnp.pad(x, ((0, 0), (pad, pad), (pad, pad), (0, 0)))
    xw = jnp.stack(
        [lax.slice_in_dim(xp, kw * dilation, kw * dilation + (OW - 1) * stride + 1,
                          stride=stride, axis=2) for kw in range(k)],
        axis=3)
    patches = jnp.stack(
        [lax.slice_in_dim(xw, kh * dilation, kh * dilation + (OH - 1) * stride + 1,
                          stride=stride, axis=1) for kh in range(k)],
        axis=3)
    return patches.reshape(B * OH * OW, k * k * C), OH, OW


def fused_tcn_kernel(patch_ref, res1_ref, w1_ref, bn1_ref, w2_ref, bn2_ref,
                     w3_ref, bn3_ref, w4_ref, bn4_ref, out_ref):
    B = patch_ref.shape[0] // 64   # rows are (b, oh, ow) over the 8x8 layer-1 output

    def bn_res_lif(conv, bn_ref, res):
        # BatchNorm2d forward in training mode (fresh module): biased batch stats over
        # N*H*W (= the rows of `conv`); two-pass variance for numerical safety.
        mean = jnp.mean(conv, axis=0, keepdims=True)
        cen = conv - mean
        var = jnp.mean(cen * cen, axis=0, keepdims=True)
        y = cen * lax.rsqrt(var + BN_EPS) * bn_ref[0:1, :] + bn_ref[1:2, :]
        y = y + res                                   # max-pool residual
        # ParametricLIF single step from fresh state v=0 (hard reset, v_reset=0):
        #   v = y * sigmoid(0) = y/2; spike = heaviside(v - v_threshold)  -> exactly 0/1
        return (y * LIF_DECAY >= LIF_VTH).astype(jnp.bfloat16)

    def repeat2(x):
        # interleaved channel repeat (R, C) -> (R, 2C), y[:, 2c+j] = x[:, c], done as a
        # 0/1 matmul (iota-built) so no lane-restructuring reshape happens in-kernel.
        c = x.shape[-1]
        row = lax.broadcasted_iota(jnp.int32, (c, 2 * c), 0)
        col = lax.broadcasted_iota(jnp.int32, (c, 2 * c), 1)
        rep = jnp.logical_or(col == 2 * row, col == 2 * row + 1).astype(x.dtype)
        return jnp.dot(x, rep, preferred_element_type=jnp.float32)

    # ---- layer 1: 80x80 dilated conv == one (B*64, 6400) x (6400, 32) MXU matmul ----
    conv1 = jnp.dot(patch_ref[...], w1_ref[...], preferred_element_type=jnp.float32)
    spk1 = bn_res_lif(conv1, bn1_ref, res1_ref[...].astype(jnp.float32))   # (B*64, 32)

    def pix(h, w):
        # layer-1 spikes at spatial position (h, w) for every batch element -> (B, 32)
        r = h * 8 + w
        return jnp.concatenate(
            [spk1[b * 64 + r: b * 64 + r + 1, :] for b in range(B)], axis=0)

    # ---- layer 2: pruned to the 4 valid taps per output position (2x2 output) ----
    conv2_rows, res2_rows = [], []
    for oh in range(2):
        for ow in range(2):
            px = [pix(h, w) for h in L2_HSEL[oh] for w in L2_HSEL[ow]]      # 4 x (B, 32)
            lhs = jnp.concatenate(px, axis=-1)                              # (B, 128): (kh, kw, cin)
            conv2_rows.append(jnp.dot(lhs, w2_ref[oh * 2 + ow],
                                      preferred_element_type=jnp.float32))  # (B, 64)
            # residual max-pool: the same 4 pixels are the only valid window entries
            res2_rows.append(jnp.maximum(jnp.maximum(px[0], px[1]),
                                         jnp.maximum(px[2], px[3])))        # (B, 32)
    conv2 = jnp.concatenate(conv2_rows, axis=0)                             # (4B, 64), rows ((oh,ow), b)
    res2 = repeat2(jnp.concatenate(res2_rows, axis=0))                      # channels 32 -> 64
    spk2 = bn_res_lif(conv2, bn2_ref, res2)                                 # (4B, 64)

    # ---- layer 3: collapses to a 1x1 conv on pixel (0,0) of the 2x2 layer-2 output ----
    spk2_00 = spk2[0:B, :]                                                  # rows of position (0,0)
    conv3 = jnp.dot(spk2_00, w3_ref[...], preferred_element_type=jnp.float32)   # (B, 128)
    res3 = repeat2(spk2_00)                                                 # max-pool == same pixel; 64 -> 128
    spk3 = bn_res_lif(conv3, bn3_ref, res3)                                 # (B, 128)

    # ---- layer 4 (TemporalBlock1): 1x1 conv; residual max-pool is the input pixel itself ----
    conv4 = jnp.dot(spk3, w4_ref[...], preferred_element_type=jnp.float32)  # (B, 128)
    spk4 = bn_res_lif(conv4, bn4_ref, spk3.astype(jnp.float32))
    out_ref[...] = spk4.astype(out_ref.dtype)


def _full_spec(shape):
    return pl.BlockSpec(shape, lambda i: (0,) * len(shape))


def fused_forward(patches, res1, p):
    B = patches.shape[0] // 64
    operands = (patches, res1, p["w1"], p["bn1"], p["w2"], p["bn2"],
                p["w3"], p["bn3"], p["w4"], p["bn4"])
    return pl.pallas_call(
        fused_tcn_kernel,
        out_shape=jax.ShapeDtypeStruct((B, 128), jnp.float32),
        grid=(1,),
        in_specs=[_full_spec(a.shape) for a in operands],
        out_specs=_full_spec((B, 128)),
        compiler_params=pltpu.CompilerParams(
            dimension_semantics=("arbitrary",),
            vmem_limit_bytes=32 * 1024 * 1024,     # <= physical VMEM on v5e/v6e/v7x
        ),
    )(*operands)


def temporal_conv_net(x, params):
    """x: (B, 1, 80, 80) float32 NCHW -> (B, 128, 1, 1) float32 spikes (0/1)."""
    B, C, H, W = x.shape
    assert C == 1 and H == 80 and W == 80, "tap pruning / fused geometry derived for 1x80x80 inputs"
    act = jnp.transpose(x, (0, 2, 3, 1)).astype(jnp.bfloat16)              # NHWC, MXU-native
    patches, OH, OW = _im2col_nhwc(act, 80, 10, 2, 79)                     # (B*64, 6400) bf16
    # Layer-1 residual.
    # TODO(synk): the reference `nn.MaxPool2d(n_inputs, n_outputs, kernel_size, ...)` is
    # invalid PyTorch (duplicate kernel/stride args, channel mismatch); as before we pool
    # with the conv's own geometry and repeat channels 1 -> 32 so `out + res` is defined.
    neg = jnp.asarray(jnp.finfo(act.dtype).min, act.dtype)                 # finite lowest
    res1 = lax.reduce_window(
        act, neg, lax.max,
        window_dimensions=(1, 80, 80, 1),
        window_strides=(1, 10, 10, 1),
        padding=((0, 0), (79, 79), (79, 79), (0, 0)),
        window_dilation=(1, 2, 2, 1))                                      # (B, 8, 8, 1)
    res1 = jnp.repeat(res1, 32, axis=-1).reshape(B * OH * OW, 32)          # (B*64, 32)
    out = fused_forward(patches, res1, params)                             # (B, 128) spikes
    return out[:, :, None, None].astype(jnp.float32)                       # NCHW (B, 128, 1, 1)


def init_params(key):
    """Deterministic synthetic parameters, pre-packed with structural-zero taps pruned."""
    ks = jax.random.split(key, 12)

    def conv_w(k, cout, cin, ksz):
        fan_in = cin * ksz * ksz
        return jax.random.normal(k, (cout, cin, ksz, ksz), jnp.float32) * (2.0 / fan_in) ** 0.5

    def bn_p(kg, kb, c):
        gamma = 1.0 + 0.1 * jax.random.normal(kg, (c,), jnp.float32)
        beta = 0.1 * jax.random.normal(kb, (c,), jnp.float32)
        return jnp.stack([gamma, beta], axis=0)                            # (2, C) f32

    w1 = conv_w(ks[0], 32, 1, 80)
    w2 = conv_w(ks[1], 64, 32, 20)
    w3 = conv_w(ks[2], 128, 64, 11)
    w4 = conv_w(ks[3], 128, 128, 5)

    # layer 1: full (kh, kw, cin=1) x cout matrix; cout kept at 32 (no 128-lane zero pad)
    w1p = jnp.transpose(w1, (2, 3, 1, 0)).reshape(80 * 80, 32).astype(jnp.bfloat16)
    # layer 2: keep only the 4 taps that ever see valid data; one (4*cin, cout) slice per
    # output position (oh, ow), rows flattened (kh, kw, cin) to match the kernel's lhs.
    w2t = jnp.transpose(w2, (2, 3, 1, 0))                                  # (kh, kw, cin, cout)
    slabs = []
    for oh in range(2):
        for ow in range(2):
            taps = jnp.stack([w2t[a, b] for a in L2_KSEL[oh] for b in L2_KSEL[ow]], axis=0)
            slabs.append(taps.reshape(4 * 32, 64))                         # (128, 64)
    w2p = jnp.stack(slabs, axis=0).astype(jnp.bfloat16)                    # (4, 128, 64)
    # layers 3 / 4 collapse to 1x1 convs (single valid tap each)
    w3p = jnp.transpose(w3[:, :, L3_KSEL, L3_KSEL], (1, 0)).astype(jnp.bfloat16)   # (64, 128)
    w4p = jnp.transpose(w4[:, :, L4_KSEL, L4_KSEL], (1, 0)).astype(jnp.bfloat16)   # (128, 128)

    return dict(
        w1=w1p, bn1=bn_p(ks[4], ks[5], 32),
        w2=w2p, bn2=bn_p(ks[6], ks[7], 64),
        w3=w3p, bn3=bn_p(ks[8], ks[9], 128),
        w4=w4p, bn4=bn_p(ks[10], ks[11], 128),
    )


if __name__ == "__main__":
    key = jax.random.PRNGKey(0)
    kx, kp = jax.random.split(key)
    # Spatial size 80 is what the module's geometry implies (80 -> 8 -> 2 -> 1 -> 1
    # spatially, channels 1 -> 32 -> 64 -> 128 -> 128); batch kept small (2).
    x = jax.random.normal(kx, (2, 1, 80, 80), jnp.float32)
    params = init_params(kp)
    fwd = jax.jit(temporal_conv_net)
    out = jax.block_until_ready(fwd(x, params))
    assert out.shape == (2, 128, 1, 1), out.shape
    assert out.dtype == jnp.float32
    assert bool(jnp.all((out == 0.0) | (out == 1.0)))    # LIF output is a 0/1 spike train
    print("KERNEL_OK")
</pallas_src>

<mosaic_0001>
module attributes {stable_mosaic.version = 11 : i64} {
  func.func @fused_tcn_kernel(%arg0: i32, %arg1: memref<128x6400xbf16, #tpu.memory_space<vmem>>, %arg2: memref<128x32xbf16, #tpu.memory_space<vmem>>, %arg3: memref<6400x32xbf16, #tpu.memory_space<vmem>>, %arg4: memref<2x32xf32, #tpu.memory_space<vmem>>, %arg5: memref<4x128x64xbf16, #tpu.memory_space<vmem>>, %arg6: memref<2x64xf32, #tpu.memory_space<vmem>>, %arg7: memref<64x128xbf16, #tpu.memory_space<vmem>>, %arg8: memref<2x128xf32, #tpu.memory_space<vmem>>, %arg9: memref<128x128xbf16, #tpu.memory_space<vmem>>, %arg10: memref<2x128xf32, #tpu.memory_space<vmem>>, %arg11: memref<2x128xf32, #tpu.memory_space<vmem>>) attributes {dimension_semantics = [#tpu.dimension_semantics<arbitrary>], iteration_bounds = array<i64: 1>, scalar_prefetch = 0 : i64, scratch_operands = 0 : i64, tpu.core_type = #tpu.core_type<tc>, window_params = [{pipeline_mode = #tpu.pipeline_mode<synchronous>, transform_indices = @transform_0, window_bounds = array<i64: 128, 6400>}, {pipeline_mode = #tpu.pipeline_mode<synchronous>, transform_indices = @transform_1, window_bounds = array<i64: 128, 32>}, {pipeline_mode = #tpu.pipeline_mode<synchronous>, transform_indices = @transform_2, window_bounds = array<i64: 6400, 32>}, {pipeline_mode = #tpu.pipeline_mode<synchronous>, transform_indices = @transform_3, window_bounds = array<i64: 2, 32>}, {pipeline_mode = #tpu.pipeline_mode<synchronous>, transform_indices = @transform_4, window_bounds = array<i64: 4, 128, 64>}, {pipeline_mode = #tpu.pipeline_mode<synchronous>, transform_indices = @transform_5, window_bounds = array<i64: 2, 64>}, {pipeline_mode = #tpu.pipeline_mode<synchronous>, transform_indices = @transform_6, window_bounds = array<i64: 64, 128>}, {pipeline_mode = #tpu.pipeline_mode<synchronous>, transform_indices = @transform_7, window_bounds = array<i64: 2, 128>}, {pipeline_mode = #tpu.pipeline_mode<synchronous>, transform_indices = @transform_8, window_bounds = array<i64: 128, 128>}, {pipeline_mode = #tpu.pipeline_mode<synchronous>, transform_indices = @transform_9, window_bounds = array<i64: 2, 128>}, {pipeline_mode = #tpu.pipeline_mode<synchronous>, transform_indices = @transform_10, window_bounds = array<i64: 2, 128>}]} {
    %c0 = arith.constant 0 : index
    %c0_0 = arith.constant 0 : index
    %0 = vector.load %arg1[%c0, %c0_0] : memref<128x6400xbf16, #tpu.memory_space<vmem>>, vector<128x6400xbf16>
    %c0_1 = arith.constant 0 : index
    %c0_2 = arith.constant 0 : index
    %1 = vector.load %arg3[%c0_1, %c0_2] : memref<6400x32xbf16, #tpu.memory_space<vmem>>, vector<6400x32xbf16>
    %cst = arith.constant dense<0.000000e+00> : vector<128x32xf32>
    %2 = tpu.matmul %0, %1, %cst {dimension_numbers = #tpu.dot_dimension_numbers<[1], [0], [0], [1], [0, 0, 1, 1], [], []>} : vector<128x6400xbf16>, vector<6400x32xbf16>, vector<128x32xf32> -> vector<128x32xf32>
    %c0_3 = arith.constant 0 : index
    %c0_4 = arith.constant 0 : index
    %3 = vector.load %arg2[%c0_3, %c0_4] : memref<128x32xbf16, #tpu.memory_space<vmem>>, vector<128x32xbf16>
    %4 = arith.extf %3 : vector<128x32xbf16> to vector<128x32xf32>
    %cst_5 = arith.constant dense<0.000000e+00> : vector<32xf32>
    %5 = vector.multi_reduction <add>, %2, %cst_5 [0] : vector<128x32xf32> to vector<32xf32>
    %6 = vector.shape_cast %5 : vector<32xf32> to vector<1x32xf32>
    %cst_6 = arith.constant 1.280000e+02 : f32
    %7 = vector.broadcast %cst_6 : f32 to vector<1x32xf32>
    %8 = arith.divf %6, %7 : vector<1x32xf32>
    %9 = vector.broadcast %8 : vector<1x32xf32> to vector<128x32xf32>
    %10 = arith.subf %2, %9 : vector<128x32xf32>
    %11 = arith.mulf %10, %10 : vector<128x32xf32>
    %cst_7 = arith.constant dense<0.000000e+00> : vector<32xf32>
    %12 = vector.multi_reduction <add>, %11, %cst_7 [0] : vector<128x32xf32> to vector<32xf32>
    %13 = vector.shape_cast %12 : vector<32xf32> to vector<1x32xf32>
    %cst_8 = arith.constant 1.280000e+02 : f32
    %14 = vector.broadcast %cst_8 : f32 to vector<1x32xf32>
    %15 = arith.divf %13, %14 : vector<1x32xf32>
    %cst_9 = arith.constant 9.99999974E-6 : f32
    %16 = vector.broadcast %cst_9 : f32 to vector<1x32xf32>
    %17 = arith.addf %15, %16 : vector<1x32xf32>
    %18 = math.rsqrt %17 : vector<1x32xf32>
    %19 = vector.broadcast %18 : vector<1x32xf32> to vector<128x32xf32>
    %20 = arith.mulf %10, %19 : vector<128x32xf32>
    %c0_10 = arith.constant 0 : index
    %c0_11 = arith.constant 0 : index
    %21 = vector.load %arg4[%c0_10, %c0_11] : memref<2x32xf32, #tpu.memory_space<vmem>>, vector<1x32xf32>
    %22 = vector.broadcast %21 : vector<1x32xf32> to vector<128x32xf32>
    %23 = arith.mulf %20, %22 : vector<128x32xf32>
    %c1 = arith.constant 1 : index
    %c0_12 = arith.constant 0 : index
    %24 = vector.load %arg4[%c1, %c0_12] : memref<2x32xf32, #tpu.memory_space<vmem>>, vector<1x32xf32>
    %25 = vector.broadcast %24 : vector<1x32xf32> to vector<128x32xf32>
    %26 = arith.addf %23, %25 : vector<128x32xf32>
    %27 = arith.addf %26, %4 : vector<128x32xf32>
    %cst_13 = arith.constant 5.000000e-01 : f32
    %28 = vector.broadcast %cst_13 : f32 to vector<128x32xf32>
    %29 = arith.mulf %27, %28 : vector<128x32xf32>
    %cst_14 = arith.constant 1.000000e+00 : f32
    %30 = vector.broadcast %cst_14 : f32 to vector<128x32xf32>
    %31 = arith.cmpf oge, %29, %30 : vector<128x32xf32>
    %32 = arith.extui %31 : vector<128x32xi1> to vector<128x32xi32>
    %33 = arith.sitofp %32 : vector<128x32xi32> to vector<128x32xf32>
    %34 = arith.truncf %33 : vector<128x32xf32> to vector<128x32xbf16>
    %35 = vector.extract_strided_slice %34 {offsets = [18, 0], sizes = [1, 32], strides = [1, 1]} : vector<128x32xbf16> to vector<1x32xbf16>
    %36 = vector.extract_strided_slice %34 {offsets = [82, 0], sizes = [1, 32], strides = [1, 1]} : vector<128x32xbf16> to vector<1x32xbf16>
    %37 = tpu.concatenate %35, %36 in 0 : vector<1x32xbf16>, vector<1x32xbf16> -> vector<2x32xbf16>
    %38 = vector.extract_strided_slice %34 {offsets = [22, 0], sizes = [1, 32], strides = [1, 1]} : vector<128x32xbf16> to vector<1x32xbf16>
    %39 = vector.extract_strided_slice %34 {offsets = [86, 0], sizes = [1, 32], strides = [1, 1]} : vector<128x32xbf16> to vector<1x32xbf16>
    %40 = tpu.concatenate %38, %39 in 0 : vector<1x32xbf16>, vector<1x32xbf16> -> vector<2x32xbf16>
    %41 = vector.extract_strided_slice %34 {offsets = [50, 0], sizes = [1, 32], strides = [1, 1]} : vector<128x32xbf16> to vector<1x32xbf16>
    %42 = vector.extract_strided_slice %34 {offsets = [114, 0], sizes = [1, 32], strides = [1, 1]} : vector<128x32xbf16> to vector<1x32xbf16>
    %43 = tpu.concatenate %41, %42 in 0 : vector<1x32xbf16>, vector<1x32xbf16> -> vector<2x32xbf16>
    %44 = vector.extract_strided_slice %34 {offsets = [54, 0], sizes = [1, 32], strides = [1, 1]} : vector<128x32xbf16> to vector<1x32xbf16>
    %45 = vector.extract_strided_slice %34 {offsets = [118, 0], sizes = [1, 32], strides = [1, 1]} : vector<128x32xbf16> to vector<1x32xbf16>
    %46 = tpu.concatenate %44, %45 in 0 : vector<1x32xbf16>, vector<1x32xbf16> -> vector<2x32xbf16>
    %47 = tpu.concatenate %37, %40, %43, %46 in 1 : vector<2x32xbf16>, vector<2x32xbf16>, vector<2x32xbf16>, vector<2x32xbf16> -> vector<2x128xbf16>
    %c0_15 = arith.constant 0 : index
    %c0_16 = arith.constant 0 : index
    %c0_17 = arith.constant 0 : index
    %48 = vector.load %arg5[%c0_15, %c0_16, %c0_17] : memref<4x128x64xbf16, #tpu.memory_space<vmem>>, vector<1x128x64xbf16>
    %49 = vector.shape_cast %48 : vector<1x128x64xbf16> to vector<128x64xbf16>
    %cst_18 = arith.constant dense<0.000000e+00> : vector<2x64xf32>
    %50 = tpu.matmul %47, %49, %cst_18 {dimension_numbers = #tpu.dot_dimension_numbers<[1], [0], [0], [1], [0, 0, 1, 1], [], []>} : vector<2x128xbf16>, vector<128x64xbf16>, vector<2x64xf32> -> vector<2x64xf32>
    %51 = arith.maximumf %37, %40 : vector<2x32xbf16>
    %52 = arith.maximumf %43, %46 : vector<2x32xbf16>
    %53 = arith.maximumf %51, %52 : vector<2x32xbf16>
    %54 = vector.extract_strided_slice %34 {offsets = [19, 0], sizes = [1, 32], strides = [1, 1]} : vector<128x32xbf16> to vector<1x32xbf16>
    %55 = vector.extract_strided_slice %34 {offsets = [83, 0], sizes = [1, 32], strides = [1, 1]} : vector<128x32xbf16> to vector<1x32xbf16>
    %56 = tpu.concatenate %54, %55 in 0 : vector<1x32xbf16>, vector<1x32xbf16> -> vector<2x32xbf16>
    %57 = vector.extract_strided_slice %34 {offsets = [23, 0], sizes = [1, 32], strides = [1, 1]} : vector<128x32xbf16> to vector<1x32xbf16>
    %58 = vector.extract_strided_slice %34 {offsets = [87, 0], sizes = [1, 32], strides = [1, 1]} : vector<128x32xbf16> to vector<1x32xbf16>
    %59 = tpu.concatenate %57, %58 in 0 : vector<1x32xbf16>, vector<1x32xbf16> -> vector<2x32xbf16>
    %60 = vector.extract_strided_slice %34 {offsets = [51, 0], sizes = [1, 32], strides = [1, 1]} : vector<128x32xbf16> to vector<1x32xbf16>
    %61 = vector.extract_strided_slice %34 {offsets = [115, 0], sizes = [1, 32], strides = [1, 1]} : vector<128x32xbf16> to vector<1x32xbf16>
    %62 = tpu.concatenate %60, %61 in 0 : vector<1x32xbf16>, vector<1x32xbf16> -> vector<2x32xbf16>
    %63 = vector.extract_strided_slice %34 {offsets = [55, 0], sizes = [1, 32], strides = [1, 1]} : vector<128x32xbf16> to vector<1x32xbf16>
    %64 = vector.extract_strided_slice %34 {offsets = [119, 0], sizes = [1, 32], strides = [1, 1]} : vector<128x32xbf16> to vector<1x32xbf16>
    %65 = tpu.concatenate %63, %64 in 0 : vector<1x32xbf16>, vector<1x32xbf16> -> vector<2x32xbf16>
    %66 = tpu.concatenate %56, %59, %62, %65 in 1 : vector<2x32xbf16>, vector<2x32xbf16>, vector<2x32xbf16>, vector<2x32xbf16> -> vector<2x128xbf16>
    %c1_19 = arith.constant 1 : index
    %c0_20 = arith.constant 0 : index
    %c0_21 = arith.constant 0 : index
    %67 = vector.load %arg5[%c1_19, %c0_20, %c0_21] : memref<4x128x64xbf16, #tpu.memory_space<vmem>>, vector<1x128x64xbf16>
    %68 = vector.shape_cast %67 : vector<1x128x64xbf16> to vector<128x64xbf16>
    %cst_22 = arith.constant dense<0.000000e+00> : vector<2x64xf32>
    %69 = tpu.matmul %66, %68, %cst_22 {dimension_numbers = #tpu.dot_dimension_numbers<[1], [0], [0], [1], [0, 0, 1, 1], [], []>} : vector<2x128xbf16>, vector<128x64xbf16>, vector<2x64xf32> -> vector<2x64xf32>
    %70 = arith.maximumf %56, %59 : vector<2x32xbf16>
    %71 = arith.maximumf %62, %65 : vector<2x32xbf16>
    %72 = arith.maximumf %70, %71 : vector<2x32xbf16>
    %73 = vector.extract_strided_slice %34 {offsets = [26, 0], sizes = [1, 32], strides = [1, 1]} : vector<128x32xbf16> to vector<1x32xbf16>
    %74 = vector.extract_strided_slice %34 {offsets = [90, 0], sizes = [1, 32], strides = [1, 1]} : vector<128x32xbf16> to vector<1x32xbf16>
    %75 = tpu.concatenate %73, %74 in 0 : vector<1x32xbf16>, vector<1x32xbf16> -> vector<2x32xbf16>
    %76 = vector.extract_strided_slice %34 {offsets = [30, 0], sizes = [1, 32], strides = [1, 1]} : vector<128x32xbf16> to vector<1x32xbf16>
    %77 = vector.extract_strided_slice %34 {offsets = [94, 0], sizes = [1, 32], strides = [1, 1]} : vector<128x32xbf16> to vector<1x32xbf16>
    %78 = tpu.concatenate %76, %77 in 0 : vector<1x32xbf16>, vector<1x32xbf16> -> vector<2x32xbf16>
    %79 = vector.extract_strided_slice %34 {offsets = [58, 0], sizes = [1, 32], strides = [1, 1]} : vector<128x32xbf16> to vector<1x32xbf16>
    %80 = vector.extract_strided_slice %34 {offsets = [122, 0], sizes = [1, 32], strides = [1, 1]} : vector<128x32xbf16> to vector<1x32xbf16>
    %81 = tpu.concatenate %79, %80 in 0 : vector<1x32xbf16>, vector<1x32xbf16> -> vector<2x32xbf16>
    %82 = vector.extract_strided_slice %34 {offsets = [62, 0], sizes = [1, 32], strides = [1, 1]} : vector<128x32xbf16> to vector<1x32xbf16>
    %83 = vector.extract_strided_slice %34 {offsets = [126, 0], sizes = [1, 32], strides = [1, 1]} : vector<128x32xbf16> to vector<1x32xbf16>
    %84 = tpu.concatenate %82, %83 in 0 : vector<1x32xbf16>, vector<1x32xbf16> -> vector<2x32xbf16>
    %85 = tpu.concatenate %75, %78, %81, %84 in 1 : vector<2x32xbf16>, vector<2x32xbf16>, vector<2x32xbf16>, vector<2x32xbf16> -> vector<2x128xbf16>
    %c2 = arith.constant 2 : index
    %c0_23 = arith.constant 0 : index
    %c0_24 = arith.constant 0 : index
    %86 = vector.load %arg5[%c2, %c0_23, %c0_24] : memref<4x128x64xbf16, #tpu.memory_space<vmem>>, vector<1x128x64xbf16>
    %87 = vector.shape_cast %86 : vector<1x128x64xbf16> to vector<128x64xbf16>
    %cst_25 = arith.constant dense<0.000000e+00> : vector<2x64xf32>
    %88 = tpu.matmul %85, %87, %cst_25 {dimension_numbers = #tpu.dot_dimension_numbers<[1], [0], [0], [1], [0, 0, 1, 1], [], []>} : vector<2x128xbf16>, vector<128x64xbf16>, vector<2x64xf32> -> vector<2x64xf32>
    %89 = arith.maximumf %75, %78 : vector<2x32xbf16>
    %90 = arith.maximumf %81, %84 : vector<2x32xbf16>
    %91 = arith.maximumf %89, %90 : vector<2x32xbf16>
    %92 = vector.extract_strided_slice %34 {offsets = [27, 0], sizes = [1, 32], strides = [1, 1]} : vector<128x32xbf16> to vector<1x32xbf16>
    %93 = vector.extract_strided_slice %34 {offsets = [91, 0], sizes = [1, 32], strides = [1, 1]} : vector<128x32xbf16> to vector<1x32xbf16>
    %94 = tpu.concatenate %92, %93 in 0 : vector<1x32xbf16>, vector<1x32xbf16> -> vector<2x32xbf16>
    %95 = vector.extract_strided_slice %34 {offsets = [31, 0], sizes = [1, 32], strides = [1, 1]} : vector<128x32xbf16> to vector<1x32xbf16>
    %96 = vector.extract_strided_slice %34 {offsets = [95, 0], sizes = [1, 32], strides = [1, 1]} : vector<128x32xbf16> to vector<1x32xbf16>
    %97 = tpu.concatenate %95, %96 in 0 : vector<1x32xbf16>, vector<1x32xbf16> -> vector<2x32xbf16>
    %98 = vector.extract_strided_slice %34 {offsets = [59, 0], sizes = [1, 32], strides = [1, 1]} : vector<128x32xbf16> to vector<1x32xbf16>
    %99 = vector.extract_strided_slice %34 {offsets = [123, 0], sizes = [1, 32], strides = [1, 1]} : vector<128x32xbf16> to vector<1x32xbf16>
    %100 = tpu.concatenate %98, %99 in 0 : vector<1x32xbf16>, vector<1x32xbf16> -> vector<2x32xbf16>
    %101 = vector.extract_strided_slice %34 {offsets = [63, 0], sizes = [1, 32], strides = [1, 1]} : vector<128x32xbf16> to vector<1x32xbf16>
    %102 = vector.extract_strided_slice %34 {offsets = [127, 0], sizes = [1, 32], strides = [1, 1]} : vector<128x32xbf16> to vector<1x32xbf16>
    %103 = tpu.concatenate %101, %102 in 0 : vector<1x32xbf16>, vector<1x32xbf16> -> vector<2x32xbf16>
    %104 = tpu.concatenate %94, %97, %100, %103 in 1 : vector<2x32xbf16>, vector<2x32xbf16>, vector<2x32xbf16>, vector<2x32xbf16> -> vector<2x128xbf16>
    %c3 = arith.constant 3 : index
    %c0_26 = arith.constant 0 : index
    %c0_27 = arith.constant 0 : index
    %105 = vector.load %arg5[%c3, %c0_26, %c0_27] : memref<4x128x64xbf16, #tpu.memory_space<vmem>>, vector<1x128x64xbf16>
    %106 = vector.shape_cast %105 : vector<1x128x64xbf16> to vector<128x64xbf16>
    %cst_28 = arith.constant dense<0.000000e+00> : vector<2x64xf32>
    %107 = tpu.matmul %104, %106, %cst_28 {dimension_numbers = #tpu.dot_dimension_numbers<[1], [0], [0], [1], [0, 0, 1, 1], [], []>} : vector<2x128xbf16>, vector<128x64xbf16>, vector<2x64xf32> -> vector<2x64xf32>
    %108 = arith.maximumf %94, %97 : vector<2x32xbf16>
    %109 = arith.maximumf %100, %103 : vector<2x32xbf16>
    %110 = arith.maximumf %108, %109 : vector<2x32xbf16>
    %111 = tpu.concatenate %50, %69, %88, %107 in 0 : vector<2x64xf32>, vector<2x64xf32>, vector<2x64xf32>, vector<2x64xf32> -> vector<8x64xf32>
    %112 = tpu.concatenate %53, %72, %91, %110 in 0 : vector<2x32xbf16>, vector<2x32xbf16>, vector<2x32xbf16>, vector<2x32xbf16> -> vector<8x32xbf16>
    %113 = tpu.iota {dimensions = array<i32: 0>} : vector<32x64xi32>
    %114 = tpu.iota {dimensions = array<i32: 1>} : vector<32x64xi32>
    %c2_i32 = arith.constant 2 : i32
    %115 = vector.broadcast %c2_i32 : i32 to vector<32x64xi32>
    %116 = arith.muli %115, %113 : vector<32x64xi32>
    %117 = arith.cmpi eq, %114, %116 : vector<32x64xi32>
    %c2_i32_29 = arith.constant 2 : i32
    %118 = vector.broadcast %c2_i32_29 : i32 to vector<32x64xi32>
    %119 = arith.muli %118, %113 : vector<32x64xi32>
    %c1_i32 = arith.constant 1 : i32
    %120 = vector.broadcast %c1_i32 : i32 to vector<32x64xi32>
    %121 = arith.addi %119, %120 : vector<32x64xi32>
    %122 = arith.cmpi eq, %114, %121 : vector<32x64xi32>
    %123 = arith.ori %117, %122 : vector<32x64xi1>
    %124 = arith.extui %123 : vector<32x64xi1> to vector<32x64xi32>
    %125 = arith.sitofp %124 : vector<32x64xi32> to vector<32x64xf32>
    %126 = arith.truncf %125 : vector<32x64xf32> to vector<32x64xbf16>
    %cst_30 = arith.constant dense<0.000000e+00> : vector<8x64xf32>
    %127 = tpu.matmul %112, %126, %cst_30 {dimension_numbers = #tpu.dot_dimension_numbers<[1], [0], [0], [1], [0, 0, 1, 1], [], []>} : vector<8x32xbf16>, vector<32x64xbf16>, vector<8x64xf32> -> vector<8x64xf32>
    %cst_31 = arith.constant dense<0.000000e+00> : vector<64xf32>
    %128 = vector.multi_reduction <add>, %111, %cst_31 [0] : vector<8x64xf32> to vector<64xf32>
    %129 = vector.shape_cast %128 : vector<64xf32> to vector<1x64xf32>
    %cst_32 = arith.constant 8.000000e+00 : f32
    %130 = vector.broadcast %cst_32 : f32 to vector<1x64xf32>
    %131 = arith.divf %129, %130 : vector<1x64xf32>
    %132 = vector.broadcast %131 : vector<1x64xf32> to vector<8x64xf32>
    %133 = arith.subf %111, %132 : vector<8x64xf32>
    %134 = arith.mulf %133, %133 : vector<8x64xf32>
    %cst_33 = arith.constant dense<0.000000e+00> : vector<64xf32>
    %135 = vector.multi_reduction <add>, %134, %cst_33 [0] : vector<8x64xf32> to vector<64xf32>
    %136 = vector.shape_cast %135 : vector<64xf32> to vector<1x64xf32>
    %cst_34 = arith.constant 8.000000e+00 : f32
    %137 = vector.broadcast %cst_34 : f32 to vector<1x64xf32>
    %138 = arith.divf %136, %137 : vector<1x64xf32>
    %cst_35 = arith.constant 9.99999974E-6 : f32
    %139 = vector.broadcast %cst_35 : f32 to vector<1x64xf32>
    %140 = arith.addf %138, %139 : vector<1x64xf32>
    %141 = math.rsqrt %140 : vector<1x64xf32>
    %142 = vector.broadcast %141 : vector<1x64xf32> to vector<8x64xf32>
    %143 = arith.mulf %133, %142 : vector<8x64xf32>
    %c0_36 = arith.constant 0 : index
    %c0_37 = arith.constant 0 : index
    %144 = vector.load %arg6[%c0_36, %c0_37] : memref<2x64xf32, #tpu.memory_space<vmem>>, vector<1x64xf32>
    %145 = vector.broadcast %144 : vector<1x64xf32> to vector<8x64xf32>
    %146 = arith.mulf %143, %145 : vector<8x64xf32>
    %c1_38 = arith.constant 1 : index
    %c0_39 = arith.constant 0 : index
    %147 = vector.load %arg6[%c1_38, %c0_39] : memref<2x64xf32, #tpu.memory_space<vmem>>, vector<1x64xf32>
    %148 = vector.broadcast %147 : vector<1x64xf32> to vector<8x64xf32>
    %149 = arith.addf %146, %148 : vector<8x64xf32>
    %150 = arith.addf %149, %127 : vector<8x64xf32>
    %cst_40 = arith.constant 5.000000e-01 : f32
    %151 = vector.broadcast %cst_40 : f32 to vector<8x64xf32>
    %152 = arith.mulf %150, %151 : vector<8x64xf32>
    %cst_41 = arith.constant 1.000000e+00 : f32
    %153 = vector.broadcast %cst_41 : f32 to vector<8x64xf32>
    %154 = arith.cmpf oge, %152, %153 : vector<8x64xf32>
    %155 = arith.extui %154 : vector<8x64xi1> to vector<8x64xi32>
    %156 = arith.sitofp %155 : vector<8x64xi32> to vector<8x64xf32>
    %157 = arith.truncf %156 : vector<8x64xf32> to vector<8x64xbf16>
    %158 = vector.extract_strided_slice %157 {offsets = [0, 0], sizes = [2, 64], strides = [1, 1]} : vector<8x64xbf16> to vector<2x64xbf16>
    %c0_42 = arith.constant 0 : index
    %c0_43 = arith.constant 0 : index
    %159 = vector.load %arg7[%c0_42, %c0_43] : memref<64x128xbf16, #tpu.memory_space<vmem>>, vector<64x128xbf16>
    %cst_44 = arith.constant dense<0.000000e+00> : vector<2x128xf32>
    %160 = tpu.matmul %158, %159, %cst_44 {dimension_numbers = #tpu.dot_dimension_numbers<[1], [0], [0], [1], [0, 0, 1, 1], [], []>} : vector<2x64xbf16>, vector<64x128xbf16>, vector<2x128xf32> -> vector<2x128xf32>
    %161 = tpu.iota {dimensions = array<i32: 0>} : vector<64x128xi32>
    %162 = tpu.iota {dimensions = array<i32: 1>} : vector<64x128xi32>
    %c2_i32_45 = arith.constant 2 : i32
    %163 = vector.broadcast %c2_i32_45 : i32 to vector<64x128xi32>
    %164 = arith.muli %163, %161 : vector<64x128xi32>
    %165 = arith.cmpi eq, %162, %164 : vector<64x128xi32>
    %c2_i32_46 = arith.constant 2 : i32
    %166 = vector.broadcast %c2_i32_46 : i32 to vector<64x128xi32>
    %167 = arith.muli %166, %161 : vector<64x128xi32>
    %c1_i32_47 = arith.constant 1 : i32
    %168 = vector.broadcast %c1_i32_47 : i32 to vector<64x128xi32>
    %169 = arith.addi %167, %168 : vector<64x128xi32>
    %170 = arith.cmpi eq, %162, %169 : vector<64x128xi32>
    %171 = arith.ori %165, %170 : vector<64x128xi1>
    %172 = arith.extui %171 : vector<64x128xi1> to vector<64x128xi32>
    %173 = arith.sitofp %172 : vector<64x128xi32> to vector<64x128xf32>
    %174 = arith.truncf %173 : vector<64x128xf32> to vector<64x128xbf16>
    %cst_48 = arith.constant dense<0.000000e+00> : vector<2x128xf32>
    %175 = tpu.matmul %158, %174, %cst_48 {dimension_numbers = #tpu.dot_dimension_numbers<[1], [0], [0], [1], [0, 0, 1, 1], [], []>} : vector<2x64xbf16>, vector<64x128xbf16>, vector<2x128xf32> -> vector<2x128xf32>
    %cst_49 = arith.constant dense<0.000000e+00> : vector<128xf32>
    %176 = vector.multi_reduction <add>, %160, %cst_49 [0] : vector<2x128xf32> to vector<128xf32>
    %177 = vector.shape_cast %176 : vector<128xf32> to vector<1x128xf32>
    %cst_50 = arith.constant 2.000000e+00 : f32
    %178 = vector.broadcast %cst_50 : f32 to vector<1x128xf32>
    %179 = arith.divf %177, %178 : vector<1x128xf32>
    %180 = vector.broadcast %179 : vector<1x128xf32> to vector<2x128xf32>
    %181 = arith.subf %160, %180 : vector<2x128xf32>
    %182 = arith.mulf %181, %181 : vector<2x128xf32>
    %cst_51 = arith.constant dense<0.000000e+00> : vector<128xf32>
    %183 = vector.multi_reduction <add>, %182, %cst_51 [0] : vector<2x128xf32> to vector<128xf32>
    %184 = vector.shape_cast %183 : vector<128xf32> to vector<1x128xf32>
    %cst_52 = arith.constant 2.000000e+00 : f32
    %185 = vector.broadcast %cst_52 : f32 to vector<1x128xf32>
    %186 = arith.divf %184, %185 : vector<1x128xf32>
    %cst_53 = arith.constant 9.99999974E-6 : f32
    %187 = vector.broadcast %cst_53 : f32 to vector<1x128xf32>
    %188 = arith.addf %186, %187 : vector<1x128xf32>
    %189 = math.rsqrt %188 : vector<1x128xf32>
    %190 = vector.broadcast %189 : vector<1x128xf32> to vector<2x128xf32>
    %191 = arith.mulf %181, %190 : vector<2x128xf32>
    %c0_54 = arith.constant 0 : index
    %c0_55 = arith.constant 0 : index
    %192 = vector.load %arg8[%c0_54, %c0_55] : memref<2x128xf32, #tpu.memory_space<vmem>>, vector<1x128xf32>
    %193 = vector.broadcast %192 : vector<1x128xf32> to vector<2x128xf32>
    %194 = arith.mulf %191, %193 : vector<2x128xf32>
    %c1_56 = arith.constant 1 : index
    %c0_57 = arith.constant 0 : index
    %195 = vector.load %arg8[%c1_56, %c0_57] : memref<2x128xf32, #tpu.memory_space<vmem>>, vector<1x128xf32>
    %196 = vector.broadcast %195 : vector<1x128xf32> to vector<2x128xf32>
    %197 = arith.addf %194, %196 : vector<2x128xf32>
    %198 = arith.addf %197, %175 : vector<2x128xf32>
    %cst_58 = arith.constant 5.000000e-01 : f32
    %199 = vector.broadcast %cst_58 : f32 to vector<2x128xf32>
    %200 = arith.mulf %198, %199 : vector<2x128xf32>
    %cst_59 = arith.constant 1.000000e+00 : f32
    %201 = vector.broadcast %cst_59 : f32 to vector<2x128xf32>
    %202 = arith.cmpf oge, %200, %201 : vector<2x128xf32>
    %203 = arith.extui %202 : vector<2x128xi1> to vector<2x128xi32>
    %204 = arith.sitofp %203 : vector<2x128xi32> to vector<2x128xf32>
    %205 = arith.truncf %204 : vector<2x128xf32> to vector<2x128xbf16>
    %c0_60 = arith.constant 0 : index
    %c0_61 = arith.constant 0 : index
    %206 = vector.load %arg9[%c0_60, %c0_61] : memref<128x128xbf16, #tpu.memory_space<vmem>>, vector<128x128xbf16>
    %cst_62 = arith.constant dense<0.000000e+00> : vector<2x128xf32>
    %207 = tpu.matmul %205, %206, %cst_62 {dimension_numbers = #tpu.dot_dimension_numbers<[1], [0], [0], [1], [0, 0, 1, 1], [], []>} : vector<2x128xbf16>, vector<128x128xbf16>, vector<2x128xf32> -> vector<2x128xf32>
    %208 = arith.extf %205 : vector<2x128xbf16> to vector<2x128xf32>
    %cst_63 = arith.constant dense<0.000000e+00> : vector<128xf32>
    %209 = vector.multi_reduction <add>, %207, %cst_63 [0] : vector<2x128xf32> to vector<128xf32>
    %210 = vector.shape_cast %209 : vector<128xf32> to vector<1x128xf32>
    %cst_64 = arith.constant 2.000000e+00 : f32
    %211 = vector.broadcast %cst_64 : f32 to vector<1x128xf32>
    %212 = arith.divf %210, %211 : vector<1x128xf32>
    %213 = vector.broadcast %212 : vector<1x128xf32> to vector<2x128xf32>
    %214 = arith.subf %207, %213 : vector<2x128xf32>
    %215 = arith.mulf %214, %214 : vector<2x128xf32>
    %cst_65 = arith.constant dense<0.000000e+00> : vector<128xf32>
    %216 = vector.multi_reduction <add>, %215, %cst_65 [0] : vector<2x128xf32> to vector<128xf32>
    %217 = vector.shape_cast %216 : vector<128xf32> to vector<1x128xf32>
    %cst_66 = arith.constant 2.000000e+00 : f32
    %218 = vector.broadcast %cst_66 : f32 to vector<1x128xf32>
    %219 = arith.divf %217, %218 : vector<1x128xf32>
    %cst_67 = arith.constant 9.99999974E-6 : f32
    %220 = vector.broadcast %cst_67 : f32 to vector<1x128xf32>
    %221 = arith.addf %219, %220 : vector<1x128xf32>
    %222 = math.rsqrt %221 : vector<1x128xf32>
    %223 = vector.broadcast %222 : vector<1x128xf32> to vector<2x128xf32>
    %224 = arith.mulf %214, %223 : vector<2x128xf32>
    %c0_68 = arith.constant 0 : index
    %c0_69 = arith.constant 0 : index
    %225 = vector.load %arg10[%c0_68, %c0_69] : memref<2x128xf32, #tpu.memory_space<vmem>>, vector<1x128xf32>
    %226 = vector.broadcast %225 : vector<1x128xf32> to vector<2x128xf32>
    %227 = arith.mulf %224, %226 : vector<2x128xf32>
    %c1_70 = arith.constant 1 : index
    %c0_71 = arith.constant 0 : index
    %228 = vector.load %arg10[%c1_70, %c0_71] : memref<2x128xf32, #tpu.memory_space<vmem>>, vector<1x128xf32>
    %229 = vector.broadcast %228 : vector<1x128xf32> to vector<2x128xf32>
    %230 = arith.addf %227, %229 : vector<2x128xf32>
    %231 = arith.addf %230, %208 : vector<2x128xf32>
    %cst_72 = arith.constant 5.000000e-01 : f32
    %232 = vector.broadcast %cst_72 : f32 to vector<2x128xf32>
    %233 = arith.mulf %231, %232 : vector<2x128xf32>
    %cst_73 = arith.constant 1.000000e+00 : f32
    %234 = vector.broadcast %cst_73 : f32 to vector<2x128xf32>
    %235 = arith.cmpf oge, %233, %234 : vector<2x128xf32>
    %236 = arith.extui %235 : vector<2x128xi1> to vector<2x128xi32>
    %237 = arith.sitofp %236 : vector<2x128xi32> to vector<2x128xf32>
    %238 = arith.truncf %237 : vector<2x128xf32> to vector<2x128xbf16>
    %239 = arith.extf %238 : vector<2x128xbf16> to vector<2x128xf32>
    %c0_74 = arith.constant 0 : index
    %c0_75 = arith.constant 0 : index
    %240 = vector.load %arg11[%c0_74, %c0_75] : memref<2x128xf32, #tpu.memory_space<vmem>>, vector<2x128xf32>
    tpu.vector_store %arg11[%c0_74, %c0_75], %239 {strides = array<i32>} : memref<2x128xf32, #tpu.memory_space<vmem>>, vector<2x128xf32>,
    return
  }
  func.func @transform_0(%arg0: i32) -> (i32, i32) {
    %c0_i32 = arith.constant 0 : i32
    %c0_i32_0 = arith.constant 0 : i32
    %c0_i32_1 = arith.constant 0 : i32
    return %c0_i32, %c0_i32_0 : i32, i32
  }
  func.func @transform_1(%arg0: i32) -> (i32, i32) {
    %c0_i32 = arith.constant 0 : i32
    %c0_i32_0 = arith.constant 0 : i32
    %c0_i32_1 = arith.constant 0 : i32
    return %c0_i32, %c0_i32_0 : i32, i32
  }
  func.func @transform_2(%arg0: i32) -> (i32, i32) {
    %c0_i32 = arith.constant 0 : i32
    %c0_i32_0 = arith.constant 0 : i32
    %c0_i32_1 = arith.constant 0 : i32
    return %c0_i32, %c0_i32_0 : i32, i32
  }
  func.func @transform_3(%arg0: i32) -> (i32, i32) {
    %c0_i32 = arith.constant 0 : i32
    %c0_i32_0 = arith.constant 0 : i32
    %c0_i32_1 = arith.constant 0 : i32
    return %c0_i32, %c0_i32_0 : i32, i32
  }
  func.func @transform_4(%arg0: i32) -> (i32, i32, i32) {
    %c0_i32 = arith.constant 0 : i32
    %c0_i32_0 = arith.constant 0 : i32
    %c0_i32_1 = arith.constant 0 : i32
    %c0_i32_2 = arith.constant 0 : i32
    return %c0_i32, %c0_i32_0, %c0_i32_1 : i32, i32, i32
  }
  func.func @transform_5(%arg0: i32) -> (i32, i32) {
    %c0_i32 = arith.constant 0 : i32
    %c0_i32_0 = arith.constant 0 : i32
    %c0_i32_1 = arith.constant 0 : i32
    return %c0_i32, %c0_i32_0 : i32, i32
  }
  func.func @transform_6(%arg0: i32) -> (i32, i32) {
    %c0_i32 = arith.constant 0 : i32
    %c0_i32_0 = arith.constant 0 : i32
    %c0_i32_1 = arith.constant 0 : i32
    return %c0_i32, %c0_i32_0 : i32, i32
  }
  func.func @transform_7(%arg0: i32) -> (i32, i32) {
    %c0_i32 = arith.constant 0 : i32
    %c0_i32_0 = arith.constant 0 : i32
    %c0_i32_1 = arith.constant 0 : i32
    return %c0_i32, %c0_i32_0 : i32, i32
  }
  func.func @transform_8(%arg0: i32) -> (i32, i32) {
    %c0_i32 = arith.constant 0 : i32
    %c0_i32_0 = arith.constant 0 : i32
    %c0_i32_1 = arith.constant 0 : i32
    return %c0_i32, %c0_i32_0 : i32, i32
  }
  func.func @transform_9(%arg0: i32) -> (i32, i32) {
    %c0_i32 = arith.constant 0 : i32
    %c0_i32_0 = arith.constant 0 : i32
    %c0_i32_1 = arith.constant 0 : i32
    return %c0_i32, %c0_i32_0 : i32, i32
  }
  func.func @transform_10(%arg0: i32) -> (i32, i32) {
    %c0_i32 = arith.constant 0 : i32
    %c0_i32_0 = arith.constant 0 : i32
    %c0_i32_1 = arith.constant 0 : i32
    return %c0_i32, %c0_i32_0 : i32, i32
  }
}

</mosaic_0001>

<llo_original>
// kernel: temporal_conv_net.1
$region0: #{temporal_conv_net.1}
  #allocation0 [shape = 'u32[]', space=smem, size = 0x4, offset = 0x4, fixed_abs, tag = 'smem constant byte address 0x4 - core index']
  #allocation1 [shape = 'u32[144,128]{1,0:T(1,128)}', space=vmem, size = 0x12000, scoped, tag = 'internal scratch']
  %s0 = inlined_call_operand.vmem [shape: bf16[128,6400], index: 0, kind: input, shape index: {}]
  %s1 = inlined_call_operand.vmem [shape: bf16[128,32], index: 1, kind: input, shape index: {}]
  %s2 = inlined_call_operand.vmem [shape: bf16[6400,32], index: 2, kind: input, shape index: {}]
  %s3 = inlined_call_operand.vmem [shape: f32[2,32], index: 3, kind: input, shape index: {}]
  %s4 = inlined_call_operand.vmem [shape: bf16[4,128,64], index: 4, kind: input, shape index: {}]
  %s5 = inlined_call_operand.vmem [shape: f32[2,64], index: 5, kind: input, shape index: {}]
  %s6 = inlined_call_operand.vmem [shape: bf16[64,128], index: 6, kind: input, shape index: {}]
  %s7 = inlined_call_operand.vmem [shape: f32[2,128], index: 7, kind: input, shape index: {}]
  %s8 = inlined_call_operand.vmem [shape: bf16[128,128], index: 8, kind: input, shape index: {}]
  %s9 = inlined_call_operand.vmem [shape: f32[2,128], index: 9, kind: input, shape index: {}]
  %s10 = inlined_call_operand.hbm [shape: f32[2,128], index: 10, kind: output, shape index: {}]
  %s11 = sld [smem:[#allocation0]]
  $region50: #{temporal_conv_net.1} parent=0
    _
  %s13 = ssub.s32 1, %s11
  %s14 = scalar_select 0, %s13, %s11
  $region1: #{temporal_conv_net.1} parent=0
    #allocation2 [shape = 'u8[1024]{0}', space=vmem, size = 0x400, scoped, tag = 'output window, operand 0, single buffered']
    #allocation3 [shape = 's32[1]{0}', space=sflag, size = 0x4, scoped, tag = 'scoped memory for temporal_conv_net.1']
    %15 = vsyncpa [#allocation3], 0
    // Predicated region
    $region2: #{temporal_conv_net.1} parent=1 // pred_check
      _
    $region3: #{temporal_conv_net.1} parent=1 // pred_check_branch
      %17 = sbr.rel (0) target = $region5
    $region4: #{temporal_conv_net.1} parent=1 // pred_region
      _
    $region5: #{temporal_conv_net.1} parent=1 // pred_fallthru
      _
    // Predicated region
    $region6: #{temporal_conv_net.1} parent=1 // pred_check
      _
    $region7: #{temporal_conv_net.1} parent=1 // pred_check_branch
      %19 = sbr.rel (0) target = $region9
    $region8: #{temporal_conv_net.1} parent=1 // pred_region
      _
    $region9: #{temporal_conv_net.1} parent=1 // pred_fallthru
      _
    // Predicated region
    $region10: #{temporal_conv_net.1} parent=1 // pred_check
      _
    $region11: #{temporal_conv_net.1} parent=1 // pred_check_branch
      %21 = sbr.rel (0) target = $region13
    $region12: #{temporal_conv_net.1} parent=1 // pred_region
      _
    $region13: #{temporal_conv_net.1} parent=1 // pred_fallthru
      _
    // Predicated region
    $region14: #{temporal_conv_net.1} parent=1 // pred_check
      _
    $region15: #{temporal_conv_net.1} parent=1 // pred_check_branch
      %23 = sbr.rel (0) target = $region17
    $region16: #{temporal_conv_net.1} parent=1 // pred_region
      _
    $region17: #{temporal_conv_net.1} parent=1 // pred_fallthru
      _
    // Predicated region
    $region18: #{temporal_conv_net.1} parent=1 // pred_check
      _
    $region19: #{temporal_conv_net.1} parent=1 // pred_check_branch
      %25 = sbr.rel (0) target = $region21
    $region20: #{temporal_conv_net.1} parent=1 // pred_region
      _
    $region21: #{temporal_conv_net.1} parent=1 // pred_fallthru
      _
    // Predicated region
    $region22: #{temporal_conv_net.1} parent=1 // pred_check
      _
    $region23: #{temporal_conv_net.1} parent=1 // pred_check_branch
      %27 = sbr.rel (0) target = $region25
    $region24: #{temporal_conv_net.1} parent=1 // pred_region
      _
    $region25: #{temporal_conv_net.1} parent=1 // pred_fallthru
      _
    // Predicated region
    $region26: #{temporal_conv_net.1} parent=1 // pred_check
      _
    $region27: #{temporal_conv_net.1} parent=1 // pred_check_branch
      %29 = sbr.rel (0) target = $region29
    $region28: #{temporal_conv_net.1} parent=1 // pred_region
      _
    $region29: #{temporal_conv_net.1} parent=1 // pred_fallthru
      _
    // Predicated region
    $region30: #{temporal_conv_net.1} parent=1 // pred_check
      _
    $region31: #{temporal_conv_net.1} parent=1 // pred_check_branch
      %31 = sbr.rel (0) target = $region33
    $region32: #{temporal_conv_net.1} parent=1 // pred_region
      _
    $region33: #{temporal_conv_net.1} parent=1 // pred_fallthru
      _
    // Predicated region
    $region34: #{temporal_conv_net.1} parent=1 // pred_check
      _
    $region35: #{temporal_conv_net.1} parent=1 // pred_check_branch
      %33 = sbr.rel (0) target = $region37
    $region36: #{temporal_conv_net.1} parent=1 // pred_region
      _
    $region37: #{temporal_conv_net.1} parent=1 // pred_fallthru
      _
    // Predicated region
    $region38: #{temporal_conv_net.1} parent=1 // pred_check
      _
    $region39: #{temporal_conv_net.1} parent=1 // pred_check_branch
      %35 = sbr.rel (0) target = $region41
    $region40: #{temporal_conv_net.1} parent=1 // pred_region
      _
    $region41: #{temporal_conv_net.1} parent=1 // pred_fallthru
      _
    %v37 = vld [vmem:[%s0] sm:$0xff]
    %v38 = vld [vmem:[%s0 + $0x8] sm:$0xff]
    %v39 = vld [vmem:[%s0 + $0x10] sm:$0xff]
    %v40 = vld [vmem:[%s0 + $0x18] sm:$0xff]
    %v41 = vld [vmem:[%s0 + $0x20] sm:$0xff]
    %v42 = vld [vmem:[%s0 + $0x28] sm:$0xff]
    %v43 = vld [vmem:[%s0 + $0x30] sm:$0xff]
    %v44 = vld [vmem:[%s0 + $0x38] sm:$0xff]
    %v45 = vld [vmem:[%s0 + $0x40] sm:$0xff]
    %v46 = vld [vmem:[%s0 + $0x48] sm:$0xff]
    %v47 = vld [vmem:[%s0 + $0x50] sm:$0xff]
    %v48 = vld [vmem:[%s0 + $0x58] sm:$0xff]
    %v49 = vld [vmem:[%s0 + $0x60] sm:$0xff]
    %v50 = vld [vmem:[%s0 + $0x68] sm:$0xff]
    %v51 = vld [vmem:[%s0 + $0x70] sm:$0xff]
    %v52 = vld [vmem:[%s0 + $0x78] sm:$0xff]
    %v53 = vld [vmem:[%s0 + $0x80] sm:$0xff]
    %v54 = vld [vmem:[%s0 + $0x88] sm:$0xff]
    %v55 = vld [vmem:[%s0 + $0x90] sm:$0xff]
    %v56 = vld [vmem:[%s0 + $0x98] sm:$0xff]
    %v57 = vld [vmem:[%s0 + $0xa0] sm:$0xff]
    %v58 = vld [vmem:[%s0 + $0xa8] sm:$0xff]
    %v59 = vld [vmem:[%s0 + $0xb0] sm:$0xff]
    %v60 = vld [vmem:[%s0 + $0xb8] sm:$0xff]
    %v61 = vld [vmem:[%s0 + $0xc0] sm:$0xff]
    %v62 = vld [vmem:[%s0 + $0xc8] sm:$0xff]
    %v63 = vld [vmem:[%s0 + $0xd0] sm:$0xff]
    %v64 = vld [vmem:[%s0 + $0xd8] sm:$0xff]
    %v65 = vld [vmem:[%s0 + $0xe0] sm:$0xff]
    %v66 = vld [vmem:[%s0 + $0xe8] sm:$0xff]
    %v67 = vld [vmem:[%s0 + $0xf0] sm:$0xff]
    %v68 = vld [vmem:[%s0 + $0xf8] sm:$0xff]
    %v69 = vld [vmem:[%s0 + $0x100] sm:$0xff]
    %v70 = vld [vmem:[%s0 + $0x108] sm:$0xff]
    %v71 = vld [vmem:[%s0 + $0x110] sm:$0xff]
    %v72 = vld [vmem:[%s0 + $0x118] sm:$0xff]
    %v73 = vld [vmem:[%s0 + $0x120] sm:$0xff]
    %v74 = vld [vmem:[%s0 + $0x128] sm:$0xff]
    %v75 = vld [vmem:[%s0 + $0x130] sm:$0xff]
    %v76 = vld [vmem:[%s0 + $0x138] sm:$0xff]
    %v77 = vld [vmem:[%s0 + $0x140] sm:$0xff]
    %v78 = vld [vmem:[%s0 + $0x148] sm:$0xff]
    %v79 = vld [vmem:[%s0 + $0x150] sm:$0xff]
    %v80 = vld [vmem:[%s0 + $0x158] sm:$0xff]
    %v81 = vld [vmem:[%s0 + $0x160] sm:$0xff]
    %v82 = vld [vmem:[%s0 + $0x168] sm:$0xff]
    %v83 = vld [vmem:[%s0 + $0x170] sm:$0xff]
    %v84 = vld [vmem:[%s0 + $0x178] sm:$0xff]
    %v85 = vld [vmem:[%s0 + $0x180] sm:$0xff]
    %v86 = vld [vmem:[%s0 + $0x188] sm:$0xff]
    %v87 = vld [vmem:[%s0 + $0x190] sm:$0xff]
    %v88 = vld [vmem:[%s0 + $0x198] sm:$0xff]
    %v89 = vld [vmem:[%s0 + $0x1a0] sm:$0xff]
    %v90 = vld [vmem:[%s0 + $0x1a8] sm:$0xff]
    %v91 = vld [vmem:[%s0 + $0x1b0] sm:$0xff]
    %v92 = vld [vmem:[%s0 + $0x1b8] sm:$0xff]
    %v93 = vld [vmem:[%s0 + $0x1c0] sm:$0xff]
    %v94 = vld [vmem:[%s0 + $0x1c8] sm:$0xff]
    %v95 = vld [vmem:[%s0 + $0x1d0] sm:$0xff]
    %v96 = vld [vmem:[%s0 + $0x1d8] sm:$0xff]
    %v97 = vld [vmem:[%s0 + $0x1e0] sm:$0xff]
    %v98 = vld [vmem:[%s0 + $0x1e8] sm:$0xff]
    %v99 = vld [vmem:[%s0 + $0x1f0] sm:$0xff]
    %v100 = vld [vmem:[%s0 + $0x1f8] sm:$0xff]
    %v101 = vld [vmem:[%s0 + $0x200] sm:$0xff]
    %v102 = vld [vmem:[%s0 + $0x208] sm:$0xff]
    %v103 = vld [vmem:[%s0 + $0x210] sm:$0xff]
    %v104 = vld [vmem:[%s0 + $0x218] sm:$0xff]
    %v105 = vld [vmem:[%s0 + $0x220] sm:$0xff]
    %v106 = vld [vmem:[%s0 + $0x228] sm:$0xff]
    %v107 = vld [vmem:[%s0 + $0x230] sm:$0xff]
    %v108 = vld [vmem:[%s0 + $0x238] sm:$0xff]
    %v109 = vld [vmem:[%s0 + $0x240] sm:$0xff]
    %v110 = vld [vmem:[%s0 + $0x248] sm:$0xff]
    %v111 = vld [vmem:[%s0 + $0x250] sm:$0xff]
    %v112 = vld [vmem:[%s0 + $0x258] sm:$0xff]
    %v113 = vld [vmem:[%s0 + $0x260] sm:$0xff]
    %v114 = vld [vmem:[%s0 + $0x268] sm:$0xff]
    %v115 = vld [vmem:[%s0 + $0x270] sm:$0xff]
    %v116 = vld [vmem:[%s0 + $0x278] sm:$0xff]
    %v117 = vld [vmem:[%s0 + $0x280] sm:$0xff]
    %v118 = vld [vmem:[%s0 + $0x288] sm:$0xff]
    %v119 = vld [vmem:[%s0 + $0x290] sm:$0xff]
    %v120 = vld [vmem:[%s0 + $0x298] sm:$0xff]
    %v121 = vld [vmem:[%s0 + $0x2a0] sm:$0xff]
    %v122 = vld [vmem:[%s0 + $0x2a8] sm:$0xff]
    %v123 = vld [vmem:[%s0 + $0x2b0] sm:$0xff]
    %v124 = vld [vmem:[%s0 + $0x2b8] sm:$0xff]
    %v125 = vld [vmem:[%s0 + $0x2c0] sm:$0xff]
    %v126 = vld [vmem:[%s0 + $0x2c8] sm:$0xff]
    %v127 = vld [vmem:[%s0 + $0x2d0] sm:$0xff]
    %v128 = vld [vmem:[%s0 + $0x2d8] sm:$0xff]
    %v129 = vld [vmem:[%s0 + $0x2e0] sm:$0xff]
    %v130 = vld [vmem:[%s0 + $0x2e8] sm:$0xff]
    %v131 = vld [vmem:[%s0 + $0x2f0] sm:$0xff]
    %v132 = vld [vmem:[%s0 + $0x2f8] sm:$0xff]
    %v133 = vld [vmem:[%s0 + $0x300] sm:$0xff]
    %v134 = vld [vmem:[%s0 + $0x308] sm:$0xff]
    %v135 = vld [vmem:[%s0 + $0x310] sm:$0xff]
    %v136 = vld [vmem:[%s0 + $0x318] sm:$0xff]
    %v137 = vld [vmem:[%s0 + $0x320] sm:$0xff]
    %v138 = vld [vmem:[%s0 + $0x328] sm:$0xff]
    %v139 = vld [vmem:[%s0 + $0x330] sm:$0xff]
    %v140 = vld [vmem:[%s0 + $0x338] sm:$0xff]
    %v141 = vld [vmem:[%s0 + $0x340] sm:$0xff]
    %v142 = vld [vmem:[%s0 + $0x348] sm:$0xff]
    %v143 = vld [vmem:[%s0 + $0x350] sm:$0xff]
    %v144 = vld [vmem:[%s0 + $0x358] sm:$0xff]
    %v145 = vld [vmem:[%s0 + $0x360] sm:$0xff]
    %v146 = vld [vmem:[%s0 + $0x368] sm:$0xff]
    %v147 = vld [vmem:[%s0 + $0x370] sm:$0xff]
    %v148 = vld [vmem:[%s0 + $0x378] sm:$0xff]
    %v149 = vld [vmem:[%s0 + $0x380] sm:$0xff]
    %v150 = vld [vmem:[%s0 + $0x388] sm:$0xff]
    %v151 = vld [vmem:[%s0 + $0x390] sm:$0xff]
    %v152 = vld [vmem:[%s0 + $0x398] sm:$0xff]
    %v153 = vld [vmem:[%s0 + $0x3a0] sm:$0xff]
    %v154 = vld [vmem:[%s0 + $0x3a8] sm:$0xff]
    %v155 = vld [vmem:[%s0 + $0x3b0] sm:$0xff]
    %v156 = vld [vmem:[%s0 + $0x3b8] sm:$0xff]
    %v157 = vld [vmem:[%s0 + $0x3c0] sm:$0xff]
    %v158 = vld [vmem:[%s0 + $0x3c8] sm:$0xff]
    %v159 = vld [vmem:[%s0 + $0x3d0] sm:$0xff]
    %v160 = vld [vmem:[%s0 + $0x3d8] sm:$0xff]
    %v161 = vld [vmem:[%s0 + $0x3e0] sm:$0xff]
    %v162 = vld [vmem:[%s0 + $0x3e8] sm:$0xff]
    %v163 = vld [vmem:[%s0 + $0x3f0] sm:$0xff]
    %v164 = vld [vmem:[%s0 + $0x3f8] sm:$0xff]
    %v165 = vld [vmem:[%s0 + $0x400] sm:$0xff]
    %v166 = vld [vmem:[%s0 + $0x408] sm:$0xff]
    %v167 = vld [vmem:[%s0 + $0x410] sm:$0xff]
    %v168 = vld [vmem:[%s0 + $0x418] sm:$0xff]
    %v169 = vld [vmem:[%s0 + $0x420] sm:$0xff]
    %v170 = vld [vmem:[%s0 + $0x428] sm:$0xff]
    %v171 = vld [vmem:[%s0 + $0x430] sm:$0xff]
    %v172 = vld [vmem:[%s0 + $0x438] sm:$0xff]
    %v173 = vld [vmem:[%s0 + $0x440] sm:$0xff]
    %v174 = vld [vmem:[%s0 + $0x448] sm:$0xff]
    %v175 = vld [vmem:[%s0 + $0x450] sm:$0xff]
    %v176 = vld [vmem:[%s0 + $0x458] sm:$0xff]
    %v177 = vld [vmem:[%s0 + $0x460] sm:$0xff]
    %v178 = vld [vmem:[%s0 + $0x468] sm:$0xff]
    %v179 = vld [vmem:[%s0 + $0x470] sm:$0xff]
    %v180 = vld [vmem:[%s0 + $0x478] sm:$0xff]
    %v181 = vld [vmem:[%s0 + $0x480] sm:$0xff]
    %v182 = vld [vmem:[%s0 + $0x488] sm:$0xff]
    %v183 = vld [vmem:[%s0 + $0x490] sm:$0xff]
    %v184 = vld [vmem:[%s0 + $0x498] sm:$0xff]
    %v185 = vld [vmem:[%s0 + $0x4a0] sm:$0xff]
    %v186 = vld [vmem:[%s0 + $0x4a8] sm:$0xff]
    %v187 = vld [vmem:[%s0 + $0x4b0] sm:$0xff]
    %v188 = vld [vmem:[%s0 + $0x4b8] sm:$0xff]
    %v189 = vld [vmem:[%s0 + $0x4c0] sm:$0xff]
    %v190 = vld [vmem:[%s0 + $0x4c8] sm:$0xff]
    %v191 = vld [vmem:[%s0 + $0x4d0] sm:$0xff]
    %v192 = vld [vmem:[%s0 + $0x4d8] sm:$0xff]
    %v193 = vld [vmem:[%s0 + $0x4e0] sm:$0xff]
    %v194 = vld [vmem:[%s0 + $0x4e8] sm:$0xff]
    %v195 = vld [vmem:[%s0 + $0x4f0] sm:$0xff]
    %v196 = vld [vmem:[%s0 + $0x4f8] sm:$0xff]
    %v197 = vld [vmem:[%s0 + $0x500] sm:$0xff]
    %v198 = vld [vmem:[%s0 + $0x508] sm:$0xff]
    %v199 = vld [vmem:[%s0 + $0x510] sm:$0xff]
    %v200 = vld [vmem:[%s0 + $0x518] sm:$0xff]
    %v201 = vld [vmem:[%s0 + $0x520] sm:$0xff]
    %v202 = vld [vmem:[%s0 + $0x528] sm:$0xff]
    %v203 = vld [vmem:[%s0 + $0x530] sm:$0xff]
    %v204 = vld [vmem:[%s0 + $0x538] sm:$0xff]
    %v205 = vld [vmem:[%s0 + $0x540] sm:$0xff]
    %v206 = vld [vmem:[%s0 + $0x548] sm:$0xff]
    %v207 = vld [vmem:[%s0 + $0x550] sm:$0xff]
    %v208 = vld [vmem:[%s0 + $0x558] sm:$0xff]
    %v209 = vld [vmem:[%s0 + $0x560] sm:$0xff]
    %v210 = vld [vmem:[%s0 + $0x568] sm:$0xff]
    %v211 = vld [vmem:[%s0 + $0x570] sm:$0xff]
    %v212 = vld [vmem:[%s0 + $0x578] sm:$0xff]
    %v213 = vld [vmem:[%s0 + $0x580] sm:$0xff]
    %v214 = vld [vmem:[%s0 + $0x588] sm:$0xff]
    %v215 = vld [vmem:[%s0 + $0x590] sm:$0xff]
    %v216 = vld [vmem:[%s0 + $0x598] sm:$0xff]
    %v217 = vld [vmem:[%s0 + $0x5a0] sm:$0xff]
    %v218 = vld [vmem:[%s0 + $0x5a8] sm:$0xff]
    %v219 = vld [vmem:[%s0 + $0x5b0] sm:$0xff]
    %v220 = vld [vmem:[%s0 + $0x5b8] sm:$0xff]
    %v221 = vld [vmem:[%s0 + $0x5c0] sm:$0xff]
    %v222 = vld [vmem:[%s0 + $0x5c8] sm:$0xff]
    %v223 = vld [vmem:[%s0 + $0x5d0] sm:$0xff]
    %v224 = vld [vmem:[%s0 + $0x5d8] sm:$0xff]
    %v225 = vld [vmem:[%s0 + $0x5e0] sm:$0xff]
    %v226 = vld [vmem:[%s0 + $0x5e8] sm:$0xff]
    %v227 = vld [vmem:[%s0 + $0x5f0] sm:$0xff]
    %v228 = vld [vmem:[%s0 + $0x5f8] sm:$0xff]
    %v229 = vld [vmem:[%s0 + $0x600] sm:$0xff]
    %v230 = vld [vmem:[%s0 + $0x608] sm:$0xff]
    %v231 = vld [vmem:[%s0 + $0x610] sm:$0xff]
    %v232 = vld [vmem:[%s0 + $0x618] sm:$0xff]
    %v233 = vld [vmem:[%s0 + $0x620] sm:$0xff]
    %v234 = vld [vmem:[%s0 + $0x628] sm:$0xff]
    %v235 = vld [vmem:[%s0 + $0x630] sm:$0xff]
    %v236 = vld [vmem:[%s0 + $0x638] sm:$0xff]
    %v237 = vld [vmem:[%s0 + $0x640] sm:$0xff]
    %v238 = vld [vmem:[%s0 + $0x648] sm:$0xff]
    %v239 = vld [vmem:[%s0 + $0x650] sm:$0xff]
    %v240 = vld [vmem:[%s0 + $0x658] sm:$0xff]
    %v241 = vld [vmem:[%s0 + $0x660] sm:$0xff]
    %v242 = vld [vmem:[%s0 + $0x668] sm:$0xff]
    %v243 = vld [vmem:[%s0 + $0x670] sm:$0xff]
    %v244 = vld [vmem:[%s0 + $0x678] sm:$0xff]
    %v245 = vld [vmem:[%s0 + $0x680] sm:$0xff]
    %v246 = vld [vmem:[%s0 + $0x688] sm:$0xff]
    %v247 = vld [vmem:[%s0 + $0x690] sm:$0xff]
    %v248 = vld [vmem:[%s0 + $0x698] sm:$0xff]
    %v249 = vld [vmem:[%s0 + $0x6a0] sm:$0xff]
    %v250 = vld [vmem:[%s0 + $0x6a8] sm:$0xff]
    %v251 = vld [vmem:[%s0 + $0x6b0] sm:$0xff]
    %v252 = vld [vmem:[%s0 + $0x6b8] sm:$0xff]
    %v253 = vld [vmem:[%s0 + $0x6c0] sm:$0xff]
    %v254 = vld [vmem:[%s0 + $0x6c8] sm:$0xff]
    %v255 = vld [vmem:[%s0 + $0x6d0] sm:$0xff]
    %v256 = vld [vmem:[%s0 + $0x6d8] sm:$0xff]
    %v257 = vld [vmem:[%s0 + $0x6e0] sm:$0xff]
    %v258 = vld [vmem:[%s0 + $0x6e8] sm:$0xff]
    %v259 = vld [vmem:[%s0 + $0x6f0] sm:$0xff]
    %v260 = vld [vmem:[%s0 + $0x6f8] sm:$0xff]
    %v261 = vld [vmem:[%s0 + $0x700] sm:$0xff]
    %v262 = vld [vmem:[%s0 + $0x708] sm:$0xff]
    %v263 = vld [vmem:[%s0 + $0x710] sm:$0xff]
    %v264 = vld [vmem:[%s0 + $0x718] sm:$0xff]
    %v265 = vld [vmem:[%s0 + $0x720] sm:$0xff]
    %v266 = vld [vmem:[%s0 + $0x728] sm:$0xff]
    %v267 = vld [vmem:[%s0 + $0x730] sm:$0xff]
    %v268 = vld [vmem:[%s0 + $0x738] sm:$0xff]
    %v269 = vld [vmem:[%s0 + $0x740] sm:$0xff]
    %v270 = vld [vmem:[%s0 + $0x748] sm:$0xff]
    %v271 = vld [vmem:[%s0 + $0x750] sm:$0xff]
    %v272 = vld [vmem:[%s0 + $0x758] sm:$0xff]
    %v273 = vld [vmem:[%s0 + $0x760] sm:$0xff]
    %v274 = vld [vmem:[%s0 + $0x768] sm:$0xff]
    %v275 = vld [vmem:[%s0 + $0x770] sm:$0xff]
    %v276 = vld [vmem:[%s0 + $0x778] sm:$0xff]
    %v277 = vld [vmem:[%s0 + $0x780] sm:$0xff]
    %v278 = vld [vmem:[%s0 + $0x788] sm:$0xff]
    %v279 = vld [vmem:[%s0 + $0x790] sm:$0xff]
    %v280 = vld [vmem:[%s0 + $0x798] sm:$0xff]
    %v281 = vld [vmem:[%s0 + $0x7a0] sm:$0xff]
    %v282 = vld [vmem:[%s0 + $0x7a8] sm:$0xff]
    %v283 = vld [vmem:[%s0 + $0x7b0] sm:$0xff]
    %v284 = vld [vmem:[%s0 + $0x7b8] sm:$0xff]
    %v285 = vld [vmem:[%s0 + $0x7c0] sm:$0xff]
    %v286 = vld [vmem:[%s0 + $0x7c8] sm:$0xff]
    %v287 = vld [vmem:[%s0 + $0x7d0] sm:$0xff]
    %v288 = vld [vmem:[%s0 + $0x7d8] sm:$0xff]
    %v289 = vld [vmem:[%s0 + $0x7e0] sm:$0xff]
    %v290 = vld [vmem:[%s0 + $0x7e8] sm:$0xff]
    %v291 = vld [vmem:[%s0 + $0x7f0] sm:$0xff]
    %v292 = vld [vmem:[%s0 + $0x7f8] sm:$0xff]
    %v293 = vld [vmem:[%s0 + $0x800] sm:$0xff]
    %v294 = vld [vmem:[%s0 + $0x808] sm:$0xff]
    %v295 = vld [vmem:[%s0 + $0x810] sm:$0xff]
    %v296 = vld [vmem:[%s0 + $0x818] sm:$0xff]
    %v297 = vld [vmem:[%s0 + $0x820] sm:$0xff]
    %v298 = vld [vmem:[%s0 + $0x828] sm:$0xff]
    %v299 = vld [vmem:[%s0 + $0x830] sm:$0xff]
    %v300 = vld [vmem:[%s0 + $0x838] sm:$0xff]
    %v301 = vld [vmem:[%s0 + $0x840] sm:$0xff]
    %v302 = vld [vmem:[%s0 + $0x848] sm:$0xff]
    %v303 = vld [vmem:[%s0 + $0x850] sm:$0xff]
    %v304 = vld [vmem:[%s0 + $0x858] sm:$0xff]
    %v305 = vld [vmem:[%s0 + $0x860] sm:$0xff]
    %v306 = vld [vmem:[%s0 + $0x868] sm:$0xff]
    %v307 = vld [vmem:[%s0 + $0x870] sm:$0xff]
    %v308 = vld [vmem:[%s0 + $0x878] sm:$0xff]
    %v309 = vld [vmem:[%s0 + $0x880] sm:$0xff]
    %v310 = vld [vmem:[%s0 + $0x888] sm:$0xff]
    %v311 = vld [vmem:[%s0 + $0x890] sm:$0xff]
    %v312 = vld [vmem:[%s0 + $0x898] sm:$0xff]
    %v313 = vld [vmem:[%s0 + $0x8a0] sm:$0xff]
    %v314 = vld [vmem:[%s0 + $0x8a8] sm:$0xff]
    %v315 = vld [vmem:[%s0 + $0x8b0] sm:$0xff]
    %v316 = vld [vmem:[%s0 + $0x8b8] sm:$0xff]
    %v317 = vld [vmem:[%s0 + $0x8c0] sm:$0xff]
    %v318 = vld [vmem:[%s0 + $0x8c8] sm:$0xff]
    %v319 = vld [vmem:[%s0 + $0x8d0] sm:$0xff]
    %v320 = vld [vmem:[%s0 + $0x8d8] sm:$0xff]
    %v321 = vld [vmem:[%s0 + $0x8e0] sm:$0xff]
    %v322 = vld [vmem:[%s0 + $0x8e8] sm:$0xff]
    %v323 = vld [vmem:[%s0 + $0x8f0] sm:$0xff]
    %v324 = vld [vmem:[%s0 + $0x8f8] sm:$0xff]
    %v325 = vld [vmem:[%s0 + $0x900] sm:$0xff]
    %v326 = vld [vmem:[%s0 + $0x908] sm:$0xff]
    %v327 = vld [vmem:[%s0 + $0x910] sm:$0xff]
    %v328 = vld [vmem:[%s0 + $0x918] sm:$0xff]
    %v329 = vld [vmem:[%s0 + $0x920] sm:$0xff]
    %v330 = vld [vmem:[%s0 + $0x928] sm:$0xff]
    %v331 = vld [vmem:[%s0 + $0x930] sm:$0xff]
    %v332 = vld [vmem:[%s0 + $0x938] sm:$0xff]
    %v333 = vld [vmem:[%s0 + $0x940] sm:$0xff]
    %v334 = vld [vmem:[%s0 + $0x948] sm:$0xff]
    %v335 = vld [vmem:[%s0 + $0x950] sm:$0xff]
    %v336 = vld [vmem:[%s0 + $0x958] sm:$0xff]
    %v337 = vld [vmem:[%s0 + $0x960] sm:$0xff]
    %v338 = vld [vmem:[%s0 + $0x968] sm:$0xff]
    %v339 = vld [vmem:[%s0 + $0x970] sm:$0xff]
    %v340 = vld [vmem:[%s0 + $0x978] sm:$0xff]
    %v341 = vld [vmem:[%s0 + $0x980] sm:$0xff]
    %v342 = vld [vmem:[%s0 + $0x988] sm:$0xff]
    %v343 = vld [vmem:[%s0 + $0x990] sm:$0xff]
    %v344 = vld [vmem:[%s0 + $0x998] sm:$0xff]
    %v345 = vld [vmem:[%s0 + $0x9a0] sm:$0xff]
    %v346 = vld [vmem:[%s0 + $0x9a8] sm:$0xff]
    %v347 = vld [vmem:[%s0 + $0x9b0] sm:$0xff]
    %v348 = vld [vmem:[%s0 + $0x9b8] sm:$0xff]
    %v349 = vld [vmem:[%s0 + $0x9c0] sm:$0xff]
    %v350 = vld [vmem:[%s0 + $0x9c8] sm:$0xff]
    %v351 = vld [vmem:[%s0 + $0x9d0] sm:$0xff]
    %v352 = vld [vmem:[%s0 + $0x9d8] sm:$0xff]
    %v353 = vld [vmem:[%s0 + $0x9e0] sm:$0xff]
    %v354 = vld [vmem:[%s0 + $0x9e8] sm:$0xff]
    %v355 = vld [vmem:[%s0 + $0x9f0] sm:$0xff]
    %v356 = vld [vmem:[%s0 + $0x9f8] sm:$0xff]
    %v357 = vld [vmem:[%s0 + $0xa00] sm:$0xff]
    %v358 = vld [vmem:[%s0 + $0xa08] sm:$0xff]
    %v359 = vld [vmem:[%s0 + $0xa10] sm:$0xff]
    %v360 = vld [vmem:[%s0 + $0xa18] sm:$0xff]
    %v361 = vld [vmem:[%s0 + $0xa20] sm:$0xff]
    %v362 = vld [vmem:[%s0 + $0xa28] sm:$0xff]
    %v363 = vld [vmem:[%s0 + $0xa30] sm:$0xff]
    %v364 = vld [vmem:[%s0 + $0xa38] sm:$0xff]
    %v365 = vld [vmem:[%s0 + $0xa40] sm:$0xff]
    %v366 = vld [vmem:[%s0 + $0xa48] sm:$0xff]
    %v367 = vld [vmem:[%s0 + $0xa50] sm:$0xff]
    %v368 = vld [vmem:[%s0 + $0xa58] sm:$0xff]
    %v369 = vld [vmem:[%s0 + $0xa60] sm:$0xff]
    %v370 = vld [vmem:[%s0 + $0xa68] sm:$0xff]
    %v371 = vld [vmem:[%s0 + $0xa70] sm:$0xff]
    %v372 = vld [vmem:[%s0 + $0xa78] sm:$0xff]
    %v373 = vld [vmem:[%s0 + $0xa80] sm:$0xff]
    %v374 = vld [vmem:[%s0 + $0xa88] sm:$0xff]
    %v375 = vld [vmem:[%s0 + $0xa90] sm:$0xff]
    %v376 = vld [vmem:[%s0 + $0xa98] sm:$0xff]
    %v377 = vld [vmem:[%s0 + $0xaa0] sm:$0xff]
    %v378 = vld [vmem:[%s0 + $0xaa8] sm:$0xff]
    %v379 = vld [vmem:[%s0 + $0xab0] sm:$0xff]
    %v380 = vld [vmem:[%s0 + $0xab8] sm:$0xff]
    %v381 = vld [vmem:[%s0 + $0xac0] sm:$0xff]
    %v382 = vld [vmem:[%s0 + $0xac8] sm:$0xff]
    %v383 = vld [vmem:[%s0 + $0xad0] sm:$0xff]
    %v384 = vld [vmem:[%s0 + $0xad8] sm:$0xff]
    %v385 = vld [vmem:[%s0 + $0xae0] sm:$0xff]
    %v386 = vld [vmem:[%s0 + $0xae8] sm:$0xff]
    %v387 = vld [vmem:[%s0 + $0xaf0] sm:$0xff]
    %v388 = vld [vmem:[%s0 + $0xaf8] sm:$0xff]
    %v389 = vld [vmem:[%s0 + $0xb00] sm:$0xff]
    %v390 = vld [vmem:[%s0 + $0xb08] sm:$0xff]
    %v391 = vld [vmem:[%s0 + $0xb10] sm:$0xff]
    %v392 = vld [vmem:[%s0 + $0xb18] sm:$0xff]
    %v393 = vld [vmem:[%s0 + $0xb20] sm:$0xff]
    %v394 = vld [vmem:[%s0 + $0xb28] sm:$0xff]
    %v395 = vld [vmem:[%s0 + $0xb30] sm:$0xff]
    %v396 = vld [vmem:[%s0 + $0xb38] sm:$0xff]
    %v397 = vld [vmem:[%s0 + $0xb40] sm:$0xff]
    %v398 = vld [vmem:[%s0 + $0xb48] sm:$0xff]
    %v399 = vld [vmem:[%s0 + $0xb50] sm:$0xff]
    %v400 = vld [vmem:[%s0 + $0xb58] sm:$0xff]
    %v401 = vld [vmem:[%s0 + $0xb60] sm:$0xff]
    %v402 = vld [vmem:[%s0 + $0xb68] sm:$0xff]
    %v403 = vld [vmem:[%s0 + $0xb70] sm:$0xff]
    %v404 = vld [vmem:[%s0 + $0xb78] sm:$0xff]
    %v405 = vld [vmem:[%s0 + $0xb80] sm:$0xff]
    %v406 = vld [vmem:[%s0 + $0xb88] sm:$0xff]
    %v407 = vld [vmem:[%s0 + $0xb90] sm:$0xff]
    %v408 = vld [vmem:[%s0 + $0xb98] sm:$0xff]
    %v409 = vld [vmem:[%s0 + $0xba0] sm:$0xff]
    %v410 = vld [vmem:[%s0 + $0xba8] sm:$0xff]
    %v411 = vld [vmem:[%s0 + $0xbb0] sm:$0xff]
    %v412 = vld [vmem:[%s0 + $0xbb8] sm:$0xff]
    %v413 = vld [vmem:[%s0 + $0xbc0] sm:$0xff]
    %v414 = vld [vmem:[%s0 + $0xbc8] sm:$0xff]
    %v415 = vld [vmem:[%s0 + $0xbd0] sm:$0xff]
    %v416 = vld [vmem:[%s0 + $0xbd8] sm:$0xff]
    %v417 = vld [vmem:[%s0 + $0xbe0] sm:$0xff]
    %v418 = vld [vmem:[%s0 + $0xbe8] sm:$0xff]
    %v419 = vld [vmem:[%s0 + $0xbf0] sm:$0xff]
    %v420 = vld [vmem:[%s0 + $0xbf8] sm:$0xff]
    %v421 = vld [vmem:[%s0 + $0xc00] sm:$0xff]
    %v422 = vld [vmem:[%s0 + $0xc08] sm:$0xff]
    %v423 = vld [vmem:[%s0 + $0xc10] sm:$0xff]
    %v424 = vld [vmem:[%s0 + $0xc18] sm:$0xff]
    %v425 = vld [vmem:[%s0 + $0xc20] sm:$0xff]
    %v426 = vld [vmem:[%s0 + $0xc28] sm:$0xff]
    %v427 = vld [vmem:[%s0 + $0xc30] sm:$0xff]
    %v428 = vld [vmem:[%s0 + $0xc38] sm:$0xff]
    %v429 = vld [vmem:[%s0 + $0xc40] sm:$0xff]
    %v430 = vld [vmem:[%s0 + $0xc48] sm:$0xff]
    %v431 = vld [vmem:[%s0 + $0xc50] sm:$0xff]
    %v432 = vld [vmem:[%s0 + $0xc58] sm:$0xff]
    %v433 = vld [vmem:[%s0 + $0xc60] sm:$0xff]
    %v434 = vld [vmem:[%s0 + $0xc68] sm:$0xff]
    %v435 = vld [vmem:[%s0 + $0xc70] sm:$0xff]
    %v436 = vld [vmem:[%s0 + $0xc78] sm:$0xff]
    %v437 = vld [vmem:[%s2] sm:$0xf]
    %v438 = vld [vmem:[%s2 + $0x4] sm:$0xf]
    %v439 = vld [vmem:[%s2 + $0x8] sm:$0xf]
    %v440 = vld [vmem:[%s2 + $0xc] sm:$0xf]
    %v441 = vld [vmem:[%s2 + $0x10] sm:$0xf]
    %v442 = vld [vmem:[%s2 + $0x14] sm:$0xf]
    %v443 = vld [vmem:[%s2 + $0x18] sm:$0xf]
    %v444 = vld [vmem:[%s2 + $0x1c] sm:$0xf]
    %v445 = vld [vmem:[%s2 + $0x20] sm:$0xf]
    %v446 = vld [vmem:[%s2 + $0x24] sm:$0xf]
    %v447 = vld [vmem:[%s2 + $0x28] sm:$0xf]
    %v448 = vld [vmem:[%s2 + $0x2c] sm:$0xf]
    %v449 = vld [vmem:[%s2 + $0x30] sm:$0xf]
    %v450 = vld [vmem:[%s2 + $0x34] sm:$0xf]
    %v451 = vld [vmem:[%s2 + $0x38] sm:$0xf]
    %v452 = vld [vmem:[%s2 + $0x3c] sm:$0xf]
    %v453 = vld [vmem:[%s2 + $0x40] sm:$0xf]
    %v454 = vld [vmem:[%s2 + $0x44] sm:$0xf]
    %v455 = vld [vmem:[%s2 + $0x48] sm:$0xf]
    %v456 = vld [vmem:[%s2 + $0x4c] sm:$0xf]
    %v457 = vld [vmem:[%s2 + $0x50] sm:$0xf]
    %v458 = vld [vmem:[%s2 + $0x54] sm:$0xf]
    %v459 = vld [vmem:[%s2 + $0x58] sm:$0xf]
    %v460 = vld [vmem:[%s2 + $0x5c] sm:$0xf]
    %v461 = vld [vmem:[%s2 + $0x60] sm:$0xf]
    %v462 = vld [vmem:[%s2 + $0x64] sm:$0xf]
    %v463 = vld [vmem:[%s2 + $0x68] sm:$0xf]
    %v464 = vld [vmem:[%s2 + $0x6c] sm:$0xf]
    %v465 = vld [vmem:[%s2 + $0x70] sm:$0xf]
    %v466 = vld [vmem:[%s2 + $0x74] sm:$0xf]
    %v467 = vld [vmem:[%s2 + $0x78] sm:$0xf]
    %v468 = vld [vmem:[%s2 + $0x7c] sm:$0xf]
    %v469 = vld [vmem:[%s2 + $0x80] sm:$0xf]
    %v470 = vld [vmem:[%s2 + $0x84] sm:$0xf]
    %v471 = vld [vmem:[%s2 + $0x88] sm:$0xf]
    %v472 = vld [vmem:[%s2 + $0x8c] sm:$0xf]
    %v473 = vld [vmem:[%s2 + $0x90] sm:$0xf]
    %v474 = vld [vmem:[%s2 + $0x94] sm:$0xf]
    %v475 = vld [vmem:[%s2 + $0x98] sm:$0xf]
    %v476 = vld [vmem:[%s2 + $0x9c] sm:$0xf]
    %v477 = vld [vmem:[%s2 + $0xa0] sm:$0xf]
    %v478 = vld [vmem:[%s2 + $0xa4] sm:$0xf]
    %v479 = vld [vmem:[%s2 + $0xa8] sm:$0xf]
    %v480 = vld [vmem:[%s2 + $0xac] sm:$0xf]
    %v481 = vld [vmem:[%s2 + $0xb0] sm:$0xf]
    %v482 = vld [vmem:[%s2 + $0xb4] sm:$0xf]
    %v483 = vld [vmem:[%s2 + $0xb8] sm:$0xf]
    %v484 = vld [vmem:[%s2 + $0xbc] sm:$0xf]
    %v485 = vld [vmem:[%s2 + $0xc0] sm:$0xf]
    %v486 = vld [vmem:[%s2 + $0xc4] sm:$0xf]
    %v487 = vld [vmem:[%s2 + $0xc8] sm:$0xf]
    %v488 = vld [vmem:[%s2 + $0xcc] sm:$0xf]
    %v489 = vld [vmem:[%s2 + $0xd0] sm:$0xf]
    %v490 = vld [vmem:[%s2 + $0xd4] sm:$0xf]
    %v491 = vld [vmem:[%s2 + $0xd8] sm:$0xf]
    %v492 = vld [vmem:[%s2 + $0xdc] sm:$0xf]
    %v493 = vld [vmem:[%s2 + $0xe0] sm:$0xf]
    %v494 = vld [vmem:[%s2 + $0xe4] sm:$0xf]
    %v495 = vld [vmem:[%s2 + $0xe8] sm:$0xf]
    %v496 = vld [vmem:[%s2 + $0xec] sm:$0xf]
    %v497 = vld [vmem:[%s2 + $0xf0] sm:$0xf]
    %v498 = vld [vmem:[%s2 + $0xf4] sm:$0xf]
    %v499 = vld [vmem:[%s2 + $0xf8] sm:$0xf]
    %v500 = vld [vmem:[%s2 + $0xfc] sm:$0xf]
    %v501 = vld [vmem:[%s2 + $0x100] sm:$0xf]
    %v502 = vld [vmem:[%s2 + $0x104] sm:$0xf]
    %v503 = vld [vmem:[%s2 + $0x108] sm:$0xf]
    %v504 = vld [vmem:[%s2 + $0x10c] sm:$0xf]
    %v505 = vld [vmem:[%s2 + $0x110] sm:$0xf]
    %v506 = vld [vmem:[%s2 + $0x114] sm:$0xf]
    %v507 = vld [vmem:[%s2 + $0x118] sm:$0xf]
    %v508 = vld [vmem:[%s2 + $0x11c] sm:$0xf]
    %v509 = vld [vmem:[%s2 + $0x120] sm:$0xf]
    %v510 = vld [vmem:[%s2 + $0x124] sm:$0xf]
    %v511 = vld [vmem:[%s2 + $0x128] sm:$0xf]
    %v512 = vld [vmem:[%s2 + $0x12c] sm:$0xf]
    %v513 = vld [vmem:[%s2 + $0x130] sm:$0xf]
    %v514 = vld [vmem:[%s2 + $0x134] sm:$0xf]
    %v515 = vld [vmem:[%s2 + $0x138] sm:$0xf]
    %v516 = vld [vmem:[%s2 + $0x13c] sm:$0xf]
    %v517 = vld [vmem:[%s2 + $0x140] sm:$0xf]
    %v518 = vld [vmem:[%s2 + $0x144] sm:$0xf]
    %v519 = vld [vmem:[%s2 + $0x148] sm:$0xf]
    %v520 = vld [vmem:[%s2 + $0x14c] sm:$0xf]
    %v521 = vld [vmem:[%s2 + $0x150] sm:$0xf]
    %v522 = vld [vmem:[%s2 + $0x154] sm:$0xf]
    %v523 = vld [vmem:[%s2 + $0x158] sm:$0xf]
    %v524 = vld [vmem:[%s2 + $0x15c] sm:$0xf]
    %v525 = vld [vmem:[%s2 + $0x160] sm:$0xf]
    %v526 = vld [vmem:[%s2 + $0x164] sm:$0xf]
    %v527 = vld [vmem:[%s2 + $0x168] sm:$0xf]
    %v528 = vld [vmem:[%s2 + $0x16c] sm:$0xf]
    %v529 = vld [vmem:[%s2 + $0x170] sm:$0xf]
    %v530 = vld [vmem:[%s2 + $0x174] sm:$0xf]
    %v531 = vld [vmem:[%s2 + $0x178] sm:$0xf]
    %v532 = vld [vmem:[%s2 + $0x17c] sm:$0xf]
    %v533 = vld [vmem:[%s2 + $0x180] sm:$0xf]
    %v534 = vld [vmem:[%s2 + $0x184] sm:$0xf]
    %v535 = vld [vmem:[%s2 + $0x188] sm:$0xf]
    %v536 = vld [vmem:[%s2 + $0x18c] sm:$0xf]
    %v537 = vld [vmem:[%s2 + $0x190] sm:$0xf]
    %v538 = vld [vmem:[%s2 + $0x194] sm:$0xf]
    %v539 = vld [vmem:[%s2 + $0x198] sm:$0xf]
    %v540 = vld [vmem:[%s2 + $0x19c] sm:$0xf]
    %v541 = vld [vmem:[%s2 + $0x1a0] sm:$0xf]
    %v542 = vld [vmem:[%s2 + $0x1a4] sm:$0xf]
    %v543 = vld [vmem:[%s2 + $0x1a8] sm:$0xf]
    %v544 = vld [vmem:[%s2 + $0x1ac] sm:$0xf]
    %v545 = vld [vmem:[%s2 + $0x1b0] sm:$0xf]
    %v546 = vld [vmem:[%s2 + $0x1b4] sm:$0xf]
    %v547 = vld [vmem:[%s2 + $0x1b8] sm:$0xf]
    %v548 = vld [vmem:[%s2 + $0x1bc] sm:$0xf]
    %v549 = vld [vmem:[%s2 + $0x1c0] sm:$0xf]
    %v550 = vld [vmem:[%s2 + $0x1c4] sm:$0xf]
    %v551 = vld [vmem:[%s2 + $0x1c8] sm:$0xf]
    %v552 = vld [vmem:[%s2 + $0x1cc] sm:$0xf]
    %v553 = vld [vmem:[%s2 + $0x1d0] sm:$0xf]
    %v554 = vld [vmem:[%s2 + $0x1d4] sm:$0xf]
    %v555 = vld [vmem:[%s2 + $0x1d8] sm:$0xf]
    %v556 = vld [vmem:[%s2 + $0x1dc] sm:$0xf]
    %v557 = vld [vmem:[%s2 + $0x1e0] sm:$0xf]
    %v558 = vld [vmem:[%s2 + $0x1e4] sm:$0xf]
    %v559 = vld [vmem:[%s2 + $0x1e8] sm:$0xf]
    %v560 = vld [vmem:[%s2 + $0x1ec] sm:$0xf]
    %v561 = vld [vmem:[%s2 + $0x1f0] sm:$0xf]
    %v562 = vld [vmem:[%s2 + $0x1f4] sm:$0xf]
    %v563 = vld [vmem:[%s2 + $0x1f8] sm:$0xf]
    %v564 = vld [vmem:[%s2 + $0x1fc] sm:$0xf]
    %v565 = vld [vmem:[%s2 + $0x200] sm:$0xf]
    %v566 = vld [vmem:[%s2 + $0x204] sm:$0xf]
    %v567 = vld [vmem:[%s2 + $0x208] sm:$0xf]
    %v568 = vld [vmem:[%s2 + $0x20c] sm:$0xf]
    %v569 = vld [vmem:[%s2 + $0x210] sm:$0xf]
    %v570 = vld [vmem:[%s2 + $0x214] sm:$0xf]
    %v571 = vld [vmem:[%s2 + $0x218] sm:$0xf]
    %v572 = vld [vmem:[%s2 + $0x21c] sm:$0xf]
    %v573 = vld [vmem:[%s2 + $0x220] sm:$0xf]
    %v574 = vld [vmem:[%s2 + $0x224] sm:$0xf]
    %v575 = vld [vmem:[%s2 + $0x228] sm:$0xf]
    %v576 = vld [vmem:[%s2 + $0x22c] sm:$0xf]
    %v577 = vld [vmem:[%s2 + $0x230] sm:$0xf]
    %v578 = vld [vmem:[%s2 + $0x234] sm:$0xf]
    %v579 = vld [vmem:[%s2 + $0x238] sm:$0xf]
    %v580 = vld [vmem:[%s2 + $0x23c] sm:$0xf]
    %v581 = vld [vmem:[%s2 + $0x240] sm:$0xf]
    %v582 = vld [vmem:[%s2 + $0x244] sm:$0xf]
    %v583 = vld [vmem:[%s2 + $0x248] sm:$0xf]
    %v584 = vld [vmem:[%s2 + $0x24c] sm:$0xf]
    %v585 = vld [vmem:[%s2 + $0x250] sm:$0xf]
    %v586 = vld [vmem:[%s2 + $0x254] sm:$0xf]
    %v587 = vld [vmem:[%s2 + $0x258] sm:$0xf]
    %v588 = vld [vmem:[%s2 + $0x25c] sm:$0xf]
    %v589 = vld [vmem:[%s2 + $0x260] sm:$0xf]
    %v590 = vld [vmem:[%s2 + $0x264] sm:$0xf]
    %v591 = vld [vmem:[%s2 + $0x268] sm:$0xf]
    %v592 = vld [vmem:[%s2 + $0x26c] sm:$0xf]
    %v593 = vld [vmem:[%s2 + $0x270] sm:$0xf]
    %v594 = vld [vmem:[%s2 + $0x274] sm:$0xf]
    %v595 = vld [vmem:[%s2 + $0x278] sm:$0xf]
    %v596 = vld [vmem:[%s2 + $0x27c] sm:$0xf]
    %v597 = vld [vmem:[%s2 + $0x280] sm:$0xf]
    %v598 = vld [vmem:[%s2 + $0x284] sm:$0xf]
    %v599 = vld [vmem:[%s2 + $0x288] sm:$0xf]
    %v600 = vld [vmem:[%s2 + $0x28c] sm:$0xf]
    %v601 = vld [vmem:[%s2 + $0x290] sm:$0xf]
    %v602 = vld [vmem:[%s2 + $0x294] sm:$0xf]
    %v603 = vld [vmem:[%s2 + $0x298] sm:$0xf]
    %v604 = vld [vmem:[%s2 + $0x29c] sm:$0xf]
    %v605 = vld [vmem:[%s2 + $0x2a0] sm:$0xf]
    %v606 = vld [vmem:[%s2 + $0x2a4] sm:$0xf]
    %v607 = vld [vmem:[%s2 + $0x2a8] sm:$0xf]
    %v608 = vld [vmem:[%s2 + $0x2ac] sm:$0xf]
    %v609 = vld [vmem:[%s2 + $0x2b0] sm:$0xf]
    %v610 = vld [vmem:[%s2 + $0x2b4] sm:$0xf]
    %v611 = vld [vmem:[%s2 + $0x2b8] sm:$0xf]
    %v612 = vld [vmem:[%s2 + $0x2bc] sm:$0xf]
    %v613 = vld [vmem:[%s2 + $0x2c0] sm:$0xf]
    %v614 = vld [vmem:[%s2 + $0x2c4] sm:$0xf]
    %v615 = vld [vmem:[%s2 + $0x2c8] sm:$0xf]
    %v616 = vld [vmem:[%s2 + $0x2cc] sm:$0xf]
    %v617 = vld [vmem:[%s2 + $0x2d0] sm:$0xf]
    %v618 = vld [vmem:[%s2 + $0x2d4] sm:$0xf]
    %v619 = vld [vmem:[%s2 + $0x2d8] sm:$0xf]
    %v620 = vld [vmem:[%s2 + $0x2dc] sm:$0xf]
    %v621 = vld [vmem:[%s2 + $0x2e0] sm:$0xf]
    %v622 = vld [vmem:[%s2 + $0x2e4] sm:$0xf]
    %v623 = vld [vmem:[%s2 + $0x2e8] sm:$0xf]
    %v624 = vld [vmem:[%s2 + $0x2ec] sm:$0xf]
    %v625 = vld [vmem:[%s2 + $0x2f0] sm:$0xf]
    %v626 = vld [vmem:[%s2 + $0x2f4] sm:$0xf]
    %v627 = vld [vmem:[%s2 + $0x2f8] sm:$0xf]
    %v628 = vld [vmem:[%s2 + $0x2fc] sm:$0xf]
    %v629 = vld [vmem:[%s2 + $0x300] sm:$0xf]
    %v630 = vld [vmem:[%s2 + $0x304] sm:$0xf]
    %v631 = vld [vmem:[%s2 + $0x308] sm:$0xf]
    %v632 = vld [vmem:[%s2 + $0x30c] sm:$0xf]
    %v633 = vld [vmem:[%s2 + $0x310] sm:$0xf]
    %v634 = vld [vmem:[%s2 + $0x314] sm:$0xf]
    %v635 = vld [vmem:[%s2 + $0x318] sm:$0xf]
    %v636 = vld [vmem:[%s2 + $0x31c] sm:$0xf]
    %v637 = vld [vmem:[%s2 + $0x320] sm:$0xf]
    %v638 = vld [vmem:[%s2 + $0x324] sm:$0xf]
    %v639 = vld [vmem:[%s2 + $0x328] sm:$0xf]
    %v640 = vld [vmem:[%s2 + $0x32c] sm:$0xf]
    %v641 = vld [vmem:[%s2 + $0x330] sm:$0xf]
    %v642 = vld [vmem:[%s2 + $0x334] sm:$0xf]
    %v643 = vld [vmem:[%s2 + $0x338] sm:$0xf]
    %v644 = vld [vmem:[%s2 + $0x33c] sm:$0xf]
    %v645 = vld [vmem:[%s2 + $0x340] sm:$0xf]
    %v646 = vld [vmem:[%s2 + $0x344] sm:$0xf]
    %v647 = vld [vmem:[%s2 + $0x348] sm:$0xf]
    %v648 = vld [vmem:[%s2 + $0x34c] sm:$0xf]
    %v649 = vld [vmem:[%s2 + $0x350] sm:$0xf]
    %v650 = vld [vmem:[%s2 + $0x354] sm:$0xf]
    %v651 = vld [vmem:[%s2 + $0x358] sm:$0xf]
    %v652 = vld [vmem:[%s2 + $0x35c] sm:$0xf]
    %v653 = vld [vmem:[%s2 + $0x360] sm:$0xf]
    %v654 = vld [vmem:[%s2 + $0x364] sm:$0xf]
    %v655 = vld [vmem:[%s2 + $0x368] sm:$0xf]
    %v656 = vld [vmem:[%s2 + $0x36c] sm:$0xf]
    %v657 = vld [vmem:[%s2 + $0x370] sm:$0xf]
    %v658 = vld [vmem:[%s2 + $0x374] sm:$0xf]
    %v659 = vld [vmem:[%s2 + $0x378] sm:$0xf]
    %v660 = vld [vmem:[%s2 + $0x37c] sm:$0xf]
    %v661 = vld [vmem:[%s2 + $0x380] sm:$0xf]
    %v662 = vld [vmem:[%s2 + $0x384] sm:$0xf]
    %v663 = vld [vmem:[%s2 + $0x388] sm:$0xf]
    %v664 = vld [vmem:[%s2 + $0x38c] sm:$0xf]
    %v665 = vld [vmem:[%s2 + $0x390] sm:$0xf]
    %v666 = vld [vmem:[%s2 + $0x394] sm:$0xf]
    %v667 = vld [vmem:[%s2 + $0x398] sm:$0xf]
    %v668 = vld [vmem:[%s2 + $0x39c] sm:$0xf]
    %v669 = vld [vmem:[%s2 + $0x3a0] sm:$0xf]
    %v670 = vld [vmem:[%s2 + $0x3a4] sm:$0xf]
    %v671 = vld [vmem:[%s2 + $0x3a8] sm:$0xf]
    %v672 = vld [vmem:[%s2 + $0x3ac] sm:$0xf]
    %v673 = vld [vmem:[%s2 + $0x3b0] sm:$0xf]
    %v674 = vld [vmem:[%s2 + $0x3b4] sm:$0xf]
    %v675 = vld [vmem:[%s2 + $0x3b8] sm:$0xf]
    %v676 = vld [vmem:[%s2 + $0x3bc] sm:$0xf]
    %v677 = vld [vmem:[%s2 + $0x3c0] sm:$0xf]
    %v678 = vld [vmem:[%s2 + $0x3c4] sm:$0xf]
    %v679 = vld [vmem:[%s2 + $0x3c8] sm:$0xf]
    %v680 = vld [vmem:[%s2 + $0x3cc] sm:$0xf]
    %v681 = vld [vmem:[%s2 + $0x3d0] sm:$0xf]
    %v682 = vld [vmem:[%s2 + $0x3d4] sm:$0xf]
    %v683 = vld [vmem:[%s2 + $0x3d8] sm:$0xf]
    %v684 = vld [vmem:[%s2 + $0x3dc] sm:$0xf]
    %v685 = vld [vmem:[%s2 + $0x3e0] sm:$0xf]
    %v686 = vld [vmem:[%s2 + $0x3e4] sm:$0xf]
    %v687 = vld [vmem:[%s2 + $0x3e8] sm:$0xf]
    %v688 = vld [vmem:[%s2 + $0x3ec] sm:$0xf]
    %v689 = vld [vmem:[%s2 + $0x3f0] sm:$0xf]
    %v690 = vld [vmem:[%s2 + $0x3f4] sm:$0xf]
    %v691 = vld [vmem:[%s2 + $0x3f8] sm:$0xf]
    %v692 = vld [vmem:[%s2 + $0x3fc] sm:$0xf]
    %v693 = vld [vmem:[%s2 + $0x400] sm:$0xf]
    %v694 = vld [vmem:[%s2 + $0x404] sm:$0xf]
    %v695 = vld [vmem:[%s2 + $0x408] sm:$0xf]
    %v696 = vld [vmem:[%s2 + $0x40c] sm:$0xf]
    %v697 = vld [vmem:[%s2 + $0x410] sm:$0xf]
    %v698 = vld [vmem:[%s2 + $0x414] sm:$0xf]
    %v699 = vld [vmem:[%s2 + $0x418] sm:$0xf]
    %v700 = vld [vmem:[%s2 + $0x41c] sm:$0xf]
    %v701 = vld [vmem:[%s2 + $0x420] sm:$0xf]
    %v702 = vld [vmem:[%s2 + $0x424] sm:$0xf]
    %v703 = vld [vmem:[%s2 + $0x428] sm:$0xf]
    %v704 = vld [vmem:[%s2 + $0x42c] sm:$0xf]
    %v705 = vld [vmem:[%s2 + $0x430] sm:$0xf]
    %v706 = vld [vmem:[%s2 + $0x434] sm:$0xf]
    %v707 = vld [vmem:[%s2 + $0x438] sm:$0xf]
    %v708 = vld [vmem:[%s2 + $0x43c] sm:$0xf]
    %v709 = vld [vmem:[%s2 + $0x440] sm:$0xf]
    %v710 = vld [vmem:[%s2 + $0x444] sm:$0xf]
    %v711 = vld [vmem:[%s2 + $0x448] sm:$0xf]
    %v712 = vld [vmem:[%s2 + $0x44c] sm:$0xf]
    %v713 = vld [vmem:[%s2 + $0x450] sm:$0xf]
    %v714 = vld [vmem:[%s2 + $0x454] sm:$0xf]
    %v715 = vld [vmem:[%s2 + $0x458] sm:$0xf]
    %v716 = vld [vmem:[%s2 + $0x45c] sm:$0xf]
    %v717 = vld [vmem:[%s2 + $0x460] sm:$0xf]
    %v718 = vld [vmem:[%s2 + $0x464] sm:$0xf]
    %v719 = vld [vmem:[%s2 + $0x468] sm:$0xf]
    %v720 = vld [vmem:[%s2 + $0x46c] sm:$0xf]
    %v721 = vld [vmem:[%s2 + $0x470] sm:$0xf]
    %v722 = vld [vmem:[%s2 + $0x474] sm:$0xf]
    %v723 = vld [vmem:[%s2 + $0x478] sm:$0xf]
    %v724 = vld [vmem:[%s2 + $0x47c] sm:$0xf]
    %v725 = vld [vmem:[%s2 + $0x480] sm:$0xf]
    %v726 = vld [vmem:[%s2 + $0x484] sm:$0xf]
    %v727 = vld [vmem:[%s2 + $0x488] sm:$0xf]
    %v728 = vld [vmem:[%s2 + $0x48c] sm:$0xf]
    %v729 = vld [vmem:[%s2 + $0x490] sm:$0xf]
    %v730 = vld [vmem:[%s2 + $0x494] sm:$0xf]
    %v731 = vld [vmem:[%s2 + $0x498] sm:$0xf]
    %v732 = vld [vmem:[%s2 + $0x49c] sm:$0xf]
    %v733 = vld [vmem:[%s2 + $0x4a0] sm:$0xf]
    %v734 = vld [vmem:[%s2 + $0x4a4] sm:$0xf]
    %v735 = vld [vmem:[%s2 + $0x4a8] sm:$0xf]
    %v736 = vld [vmem:[%s2 + $0x4ac] sm:$0xf]
    %v737 = vld [vmem:[%s2 + $0x4b0] sm:$0xf]
    %v738 = vld [vmem:[%s2 + $0x4b4] sm:$0xf]
    %v739 = vld [vmem:[%s2 + $0x4b8] sm:$0xf]
    %v740 = vld [vmem:[%s2 + $0x4bc] sm:$0xf]
    %v741 = vld [vmem:[%s2 + $0x4c0] sm:$0xf]
    %v742 = vld [vmem:[%s2 + $0x4c4] sm:$0xf]
    %v743 = vld [vmem:[%s2 + $0x4c8] sm:$0xf]
    %v744 = vld [vmem:[%s2 + $0x4cc] sm:$0xf]
    %v745 = vld [vmem:[%s2 + $0x4d0] sm:$0xf]
    %v746 = vld [vmem:[%s2 + $0x4d4] sm:$0xf]
    %v747 = vld [vmem:[%s2 + $0x4d8] sm:$0xf]
    %v748 = vld [vmem:[%s2 + $0x4dc] sm:$0xf]
    %v749 = vld [vmem:[%s2 + $0x4e0] sm:$0xf]
    %v750 = vld [vmem:[%s2 + $0x4e4] sm:$0xf]
    %v751 = vld [vmem:[%s2 + $0x4e8] sm:$0xf]
    %v752 = vld [vmem:[%s2 + $0x4ec] sm:$0xf]
    %v753 = vld [vmem:[%s2 + $0x4f0] sm:$0xf]
    %v754 = vld [vmem:[%s2 + $0x4f4] sm:$0xf]
    %v755 = vld [vmem:[%s2 + $0x4f8] sm:$0xf]
    %v756 = vld [vmem:[%s2 + $0x4fc] sm:$0xf]
    %v757 = vld [vmem:[%s2 + $0x500] sm:$0xf]
    %v758 = vld [vmem:[%s2 + $0x504] sm:$0xf]
    %v759 = vld [vmem:[%s2 + $0x508] sm:$0xf]
    %v760 = vld [vmem:[%s2 + $0x50c] sm:$0xf]
    %v761 = vld [vmem:[%s2 + $0x510] sm:$0xf]
    %v762 = vld [vmem:[%s2 + $0x514] sm:$0xf]
    %v763 = vld [vmem:[%s2 + $0x518] sm:$0xf]
    %v764 = vld [vmem:[%s2 + $0x51c] sm:$0xf]
    %v765 = vld [vmem:[%s2 + $0x520] sm:$0xf]
    %v766 = vld [vmem:[%s2 + $0x524] sm:$0xf]
    %v767 = vld [vmem:[%s2 + $0x528] sm:$0xf]
    %v768 = vld [vmem:[%s2 + $0x52c] sm:$0xf]
    %v769 = vld [vmem:[%s2 + $0x530] sm:$0xf]
    %v770 = vld [vmem:[%s2 + $0x534] sm:$0xf]
    %v771 = vld [vmem:[%s2 + $0x538] sm:$0xf]
    %v772 = vld [vmem:[%s2 + $0x53c] sm:$0xf]
    %v773 = vld [vmem:[%s2 + $0x540] sm:$0xf]
    %v774 = vld [vmem:[%s2 + $0x544] sm:$0xf]
    %v775 = vld [vmem:[%s2 + $0x548] sm:$0xf]
    %v776 = vld [vmem:[%s2 + $0x54c] sm:$0xf]
    %v777 = vld [vmem:[%s2 + $0x550] sm:$0xf]
    %v778 = vld [vmem:[%s2 + $0x554] sm:$0xf]
    %v779 = vld [vmem:[%s2 + $0x558] sm:$0xf]
    %v780 = vld [vmem:[%s2 + $0x55c] sm:$0xf]
    %v781 = vld [vmem:[%s2 + $0x560] sm:$0xf]
    %v782 = vld [vmem:[%s2 + $0x564] sm:$0xf]
    %v783 = vld [vmem:[%s2 + $0x568] sm:$0xf]
    %v784 = vld [vmem:[%s2 + $0x56c] sm:$0xf]
    %v785 = vld [vmem:[%s2 + $0x570] sm:$0xf]
    %v786 = vld [vmem:[%s2 + $0x574] sm:$0xf]
    %v787 = vld [vmem:[%s2 + $0x578] sm:$0xf]
    %v788 = vld [vmem:[%s2 + $0x57c] sm:$0xf]
    %v789 = vld [vmem:[%s2 + $0x580] sm:$0xf]
    %v790 = vld [vmem:[%s2 + $0x584] sm:$0xf]
    %v791 = vld [vmem:[%s2 + $0x588] sm:$0xf]
    %v792 = vld [vmem:[%s2 + $0x58c] sm:$0xf]
    %v793 = vld [vmem:[%s2 + $0x590] sm:$0xf]
    %v794 = vld [vmem:[%s2 + $0x594] sm:$0xf]
    %v795 = vld [vmem:[%s2 + $0x598] sm:$0xf]
    %v796 = vld [vmem:[%s2 + $0x59c] sm:$0xf]
    %v797 = vld [vmem:[%s2 + $0x5a0] sm:$0xf]
    %v798 = vld [vmem:[%s2 + $0x5a4] sm:$0xf]
    %v799 = vld [vmem:[%s2 + $0x5a8] sm:$0xf]
    %v800 = vld [vmem:[%s2 + $0x5ac] sm:$0xf]
    %v801 = vld [vmem:[%s2 + $0x5b0] sm:$0xf]
    %v802 = vld [vmem:[%s2 + $0x5b4] sm:$0xf]
    %v803 = vld [vmem:[%s2 + $0x5b8] sm:$0xf]
    %v804 = vld [vmem:[%s2 + $0x5bc] sm:$0xf]
    %v805 = vld [vmem:[%s2 + $0x5c0] sm:$0xf]
    %v806 = vld [vmem:[%s2 + $0x5c4] sm:$0xf]
    %v807 = vld [vmem:[%s2 + $0x5c8] sm:$0xf]
    %v808 = vld [vmem:[%s2 + $0x5cc] sm:$0xf]
    %v809 = vld [vmem:[%s2 + $0x5d0] sm:$0xf]
    %v810 = vld [vmem:[%s2 + $0x5d4] sm:$0xf]
    %v811 = vld [vmem:[%s2 + $0x5d8] sm:$0xf]
    %v812 = vld [vmem:[%s2 + $0x5dc] sm:$0xf]
    %v813 = vld [vmem:[%s2 + $0x5e0] sm:$0xf]
    %v814 = vld [vmem:[%s2 + $0x5e4] sm:$0xf]
    %v815 = vld [vmem:[%s2 + $0x5e8] sm:$0xf]
    %v816 = vld [vmem:[%s2 + $0x5ec] sm:$0xf]
    %v817 = vld [vmem:[%s2 + $0x5f0] sm:$0xf]
    %v818 = vld [vmem:[%s2 + $0x5f4] sm:$0xf]
    %v819 = vld [vmem:[%s2 + $0x5f8] sm:$0xf]
    %v820 = vld [vmem:[%s2 + $0x5fc] sm:$0xf]
    %v821 = vld [vmem:[%s2 + $0x600] sm:$0xf]
    %v822 = vld [vmem:[%s2 + $0x604] sm:$0xf]
    %v823 = vld [vmem:[%s2 + $0x608] sm:$0xf]
    %v824 = vld [vmem:[%s2 + $0x60c] sm:$0xf]
    %v825 = vld [vmem:[%s2 + $0x610] sm:$0xf]
    %v826 = vld [vmem:[%s2 + $0x614] sm:$0xf]
    %v827 = vld [vmem:[%s2 + $0x618] sm:$0xf]
    %v828 = vld [vmem:[%s2 + $0x61c] sm:$0xf]
    %v829 = vld [vmem:[%s2 + $0x620] sm:$0xf]
    %v830 = vld [vmem:[%s2 + $0x624] sm:$0xf]
    %v831 = vld [vmem:[%s2 + $0x628] sm:$0xf]
    %v832 = vld [vmem:[%s2 + $0x62c] sm:$0xf]
    %v833 = vld [vmem:[%s2 + $0x630] sm:$0xf]
    %v834 = vld [vmem:[%s2 + $0x634] sm:$0xf]
    %v835 = vld [vmem:[%s2 + $0x638] sm:$0xf]
    %v836 = vld [vmem:[%s2 + $0x63c] sm:$0xf]
    %v837 = vld [vmem:[%s2 + $0x640] sm:$0xf]
    %v838 = vld [vmem:[%s2 + $0x644] sm:$0xf]
    %v839 = vld [vmem:[%s2 + $0x648] sm:$0xf]
    %v840 = vld [vmem:[%s2 + $0x64c] sm:$0xf]
    %v841 = vld [vmem:[%s2 + $0x650] sm:$0xf]
    %v842 = vld [vmem:[%s2 + $0x654] sm:$0xf]
    %v843 = vld [vmem:[%s2 + $0x658] sm:$0xf]
    %v844 = vld [vmem:[%s2 + $0x65c] sm:$0xf]
    %v845 = vld [vmem:[%s2 + $0x660] sm:$0xf]
    %v846 = vld [vmem:[%s2 + $0x664] sm:$0xf]
    %v847 = vld [vmem:[%s2 + $0x668] sm:$0xf]
    %v848 = vld [vmem:[%s2 + $0x66c] sm:$0xf]
    %v849 = vld [vmem:[%s2 + $0x670] sm:$0xf]
    %v850 = vld [vmem:[%s2 + $0x674] sm:$0xf]
    %v851 = vld [vmem:[%s2 + $0x678] sm:$0xf]
    %v852 = vld [vmem:[%s2 + $0x67c] sm:$0xf]
    %v853 = vld [vmem:[%s2 + $0x680] sm:$0xf]
    %v854 = vld [vmem:[%s2 + $0x684] sm:$0xf]
    %v855 = vld [vmem:[%s2 + $0x688] sm:$0xf]
    %v856 = vld [vmem:[%s2 + $0x68c] sm:$0xf]
    %v857 = vld [vmem:[%s2 + $0x690] sm:$0xf]
    %v858 = vld [vmem:[%s2 + $0x694] sm:$0xf]
    %v859 = vld [vmem:[%s2 + $0x698] sm:$0xf]
    %v860 = vld [vmem:[%s2 + $0x69c] sm:$0xf]
    %v861 = vld [vmem:[%s2 + $0x6a0] sm:$0xf]
    %v862 = vld [vmem:[%s2 + $0x6a4] sm:$0xf]
    %v863 = vld [vmem:[%s2 + $0x6a8] sm:$0xf]
    %v864 = vld [vmem:[%s2 + $0x6ac] sm:$0xf]
    %v865 = vld [vmem:[%s2 + $0x6b0] sm:$0xf]
    %v866 = vld [vmem:[%s2 + $0x6b4] sm:$0xf]
    %v867 = vld [vmem:[%s2 + $0x6b8] sm:$0xf]
    %v868 = vld [vmem:[%s2 + $0x6bc] sm:$0xf]
    %v869 = vld [vmem:[%s2 + $0x6c0] sm:$0xf]
    %v870 = vld [vmem:[%s2 + $0x6c4] sm:$0xf]
    %v871 = vld [vmem:[%s2 + $0x6c8] sm:$0xf]
    %v872 = vld [vmem:[%s2 + $0x6cc] sm:$0xf]
    %v873 = vld [vmem:[%s2 + $0x6d0] sm:$0xf]
    %v874 = vld [vmem:[%s2 + $0x6d4] sm:$0xf]
    %v875 = vld [vmem:[%s2 + $0x6d8] sm:$0xf]
    %v876 = vld [vmem:[%s2 + $0x6dc] sm:$0xf]
    %v877 = vld [vmem:[%s2 + $0x6e0] sm:$0xf]
    %v878 = vld [vmem:[%s2 + $0x6e4] sm:$0xf]
    %v879 = vld [vmem:[%s2 + $0x6e8] sm:$0xf]
    %v880 = vld [vmem:[%s2 + $0x6ec] sm:$0xf]
    %v881 = vld [vmem:[%s2 + $0x6f0] sm:$0xf]
    %v882 = vld [vmem:[%s2 + $0x6f4] sm:$0xf]
    %v883 = vld [vmem:[%s2 + $0x6f8] sm:$0xf]
    %v884 = vld [vmem:[%s2 + $0x6fc] sm:$0xf]
    %v885 = vld [vmem:[%s2 + $0x700] sm:$0xf]
    %v886 = vld [vmem:[%s2 + $0x704] sm:$0xf]
    %v887 = vld [vmem:[%s2 + $0x708] sm:$0xf]
    %v888 = vld [vmem:[%s2 + $0x70c] sm:$0xf]
    %v889 = vld [vmem:[%s2 + $0x710] sm:$0xf]
    %v890 = vld [vmem:[%s2 + $0x714] sm:$0xf]
    %v891 = vld [vmem:[%s2 + $0x718] sm:$0xf]
    %v892 = vld [vmem:[%s2 + $0x71c] sm:$0xf]
    %v893 = vld [vmem:[%s2 + $0x720] sm:$0xf]
    %v894 = vld [vmem:[%s2 + $0x724] sm:$0xf]
    %v895 = vld [vmem:[%s2 + $0x728] sm:$0xf]
    %v896 = vld [vmem:[%s2 + $0x72c] sm:$0xf]
    %v897 = vld [vmem:[%s2 + $0x730] sm:$0xf]
    %v898 = vld [vmem:[%s2 + $0x734] sm:$0xf]
    %v899 = vld [vmem:[%s2 + $0x738] sm:$0xf]
    %v900 = vld [vmem:[%s2 + $0x73c] sm:$0xf]
    %v901 = vld [vmem:[%s2 + $0x740] sm:$0xf]
    %v902 = vld [vmem:[%s2 + $0x744] sm:$0xf]
    %v903 = vld [vmem:[%s2 + $0x748] sm:$0xf]
    %v904 = vld [vmem:[%s2 + $0x74c] sm:$0xf]
    %v905 = vld [vmem:[%s2 + $0x750] sm:$0xf]
    %v906 = vld [vmem:[%s2 + $0x754] sm:$0xf]
    %v907 = vld [vmem:[%s2 + $0x758] sm:$0xf]
    %v908 = vld [vmem:[%s2 + $0x75c] sm:$0xf]
    %v909 = vld [vmem:[%s2 + $0x760] sm:$0xf]
    %v910 = vld [vmem:[%s2 + $0x764] sm:$0xf]
    %v911 = vld [vmem:[%s2 + $0x768] sm:$0xf]
    %v912 = vld [vmem:[%s2 + $0x76c] sm:$0xf]
    %v913 = vld [vmem:[%s2 + $0x770] sm:$0xf]
    %v914 = vld [vmem:[%s2 + $0x774] sm:$0xf]
    %v915 = vld [vmem:[%s2 + $0x778] sm:$0xf]
    %v916 = vld [vmem:[%s2 + $0x77c] sm:$0xf]
    %v917 = vld [vmem:[%s2 + $0x780] sm:$0xf]
    %v918 = vld [vmem:[%s2 + $0x784] sm:$0xf]
    %v919 = vld [vmem:[%s2 + $0x788] sm:$0xf]
    %v920 = vld [vmem:[%s2 + $0x78c] sm:$0xf]
    %v921 = vld [vmem:[%s2 + $0x790] sm:$0xf]
    %v922 = vld [vmem:[%s2 + $0x794] sm:$0xf]
    %v923 = vld [vmem:[%s2 + $0x798] sm:$0xf]
    %v924 = vld [vmem:[%s2 + $0x79c] sm:$0xf]
    %v925 = vld [vmem:[%s2 + $0x7a0] sm:$0xf]
    %v926 = vld [vmem:[%s2 + $0x7a4] sm:$0xf]
    %v927 = vld [vmem:[%s2 + $0x7a8] sm:$0xf]
    %v928 = vld [vmem:[%s2 + $0x7ac] sm:$0xf]
    %v929 = vld [vmem:[%s2 + $0x7b0] sm:$0xf]
    %v930 = vld [vmem:[%s2 + $0x7b4] sm:$0xf]
    %v931 = vld [vmem:[%s2 + $0x7b8] sm:$0xf]
    %v932 = vld [vmem:[%s2 + $0x7bc] sm:$0xf]
    %v933 = vld [vmem:[%s2 + $0x7c0] sm:$0xf]
    %v934 = vld [vmem:[%s2 + $0x7c4] sm:$0xf]
    %v935 = vld [vmem:[%s2 + $0x7c8] sm:$0xf]
    %v936 = vld [vmem:[%s2 + $0x7cc] sm:$0xf]
    %v937 = vld [vmem:[%s2 + $0x7d0] sm:$0xf]
    %v938 = vld [vmem:[%s2 + $0x7d4] sm:$0xf]
    %v939 = vld [vmem:[%s2 + $0x7d8] sm:$0xf]
    %v940 = vld [vmem:[%s2 + $0x7dc] sm:$0xf]
    %v941 = vld [vmem:[%s2 + $0x7e0] sm:$0xf]
    %v942 = vld [vmem:[%s2 + $0x7e4] sm:$0xf]
    %v943 = vld [vmem:[%s2 + $0x7e8] sm:$0xf]
    %v944 = vld [vmem:[%s2 + $0x7ec] sm:$0xf]
    %v945 = vld [vmem:[%s2 + $0x7f0] sm:$0xf]
    %v946 = vld [vmem:[%s2 + $0x7f4] sm:$0xf]
    %v947 = vld [vmem:[%s2 + $0x7f8] sm:$0xf]
    %v948 = vld [vmem:[%s2 + $0x7fc] sm:$0xf]
    %v949 = vld [vmem:[%s2 + $0x800] sm:$0xf]
    %v950 = vld [vmem:[%s2 + $0x804] sm:$0xf]
    %v951 = vld [vmem:[%s2 + $0x808] sm:$0xf]
    %v952 = vld [vmem:[%s2 + $0x80c] sm:$0xf]
    %v953 = vld [vmem:[%s2 + $0x810] sm:$0xf]
    %v954 = vld [vmem:[%s2 + $0x814] sm:$0xf]
    %v955 = vld [vmem:[%s2 + $0x818] sm:$0xf]
    %v956 = vld [vmem:[%s2 + $0x81c] sm:$0xf]
    %v957 = vld [vmem:[%s2 + $0x820] sm:$0xf]
    %v958 = vld [vmem:[%s2 + $0x824] sm:$0xf]
    %v959 = vld [vmem:[%s2 + $0x828] sm:$0xf]
    %v960 = vld [vmem:[%s2 + $0x82c] sm:$0xf]
    %v961 = vld [vmem:[%s2 + $0x830] sm:$0xf]
    %v962 = vld [vmem:[%s2 + $0x834] sm:$0xf]
    %v963 = vld [vmem:[%s2 + $0x838] sm:$0xf]
    %v964 = vld [vmem:[%s2 + $0x83c] sm:$0xf]
    %v965 = vld [vmem:[%s2 + $0x840] sm:$0xf]
    %v966 = vld [vmem:[%s2 + $0x844] sm:$0xf]
    %v967 = vld [vmem:[%s2 + $0x848] sm:$0xf]
    %v968 = vld [vmem:[%s2 + $0x84c] sm:$0xf]
    %v969 = vld [vmem:[%s2 + $0x850] sm:$0xf]
    %v970 = vld [vmem:[%s2 + $0x854] sm:$0xf]
    %v971 = vld [vmem:[%s2 + $0x858] sm:$0xf]
    %v972 = vld [vmem:[%s2 + $0x85c] sm:$0xf]
    %v973 = vld [vmem:[%s2 + $0x860] sm:$0xf]
    %v974 = vld [vmem:[%s2 + $0x864] sm:$0xf]
    %v975 = vld [vmem:[%s2 + $0x868] sm:$0xf]
    %v976 = vld [vmem:[%s2 + $0x86c] sm:$0xf]
    %v977 = vld [vmem:[%s2 + $0x870] sm:$0xf]
    %v978 = vld [vmem:[%s2 + $0x874] sm:$0xf]
    %v979 = vld [vmem:[%s2 + $0x878] sm:$0xf]
    %v980 = vld [vmem:[%s2 + $0x87c] sm:$0xf]
    %v981 = vld [vmem:[%s2 + $0x880] sm:$0xf]
    %v982 = vld [vmem:[%s2 + $0x884] sm:$0xf]
    %v983 = vld [vmem:[%s2 + $0x888] sm:$0xf]
    %v984 = vld [vmem:[%s2 + $0x88c] sm:$0xf]
    %v985 = vld [vmem:[%s2 + $0x890] sm:$0xf]
    %v986 = vld [vmem:[%s2 + $0x894] sm:$0xf]
    %v987 = vld [vmem:[%s2 + $0x898] sm:$0xf]
    %v988 = vld [vmem:[%s2 + $0x89c] sm:$0xf]
    %v989 = vld [vmem:[%s2 + $0x8a0] sm:$0xf]
    %v990 = vld [vmem:[%s2 + $0x8a4] sm:$0xf]
    %v991 = vld [vmem:[%s2 + $0x8a8] sm:$0xf]
    %v992 = vld [vmem:[%s2 + $0x8ac] sm:$0xf]
    %v993 = vld [vmem:[%s2 + $0x8b0] sm:$0xf]
    %v994 = vld [vmem:[%s2 + $0x8b4] sm:$0xf]
    %v995 = vld [vmem:[%s2 + $0x8b8] sm:$0xf]
    %v996 = vld [vmem:[%s2 + $0x8bc] sm:$0xf]
    %v997 = vld [vmem:[%s2 + $0x8c0] sm:$0xf]
    %v998 = vld [vmem:[%s2 + $0x8c4] sm:$0xf]
    %v999 = vld [vmem:[%s2 + $0x8c8] sm:$0xf]
    %v1000 = vld [vmem:[%s2 + $0x8cc] sm:$0xf]
    %v1001 = vld [vmem:[%s2 + $0x8d0] sm:$0xf]
    %v1002 = vld [vmem:[%s2 + $0x8d4] sm:$0xf]
    %v1003 = vld [vmem:[%s2 + $0x8d8] sm:$0xf]
    %v1004 = vld [vmem:[%s2 + $0x8dc] sm:$0xf]
    %v1005 = vld [vmem:[%s2 + $0x8e0] sm:$0xf]
    %v1006 = vld [vmem:[%s2 + $0x8e4] sm:$0xf]
    %v1007 = vld [vmem:[%s2 + $0x8e8] sm:$0xf]
    %v1008 = vld [vmem:[%s2 + $0x8ec] sm:$0xf]
    %v1009 = vld [vmem:[%s2 + $0x8f0] sm:$0xf]
    %v1010 = vld [vmem:[%s2 + $0x8f4] sm:$0xf]
    %v1011 = vld [vmem:[%s2 + $0x8f8] sm:$0xf]
    %v1012 = vld [vmem:[%s2 + $0x8fc] sm:$0xf]
    %v1013 = vld [vmem:[%s2 + $0x900] sm:$0xf]
    %v1014 = vld [vmem:[%s2 + $0x904] sm:$0xf]
    %v1015 = vld [vmem:[%s2 + $0x908] sm:$0xf]
    %v1016 = vld [vmem:[%s2 + $0x90c] sm:$0xf]
    %v1017 = vld [vmem:[%s2 + $0x910] sm:$0xf]
    %v1018 = vld [vmem:[%s2 + $0x914] sm:$0xf]
    %v1019 = vld [vmem:[%s2 + $0x918] sm:$0xf]
    %v1020 = vld [vmem:[%s2 + $0x91c] sm:$0xf]
    %v1021 = vld [vmem:[%s2 + $0x920] sm:$0xf]
    %v1022 = vld [vmem:[%s2 + $0x924] sm:$0xf]
    %v1023 = vld [vmem:[%s2 + $0x928] sm:$0xf]
    %v1024 = vld [vmem:[%s2 + $0x92c] sm:$0xf]
    %v1025 = vld [vmem:[%s2 + $0x930] sm:$0xf]
    %v1026 = vld [vmem:[%s2 + $0x934] sm:$0xf]
    %v1027 = vld [vmem:[%s2 + $0x938] sm:$0xf]
    %v1028 = vld [vmem:[%s2 + $0x93c] sm:$0xf]
    %v1029 = vld [vmem:[%s2 + $0x940] sm:$0xf]
    %v1030 = vld [vmem:[%s2 + $0x944] sm:$0xf]
    %v1031 = vld [vmem:[%s2 + $0x948] sm:$0xf]
    %v1032 = vld [vmem:[%s2 + $0x94c] sm:$0xf]
    %v1033 = vld [vmem:[%s2 + $0x950] sm:$0xf]
    %v1034 = vld [vmem:[%s2 + $0x954] sm:$0xf]
    %v1035 = vld [vmem:[%s2 + $0x958] sm:$0xf]
    %v1036 = vld [vmem:[%s2 + $0x95c] sm:$0xf]
    %v1037 = vld [vmem:[%s2 + $0x960] sm:$0xf]
    %v1038 = vld [vmem:[%s2 + $0x964] sm:$0xf]
    %v1039 = vld [vmem:[%s2 + $0x968] sm:$0xf]
    %v1040 = vld [vmem:[%s2 + $0x96c] sm:$0xf]
    %v1041 = vld [vmem:[%s2 + $0x970] sm:$0xf]
    %v1042 = vld [vmem:[%s2 + $0x974] sm:$0xf]
    %v1043 = vld [vmem:[%s2 + $0x978] sm:$0xf]
    %v1044 = vld [vmem:[%s2 + $0x97c] sm:$0xf]
    %v1045 = vld [vmem:[%s2 + $0x980] sm:$0xf]
    %v1046 = vld [vmem:[%s2 + $0x984] sm:$0xf]
    %v1047 = vld [vmem:[%s2 + $0x988] sm:$0xf]
    %v1048 = vld [vmem:[%s2 + $0x98c] sm:$0xf]
    %v1049 = vld [vmem:[%s2 + $0x990] sm:$0xf]
    %v1050 = vld [vmem:[%s2 + $0x994] sm:$0xf]
    %v1051 = vld [vmem:[%s2 + $0x998] sm:$0xf]
    %v1052 = vld [vmem:[%s2 + $0x99c] sm:$0xf]
    %v1053 = vld [vmem:[%s2 + $0x9a0] sm:$0xf]
    %v1054 = vld [vmem:[%s2 + $0x9a4] sm:$0xf]
    %v1055 = vld [vmem:[%s2 + $0x9a8] sm:$0xf]
    %v1056 = vld [vmem:[%s2 + $0x9ac] sm:$0xf]
    %v1057 = vld [vmem:[%s2 + $0x9b0] sm:$0xf]
    %v1058 = vld [vmem:[%s2 + $0x9b4] sm:$0xf]
    %v1059 = vld [vmem:[%s2 + $0x9b8] sm:$0xf]
    %v1060 = vld [vmem:[%s2 + $0x9bc] sm:$0xf]
    %v1061 = vld [vmem:[%s2 + $0x9c0] sm:$0xf]
    %v1062 = vld [vmem:[%s2 + $0x9c4] sm:$0xf]
    %v1063 = vld [vmem:[%s2 + $0x9c8] sm:$0xf]
    %v1064 = vld [vmem:[%s2 + $0x9cc] sm:$0xf]
    %v1065 = vld [vmem:[%s2 + $0x9d0] sm:$0xf]
    %v1066 = vld [vmem:[%s2 + $0x9d4] sm:$0xf]
    %v1067 = vld [vmem:[%s2 + $0x9d8] sm:$0xf]
    %v1068 = vld [vmem:[%s2 + $0x9dc] sm:$0xf]
    %v1069 = vld [vmem:[%s2 + $0x9e0] sm:$0xf]
    %v1070 = vld [vmem:[%s2 + $0x9e4] sm:$0xf]
    %v1071 = vld [vmem:[%s2 + $0x9e8] sm:$0xf]
    %v1072 = vld [vmem:[%s2 + $0x9ec] sm:$0xf]
    %v1073 = vld [vmem:[%s2 + $0x9f0] sm:$0xf]
    %v1074 = vld [vmem:[%s2 + $0x9f4] sm:$0xf]
    %v1075 = vld [vmem:[%s2 + $0x9f8] sm:$0xf]
    %v1076 = vld [vmem:[%s2 + $0x9fc] sm:$0xf]
    %v1077 = vld [vmem:[%s2 + $0xa00] sm:$0xf]
    %v1078 = vld [vmem:[%s2 + $0xa04] sm:$0xf]
    %v1079 = vld [vmem:[%s2 + $0xa08] sm:$0xf]
    %v1080 = vld [vmem:[%s2 + $0xa0c] sm:$0xf]
    %v1081 = vld [vmem:[%s2 + $0xa10] sm:$0xf]
    %v1082 = vld [vmem:[%s2 + $0xa14] sm:$0xf]
    %v1083 = vld [vmem:[%s2 + $0xa18] sm:$0xf]
    %v1084 = vld [vmem:[%s2 + $0xa1c] sm:$0xf]
    %v1085 = vld [vmem:[%s2 + $0xa20] sm:$0xf]
    %v1086 = vld [vmem:[%s2 + $0xa24] sm:$0xf]
    %v1087 = vld [vmem:[%s2 + $0xa28] sm:$0xf]
    %v1088 = vld [vmem:[%s2 + $0xa2c] sm:$0xf]
    %v1089 = vld [vmem:[%s2 + $0xa30] sm:$0xf]
    %v1090 = vld [vmem:[%s2 + $0xa34] sm:$0xf]
    %v1091 = vld [vmem:[%s2 + $0xa38] sm:$0xf]
    %v1092 = vld [vmem:[%s2 + $0xa3c] sm:$0xf]
    %v1093 = vld [vmem:[%s2 + $0xa40] sm:$0xf]
    %v1094 = vld [vmem:[%s2 + $0xa44] sm:$0xf]
    %v1095 = vld [vmem:[%s2 + $0xa48] sm:$0xf]
    %v1096 = vld [vmem:[%s2 + $0xa4c] sm:$0xf]
    %v1097 = vld [vmem:[%s2 + $0xa50] sm:$0xf]
    %v1098 = vld [vmem:[%s2 + $0xa54] sm:$0xf]
    %v1099 = vld [vmem:[%s2 + $0xa58] sm:$0xf]
    %v1100 = vld [vmem:[%s2 + $0xa5c] sm:$0xf]
    %v1101 = vld [vmem:[%s2 + $0xa60] sm:$0xf]
    %v1102 = vld [vmem:[%s2 + $0xa64] sm:$0xf]
    %v1103 = vld [vmem:[%s2 + $0xa68] sm:$0xf]
    %v1104 = vld [vmem:[%s2 + $0xa6c] sm:$0xf]
    %v1105 = vld [vmem:[%s2 + $0xa70] sm:$0xf]
    %v1106 = vld [vmem:[%s2 + $0xa74] sm:$0xf]
    %v1107 = vld [vmem:[%s2 + $0xa78] sm:$0xf]
    %v1108 = vld [vmem:[%s2 + $0xa7c] sm:$0xf]
    %v1109 = vld [vmem:[%s2 + $0xa80] sm:$0xf]
    %v1110 = vld [vmem:[%s2 + $0xa84] sm:$0xf]
    %v1111 = vld [vmem:[%s2 + $0xa88] sm:$0xf]
    %v1112 = vld [vmem:[%s2 + $0xa8c] sm:$0xf]
    %v1113 = vld [vmem:[%s2 + $0xa90] sm:$0xf]
    %v1114 = vld [vmem:[%s2 + $0xa94] sm:$0xf]
    %v1115 = vld [vmem:[%s2 + $0xa98] sm:$0xf]
    %v1116 = vld [vmem:[%s2 + $0xa9c] sm:$0xf]
    %v1117 = vld [vmem:[%s2 + $0xaa0] sm:$0xf]
    %v1118 = vld [vmem:[%s2 + $0xaa4] sm:$0xf]
    %v1119 = vld [vmem:[%s2 + $0xaa8] sm:$0xf]
    %v1120 = vld [vmem:[%s2 + $0xaac] sm:$0xf]
    %v1121 = vld [vmem:[%s2 + $0xab0] sm:$0xf]
    %v1122 = vld [vmem:[%s2 + $0xab4] sm:$0xf]
    %v1123 = vld [vmem:[%s2 + $0xab8] sm:$0xf]
    %v1124 = vld [vmem:[%s2 + $0xabc] sm:$0xf]
    %v1125 = vld [vmem:[%s2 + $0xac0] sm:$0xf]
    %v1126 = vld [vmem:[%s2 + $0xac4] sm:$0xf]
    %v1127 = vld [vmem:[%s2 + $0xac8] sm:$0xf]
    %v1128 = vld [vmem:[%s2 + $0xacc] sm:$0xf]
    %v1129 = vld [vmem:[%s2 + $0xad0] sm:$0xf]
    %v1130 = vld [vmem:[%s2 + $0xad4] sm:$0xf]
    %v1131 = vld [vmem:[%s2 + $0xad8] sm:$0xf]
    %v1132 = vld [vmem:[%s2 + $0xadc] sm:$0xf]
    %v1133 = vld [vmem:[%s2 + $0xae0] sm:$0xf]
    %v1134 = vld [vmem:[%s2 + $0xae4] sm:$0xf]
    %v1135 = vld [vmem:[%s2 + $0xae8] sm:$0xf]
    %v1136 = vld [vmem:[%s2 + $0xaec] sm:$0xf]
    %v1137 = vld [vmem:[%s2 + $0xaf0] sm:$0xf]
    %v1138 = vld [vmem:[%s2 + $0xaf4] sm:$0xf]
    %v1139 = vld [vmem:[%s2 + $0xaf8] sm:$0xf]
    %v1140 = vld [vmem:[%s2 + $0xafc] sm:$0xf]
    %v1141 = vld [vmem:[%s2 + $0xb00] sm:$0xf]
    %v1142 = vld [vmem:[%s2 + $0xb04] sm:$0xf]
    %v1143 = vld [vmem:[%s2 + $0xb08] sm:$0xf]
    %v1144 = vld [vmem:[%s2 + $0xb0c] sm:$0xf]
    %v1145 = vld [vmem:[%s2 + $0xb10] sm:$0xf]
    %v1146 = vld [vmem:[%s2 + $0xb14] sm:$0xf]
    %v1147 = vld [vmem:[%s2 + $0xb18] sm:$0xf]
    %v1148 = vld [vmem:[%s2 + $0xb1c] sm:$0xf]
    %v1149 = vld [vmem:[%s2 + $0xb20] sm:$0xf]
    %v1150 = vld [vmem:[%s2 + $0xb24] sm:$0xf]
    %v1151 = vld [vmem:[%s2 + $0xb28] sm:$0xf]
    %v1152 = vld [vmem:[%s2 + $0xb2c] sm:$0xf]
    %v1153 = vld [vmem:[%s2 + $0xb30] sm:$0xf]
    %v1154 = vld [vmem:[%s2 + $0xb34] sm:$0xf]
    %v1155 = vld [vmem:[%s2 + $0xb38] sm:$0xf]
    %v1156 = vld [vmem:[%s2 + $0xb3c] sm:$0xf]
    %v1157 = vld [vmem:[%s2 + $0xb40] sm:$0xf]
    %v1158 = vld [vmem:[%s2 + $0xb44] sm:$0xf]
    %v1159 = vld [vmem:[%s2 + $0xb48] sm:$0xf]
    %v1160 = vld [vmem:[%s2 + $0xb4c] sm:$0xf]
    %v1161 = vld [vmem:[%s2 + $0xb50] sm:$0xf]
    %v1162 = vld [vmem:[%s2 + $0xb54] sm:$0xf]
    %v1163 = vld [vmem:[%s2 + $0xb58] sm:$0xf]
    %v1164 = vld [vmem:[%s2 + $0xb5c] sm:$0xf]
    %v1165 = vld [vmem:[%s2 + $0xb60] sm:$0xf]
    %v1166 = vld [vmem:[%s2 + $0xb64] sm:$0xf]
    %v1167 = vld [vmem:[%s2 + $0xb68] sm:$0xf]
    %v1168 = vld [vmem:[%s2 + $0xb6c] sm:$0xf]
    %v1169 = vld [vmem:[%s2 + $0xb70] sm:$0xf]
    %v1170 = vld [vmem:[%s2 + $0xb74] sm:$0xf]
    %v1171 = vld [vmem:[%s2 + $0xb78] sm:$0xf]
    %v1172 = vld [vmem:[%s2 + $0xb7c] sm:$0xf]
    %v1173 = vld [vmem:[%s2 + $0xb80] sm:$0xf]
    %v1174 = vld [vmem:[%s2 + $0xb84] sm:$0xf]
    %v1175 = vld [vmem:[%s2 + $0xb88] sm:$0xf]
    %v1176 = vld [vmem:[%s2 + $0xb8c] sm:$0xf]
    %v1177 = vld [vmem:[%s2 + $0xb90] sm:$0xf]
    %v1178 = vld [vmem:[%s2 + $0xb94] sm:$0xf]
    %v1179 = vld [vmem:[%s2 + $0xb98] sm:$0xf]
    %v1180 = vld [vmem:[%s2 + $0xb9c] sm:$0xf]
    %v1181 = vld [vmem:[%s2 + $0xba0] sm:$0xf]
    %v1182 = vld [vmem:[%s2 + $0xba4] sm:$0xf]
    %v1183 = vld [vmem:[%s2 + $0xba8] sm:$0xf]
    %v1184 = vld [vmem:[%s2 + $0xbac] sm:$0xf]
    %v1185 = vld [vmem:[%s2 + $0xbb0] sm:$0xf]
    %v1186 = vld [vmem:[%s2 + $0xbb4] sm:$0xf]
    %v1187 = vld [vmem:[%s2 + $0xbb8] sm:$0xf]
    %v1188 = vld [vmem:[%s2 + $0xbbc] sm:$0xf]
    %v1189 = vld [vmem:[%s2 + $0xbc0] sm:$0xf]
    %v1190 = vld [vmem:[%s2 + $0xbc4] sm:$0xf]
    %v1191 = vld [vmem:[%s2 + $0xbc8] sm:$0xf]
    %v1192 = vld [vmem:[%s2 + $0xbcc] sm:$0xf]
    %v1193 = vld [vmem:[%s2 + $0xbd0] sm:$0xf]
    %v1194 = vld [vmem:[%s2 + $0xbd4] sm:$0xf]
    %v1195 = vld [vmem:[%s2 + $0xbd8] sm:$0xf]
    %v1196 = vld [vmem:[%s2 + $0xbdc] sm:$0xf]
    %v1197 = vld [vmem:[%s2 + $0xbe0] sm:$0xf]
    %v1198 = vld [vmem:[%s2 + $0xbe4] sm:$0xf]
    %v1199 = vld [vmem:[%s2 + $0xbe8] sm:$0xf]
    %v1200 = vld [vmem:[%s2 + $0xbec] sm:$0xf]
    %v1201 = vld [vmem:[%s2 + $0xbf0] sm:$0xf]
    %v1202 = vld [vmem:[%s2 + $0xbf4] sm:$0xf]
    %v1203 = vld [vmem:[%s2 + $0xbf8] sm:$0xf]
    %v1204 = vld [vmem:[%s2 + $0xbfc] sm:$0xf]
    %v1205 = vld [vmem:[%s2 + $0xc00] sm:$0xf]
    %v1206 = vld [vmem:[%s2 + $0xc04] sm:$0xf]
    %v1207 = vld [vmem:[%s2 + $0xc08] sm:$0xf]
    %v1208 = vld [vmem:[%s2 + $0xc0c] sm:$0xf]
    %v1209 = vld [vmem:[%s2 + $0xc10] sm:$0xf]
    %v1210 = vld [vmem:[%s2 + $0xc14] sm:$0xf]
    %v1211 = vld [vmem:[%s2 + $0xc18] sm:$0xf]
    %v1212 = vld [vmem:[%s2 + $0xc1c] sm:$0xf]
    %v1213 = vld [vmem:[%s2 + $0xc20] sm:$0xf]
    %v1214 = vld [vmem:[%s2 + $0xc24] sm:$0xf]
    %v1215 = vld [vmem:[%s2 + $0xc28] sm:$0xf]
    %v1216 = vld [vmem:[%s2 + $0xc2c] sm:$0xf]
    %v1217 = vld [vmem:[%s2 + $0xc30] sm:$0xf]
    %v1218 = vld [vmem:[%s2 + $0xc34] sm:$0xf]
    %v1219 = vld [vmem:[%s2 + $0xc38] sm:$0xf]
    %v1220 = vld [vmem:[%s2 + $0xc3c] sm:$0xf]
    %v1221 = vld [vmem:[%s2 + $0xc40] sm:$0xf]
    %v1222 = vld [vmem:[%s2 + $0xc44] sm:$0xf]
    %v1223 = vld [vmem:[%s2 + $0xc48] sm:$0xf]
    %v1224 = vld [vmem:[%s2 + $0xc4c] sm:$0xf]
    %v1225 = vld [vmem:[%s2 + $0xc50] sm:$0xf]
    %v1226 = vld [vmem:[%s2 + $0xc54] sm:$0xf]
    %v1227 = vld [vmem:[%s2 + $0xc58] sm:$0xf]
    %v1228 = vld [vmem:[%s2 + $0xc5c] sm:$0xf]
    %v1229 = vld [vmem:[%s2 + $0xc60] sm:$0xf]
    %v1230 = vld [vmem:[%s2 + $0xc64] sm:$0xf]
    %v1231 = vld [vmem:[%s2 + $0xc68] sm:$0xf]
    %v1232 = vld [vmem:[%s2 + $0xc6c] sm:$0xf]
    %v1233 = vld [vmem:[%s2 + $0xc70] sm:$0xf]
    %v1234 = vld [vmem:[%s2 + $0xc74] sm:$0xf]
    %v1235 = vld [vmem:[%s2 + $0xc78] sm:$0xf]
    %v1236 = vld [vmem:[%s2 + $0xc7c] sm:$0xf]
    %v1637 = vunpack.c.l.b16 %v37
    %v1638 = vunpack.c.h.b16 %v37
    %v1639 = vunpack.c.l.b16 %v38
    %v1640 = vunpack.c.h.b16 %v38
    %v1641 = vunpack.c.l.b16 %v39
    %v1642 = vunpack.c.h.b16 %v39
    %v1643 = vunpack.c.l.b16 %v40
    %v1644 = vunpack.c.h.b16 %v40
    %v1645 = vunpack.c.l.b16 %v41
    %v1646 = vunpack.c.h.b16 %v41
    %v1647 = vunpack.c.l.b16 %v42
    %v1648 = vunpack.c.h.b16 %v42
    %v1649 = vunpack.c.l.b16 %v43
    %v1650 = vunpack.c.h.b16 %v43
    %v1651 = vunpack.c.l.b16 %v44
    %v1652 = vunpack.c.h.b16 %v44
    %v1653 = vunpack.c.l.b16 %v45
    %v1654 = vunpack.c.h.b16 %v45
    %v1655 = vunpack.c.l.b16 %v46
    %v1656 = vunpack.c.h.b16 %v46
    %v1657 = vunpack.c.l.b16 %v47
    %v1658 = vunpack.c.h.b16 %v47
    %v1659 = vunpack.c.l.b16 %v48
    %v1660 = vunpack.c.h.b16 %v48
    %v1661 = vunpack.c.l.b16 %v49
    %v1662 = vunpack.c.h.b16 %v49
    %v1663 = vunpack.c.l.b16 %v50
    %v1664 = vunpack.c.h.b16 %v50
    %v1665 = vunpack.c.l.b16 %v51
    %v1666 = vunpack.c.h.b16 %v51
    %v1667 = vunpack.c.l.b16 %v52
    %v1668 = vunpack.c.h.b16 %v52
    %v1669 = vunpack.c.l.b16 %v53
    %v1670 = vunpack.c.h.b16 %v53
    %v1671 = vunpack.c.l.b16 %v54
    %v1672 = vunpack.c.h.b16 %v54
    %v1673 = vunpack.c.l.b16 %v55
    %v1674 = vunpack.c.h.b16 %v55
    %v1675 = vunpack.c.l.b16 %v56
    %v1676 = vunpack.c.h.b16 %v56
    %v1677 = vunpack.c.l.b16 %v57
    %v1678 = vunpack.c.h.b16 %v57
    %v1679 = vunpack.c.l.b16 %v58
    %v1680 = vunpack.c.h.b16 %v58
    %v1681 = vunpack.c.l.b16 %v59
    %v1682 = vunpack.c.h.b16 %v59
    %v1683 = vunpack.c.l.b16 %v60
    %v1684 = vunpack.c.h.b16 %v60
    %v1685 = vunpack.c.l.b16 %v61
    %v1686 = vunpack.c.h.b16 %v61
    %v1687 = vunpack.c.l.b16 %v62
    %v1688 = vunpack.c.h.b16 %v62
    %v1689 = vunpack.c.l.b16 %v63
    %v1690 = vunpack.c.h.b16 %v63
    %v1691 = vunpack.c.l.b16 %v64
    %v1692 = vunpack.c.h.b16 %v64
    %v1693 = vunpack.c.l.b16 %v65
    %v1694 = vunpack.c.h.b16 %v65
    %v1695 = vunpack.c.l.b16 %v66
    %v1696 = vunpack.c.h.b16 %v66
    %v1697 = vunpack.c.l.b16 %v67
    %v1698 = vunpack.c.h.b16 %v67
    %v1699 = vunpack.c.l.b16 %v68
    %v1700 = vunpack.c.h.b16 %v68
    %v1701 = vunpack.c.l.b16 %v69
    %v1702 = vunpack.c.h.b16 %v69
    %v1703 = vunpack.c.l.b16 %v70
    %v1704 = vunpack.c.h.b16 %v70
    %v1705 = vunpack.c.l.b16 %v71
    %v1706 = vunpack.c.h.b16 %v71
    %v1707 = vunpack.c.l.b16 %v72
    %v1708 = vunpack.c.h.b16 %v72
    %v1709 = vunpack.c.l.b16 %v73
    %v1710 = vunpack.c.h.b16 %v73
    %v1711 = vunpack.c.l.b16 %v74
    %v1712 = vunpack.c.h.b16 %v74
    %v1713 = vunpack.c.l.b16 %v75
    %v1714 = vunpack.c.h.b16 %v75
    %v1715 = vunpack.c.l.b16 %v76
    %v1716 = vunpack.c.h.b16 %v76
    %v1717 = vunpack.c.l.b16 %v77
    %v1718 = vunpack.c.h.b16 %v77
    %v1719 = vunpack.c.l.b16 %v78
    %v1720 = vunpack.c.h.b16 %v78
    %v1721 = vunpack.c.l.b16 %v79
    %v1722 = vunpack.c.h.b16 %v79
    %v1723 = vunpack.c.l.b16 %v80
    %v1724 = vunpack.c.h.b16 %v80
    %v1725 = vunpack.c.l.b16 %v81
    %v1726 = vunpack.c.h.b16 %v81
    %v1727 = vunpack.c.l.b16 %v82
    %v1728 = vunpack.c.h.b16 %v82
    %v1729 = vunpack.c.l.b16 %v83
    %v1730 = vunpack.c.h.b16 %v83
    %v1731 = vunpack.c.l.b16 %v84
    %v1732 = vunpack.c.h.b16 %v84
    %v1733 = vunpack.c.l.b16 %v85
    %v1734 = vunpack.c.h.b16 %v85
    %v1735 = vunpack.c.l.b16 %v86
    %v1736 = vunpack.c.h.b16 %v86
    %v1737 = vunpack.c.l.b16 %v87
    %v1738 = vunpack.c.h.b16 %v87
    %v1739 = vunpack.c.l.b16 %v88
    %v1740 = vunpack.c.h.b16 %v88
    %v1741 = vunpack.c.l.b16 %v89
    %v1742 = vunpack.c.h.b16 %v89
    %v1743 = vunpack.c.l.b16 %v90
    %v1744 = vunpack.c.h.b16 %v90
    %v1745 = vunpack.c.l.b16 %v91
    %v1746 = vunpack.c.h.b16 %v91
    %v1747 = vunpack.c.l.b16 %v92
    %v1748 = vunpack.c.h.b16 %v92
    %v1749 = vunpack.c.l.b16 %v93
    %v1750 = vunpack.c.h.b16 %v93
    %v1751 = vunpack.c.l.b16 %v94
    %v1752 = vunpack.c.h.b16 %v94
    %v1753 = vunpack.c.l.b16 %v95
    %v1754 = vunpack.c.h.b16 %v95
    %v1755 = vunpack.c.l.b16 %v96
    %v1756 = vunpack.c.h.b16 %v96
    %v1757 = vunpack.c.l.b16 %v97
    %v1758 = vunpack.c.h.b16 %v97
    %v1759 = vunpack.c.l.b16 %v98
    %v1760 = vunpack.c.h.b16 %v98
    %v1761 = vunpack.c.l.b16 %v99
    %v1762 = vunpack.c.h.b16 %v99
    %v1763 = vunpack.c.l.b16 %v100
    %v1764 = vunpack.c.h.b16 %v100
    %v1765 = vunpack.c.l.b16 %v101
    %v1766 = vunpack.c.h.b16 %v101
    %v1767 = vunpack.c.l.b16 %v102
    %v1768 = vunpack.c.h.b16 %v102
    %v1769 = vunpack.c.l.b16 %v103
    %v1770 = vunpack.c.h.b16 %v103
    %v1771 = vunpack.c.l.b16 %v104
    %v1772 = vunpack.c.h.b16 %v104
    %v1773 = vunpack.c.l.b16 %v105
    %v1774 = vunpack.c.h.b16 %v105
    %v1775 = vunpack.c.l.b16 %v106
    %v1776 = vunpack.c.h.b16 %v106
    %v1777 = vunpack.c.l.b16 %v107
    %v1778 = vunpack.c.h.b16 %v107
    %v1779 = vunpack.c.l.b16 %v108
    %v1780 = vunpack.c.h.b16 %v108
    %v1781 = vunpack.c.l.b16 %v109
    %v1782 = vunpack.c.h.b16 %v109
    %v1783 = vunpack.c.l.b16 %v110
    %v1784 = vunpack.c.h.b16 %v110
    %v1785 = vunpack.c.l.b16 %v111
    %v1786 = vunpack.c.h.b16 %v111
    %v1787 = vunpack.c.l.b16 %v112
    %v1788 = vunpack.c.h.b16 %v112
    %v1789 = vunpack.c.l.b16 %v113
    %v1790 = vunpack.c.h.b16 %v113
    %v1791 = vunpack.c.l.b16 %v114
    %v1792 = vunpack.c.h.b16 %v114
    %v1793 = vunpack.c.l.b16 %v115
    %v1794 = vunpack.c.h.b16 %v115
    %v1795 = vunpack.c.l.b16 %v116
    %v1796 = vunpack.c.h.b16 %v116
    %v1797 = vunpack.c.l.b16 %v117
    %v1798 = vunpack.c.h.b16 %v117
    %v1799 = vunpack.c.l.b16 %v118
    %v1800 = vunpack.c.h.b16 %v118
    %v1801 = vunpack.c.l.b16 %v119
    %v1802 = vunpack.c.h.b16 %v119
    %v1803 = vunpack.c.l.b16 %v120
    %v1804 = vunpack.c.h.b16 %v120
    %v1805 = vunpack.c.l.b16 %v121
    %v1806 = vunpack.c.h.b16 %v121
    %v1807 = vunpack.c.l.b16 %v122
    %v1808 = vunpack.c.h.b16 %v122
    %v1809 = vunpack.c.l.b16 %v123
    %v1810 = vunpack.c.h.b16 %v123
    %v1811 = vunpack.c.l.b16 %v124
    %v1812 = vunpack.c.h.b16 %v124
    %v1813 = vunpack.c.l.b16 %v125
    %v1814 = vunpack.c.h.b16 %v125
    %v1815 = vunpack.c.l.b16 %v126
    %v1816 = vunpack.c.h.b16 %v126
    %v1817 = vunpack.c.l.b16 %v127
    %v1818 = vunpack.c.h.b16 %v127
    %v1819 = vunpack.c.l.b16 %v128
    %v1820 = vunpack.c.h.b16 %v128
    %v1821 = vunpack.c.l.b16 %v129
    %v1822 = vunpack.c.h.b16 %v129
    %v1823 = vunpack.c.l.b16 %v130
    %v1824 = vunpack.c.h.b16 %v130
    %v1825 = vunpack.c.l.b16 %v131
    %v1826 = vunpack.c.h.b16 %v131
    %v1827 = vunpack.c.l.b16 %v132
    %v1828 = vunpack.c.h.b16 %v132
    %v1829 = vunpack.c.l.b16 %v133
    %v1830 = vunpack.c.h.b16 %v133
    %v1831 = vunpack.c.l.b16 %v134
    %v1832 = vunpack.c.h.b16 %v134
    %v1833 = vunpack.c.l.b16 %v135
    %v1834 = vunpack.c.h.b16 %v135
    %v1835 = vunpack.c.l.b16 %v136
    %v1836 = vunpack.c.h.b16 %v136
    %v1837 = vunpack.c.l.b16 %v137
    %v1838 = vunpack.c.h.b16 %v137
    %v1839 = vunpack.c.l.b16 %v138
    %v1840 = vunpack.c.h.b16 %v138
    %v1841 = vunpack.c.l.b16 %v139
    %v1842 = vunpack.c.h.b16 %v139
    %v1843 = vunpack.c.l.b16 %v140
    %v1844 = vunpack.c.h.b16 %v140
    %v1845 = vunpack.c.l.b16 %v141
    %v1846 = vunpack.c.h.b16 %v141
    %v1847 = vunpack.c.l.b16 %v142
    %v1848 = vunpack.c.h.b16 %v142
    %v1849 = vunpack.c.l.b16 %v143
    %v1850 = vunpack.c.h.b16 %v143
    %v1851 = vunpack.c.l.b16 %v144
    %v1852 = vunpack.c.h.b16 %v144
    %v1853 = vunpack.c.l.b16 %v145
    %v1854 = vunpack.c.h.b16 %v145
    %v1855 = vunpack.c.l.b16 %v146
    %v1856 = vunpack.c.h.b16 %v146
    %v1857 = vunpack.c.l.b16 %v147
    %v1858 = vunpack.c.h.b16 %v147
    %v1859 = vunpack.c.l.b16 %v148
    %v1860 = vunpack.c.h.b16 %v148
    %v1861 = vunpack.c.l.b16 %v149
    %v1862 = vunpack.c.h.b16 %v149
    %v1863 = vunpack.c.l.b16 %v150
    %v1864 = vunpack.c.h.b16 %v150
    %v1865 = vunpack.c.l.b16 %v151
    %v1866 = vunpack.c.h.b16 %v151
    %v1867 = vunpack.c.l.b16 %v152
    %v1868 = vunpack.c.h.b16 %v152
    %v1869 = vunpack.c.l.b16 %v153
    %v1870 = vunpack.c.h.b16 %v153
    %v1871 = vunpack.c.l.b16 %v154
    %v1872 = vunpack.c.h.b16 %v154
    %v1873 = vunpack.c.l.b16 %v155
    %v1874 = vunpack.c.h.b16 %v155
    %v1875 = vunpack.c.l.b16 %v156
    %v1876 = vunpack.c.h.b16 %v156
    %v1877 = vunpack.c.l.b16 %v157
    %v1878 = vunpack.c.h.b16 %v157
    %v1879 = vunpack.c.l.b16 %v158
    %v1880 = vunpack.c.h.b16 %v158
    %v1881 = vunpack.c.l.b16 %v159
    %v1882 = vunpack.c.h.b16 %v159
    %v1883 = vunpack.c.l.b16 %v160
    %v1884 = vunpack.c.h.b16 %v160
    %v1885 = vunpack.c.l.b16 %v161
    %v1886 = vunpack.c.h.b16 %v161
    %v1887 = vunpack.c.l.b16 %v162
    %v1888 = vunpack.c.h.b16 %v162
    %v1889 = vunpack.c.l.b16 %v163
    %v1890 = vunpack.c.h.b16 %v163
    %v1891 = vunpack.c.l.b16 %v164
    %v1892 = vunpack.c.h.b16 %v164
    %v1893 = vunpack.c.l.b16 %v165
    %v1894 = vunpack.c.h.b16 %v165
    %v1895 = vunpack.c.l.b16 %v166
    %v1896 = vunpack.c.h.b16 %v166
    %v1897 = vunpack.c.l.b16 %v167
    %v1898 = vunpack.c.h.b16 %v167
    %v1899 = vunpack.c.l.b16 %v168
    %v1900 = vunpack.c.h.b16 %v168
    %v1901 = vunpack.c.l.b16 %v169
    %v1902 = vunpack.c.h.b16 %v169
    %v1903 = vunpack.c.l.b16 %v170
    %v1904 = vunpack.c.h.b16 %v170
    %v1905 = vunpack.c.l.b16 %v171
    %v1906 = vunpack.c.h.b16 %v171
    %v1907 = vunpack.c.l.b16 %v172
    %v1908 = vunpack.c.h.b16 %v172
    %v1909 = vunpack.c.l.b16 %v173
    %v1910 = vunpack.c.h.b16 %v173
    %v1911 = vunpack.c.l.b16 %v174
    %v1912 = vunpack.c.h.b16 %v174
    %v1913 = vunpack.c.l.b16 %v175
    %v1914 = vunpack.c.h.b16 %v175
    %v1915 = vunpack.c.l.b16 %v176
    %v1916 = vunpack.c.h.b16 %v176
    %v1917 = vunpack.c.l.b16 %v177
    %v1918 = vunpack.c.h.b16 %v177
    %v1919 = vunpack.c.l.b16 %v178
    %v1920 = vunpack.c.h.b16 %v178
    %v1921 = vunpack.c.l.b16 %v179
    %v1922 = vunpack.c.h.b16 %v179
    %v1923 = vunpack.c.l.b16 %v180
    %v1924 = vunpack.c.h.b16 %v180
    %v1925 = vunpack.c.l.b16 %v181
    %v1926 = vunpack.c.h.b16 %v181
    %v1927 = vunpack.c.l.b16 %v182
    %v1928 = vunpack.c.h.b16 %v182
    %v1929 = vunpack.c.l.b16 %v183
    %v1930 = vunpack.c.h.b16 %v183
    %v1931 = vunpack.c.l.b16 %v184
    %v1932 = vunpack.c.h.b16 %v184
    %v1933 = vunpack.c.l.b16 %v185
    %v1934 = vunpack.c.h.b16 %v185
    %v1935 = vunpack.c.l.b16 %v186
    %v1936 = vunpack.c.h.b16 %v186
    %v1937 = vunpack.c.l.b16 %v187
    %v1938 = vunpack.c.h.b16 %v187
    %v1939 = vunpack.c.l.b16 %v188
    %v1940 = vunpack.c.h.b16 %v188
    %v1941 = vunpack.c.l.b16 %v189
    %v1942 = vunpack.c.h.b16 %v189
    %v1943 = vunpack.c.l.b16 %v190
    %v1944 = vunpack.c.h.b16 %v190
    %v1945 = vunpack.c.l.b16 %v191
    %v1946 = vunpack.c.h.b16 %v191
    %v1947 = vunpack.c.l.b16 %v192
    %v1948 = vunpack.c.h.b16 %v192
    %v1949 = vunpack.c.l.b16 %v193
    %v1950 = vunpack.c.h.b16 %v193
    %v1951 = vunpack.c.l.b16 %v194
    %v1952 = vunpack.c.h.b16 %v194
    %v1953 = vunpack.c.l.b16 %v195
    %v1954 = vunpack.c.h.b16 %v195
    %v1955 = vunpack.c.l.b16 %v196
    %v1956 = vunpack.c.h.b16 %v196
    %v1957 = vunpack.c.l.b16 %v197
    %v1958 = vunpack.c.h.b16 %v197
    %v1959 = vunpack.c.l.b16 %v198
    %v1960 = vunpack.c.h.b16 %v198
    %v1961 = vunpack.c.l.b16 %v199
    %v1962 = vunpack.c.h.b16 %v199
    %v1963 = vunpack.c.l.b16 %v200
    %v1964 = vunpack.c.h.b16 %v200
    %v1965 = vunpack.c.l.b16 %v201
    %v1966 = vunpack.c.h.b16 %v201
    %v1967 = vunpack.c.l.b16 %v202
    %v1968 = vunpack.c.h.b16 %v202
    %v1969 = vunpack.c.l.b16 %v203
    %v1970 = vunpack.c.h.b16 %v203
    %v1971 = vunpack.c.l.b16 %v204
    %v1972 = vunpack.c.h.b16 %v204
    %v1973 = vunpack.c.l.b16 %v205
    %v1974 = vunpack.c.h.b16 %v205
    %v1975 = vunpack.c.l.b16 %v206
    %v1976 = vunpack.c.h.b16 %v206
    %v1977 = vunpack.c.l.b16 %v207
    %v1978 = vunpack.c.h.b16 %v207
    %v1979 = vunpack.c.l.b16 %v208
    %v1980 = vunpack.c.h.b16 %v208
    %v1981 = vunpack.c.l.b16 %v209
    %v1982 = vunpack.c.h.b16 %v209
    %v1983 = vunpack.c.l.b16 %v210
    %v1984 = vunpack.c.h.b16 %v210
    %v1985 = vunpack.c.l.b16 %v211
    %v1986 = vunpack.c.h.b16 %v211
    %v1987 = vunpack.c.l.b16 %v212
    %v1988 = vunpack.c.h.b16 %v212
    %v1989 = vunpack.c.l.b16 %v213
    %v1990 = vunpack.c.h.b16 %v213
    %v1991 = vunpack.c.l.b16 %v214
    %v1992 = vunpack.c.h.b16 %v214
    %v1993 = vunpack.c.l.b16 %v215
    %v1994 = vunpack.c.h.b16 %v215
    %v1995 = vunpack.c.l.b16 %v216
    %v1996 = vunpack.c.h.b16 %v216
    %v1997 = vunpack.c.l.b16 %v217
    %v1998 = vunpack.c.h.b16 %v217
    %v1999 = vunpack.c.l.b16 %v218
    %v2000 = vunpack.c.h.b16 %v218
    %v2001 = vunpack.c.l.b16 %v219
    %v2002 = vunpack.c.h.b16 %v219
    %v2003 = vunpack.c.l.b16 %v220
    %v2004 = vunpack.c.h.b16 %v220
    %v2005 = vunpack.c.l.b16 %v221
    %v2006 = vunpack.c.h.b16 %v221
    %v2007 = vunpack.c.l.b16 %v222
    %v2008 = vunpack.c.h.b16 %v222
    %v2009 = vunpack.c.l.b16 %v223
    %v2010 = vunpack.c.h.b16 %v223
    %v2011 = vunpack.c.l.b16 %v224
    %v2012 = vunpack.c.h.b16 %v224
    %v2013 = vunpack.c.l.b16 %v225
    %v2014 = vunpack.c.h.b16 %v225
    %v2015 = vunpack.c.l.b16 %v226
    %v2016 = vunpack.c.h.b16 %v226
    %v2017 = vunpack.c.l.b16 %v227
    %v2018 = vunpack.c.h.b16 %v227
    %v2019 = vunpack.c.l.b16 %v228
    %v2020 = vunpack.c.h.b16 %v228
    %v2021 = vunpack.c.l.b16 %v229
    %v2022 = vunpack.c.h.b16 %v229
    %v2023 = vunpack.c.l.b16 %v230
    %v2024 = vunpack.c.h.b16 %v230
    %v2025 = vunpack.c.l.b16 %v231
    %v2026 = vunpack.c.h.b16 %v231
    %v2027 = vunpack.c.l.b16 %v232
    %v2028 = vunpack.c.h.b16 %v232
    %v2029 = vunpack.c.l.b16 %v233
    %v2030 = vunpack.c.h.b16 %v233
    %v2031 = vunpack.c.l.b16 %v234
    %v2032 = vunpack.c.h.b16 %v234
    %v2033 = vunpack.c.l.b16 %v235
    %v2034 = vunpack.c.h.b16 %v235
    %v2035 = vunpack.c.l.b16 %v236
    %v2036 = vunpack.c.h.b16 %v236
    %v2037 = vunpack.c.l.b16 %v237
    %v2038 = vunpack.c.h.b16 %v237
    %v2039 = vunpack.c.l.b16 %v238
    %v2040 = vunpack.c.h.b16 %v238
    %v2041 = vunpack.c.l.b16 %v239
    %v2042 = vunpack.c.h.b16 %v239
    %v2043 = vunpack.c.l.b16 %v240
    %v2044 = vunpack.c.h.b16 %v240
    %v2045 = vunpack.c.l.b16 %v241
    %v2046 = vunpack.c.h.b16 %v241
    %v2047 = vunpack.c.l.b16 %v242
    %v2048 = vunpack.c.h.b16 %v242
    %v2049 = vunpack.c.l.b16 %v243
    %v2050 = vunpack.c.h.b16 %v243
    %v2051 = vunpack.c.l.b16 %v244
    %v2052 = vunpack.c.h.b16 %v244
    %v2053 = vunpack.c.l.b16 %v245
    %v2054 = vunpack.c.h.b16 %v245
    %v2055 = vunpack.c.l.b16 %v246
    %v2056 = vunpack.c.h.b16 %v246
    %v2057 = vunpack.c.l.b16 %v247
    %v2058 = vunpack.c.h.b16 %v247
    %v2059 = vunpack.c.l.b16 %v248
    %v2060 = vunpack.c.h.b16 %v248
    %v2061 = vunpack.c.l.b16 %v249
    %v2062 = vunpack.c.h.b16 %v249
    %v2063 = vunpack.c.l.b16 %v250
    %v2064 = vunpack.c.h.b16 %v250
    %v2065 = vunpack.c.l.b16 %v251
    %v2066 = vunpack.c.h.b16 %v251
    %v2067 = vunpack.c.l.b16 %v252
    %v2068 = vunpack.c.h.b16 %v252
    %v2069 = vunpack.c.l.b16 %v253
    %v2070 = vunpack.c.h.b16 %v253
    %v2071 = vunpack.c.l.b16 %v254
    %v2072 = vunpack.c.h.b16 %v254
    %v2073 = vunpack.c.l.b16 %v255
    %v2074 = vunpack.c.h.b16 %v255
    %v2075 = vunpack.c.l.b16 %v256
    %v2076 = vunpack.c.h.b16 %v256
    %v2077 = vunpack.c.l.b16 %v257
    %v2078 = vunpack.c.h.b16 %v257
    %v2079 = vunpack.c.l.b16 %v258
    %v2080 = vunpack.c.h.b16 %v258
    %v2081 = vunpack.c.l.b16 %v259
    %v2082 = vunpack.c.h.b16 %v259
    %v2083 = vunpack.c.l.b16 %v260
    %v2084 = vunpack.c.h.b16 %v260
    %v2085 = vunpack.c.l.b16 %v261
    %v2086 = vunpack.c.h.b16 %v261
    %v2087 = vunpack.c.l.b16 %v262
    %v2088 = vunpack.c.h.b16 %v262
    %v2089 = vunpack.c.l.b16 %v263
    %v2090 = vunpack.c.h.b16 %v263
    %v2091 = vunpack.c.l.b16 %v264
    %v2092 = vunpack.c.h.b16 %v264
    %v2093 = vunpack.c.l.b16 %v265
    %v2094 = vunpack.c.h.b16 %v265
    %v2095 = vunpack.c.l.b16 %v266
    %v2096 = vunpack.c.h.b16 %v266
    %v2097 = vunpack.c.l.b16 %v267
    %v2098 = vunpack.c.h.b16 %v267
    %v2099 = vunpack.c.l.b16 %v268
    %v2100 = vunpack.c.h.b16 %v268
    %v2101 = vunpack.c.l.b16 %v269
    %v2102 = vunpack.c.h.b16 %v269
    %v2103 = vunpack.c.l.b16 %v270
    %v2104 = vunpack.c.h.b16 %v270
    %v2105 = vunpack.c.l.b16 %v271
    %v2106 = vunpack.c.h.b16 %v271
    %v2107 = vunpack.c.l.b16 %v272
    %v2108 = vunpack.c.h.b16 %v272
    %v2109 = vunpack.c.l.b16 %v273
    %v2110 = vunpack.c.h.b16 %v273
    %v2111 = vunpack.c.l.b16 %v274
    %v2112 = vunpack.c.h.b16 %v274
    %v2113 = vunpack.c.l.b16 %v275
    %v2114 = vunpack.c.h.b16 %v275
    %v2115 = vunpack.c.l.b16 %v276
    %v2116 = vunpack.c.h.b16 %v276
    %v2117 = vunpack.c.l.b16 %v277
    %v2118 = vunpack.c.h.b16 %v277
    %v2119 = vunpack.c.l.b16 %v278
    %v2120 = vunpack.c.h.b16 %v278
    %v2121 = vunpack.c.l.b16 %v279
    %v2122 = vunpack.c.h.b16 %v279
    %v2123 = vunpack.c.l.b16 %v280
    %v2124 = vunpack.c.h.b16 %v280
    %v2125 = vunpack.c.l.b16 %v281
    %v2126 = vunpack.c.h.b16 %v281
    %v2127 = vunpack.c.l.b16 %v282
    %v2128 = vunpack.c.h.b16 %v282
    %v2129 = vunpack.c.l.b16 %v283
    %v2130 = vunpack.c.h.b16 %v283
    %v2131 = vunpack.c.l.b16 %v284
    %v2132 = vunpack.c.h.b16 %v284
    %v2133 = vunpack.c.l.b16 %v285
    %v2134 = vunpack.c.h.b16 %v285
    %v2135 = vunpack.c.l.b16 %v286
    %v2136 = vunpack.c.h.b16 %v286
    %v2137 = vunpack.c.l.b16 %v287
    %v2138 = vunpack.c.h.b16 %v287
    %v2139 = vunpack.c.l.b16 %v288
    %v2140 = vunpack.c.h.b16 %v288
    %v2141 = vunpack.c.l.b16 %v289
    %v2142 = vunpack.c.h.b16 %v289
    %v2143 = vunpack.c.l.b16 %v290
    %v2144 = vunpack.c.h.b16 %v290
    %v2145 = vunpack.c.l.b16 %v291
    %v2146 = vunpack.c.h.b16 %v291
    %v2147 = vunpack.c.l.b16 %v292
    %v2148 = vunpack.c.h.b16 %v292
    %v2149 = vunpack.c.l.b16 %v293
    %v2150 = vunpack.c.h.b16 %v293
    %v2151 = vunpack.c.l.b16 %v294
    %v2152 = vunpack.c.h.b16 %v294
    %v2153 = vunpack.c.l.b16 %v295
    %v2154 = vunpack.c.h.b16 %v295
    %v2155 = vunpack.c.l.b16 %v296
    %v2156 = vunpack.c.h.b16 %v296
    %v2157 = vunpack.c.l.b16 %v297
    %v2158 = vunpack.c.h.b16 %v297
    %v2159 = vunpack.c.l.b16 %v298
    %v2160 = vunpack.c.h.b16 %v298
    %v2161 = vunpack.c.l.b16 %v299
    %v2162 = vunpack.c.h.b16 %v299
    %v2163 = vunpack.c.l.b16 %v300
    %v2164 = vunpack.c.h.b16 %v300
    %v2165 = vunpack.c.l.b16 %v301
    %v2166 = vunpack.c.h.b16 %v301
    %v2167 = vunpack.c.l.b16 %v302
    %v2168 = vunpack.c.h.b16 %v302
    %v2169 = vunpack.c.l.b16 %v303
    %v2170 = vunpack.c.h.b16 %v303
    %v2171 = vunpack.c.l.b16 %v304
    %v2172 = vunpack.c.h.b16 %v304
    %v2173 = vunpack.c.l.b16 %v305
    %v2174 = vunpack.c.h.b16 %v305
    %v2175 = vunpack.c.l.b16 %v306
    %v2176 = vunpack.c.h.b16 %v306
    %v2177 = vunpack.c.l.b16 %v307
    %v2178 = vunpack.c.h.b16 %v307
    %v2179 = vunpack.c.l.b16 %v308
    %v2180 = vunpack.c.h.b16 %v308
    %v2181 = vunpack.c.l.b16 %v309
    %v2182 = vunpack.c.h.b16 %v309
    %v2183 = vunpack.c.l.b16 %v310
    %v2184 = vunpack.c.h.b16 %v310
    %v2185 = vunpack.c.l.b16 %v311
    %v2186 = vunpack.c.h.b16 %v311
    %v2187 = vunpack.c.l.b16 %v312
    %v2188 = vunpack.c.h.b16 %v312
    %v2189 = vunpack.c.l.b16 %v313
    %v2190 = vunpack.c.h.b16 %v313
    %v2191 = vunpack.c.l.b16 %v314
    %v2192 = vunpack.c.h.b16 %v314
    %v2193 = vunpack.c.l.b16 %v315
    %v2194 = vunpack.c.h.b16 %v315
    %v2195 = vunpack.c.l.b16 %v316
    %v2196 = vunpack.c.h.b16 %v316
    %v2197 = vunpack.c.l.b16 %v317
    %v2198 = vunpack.c.h.b16 %v317
    %v2199 = vunpack.c.l.b16 %v318
    %v2200 = vunpack.c.h.b16 %v318
    %v2201 = vunpack.c.l.b16 %v319
    %v2202 = vunpack.c.h.b16 %v319
    %v2203 = vunpack.c.l.b16 %v320
    %v2204 = vunpack.c.h.b16 %v320
    %v2205 = vunpack.c.l.b16 %v321
    %v2206 = vunpack.c.h.b16 %v321
    %v2207 = vunpack.c.l.b16 %v322
    %v2208 = vunpack.c.h.b16 %v322
    %v2209 = vunpack.c.l.b16 %v323
    %v2210 = vunpack.c.h.b16 %v323
    %v2211 = vunpack.c.l.b16 %v324
    %v2212 = vunpack.c.h.b16 %v324
    %v2213 = vunpack.c.l.b16 %v325
    %v2214 = vunpack.c.h.b16 %v325
    %v2215 = vunpack.c.l.b16 %v326
    %v2216 = vunpack.c.h.b16 %v326
    %v2217 = vunpack.c.l.b16 %v327
    %v2218 = vunpack.c.h.b16 %v327
    %v2219 = vunpack.c.l.b16 %v328
    %v2220 = vunpack.c.h.b16 %v328
    %v2221 = vunpack.c.l.b16 %v329
    %v2222 = vunpack.c.h.b16 %v329
    %v2223 = vunpack.c.l.b16 %v330
    %v2224 = vunpack.c.h.b16 %v330
    %v2225 = vunpack.c.l.b16 %v331
    %v2226 = vunpack.c.h.b16 %v331
    %v2227 = vunpack.c.l.b16 %v332
    %v2228 = vunpack.c.h.b16 %v332
    %v2229 = vunpack.c.l.b16 %v333
    %v2230 = vunpack.c.h.b16 %v333
    %v2231 = vunpack.c.l.b16 %v334
    %v2232 = vunpack.c.h.b16 %v334
    %v2233 = vunpack.c.l.b16 %v335
    %v2234 = vunpack.c.h.b16 %v335
    %v2235 = vunpack.c.l.b16 %v336
    %v2236 = vunpack.c.h.b16 %v336
    %v2237 = vunpack.c.l.b16 %v337
    %v2238 = vunpack.c.h.b16 %v337
    %v2239 = vunpack.c.l.b16 %v338
    %v2240 = vunpack.c.h.b16 %v338
    %v2241 = vunpack.c.l.b16 %v339
    %v2242 = vunpack.c.h.b16 %v339
    %v2243 = vunpack.c.l.b16 %v340
    %v2244 = vunpack.c.h.b16 %v340
    %v2245 = vunpack.c.l.b16 %v341
    %v2246 = vunpack.c.h.b16 %v341
    %v2247 = vunpack.c.l.b16 %v342
    %v2248 = vunpack.c.h.b16 %v342
    %v2249 = vunpack.c.l.b16 %v343
    %v2250 = vunpack.c.h.b16 %v343
    %v2251 = vunpack.c.l.b16 %v344
    %v2252 = vunpack.c.h.b16 %v344
    %v2253 = vunpack.c.l.b16 %v345
    %v2254 = vunpack.c.h.b16 %v345
    %v2255 = vunpack.c.l.b16 %v346
    %v2256 = vunpack.c.h.b16 %v346
    %v2257 = vunpack.c.l.b16 %v347
    %v2258 = vunpack.c.h.b16 %v347
    %v2259 = vunpack.c.l.b16 %v348
    %v2260 = vunpack.c.h.b16 %v348
    %v2261 = vunpack.c.l.b16 %v349
    %v2262 = vunpack.c.h.b16 %v349
    %v2263 = vunpack.c.l.b16 %v350
    %v2264 = vunpack.c.h.b16 %v350
    %v2265 = vunpack.c.l.b16 %v351
    %v2266 = vunpack.c.h.b16 %v351
    %v2267 = vunpack.c.l.b16 %v352
    %v2268 = vunpack.c.h.b16 %v352
    %v2269 = vunpack.c.l.b16 %v353
    %v2270 = vunpack.c.h.b16 %v353
    %v2271 = vunpack.c.l.b16 %v354
    %v2272 = vunpack.c.h.b16 %v354
    %v2273 = vunpack.c.l.b16 %v355
    %v2274 = vunpack.c.h.b16 %v355
    %v2275 = vunpack.c.l.b16 %v356
    %v2276 = vunpack.c.h.b16 %v356
    %v2277 = vunpack.c.l.b16 %v357
    %v2278 = vunpack.c.h.b16 %v357
    %v2279 = vunpack.c.l.b16 %v358
    %v2280 = vunpack.c.h.b16 %v358
    %v2281 = vunpack.c.l.b16 %v359
    %v2282 = vunpack.c.h.b16 %v359
    %v2283 = vunpack.c.l.b16 %v360
    %v2284 = vunpack.c.h.b16 %v360
    %v2285 = vunpack.c.l.b16 %v361
    %v2286 = vunpack.c.h.b16 %v361
    %v2287 = vunpack.c.l.b16 %v362
    %v2288 = vunpack.c.h.b16 %v362
    %v2289 = vunpack.c.l.b16 %v363
    %v2290 = vunpack.c.h.b16 %v363
    %v2291 = vunpack.c.l.b16 %v364
    %v2292 = vunpack.c.h.b16 %v364
    %v2293 = vunpack.c.l.b16 %v365
    %v2294 = vunpack.c.h.b16 %v365
    %v2295 = vunpack.c.l.b16 %v366
    %v2296 = vunpack.c.h.b16 %v366
    %v2297 = vunpack.c.l.b16 %v367
    %v2298 = vunpack.c.h.b16 %v367
    %v2299 = vunpack.c.l.b16 %v368
    %v2300 = vunpack.c.h.b16 %v368
    %v2301 = vunpack.c.l.b16 %v369
    %v2302 = vunpack.c.h.b16 %v369
    %v2303 = vunpack.c.l.b16 %v370
    %v2304 = vunpack.c.h.b16 %v370
    %v2305 = vunpack.c.l.b16 %v371
    %v2306 = vunpack.c.h.b16 %v371
    %v2307 = vunpack.c.l.b16 %v372
    %v2308 = vunpack.c.h.b16 %v372
    %v2309 = vunpack.c.l.b16 %v373
    %v2310 = vunpack.c.h.b16 %v373
    %v2311 = vunpack.c.l.b16 %v374
    %v2312 = vunpack.c.h.b16 %v374
    %v2313 = vunpack.c.l.b16 %v375
    %v2314 = vunpack.c.h.b16 %v375
    %v2315 = vunpack.c.l.b16 %v376
    %v2316 = vunpack.c.h.b16 %v376
    %v2317 = vunpack.c.l.b16 %v377
    %v2318 = vunpack.c.h.b16 %v377
    %v2319 = vunpack.c.l.b16 %v378
    %v2320 = vunpack.c.h.b16 %v378
    %v2321 = vunpack.c.l.b16 %v379
    %v2322 = vunpack.c.h.b16 %v379
    %v2323 = vunpack.c.l.b16 %v380
    %v2324 = vunpack.c.h.b16 %v380
    %v2325 = vunpack.c.l.b16 %v381
    %v2326 = vunpack.c.h.b16 %v381
    %v2327 = vunpack.c.l.b16 %v382
    %v2328 = vunpack.c.h.b16 %v382
    %v2329 = vunpack.c.l.b16 %v383
    %v2330 = vunpack.c.h.b16 %v383
    %v2331 = vunpack.c.l.b16 %v384
    %v2332 = vunpack.c.h.b16 %v384
    %v2333 = vunpack.c.l.b16 %v385
    %v2334 = vunpack.c.h.b16 %v385
    %v2335 = vunpack.c.l.b16 %v386
    %v2336 = vunpack.c.h.b16 %v386
    %v2337 = vunpack.c.l.b16 %v387
    %v2338 = vunpack.c.h.b16 %v387
    %v2339 = vunpack.c.l.b16 %v388
    %v2340 = vunpack.c.h.b16 %v388
    %v2341 = vunpack.c.l.b16 %v389
    %v2342 = vunpack.c.h.b16 %v389
    %v2343 = vunpack.c.l.b16 %v390
    %v2344 = vunpack.c.h.b16 %v390
    %v2345 = vunpack.c.l.b16 %v391
    %v2346 = vunpack.c.h.b16 %v391
    %v2347 = vunpack.c.l.b16 %v392
    %v2348 = vunpack.c.h.b16 %v392
    %v2349 = vunpack.c.l.b16 %v393
    %v2350 = vunpack.c.h.b16 %v393
    %v2351 = vunpack.c.l.b16 %v394
    %v2352 = vunpack.c.h.b16 %v394
    %v2353 = vunpack.c.l.b16 %v395
    %v2354 = vunpack.c.h.b16 %v395
    %v2355 = vunpack.c.l.b16 %v396
    %v2356 = vunpack.c.h.b16 %v396
    %v2357 = vunpack.c.l.b16 %v397
    %v2358 = vunpack.c.h.b16 %v397
    %v2359 = vunpack.c.l.b16 %v398
    %v2360 = vunpack.c.h.b16 %v398
    %v2361 = vunpack.c.l.b16 %v399
    %v2362 = vunpack.c.h.b16 %v399
    %v2363 = vunpack.c.l.b16 %v400
    %v2364 = vunpack.c.h.b16 %v400
    %v2365 = vunpack.c.l.b16 %v401
    %v2366 = vunpack.c.h.b16 %v401
    %v2367 = vunpack.c.l.b16 %v402
    %v2368 = vunpack.c.h.b16 %v402
    %v2369 = vunpack.c.l.b16 %v403
    %v2370 = vunpack.c.h.b16 %v403
    %v2371 = vunpack.c.l.b16 %v404
    %v2372 = vunpack.c.h.b16 %v404
    %v2373 = vunpack.c.l.b16 %v405
    %v2374 = vunpack.c.h.b16 %v405
    %v2375 = vunpack.c.l.b16 %v406
    %v2376 = vunpack.c.h.b16 %v406
    %v2377 = vunpack.c.l.b16 %v407
    %v2378 = vunpack.c.h.b16 %v407
    %v2379 = vunpack.c.l.b16 %v408
    %v2380 = vunpack.c.h.b16 %v408
    %v2381 = vunpack.c.l.b16 %v409
    %v2382 = vunpack.c.h.b16 %v409
    %v2383 = vunpack.c.l.b16 %v410
    %v2384 = vunpack.c.h.b16 %v410
    %v2385 = vunpack.c.l.b16 %v411
    %v2386 = vunpack.c.h.b16 %v411
    %v2387 = vunpack.c.l.b16 %v412
    %v2388 = vunpack.c.h.b16 %v412
    %v2389 = vunpack.c.l.b16 %v413
    %v2390 = vunpack.c.h.b16 %v413
    %v2391 = vunpack.c.l.b16 %v414
    %v2392 = vunpack.c.h.b16 %v414
    %v2393 = vunpack.c.l.b16 %v415
    %v2394 = vunpack.c.h.b16 %v415
    %v2395 = vunpack.c.l.b16 %v416
    %v2396 = vunpack.c.h.b16 %v416
    %v2397 = vunpack.c.l.b16 %v417
    %v2398 = vunpack.c.h.b16 %v417
    %v2399 = vunpack.c.l.b16 %v418
    %v2400 = vunpack.c.h.b16 %v418
    %v2401 = vunpack.c.l.b16 %v419
    %v2402 = vunpack.c.h.b16 %v419
    %v2403 = vunpack.c.l.b16 %v420
    %v2404 = vunpack.c.h.b16 %v420
    %v2405 = vunpack.c.l.b16 %v421
    %v2406 = vunpack.c.h.b16 %v421
    %v2407 = vunpack.c.l.b16 %v422
    %v2408 = vunpack.c.h.b16 %v422
    %v2409 = vunpack.c.l.b16 %v423
    %v2410 = vunpack.c.h.b16 %v423
    %v2411 = vunpack.c.l.b16 %v424
    %v2412 = vunpack.c.h.b16 %v424
    %v2413 = vunpack.c.l.b16 %v425
    %v2414 = vunpack.c.h.b16 %v425
    %v2415 = vunpack.c.l.b16 %v426
    %v2416 = vunpack.c.h.b16 %v426
    %v2417 = vunpack.c.l.b16 %v427
    %v2418 = vunpack.c.h.b16 %v427
    %v2419 = vunpack.c.l.b16 %v428
    %v2420 = vunpack.c.h.b16 %v428
    %v2421 = vunpack.c.l.b16 %v429
    %v2422 = vunpack.c.h.b16 %v429
    %v2423 = vunpack.c.l.b16 %v430
    %v2424 = vunpack.c.h.b16 %v430
    %v2425 = vunpack.c.l.b16 %v431
    %v2426 = vunpack.c.h.b16 %v431
    %v2427 = vunpack.c.l.b16 %v432
    %v2428 = vunpack.c.h.b16 %v432
    %v2429 = vunpack.c.l.b16 %v433
    %v2430 = vunpack.c.h.b16 %v433
    %v2431 = vunpack.c.l.b16 %v434
    %v2432 = vunpack.c.h.b16 %v434
    %v2433 = vunpack.c.l.b16 %v435
    %v2434 = vunpack.c.h.b16 %v435
    %v2435 = vunpack.c.l.b16 %v436
    %v2436 = vunpack.c.h.b16 %v436
    %v2437 = vpack.c.b16 %v1687, %v1637
    %v2438 = vpack.c.b16 %v1688, %v1638
    %v2439 = vpack.c.b16 %v1689, %v1639
    %v2440 = vpack.c.b16 %v1690, %v1640
    %v2441 = vpack.c.b16 %v1691, %v1641
    %v2442 = vpack.c.b16 %v1692, %v1642
    %v2443 = vpack.c.b16 %v1693, %v1643
    %v2444 = vpack.c.b16 %v1694, %v1644
    %v2445 = vpack.c.b16 %v1695, %v1645
    %v2446 = vpack.c.b16 %v1696, %v1646
    %v2447 = vpack.c.b16 %v1697, %v1647
    %v2448 = vpack.c.b16 %v1698, %v1648
    %v2449 = vpack.c.b16 %v1699, %v1649
    %v2450 = vpack.c.b16 %v1700, %v1650
    %v2451 = vpack.c.b16 %v1701, %v1651
    %v2452 = vpack.c.b16 %v1702, %v1652
    %v2453 = vpack.c.b16 %v1703, %v1653
    %v2454 = vpack.c.b16 %v1704, %v1654
    %v2455 = vpack.c.b16 %v1705, %v1655
    %v2456 = vpack.c.b16 %v1706, %v1656
    %v2457 = vpack.c.b16 %v1707, %v1657
    %v2458 = vpack.c.b16 %v1708, %v1658
    %v2459 = vpack.c.b16 %v1709, %v1659
    %v2460 = vpack.c.b16 %v1710, %v1660
    %v2461 = vpack.c.b16 %v1711, %v1661
    %v2462 = vpack.c.b16 %v1712, %v1662
    %v2463 = vpack.c.b16 %v1713, %v1663
    %v2464 = vpack.c.b16 %v1714, %v1664
    %v2465 = vpack.c.b16 %v1715, %v1665
    %v2466 = vpack.c.b16 %v1716, %v1666
    %v2467 = vpack.c.b16 %v1717, %v1667
    %v2468 = vpack.c.b16 %v1718, %v1668
    %v2469 = vpack.c.b16 %v1719, %v1669
    %v2470 = vpack.c.b16 %v1720, %v1670
    %v2471 = vpack.c.b16 %v1721, %v1671
    %v2472 = vpack.c.b16 %v1722, %v1672
    %v2473 = vpack.c.b16 %v1723, %v1673
    %v2474 = vpack.c.b16 %v1724, %v1674
    %v2475 = vpack.c.b16 %v1725, %v1675
    %v2476 = vpack.c.b16 %v1726, %v1676
    %v2477 = vpack.c.b16 %v1727, %v1677
    %v2478 = vpack.c.b16 %v1728, %v1678
    %v2479 = vpack.c.b16 %v1729, %v1679
    %v2480 = vpack.c.b16 %v1730, %v1680
    %v2481 = vpack.c.b16 %v1731, %v1681
    %v2482 = vpack.c.b16 %v1732, %v1682
    %v2483 = vpack.c.b16 %v1733, %v1683
    %v2484 = vpack.c.b16 %v1734, %v1684
    %v2485 = vpack.c.b16 %v1735, %v1685
    %v2486 = vpack.c.b16 %v1736, %v1686
    %v2487 = vpack.c.b16 %v1787, %v1737
    %v2488 = vpack.c.b16 %v1788, %v1738
    %v2489 = vpack.c.b16 %v1789, %v1739
    %v2490 = vpack.c.b16 %v1790, %v1740
    %v2491 = vpack.c.b16 %v1791, %v1741
    %v2492 = vpack.c.b16 %v1792, %v1742
    %v2493 = vpack.c.b16 %v1793, %v1743
    %v2494 = vpack.c.b16 %v1794, %v1744
    %v2495 = vpack.c.b16 %v1795, %v1745
    %v2496 = vpack.c.b16 %v1796, %v1746
    %v2497 = vpack.c.b16 %v1797, %v1747
    %v2498 = vpack.c.b16 %v1798, %v1748
    %v2499 = vpack.c.b16 %v1799, %v1749
    %v2500 = vpack.c.b16 %v1800, %v1750
    %v2501 = vpack.c.b16 %v1801, %v1751
    %v2502 = vpack.c.b16 %v1802, %v1752
    %v2503 = vpack.c.b16 %v1803, %v1753
    %v2504 = vpack.c.b16 %v1804, %v1754
    %v2505 = vpack.c.b16 %v1805, %v1755
    %v2506 = vpack.c.b16 %v1806, %v1756
    %v2507 = vpack.c.b16 %v1807, %v1757
    %v2508 = vpack.c.b16 %v1808, %v1758
    %v2509 = vpack.c.b16 %v1809, %v1759
    %v2510 = vpack.c.b16 %v1810, %v1760
    %v2511 = vpack.c.b16 %v1811, %v1761
    %v2512 = vpack.c.b16 %v1812, %v1762
    %v2513 = vpack.c.b16 %v1813, %v1763
    %v2514 = vpack.c.b16 %v1814, %v1764
    %v2515 = vpack.c.b16 %v1815, %v1765
    %v2516 = vpack.c.b16 %v1816, %v1766
    %v2517 = vpack.c.b16 %v1817, %v1767
    %v2518 = vpack.c.b16 %v1818, %v1768
    %v2519 = vpack.c.b16 %v1819, %v1769
    %v2520 = vpack.c.b16 %v1820, %v1770
    %v2521 = vpack.c.b16 %v1821, %v1771
    %v2522 = vpack.c.b16 %v1822, %v1772
    %v2523 = vpack.c.b16 %v1823, %v1773
    %v2524 = vpack.c.b16 %v1824, %v1774
    %v2525 = vpack.c.b16 %v1825, %v1775
    %v2526 = vpack.c.b16 %v1826, %v1776
    %v2527 = vpack.c.b16 %v1827, %v1777
    %v2528 = vpack.c.b16 %v1828, %v1778
    %v2529 = vpack.c.b16 %v1829, %v1779
    %v2530 = vpack.c.b16 %v1830, %v1780
    %v2531 = vpack.c.b16 %v1831, %v1781
    %v2532 = vpack.c.b16 %v1832, %v1782
    %v2533 = vpack.c.b16 %v1833, %v1783
    %v2534 = vpack.c.b16 %v1834, %v1784
    %v2535 = vpack.c.b16 %v1835, %v1785
    %v2536 = vpack.c.b16 %v1836, %v1786
    %v2537 = vpack.c.b16 %v1887, %v1837
    %v2538 = vpack.c.b16 %v1888, %v1838
    %v2539 = vpack.c.b16 %v1889, %v1839
    %v2540 = vpack.c.b16 %v1890, %v1840
    %v2541 = vpack.c.b16 %v1891, %v1841
    %v2542 = vpack.c.b16 %v1892, %v1842
    %v2543 = vpack.c.b16 %v1893, %v1843
    %v2544 = vpack.c.b16 %v1894, %v1844
    %v2545 = vpack.c.b16 %v1895, %v1845
    %v2546 = vpack.c.b16 %v1896, %v1846
    %v2547 = vpack.c.b16 %v1897, %v1847
    %v2548 = vpack.c.b16 %v1898, %v1848
    %v2549 = vpack.c.b16 %v1899, %v1849
    %v2550 = vpack.c.b16 %v1900, %v1850
    %v2551 = vpack.c.b16 %v1901, %v1851
    %v2552 = vpack.c.b16 %v1902, %v1852
    %v2553 = vpack.c.b16 %v1903, %v1853
    %v2554 = vpack.c.b16 %v1904, %v1854
    %v2555 = vpack.c.b16 %v1905, %v1855
    %v2556 = vpack.c.b16 %v1906, %v1856
    %v2557 = vpack.c.b16 %v1907, %v1857
    %v2558 = vpack.c.b16 %v1908, %v1858
    %v2559 = vpack.c.b16 %v1909, %v1859
    %v2560 = vpack.c.b16 %v1910, %v1860
    %v2561 = vpack.c.b16 %v1911, %v1861
    %v2562 = vpack.c.b16 %v1912, %v1862
    %v2563 = vpack.c.b16 %v1913, %v1863
    %v2564 = vpack.c.b16 %v1914, %v1864
    %v2565 = vpack.c.b16 %v1915, %v1865
    %v2566 = vpack.c.b16 %v1916, %v1866
    %v2567 = vpack.c.b16 %v1917, %v1867
    %v2568 = vpack.c.b16 %v1918, %v1868
    %v2569 = vpack.c.b16 %v1919, %v1869
    %v2570 = vpack.c.b16 %v1920, %v1870
    %v2571 = vpack.c.b16 %v1921, %v1871
    %v2572 = vpack.c.b16 %v1922, %v1872
    %v2573 = vpack.c.b16 %v1923, %v1873
    %v2574 = vpack.c.b16 %v1924, %v1874
    %v2575 = vpack.c.b16 %v1925, %v1875
    %v2576 = vpack.c.b16 %v1926, %v1876
    %v2577 = vpack.c.b16 %v1927, %v1877
    %v2578 = vpack.c.b16 %v1928, %v1878
    %v2579 = vpack.c.b16 %v1929, %v1879
    %v2580 = vpack.c.b16 %v1930, %v1880
    %v2581 = vpack.c.b16 %v1931, %v1881
    %v2582 = vpack.c.b16 %v1932, %v1882
    %v2583 = vpack.c.b16 %v1933, %v1883
    %v2584 = vpack.c.b16 %v1934, %v1884
    %v2585 = vpack.c.b16 %v1935, %v1885
    %v2586 = vpack.c.b16 %v1936, %v1886
    %v2587 = vpack.c.b16 %v1987, %v1937
    %v2588 = vpack.c.b16 %v1988, %v1938
    %v2589 = vpack.c.b16 %v1989, %v1939
    %v2590 = vpack.c.b16 %v1990, %v1940
    %v2591 = vpack.c.b16 %v1991, %v1941
    %v2592 = vpack.c.b16 %v1992, %v1942
    %v2593 = vpack.c.b16 %v1993, %v1943
    %v2594 = vpack.c.b16 %v1994, %v1944
    %v2595 = vpack.c.b16 %v1995, %v1945
    %v2596 = vpack.c.b16 %v1996, %v1946
    %v2597 = vpack.c.b16 %v1997, %v1947
    %v2598 = vpack.c.b16 %v1998, %v1948
    %v2599 = vpack.c.b16 %v1999, %v1949
    %v2600 = vpack.c.b16 %v2000, %v1950
    %v2601 = vpack.c.b16 %v2001, %v1951
    %v2602 = vpack.c.b16 %v2002, %v1952
    %v2603 = vpack.c.b16 %v2003, %v1953
    %v2604 = vpack.c.b16 %v2004, %v1954
    %v2605 = vpack.c.b16 %v2005, %v1955
    %v2606 = vpack.c.b16 %v2006, %v1956
    %v2607 = vpack.c.b16 %v2007, %v1957
    %v2608 = vpack.c.b16 %v2008, %v1958
    %v2609 = vpack.c.b16 %v2009, %v1959
    %v2610 = vpack.c.b16 %v2010, %v1960
    %v2611 = vpack.c.b16 %v2011, %v1961
    %v2612 = vpack.c.b16 %v2012, %v1962
    %v2613 = vpack.c.b16 %v2013, %v1963
    %v2614 = vpack.c.b16 %v2014, %v1964
    %v2615 = vpack.c.b16 %v2015, %v1965
    %v2616 = vpack.c.b16 %v2016, %v1966
    %v2617 = vpack.c.b16 %v2017, %v1967
    %v2618 = vpack.c.b16 %v2018, %v1968
    %v2619 = vpack.c.b16 %v2019, %v1969
    %v2620 = vpack.c.b16 %v2020, %v1970
    %v2621 = vpack.c.b16 %v2021, %v1971
    %v2622 = vpack.c.b16 %v2022, %v1972
    %v2623 = vpack.c.b16 %v2023, %v1973
    %v2624 = vpack.c.b16 %v2024, %v1974
    %v2625 = vpack.c.b16 %v2025, %v1975
    %v2626 = vpack.c.b16 %v2026, %v1976
    %v2627 = vpack.c.b16 %v2027, %v1977
    %v2628 = vpack.c.b16 %v2028, %v1978
    %v2629 = vpack.c.b16 %v2029, %v1979
    %v2630 = vpack.c.b16 %v2030, %v1980
    %v2631 = vpack.c.b16 %v2031, %v1981
    %v2632 = vpack.c.b16 %v2032, %v1982
    %v2633 = vpack.c.b16 %v2033, %v1983
    %v2634 = vpack.c.b16 %v2034, %v1984
    %v2635 = vpack.c.b16 %v2035, %v1985
    %v2636 = vpack.c.b16 %v2036, %v1986
    %v2637 = vpack.c.b16 %v2087, %v2037
    %v2638 = vpack.c.b16 %v2088, %v2038
    %v2639 = vpack.c.b16 %v2089, %v2039
    %v2640 = vpack.c.b16 %v2090, %v2040
    %v2641 = vpack.c.b16 %v2091, %v2041
    %v2642 = vpack.c.b16 %v2092, %v2042
    %v2643 = vpack.c.b16 %v2093, %v2043
    %v2644 = vpack.c.b16 %v2094, %v2044
    %v2645 = vpack.c.b16 %v2095, %v2045
    %v2646 = vpack.c.b16 %v2096, %v2046
    %v2647 = vpack.c.b16 %v2097, %v2047
    %v2648 = vpack.c.b16 %v2098, %v2048
    %v2649 = vpack.c.b16 %v2099, %v2049
    %v2650 = vpack.c.b16 %v2100, %v2050
    %v2651 = vpack.c.b16 %v2101, %v2051
    %v2652 = vpack.c.b16 %v2102, %v2052
    %v2653 = vpack.c.b16 %v2103, %v2053
    %v2654 = vpack.c.b16 %v2104, %v2054
    %v2655 = vpack.c.b16 %v2105, %v2055
    %v2656 = vpack.c.b16 %v2106, %v2056
    %v2657 = vpack.c.b16 %v2107, %v2057
    %v2658 = vpack.c.b16 %v2108, %v2058
    %v2659 = vpack.c.b16 %v2109, %v2059
    %v2660 = vpack.c.b16 %v2110, %v2060
    %v2661 = vpack.c.b16 %v2111, %v2061
    %v2662 = vpack.c.b16 %v2112, %v2062
    %v2663 = vpack.c.b16 %v2113, %v2063
    %v2664 = vpack.c.b16 %v2114, %v2064
    %v2665 = vpack.c.b16 %v2115, %v2065
    %v2666 = vpack.c.b16 %v2116, %v2066
    %v2667 = vpack.c.b16 %v2117, %v2067
    %v2668 = vpack.c.b16 %v2118, %v2068
    %v2669 = vpack.c.b16 %v2119, %v2069
    %v2670 = vpack.c.b16 %v2120, %v2070
    %v2671 = vpack.c.b16 %v2121, %v2071
    %v2672 = vpack.c.b16 %v2122, %v2072
    %v2673 = vpack.c.b16 %v2123, %v2073
    %v2674 = vpack.c.b16 %v2124, %v2074
    %v2675 = vpack.c.b16 %v2125, %v2075
    %v2676 = vpack.c.b16 %v2126, %v2076
    %v2677 = vpack.c.b16 %v2127, %v2077
    %v2678 = vpack.c.b16 %v2128, %v2078
    %v2679 = vpack.c.b16 %v2129, %v2079
    %v2680 = vpack.c.b16 %v2130, %v2080
    %v2681 = vpack.c.b16 %v2131, %v2081
    %v2682 = vpack.c.b16 %v2132, %v2082
    %v2683 = vpack.c.b16 %v2133, %v2083
    %v2684 = vpack.c.b16 %v2134, %v2084
    %v2685 = vpack.c.b16 %v2135, %v2085
    %v2686 = vpack.c.b16 %v2136, %v2086
    %v2687 = vpack.c.b16 %v2187, %v2137
    %v2688 = vpack.c.b16 %v2188, %v2138
    %v2689 = vpack.c.b16 %v2189, %v2139
    %v2690 = vpack.c.b16 %v2190, %v2140
    %v2691 = vpack.c.b16 %v2191, %v2141
    %v2692 = vpack.c.b16 %v2192, %v2142
    %v2693 = vpack.c.b16 %v2193, %v2143
    %v2694 = vpack.c.b16 %v2194, %v2144
    %v2695 = vpack.c.b16 %v2195, %v2145
    %v2696 = vpack.c.b16 %v2196, %v2146
    %v2697 = vpack.c.b16 %v2197, %v2147
    %v2698 = vpack.c.b16 %v2198, %v2148
    %v2699 = vpack.c.b16 %v2199, %v2149
    %v2700 = vpack.c.b16 %v2200, %v2150
    %v2701 = vpack.c.b16 %v2201, %v2151
    %v2702 = vpack.c.b16 %v2202, %v2152
    %v2703 = vpack.c.b16 %v2203, %v2153
    %v2704 = vpack.c.b16 %v2204, %v2154
    %v2705 = vpack.c.b16 %v2205, %v2155
    %v2706 = vpack.c.b16 %v2206, %v2156
    %v2707 = vpack.c.b16 %v2207, %v2157
    %v2708 = vpack.c.b16 %v2208, %v2158
    %v2709 = vpack.c.b16 %v2209, %v2159
    %v2710 = vpack.c.b16 %v2210, %v2160
    %v2711 = vpack.c.b16 %v2211, %v2161
    %v2712 = vpack.c.b16 %v2212, %v2162
    %v2713 = vpack.c.b16 %v2213, %v2163
    %v2714 = vpack.c.b16 %v2214, %v2164
    %v2715 = vpack.c.b16 %v2215, %v2165
    %v2716 = vpack.c.b16 %v2216, %v2166
    %v2717 = vpack.c.b16 %v2217, %v2167
    %v2718 = vpack.c.b16 %v2218, %v2168
    %v2719 = vpack.c.b16 %v2219, %v2169
    %v2720 = vpack.c.b16 %v2220, %v2170
    %v2721 = vpack.c.b16 %v2221, %v2171
    %v2722 = vpack.c.b16 %v2222, %v2172
    %v2723 = vpack.c.b16 %v2223, %v2173
    %v2724 = vpack.c.b16 %v2224, %v2174
    %v2725 = vpack.c.b16 %v2225, %v2175
    %v2726 = vpack.c.b16 %v2226, %v2176
    %v2727 = vpack.c.b16 %v2227, %v2177
    %v2728 = vpack.c.b16 %v2228, %v2178
    %v2729 = vpack.c.b16 %v2229, %v2179
    %v2730 = vpack.c.b16 %v2230, %v2180
    %v2731 = vpack.c.b16 %v2231, %v2181
    %v2732 = vpack.c.b16 %v2232, %v2182
    %v2733 = vpack.c.b16 %v2233, %v2183
    %v2734 = vpack.c.b16 %v2234, %v2184
    %v2735 = vpack.c.b16 %v2235, %v2185
    %v2736 = vpack.c.b16 %v2236, %v2186
    %v2737 = vpack.c.b16 %v2287, %v2237
    %v2738 = vpack.c.b16 %v2288, %v2238
    %v2739 = vpack.c.b16 %v2289, %v2239
    %v2740 = vpack.c.b16 %v2290, %v2240
    %v2741 = vpack.c.b16 %v2291, %v2241
    %v2742 = vpack.c.b16 %v2292, %v2242
    %v2743 = vpack.c.b16 %v2293, %v2243
    %v2744 = vpack.c.b16 %v2294, %v2244
    %v2745 = vpack.c.b16 %v2295, %v2245
    %v2746 = vpack.c.b16 %v2296, %v2246
    %v2747 = vpack.c.b16 %v2297, %v2247
    %v2748 = vpack.c.b16 %v2298, %v2248
    %v2749 = vpack.c.b16 %v2299, %v2249
    %v2750 = vpack.c.b16 %v2300, %v2250
    %v2751 = vpack.c.b16 %v2301, %v2251
    %v2752 = vpack.c.b16 %v2302, %v2252
    %v2753 = vpack.c.b16 %v2303, %v2253
    %v2754 = vpack.c.b16 %v2304, %v2254
    %v2755 = vpack.c.b16 %v2305, %v2255
    %v2756 = vpack.c.b16 %v2306, %v2256
    %v2757 = vpack.c.b16 %v2307, %v2257
    %v2758 = vpack.c.b16 %v2308, %v2258
    %v2759 = vpack.c.b16 %v2309, %v2259
    %v2760 = vpack.c.b16 %v2310, %v2260
    %v2761 = vpack.c.b16 %v2311, %v2261
    %v2762 = vpack.c.b16 %v2312, %v2262
    %v2763 = vpack.c.b16 %v2313, %v2263
    %v2764 = vpack.c.b16 %v2314, %v2264
    %v2765 = vpack.c.b16 %v2315, %v2265
    %v2766 = vpack.c.b16 %v2316, %v2266
    %v2767 = vpack.c.b16 %v2317, %v2267
    %v2768 = vpack.c.b16 %v2318, %v2268
    %v2769 = vpack.c.b16 %v2319, %v2269
    %v2770 = vpack.c.b16 %v2320, %v2270
    %v2771 = vpack.c.b16 %v2321, %v2271
    %v2772 = vpack.c.b16 %v2322, %v2272
    %v2773 = vpack.c.b16 %v2323, %v2273
    %v2774 = vpack.c.b16 %v2324, %v2274
    %v2775 = vpack.c.b16 %v2325, %v2275
    %v2776 = vpack.c.b16 %v2326, %v2276
    %v2777 = vpack.c.b16 %v2327, %v2277
    %v2778 = vpack.c.b16 %v2328, %v2278
    %v2779 = vpack.c.b16 %v2329, %v2279
    %v2780 = vpack.c.b16 %v2330, %v2280
    %v2781 = vpack.c.b16 %v2331, %v2281
    %v2782 = vpack.c.b16 %v2332, %v2282
    %v2783 = vpack.c.b16 %v2333, %v2283
    %v2784 = vpack.c.b16 %v2334, %v2284
    %v2785 = vpack.c.b16 %v2335, %v2285
    %v2786 = vpack.c.b16 %v2336, %v2286
    %v2787 = vpack.c.b16 %v2387, %v2337
    %v2788 = vpack.c.b16 %v2388, %v2338
    %v2789 = vpack.c.b16 %v2389, %v2339
    %v2790 = vpack.c.b16 %v2390, %v2340
    %v2791 = vpack.c.b16 %v2391, %v2341
    %v2792 = vpack.c.b16 %v2392, %v2342
    %v2793 = vpack.c.b16 %v2393, %v2343
    %v2794 = vpack.c.b16 %v2394, %v2344
    %v2795 = vpack.c.b16 %v2395, %v2345
    %v2796 = vpack.c.b16 %v2396, %v2346
    %v2797 = vpack.c.b16 %v2397, %v2347
    %v2798 = vpack.c.b16 %v2398, %v2348
    %v2799 = vpack.c.b16 %v2399, %v2349
    %v2800 = vpack.c.b16 %v2400, %v2350
    %v2801 = vpack.c.b16 %v2401, %v2351
    %v2802 = vpack.c.b16 %v2402, %v2352
    %v2803 = vpack.c.b16 %v2403, %v2353
    %v2804 = vpack.c.b16 %v2404, %v2354
    %v2805 = vpack.c.b16 %v2405, %v2355
    %v2806 = vpack.c.b16 %v2406, %v2356
    %v2807 = vpack.c.b16 %v2407, %v2357
    %v2808 = vpack.c.b16 %v2408, %v2358
    %v2809 = vpack.c.b16 %v2409, %v2359
    %v2810 = vpack.c.b16 %v2410, %v2360
    %v2811 = vpack.c.b16 %v2411, %v2361
    %v2812 = vpack.c.b16 %v2412, %v2362
    %v2813 = vpack.c.b16 %v2413, %v2363
    %v2814 = vpack.c.b16 %v2414, %v2364
    %v2815 = vpack.c.b16 %v2415, %v2365
    %v2816 = vpack.c.b16 %v2416, %v2366
    %v2817 = vpack.c.b16 %v2417, %v2367
    %v2818 = vpack.c.b16 %v2418, %v2368
    %v2819 = vpack.c.b16 %v2419, %v2369
    %v2820 = vpack.c.b16 %v2420, %v2370
    %v2821 = vpack.c.b16 %v2421, %v2371
    %v2822 = vpack.c.b16 %v2422, %v2372
    %v2823 = vpack.c.b16 %v2423, %v2373
    %v2824 = vpack.c.b16 %v2424, %v2374
    %v2825 = vpack.c.b16 %v2425, %v2375
    %v2826 = vpack.c.b16 %v2426, %v2376
    %v2827 = vpack.c.b16 %v2427, %v2377
    %v2828 = vpack.c.b16 %v2428, %v2378
    %v2829 = vpack.c.b16 %v2429, %v2379
    %v2830 = vpack.c.b16 %v2430, %v2380
    %v2831 = vpack.c.b16 %v2431, %v2381
    %v2832 = vpack.c.b16 %v2432, %v2382
    %v2833 = vpack.c.b16 %v2433, %v2383
    %v2834 = vpack.c.b16 %v2434, %v2384
    %v2835 = vpack.c.b16 %v2435, %v2385
    %v2836 = vpack.c.b16 %v2436, %v2386
    %v4037 = vunpack.c.l.b16 %v437
    %v4038 = vunpack.c.l.b16 %v438
    %v4039 = vunpack.c.l.b16 %v439
    %v4040 = vunpack.c.l.b16 %v440
    %v4041 = vunpack.c.l.b16 %v441
    %v4042 = vunpack.c.l.b16 %v442
    %v4043 = vunpack.c.l.b16 %v443
    %v4044 = vunpack.c.l.b16 %v444
    %v4045 = vunpack.c.l.b16 %v445
    %v4046 = vunpack.c.l.b16 %v446
    %v4047 = vunpack.c.l.b16 %v447
    %v4048 = vunpack.c.l.b16 %v448
    %v4049 = vunpack.c.l.b16 %v449
    %v4050 = vunpack.c.l.b16 %v450
    %v4051 = vunpack.c.l.b16 %v451
    %v4052 = vunpack.c.l.b16 %v452
    %v4053 = vunpack.c.l.b16 %v453
    %v4054 = vunpack.c.l.b16 %v454
    %v4055 = vunpack.c.l.b16 %v455
    %v4056 = vunpack.c.l.b16 %v456
    %v4057 = vunpack.c.l.b16 %v457
    %v4058 = vunpack.c.l.b16 %v458
    %v4059 = vunpack.c.l.b16 %v459
    %v4060 = vunpack.c.l.b16 %v460
    %v4061 = vunpack.c.l.b16 %v461
    %v4062 = vunpack.c.l.b16 %v462
    %v4063 = vunpack.c.l.b16 %v463
    %v4064 = vunpack.c.l.b16 %v464
    %v4065 = vunpack.c.l.b16 %v465
    %v4066 = vunpack.c.l.b16 %v466
    %v4067 = vunpack.c.l.b16 %v467
    %v4068 = vunpack.c.l.b16 %v468
    %v4069 = vunpack.c.l.b16 %v469
    %v4070 = vunpack.c.l.b16 %v470
    %v4071 = vunpack.c.l.b16 %v471
    %v4072 = vunpack.c.l.b16 %v472
    %v4073 = vunpack.c.l.b16 %v473
    %v4074 = vunpack.c.l.b16 %v474
    %v4075 = vunpack.c.l.b16 %v475
    %v4076 = vunpack.c.l.b16 %v476
    %v4077 = vunpack.c.l.b16 %v477
    %v4078 = vunpack.c.l.b16 %v478
    %v4079 = vunpack.c.l.b16 %v479
    %v4080 = vunpack.c.l.b16 %v480
    %v4081 = vunpack.c.l.b16 %v481
    %v4082 = vunpack.c.l.b16 %v482
    %v4083 = vunpack.c.l.b16 %v483
    %v4084 = vunpack.c.l.b16 %v484
    %v4085 = vunpack.c.l.b16 %v485
    %v4086 = vunpack.c.l.b16 %v486
    %v4087 = vunpack.c.l.b16 %v487
    %v4088 = vunpack.c.l.b16 %v488
    %v4089 = vunpack.c.l.b16 %v489
    %v4090 = vunpack.c.l.b16 %v490
    %v4091 = vunpack.c.l.b16 %v491
    %v4092 = vunpack.c.l.b16 %v492
    %v4093 = vunpack.c.l.b16 %v493
    %v4094 = vunpack.c.l.b16 %v494
    %v4095 = vunpack.c.l.b16 %v495
    %v4096 = vunpack.c.l.b16 %v496
    %v4097 = vunpack.c.l.b16 %v497
    %v4098 = vunpack.c.l.b16 %v498
    %v4099 = vunpack.c.l.b16 %v499
    %v4100 = vunpack.c.l.b16 %v500
    %v4101 = vunpack.c.l.b16 %v501
    %v4102 = vunpack.c.l.b16 %v502
    %v4103 = vunpack.c.l.b16 %v503
    %v4104 = vunpack.c.l.b16 %v504
    %v4105 = vunpack.c.l.b16 %v505
    %v4106 = vunpack.c.l.b16 %v506
    %v4107 = vunpack.c.l.b16 %v507
    %v4108 = vunpack.c.l.b16 %v508
    %v4109 = vunpack.c.l.b16 %v509
    %v4110 = vunpack.c.l.b16 %v510
    %v4111 = vunpack.c.l.b16 %v511
    %v4112 = vunpack.c.l.b16 %v512
    %v4113 = vunpack.c.l.b16 %v513
    %v4114 = vunpack.c.l.b16 %v514
    %v4115 = vunpack.c.l.b16 %v515
    %v4116 = vunpack.c.l.b16 %v516
    %v4117 = vunpack.c.l.b16 %v517
    %v4118 = vunpack.c.l.b16 %v518
    %v4119 = vunpack.c.l.b16 %v519
    %v4120 = vunpack.c.l.b16 %v520
    %v4121 = vunpack.c.l.b16 %v521
    %v4122 = vunpack.c.l.b16 %v522
    %v4123 = vunpack.c.l.b16 %v523
    %v4124 = vunpack.c.l.b16 %v524
    %v4125 = vunpack.c.l.b16 %v525
    %v4126 = vunpack.c.l.b16 %v526
    %v4127 = vunpack.c.l.b16 %v527
    %v4128 = vunpack.c.l.b16 %v528
    %v4129 = vunpack.c.l.b16 %v529
    %v4130 = vunpack.c.l.b16 %v530
    %v4131 = vunpack.c.l.b16 %v531
    %v4132 = vunpack.c.l.b16 %v532
    %v4133 = vunpack.c.l.b16 %v533
    %v4134 = vunpack.c.l.b16 %v534
    %v4135 = vunpack.c.l.b16 %v535
    %v4136 = vunpack.c.l.b16 %v536
    %v4137 = vunpack.c.l.b16 %v537
    %v4138 = vunpack.c.l.b16 %v538
    %v4139 = vunpack.c.l.b16 %v539
    %v4140 = vunpack.c.l.b16 %v540
    %v4141 = vunpack.c.l.b16 %v541
    %v4142 = vunpack.c.l.b16 %v542
    %v4143 = vunpack.c.l.b16 %v543
    %v4144 = vunpack.c.l.b16 %v544
    %v4145 = vunpack.c.l.b16 %v545
    %v4146 = vunpack.c.l.b16 %v546
    %v4147 = vunpack.c.l.b16 %v547
    %v4148 = vunpack.c.l.b16 %v548
    %v4149 = vunpack.c.l.b16 %v549
    %v4150 = vunpack.c.l.b16 %v550
    %v4151 = vunpack.c.l.b16 %v551
    %v4152 = vunpack.c.l.b16 %v552
    %v4153 = vunpack.c.l.b16 %v553
    %v4154 = vunpack.c.l.b16 %v554
    %v4155 = vunpack.c.l.b16 %v555
    %v4156 = vunpack.c.l.b16 %v556
    %v4157 = vunpack.c.l.b16 %v557
    %v4158 = vunpack.c.l.b16 %v558
    %v4159 = vunpack.c.l.b16 %v559
    %v4160 = vunpack.c.l.b16 %v560
    %v4161 = vunpack.c.l.b16 %v561
    %v4162 = vunpack.c.l.b16 %v562
    %v4163 = vunpack.c.l.b16 %v563
    %v4164 = vunpack.c.l.b16 %v564
    %v4165 = vunpack.c.l.b16 %v565
    %v4166 = vunpack.c.l.b16 %v566
    %v4167 = vunpack.c.l.b16 %v567
    %v4168 = vunpack.c.l.b16 %v568
    %v4169 = vunpack.c.l.b16 %v569
    %v4170 = vunpack.c.l.b16 %v570
    %v4171 = vunpack.c.l.b16 %v571
    %v4172 = vunpack.c.l.b16 %v572
    %v4173 = vunpack.c.l.b16 %v573
    %v4174 = vunpack.c.l.b16 %v574
    %v4175 = vunpack.c.l.b16 %v575
    %v4176 = vunpack.c.l.b16 %v576
    %v4177 = vunpack.c.l.b16 %v577
    %v4178 = vunpack.c.l.b16 %v578
    %v4179 = vunpack.c.l.b16 %v579
    %v4180 = vunpack.c.l.b16 %v580
    %v4181 = vunpack.c.l.b16 %v581
    %v4182 = vunpack.c.l.b16 %v582
    %v4183 = vunpack.c.l.b16 %v583
    %v4184 = vunpack.c.l.b16 %v584
    %v4185 = vunpack.c.l.b16 %v585
    %v4186 = vunpack.c.l.b16 %v586
    %v4187 = vunpack.c.l.b16 %v587
    %v4188 = vunpack.c.l.b16 %v588
    %v4189 = vunpack.c.l.b16 %v589
    %v4190 = vunpack.c.l.b16 %v590
    %v4191 = vunpack.c.l.b16 %v591
    %v4192 = vunpack.c.l.b16 %v592
    %v4193 = vunpack.c.l.b16 %v593
    %v4194 = vunpack.c.l.b16 %v594
    %v4195 = vunpack.c.l.b16 %v595
    %v4196 = vunpack.c.l.b16 %v596
    %v4197 = vunpack.c.l.b16 %v597
    %v4198 = vunpack.c.l.b16 %v598
    %v4199 = vunpack.c.l.b16 %v599
    %v4200 = vunpack.c.l.b16 %v600
    %v4201 = vunpack.c.l.b16 %v601
    %v4202 = vunpack.c.l.b16 %v602
    %v4203 = vunpack.c.l.b16 %v603
    %v4204 = vunpack.c.l.b16 %v604
    %v4205 = vunpack.c.l.b16 %v605
    %v4206 = vunpack.c.l.b16 %v606
    %v4207 = vunpack.c.l.b16 %v607
    %v4208 = vunpack.c.l.b16 %v608
    %v4209 = vunpack.c.l.b16 %v609
    %v4210 = vunpack.c.l.b16 %v610
    %v4211 = vunpack.c.l.b16 %v611
    %v4212 = vunpack.c.l.b16 %v612
    %v4213 = vunpack.c.l.b16 %v613
    %v4214 = vunpack.c.l.b16 %v614
    %v4215 = vunpack.c.l.b16 %v615
    %v4216 = vunpack.c.l.b16 %v616
    %v4217 = vunpack.c.l.b16 %v617
    %v4218 = vunpack.c.l.b16 %v618
    %v4219 = vunpack.c.l.b16 %v619
    %v4220 = vunpack.c.l.b16 %v620
    %v4221 = vunpack.c.l.b16 %v621
    %v4222 = vunpack.c.l.b16 %v622
    %v4223 = vunpack.c.l.b16 %v623
    %v4224 = vunpack.c.l.b16 %v624
    %v4225 = vunpack.c.l.b16 %v625
    %v4226 = vunpack.c.l.b16 %v626
    %v4227 = vunpack.c.l.b16 %v627
    %v4228 = vunpack.c.l.b16 %v628
    %v4229 = vunpack.c.l.b16 %v629
    %v4230 = vunpack.c.l.b16 %v630
    %v4231 = vunpack.c.l.b16 %v631
    %v4232 = vunpack.c.l.b16 %v632
    %v4233 = vunpack.c.l.b16 %v633
    %v4234 = vunpack.c.l.b16 %v634
    %v4235 = vunpack.c.l.b16 %v635
    %v4236 = vunpack.c.l.b16 %v636
    %v4237 = vunpack.c.l.b16 %v637
    %v4238 = vunpack.c.l.b16 %v638
    %v4239 = vunpack.c.l.b16 %v639
    %v4240 = vunpack.c.l.b16 %v640
    %v4241 = vunpack.c.l.b16 %v641
    %v4242 = vunpack.c.l.b16 %v642
    %v4243 = vunpack.c.l.b16 %v643
    %v4244 = vunpack.c.l.b16 %v644
    %v4245 = vunpack.c.l.b16 %v645
    %v4246 = vunpack.c.l.b16 %v646
    %v4247 = vunpack.c.l.b16 %v647
    %v4248 = vunpack.c.l.b16 %v648
    %v4249 = vunpack.c.l.b16 %v649
    %v4250 = vunpack.c.l.b16 %v650
    %v4251 = vunpack.c.l.b16 %v651
    %v4252 = vunpack.c.l.b16 %v652
    %v4253 = vunpack.c.l.b16 %v653
    %v4254 = vunpack.c.l.b16 %v654
    %v4255 = vunpack.c.l.b16 %v655
    %v4256 = vunpack.c.l.b16 %v656
    %v4257 = vunpack.c.l.b16 %v657
    %v4258 = vunpack.c.l.b16 %v658
    %v4259 = vunpack.c.l.b16 %v659
    %v4260 = vunpack.c.l.b16 %v660
    %v4261 = vunpack.c.l.b16 %v661
    %v4262 = vunpack.c.l.b16 %v662
    %v4263 = vunpack.c.l.b16 %v663
    %v4264 = vunpack.c.l.b16 %v664
    %v4265 = vunpack.c.l.b16 %v665
    %v4266 = vunpack.c.l.b16 %v666
    %v4267 = vunpack.c.l.b16 %v667
    %v4268 = vunpack.c.l.b16 %v668
    %v4269 = vunpack.c.l.b16 %v669
    %v4270 = vunpack.c.l.b16 %v670
    %v4271 = vunpack.c.l.b16 %v671
    %v4272 = vunpack.c.l.b16 %v672
    %v4273 = vunpack.c.l.b16 %v673
    %v4274 = vunpack.c.l.b16 %v674
    %v4275 = vunpack.c.l.b16 %v675
    %v4276 = vunpack.c.l.b16 %v676
    %v4277 = vunpack.c.l.b16 %v677
    %v4278 = vunpack.c.l.b16 %v678
    %v4279 = vunpack.c.l.b16 %v679
    %v4280 = vunpack.c.l.b16 %v680
    %v4281 = vunpack.c.l.b16 %v681
    %v4282 = vunpack.c.l.b16 %v682
    %v4283 = vunpack.c.l.b16 %v683
    %v4284 = vunpack.c.l.b16 %v684
    %v4285 = vunpack.c.l.b16 %v685
    %v4286 = vunpack.c.l.b16 %v686
    %v4287 = vunpack.c.l.b16 %v687
    %v4288 = vunpack.c.l.b16 %v688
    %v4289 = vunpack.c.l.b16 %v689
    %v4290 = vunpack.c.l.b16 %v690
    %v4291 = vunpack.c.l.b16 %v691
    %v4292 = vunpack.c.l.b16 %v692
    %v4293 = vunpack.c.l.b16 %v693
    %v4294 = vunpack.c.l.b16 %v694
    %v4295 = vunpack.c.l.b16 %v695
    %v4296 = vunpack.c.l.b16 %v696
    %v4297 = vunpack.c.l.b16 %v697
    %v4298 = vunpack.c.l.b16 %v698
    %v4299 = vunpack.c.l.b16 %v699
    %v4300 = vunpack.c.l.b16 %v700
    %v4301 = vunpack.c.l.b16 %v701
    %v4302 = vunpack.c.l.b16 %v702
    %v4303 = vunpack.c.l.b16 %v703
    %v4304 = vunpack.c.l.b16 %v704
    %v4305 = vunpack.c.l.b16 %v705
    %v4306 = vunpack.c.l.b16 %v706
    %v4307 = vunpack.c.l.b16 %v707
    %v4308 = vunpack.c.l.b16 %v708
    %v4309 = vunpack.c.l.b16 %v709
    %v4310 = vunpack.c.l.b16 %v710
    %v4311 = vunpack.c.l.b16 %v711
    %v4312 = vunpack.c.l.b16 %v712
    %v4313 = vunpack.c.l.b16 %v713
    %v4314 = vunpack.c.l.b16 %v714
    %v4315 = vunpack.c.l.b16 %v715
    %v4316 = vunpack.c.l.b16 %v716
    %v4317 = vunpack.c.l.b16 %v717
    %v4318 = vunpack.c.l.b16 %v718
    %v4319 = vunpack.c.l.b16 %v719
    %v4320 = vunpack.c.l.b16 %v720
    %v4321 = vunpack.c.l.b16 %v721
    %v4322 = vunpack.c.l.b16 %v722
    %v4323 = vunpack.c.l.b16 %v723
    %v4324 = vunpack.c.l.b16 %v724
    %v4325 = vunpack.c.l.b16 %v725
    %v4326 = vunpack.c.l.b16 %v726
    %v4327 = vunpack.c.l.b16 %v727
    %v4328 = vunpack.c.l.b16 %v728
    %v4329 = vunpack.c.l.b16 %v729
    %v4330 = vunpack.c.l.b16 %v730
    %v4331 = vunpack.c.l.b16 %v731
    %v4332 = vunpack.c.l.b16 %v732
    %v4333 = vunpack.c.l.b16 %v733
    %v4334 = vunpack.c.l.b16 %v734
    %v4335 = vunpack.c.l.b16 %v735
    %v4336 = vunpack.c.l.b16 %v736
    %v4337 = vunpack.c.l.b16 %v737
    %v4338 = vunpack.c.l.b16 %v738
    %v4339 = vunpack.c.l.b16 %v739
    %v4340 = vunpack.c.l.b16 %v740
    %v4341 = vunpack.c.l.b16 %v741
    %v4342 = vunpack.c.l.b16 %v742
    %v4343 = vunpack.c.l.b16 %v743
    %v4344 = vunpack.c.l.b16 %v744
    %v4345 = vunpack.c.l.b16 %v745
    %v4346 = vunpack.c.l.b16 %v746
    %v4347 = vunpack.c.l.b16 %v747
    %v4348 = vunpack.c.l.b16 %v748
    %v4349 = vunpack.c.l.b16 %v749
    %v4350 = vunpack.c.l.b16 %v750
    %v4351 = vunpack.c.l.b16 %v751
    %v4352 = vunpack.c.l.b16 %v752
    %v4353 = vunpack.c.l.b16 %v753
    %v4354 = vunpack.c.l.b16 %v754
    %v4355 = vunpack.c.l.b16 %v755
    %v4356 = vunpack.c.l.b16 %v756
    %v4357 = vunpack.c.l.b16 %v757
    %v4358 = vunpack.c.l.b16 %v758
    %v4359 = vunpack.c.l.b16 %v759
    %v4360 = vunpack.c.l.b16 %v760
    %v4361 = vunpack.c.l.b16 %v761
    %v4362 = vunpack.c.l.b16 %v762
    %v4363 = vunpack.c.l.b16 %v763
    %v4364 = vunpack.c.l.b16 %v764
    %v4365 = vunpack.c.l.b16 %v765
    %v4366 = vunpack.c.l.b16 %v766
    %v4367 = vunpack.c.l.b16 %v767
    %v4368 = vunpack.c.l.b16 %v768
    %v4369 = vunpack.c.l.b16 %v769
    %v4370 = vunpack.c.l.b16 %v770
    %v4371 = vunpack.c.l.b16 %v771
    %v4372 = vunpack.c.l.b16 %v772
    %v4373 = vunpack.c.l.b16 %v773
    %v4374 = vunpack.c.l.b16 %v774
    %v4375 = vunpack.c.l.b16 %v775
    %v4376 = vunpack.c.l.b16 %v776
    %v4377 = vunpack.c.l.b16 %v777
    %v4378 = vunpack.c.l.b16 %v778
    %v4379 = vunpack.c.l.b16 %v779
    %v4380 = vunpack.c.l.b16 %v780
    %v4381 = vunpack.c.l.b16 %v781
    %v4382 = vunpack.c.l.b16 %v782
    %v4383 = vunpack.c.l.b16 %v783
    %v4384 = vunpack.c.l.b16 %v784
    %v4385 = vunpack.c.l.b16 %v785
    %v4386 = vunpack.c.l.b16 %v786
    %v4387 = vunpack.c.l.b16 %v787
    %v4388 = vunpack.c.l.b16 %v788
    %v4389 = vunpack.c.l.b16 %v789
    %v4390 = vunpack.c.l.b16 %v790
    %v4391 = vunpack.c.l.b16 %v791
    %v4392 = vunpack.c.l.b16 %v792
    %v4393 = vunpack.c.l.b16 %v793
    %v4394 = vunpack.c.l.b16 %v794
    %v4395 = vunpack.c.l.b16 %v795
    %v4396 = vunpack.c.l.b16 %v796
    %v4397 = vunpack.c.l.b16 %v797
    %v4398 = vunpack.c.l.b16 %v798
    %v4399 = vunpack.c.l.b16 %v799
    %v4400 = vunpack.c.l.b16 %v800
    %v4401 = vunpack.c.l.b16 %v801
    %v4402 = vunpack.c.l.b16 %v802
    %v4403 = vunpack.c.l.b16 %v803
    %v4404 = vunpack.c.l.b16 %v804
    %v4405 = vunpack.c.l.b16 %v805
    %v4406 = vunpack.c.l.b16 %v806
    %v4407 = vunpack.c.l.b16 %v807
    %v4408 = vunpack.c.l.b16 %v808
    %v4409 = vunpack.c.l.b16 %v809
    %v4410 = vunpack.c.l.b16 %v810
    %v4411 = vunpack.c.l.b16 %v811
    %v4412 = vunpack.c.l.b16 %v812
    %v4413 = vunpack.c.l.b16 %v813
    %v4414 = vunpack.c.l.b16 %v814
    %v4415 = vunpack.c.l.b16 %v815
    %v4416 = vunpack.c.l.b16 %v816
    %v4417 = vunpack.c.l.b16 %v817
    %v4418 = vunpack.c.l.b16 %v818
    %v4419 = vunpack.c.l.b16 %v819
    %v4420 = vunpack.c.l.b16 %v820
    %v4421 = vunpack.c.l.b16 %v821
    %v4422 = vunpack.c.l.b16 %v822
    %v4423 = vunpack.c.l.b16 %v823
    %v4424 = vunpack.c.l.b16 %v824
    %v4425 = vunpack.c.l.b16 %v825
    %v4426 = vunpack.c.l.b16 %v826
    %v4427 = vunpack.c.l.b16 %v827
    %v4428 = vunpack.c.l.b16 %v828
    %v4429 = vunpack.c.l.b16 %v829
    %v4430 = vunpack.c.l.b16 %v830
    %v4431 = vunpack.c.l.b16 %v831
    %v4432 = vunpack.c.l.b16 %v832
    %v4433 = vunpack.c.l.b16 %v833
    %v4434 = vunpack.c.l.b16 %v834
    %v4435 = vunpack.c.l.b16 %v835
    %v4436 = vunpack.c.l.b16 %v836
    %v4437 = vunpack.c.l.b16 %v837
    %v4438 = vunpack.c.l.b16 %v838
    %v4439 = vunpack.c.l.b16 %v839
    %v4440 = vunpack.c.l.b16 %v840
    %v4441 = vunpack.c.l.b16 %v841
    %v4442 = vunpack.c.l.b16 %v842
    %v4443 = vunpack.c.l.b16 %v843
    %v4444 = vunpack.c.l.b16 %v844
    %v4445 = vunpack.c.l.b16 %v845
    %v4446 = vunpack.c.l.b16 %v846
    %v4447 = vunpack.c.l.b16 %v847
    %v4448 = vunpack.c.l.b16 %v848
    %v4449 = vunpack.c.l.b16 %v849
    %v4450 = vunpack.c.l.b16 %v850
    %v4451 = vunpack.c.l.b16 %v851
    %v4452 = vunpack.c.l.b16 %v852
    %v4453 = vunpack.c.l.b16 %v853
    %v4454 = vunpack.c.l.b16 %v854
    %v4455 = vunpack.c.l.b16 %v855
    %v4456 = vunpack.c.l.b16 %v856
    %v4457 = vunpack.c.l.b16 %v857
    %v4458 = vunpack.c.l.b16 %v858
    %v4459 = vunpack.c.l.b16 %v859
    %v4460 = vunpack.c.l.b16 %v860
    %v4461 = vunpack.c.l.b16 %v861
    %v4462 = vunpack.c.l.b16 %v862
    %v4463 = vunpack.c.l.b16 %v863
    %v4464 = vunpack.c.l.b16 %v864
    %v4465 = vunpack.c.l.b16 %v865
    %v4466 = vunpack.c.l.b16 %v866
    %v4467 = vunpack.c.l.b16 %v867
    %v4468 = vunpack.c.l.b16 %v868
    %v4469 = vunpack.c.l.b16 %v869
    %v4470 = vunpack.c.l.b16 %v870
    %v4471 = vunpack.c.l.b16 %v871
    %v4472 = vunpack.c.l.b16 %v872
    %v4473 = vunpack.c.l.b16 %v873
    %v4474 = vunpack.c.l.b16 %v874
    %v4475 = vunpack.c.l.b16 %v875
    %v4476 = vunpack.c.l.b16 %v876
    %v4477 = vunpack.c.l.b16 %v877
    %v4478 = vunpack.c.l.b16 %v878
    %v4479 = vunpack.c.l.b16 %v879
    %v4480 = vunpack.c.l.b16 %v880
    %v4481 = vunpack.c.l.b16 %v881
    %v4482 = vunpack.c.l.b16 %v882
    %v4483 = vunpack.c.l.b16 %v883
    %v4484 = vunpack.c.l.b16 %v884
    %v4485 = vunpack.c.l.b16 %v885
    %v4486 = vunpack.c.l.b16 %v886
    %v4487 = vunpack.c.l.b16 %v887
    %v4488 = vunpack.c.l.b16 %v888
    %v4489 = vunpack.c.l.b16 %v889
    %v4490 = vunpack.c.l.b16 %v890
    %v4491 = vunpack.c.l.b16 %v891
    %v4492 = vunpack.c.l.b16 %v892
    %v4493 = vunpack.c.l.b16 %v893
    %v4494 = vunpack.c.l.b16 %v894
    %v4495 = vunpack.c.l.b16 %v895
    %v4496 = vunpack.c.l.b16 %v896
    %v4497 = vunpack.c.l.b16 %v897
    %v4498 = vunpack.c.l.b16 %v898
    %v4499 = vunpack.c.l.b16 %v899
    %v4500 = vunpack.c.l.b16 %v900
    %v4501 = vunpack.c.l.b16 %v901
    %v4502 = vunpack.c.l.b16 %v902
    %v4503 = vunpack.c.l.b16 %v903
    %v4504 = vunpack.c.l.b16 %v904
    %v4505 = vunpack.c.l.b16 %v905
    %v4506 = vunpack.c.l.b16 %v906
    %v4507 = vunpack.c.l.b16 %v907
    %v4508 = vunpack.c.l.b16 %v908
    %v4509 = vunpack.c.l.b16 %v909
    %v4510 = vunpack.c.l.b16 %v910
    %v4511 = vunpack.c.l.b16 %v911
    %v4512 = vunpack.c.l.b16 %v912
    %v4513 = vunpack.c.l.b16 %v913
    %v4514 = vunpack.c.l.b16 %v914
    %v4515 = vunpack.c.l.b16 %v915
    %v4516 = vunpack.c.l.b16 %v916
    %v4517 = vunpack.c.l.b16 %v917
    %v4518 = vunpack.c.l.b16 %v918
    %v4519 = vunpack.c.l.b16 %v919
    %v4520 = vunpack.c.l.b16 %v920
    %v4521 = vunpack.c.l.b16 %v921
    %v4522 = vunpack.c.l.b16 %v922
    %v4523 = vunpack.c.l.b16 %v923
    %v4524 = vunpack.c.l.b16 %v924
    %v4525 = vunpack.c.l.b16 %v925
    %v4526 = vunpack.c.l.b16 %v926
    %v4527 = vunpack.c.l.b16 %v927
    %v4528 = vunpack.c.l.b16 %v928
    %v4529 = vunpack.c.l.b16 %v929
    %v4530 = vunpack.c.l.b16 %v930
    %v4531 = vunpack.c.l.b16 %v931
    %v4532 = vunpack.c.l.b16 %v932
    %v4533 = vunpack.c.l.b16 %v933
    %v4534 = vunpack.c.l.b16 %v934
    %v4535 = vunpack.c.l.b16 %v935
    %v4536 = vunpack.c.l.b16 %v936
    %v4537 = vunpack.c.l.b16 %v937
    %v4538 = vunpack.c.l.b16 %v938
    %v4539 = vunpack.c.l.b16 %v939
    %v4540 = vunpack.c.l.b16 %v940
    %v4541 = vunpack.c.l.b16 %v941
    %v4542 = vunpack.c.l.b16 %v942
    %v4543 = vunpack.c.l.b16 %v943
    %v4544 = vunpack.c.l.b16 %v944
    %v4545 = vunpack.c.l.b16 %v945
    %v4546 = vunpack.c.l.b16 %v946
    %v4547 = vunpack.c.l.b16 %v947
    %v4548 = vunpack.c.l.b16 %v948
    %v4549 = vunpack.c.l.b16 %v949
    %v4550 = vunpack.c.l.b16 %v950
    %v4551 = vunpack.c.l.b16 %v951
    %v4552 = vunpack.c.l.b16 %v952
    %v4553 = vunpack.c.l.b16 %v953
    %v4554 = vunpack.c.l.b16 %v954
    %v4555 = vunpack.c.l.b16 %v955
    %v4556 = vunpack.c.l.b16 %v956
    %v4557 = vunpack.c.l.b16 %v957
    %v4558 = vunpack.c.l.b16 %v958
    %v4559 = vunpack.c.l.b16 %v959
    %v4560 = vunpack.c.l.b16 %v960
    %v4561 = vunpack.c.l.b16 %v961
    %v4562 = vunpack.c.l.b16 %v962
    %v4563 = vunpack.c.l.b16 %v963
    %v4564 = vunpack.c.l.b16 %v964
    %v4565 = vunpack.c.l.b16 %v965
    %v4566 = vunpack.c.l.b16 %v966
    %v4567 = vunpack.c.l.b16 %v967
    %v4568 = vunpack.c.l.b16 %v968
    %v4569 = vunpack.c.l.b16 %v969
    %v4570 = vunpack.c.l.b16 %v970
    %v4571 = vunpack.c.l.b16 %v971
    %v4572 = vunpack.c.l.b16 %v972
    %v4573 = vunpack.c.l.b16 %v973
    %v4574 = vunpack.c.l.b16 %v974
    %v4575 = vunpack.c.l.b16 %v975
    %v4576 = vunpack.c.l.b16 %v976
    %v4577 = vunpack.c.l.b16 %v977
    %v4578 = vunpack.c.l.b16 %v978
    %v4579 = vunpack.c.l.b16 %v979
    %v4580 = vunpack.c.l.b16 %v980
    %v4581 = vunpack.c.l.b16 %v981
    %v4582 = vunpack.c.l.b16 %v982
    %v4583 = vunpack.c.l.b16 %v983
    %v4584 = vunpack.c.l.b16 %v984
    %v4585 = vunpack.c.l.b16 %v985
    %v4586 = vunpack.c.l.b16 %v986
    %v4587 = vunpack.c.l.b16 %v987
    %v4588 = vunpack.c.l.b16 %v988
    %v4589 = vunpack.c.l.b16 %v989
    %v4590 = vunpack.c.l.b16 %v990
    %v4591 = vunpack.c.l.b16 %v991
    %v4592 = vunpack.c.l.b16 %v992
    %v4593 = vunpack.c.l.b16 %v993
    %v4594 = vunpack.c.l.b16 %v994
    %v4595 = vunpack.c.l.b16 %v995
    %v4596 = vunpack.c.l.b16 %v996
    %v4597 = vunpack.c.l.b16 %v997
    %v4598 = vunpack.c.l.b16 %v998
    %v4599 = vunpack.c.l.b16 %v999
    %v4600 = vunpack.c.l.b16 %v1000
    %v4601 = vunpack.c.l.b16 %v1001
    %v4602 = vunpack.c.l.b16 %v1002
    %v4603 = vunpack.c.l.b16 %v1003
    %v4604 = vunpack.c.l.b16 %v1004
    %v4605 = vunpack.c.l.b16 %v1005
    %v4606 = vunpack.c.l.b16 %v1006
    %v4607 = vunpack.c.l.b16 %v1007
    %v4608 = vunpack.c.l.b16 %v1008
    %v4609 = vunpack.c.l.b16 %v1009
    %v4610 = vunpack.c.l.b16 %v1010
    %v4611 = vunpack.c.l.b16 %v1011
    %v4612 = vunpack.c.l.b16 %v1012
    %v4613 = vunpack.c.l.b16 %v1013
    %v4614 = vunpack.c.l.b16 %v1014
    %v4615 = vunpack.c.l.b16 %v1015
    %v4616 = vunpack.c.l.b16 %v1016
    %v4617 = vunpack.c.l.b16 %v1017
    %v4618 = vunpack.c.l.b16 %v1018
    %v4619 = vunpack.c.l.b16 %v1019
    %v4620 = vunpack.c.l.b16 %v1020
    %v4621 = vunpack.c.l.b16 %v1021
    %v4622 = vunpack.c.l.b16 %v1022
    %v4623 = vunpack.c.l.b16 %v1023
    %v4624 = vunpack.c.l.b16 %v1024
    %v4625 = vunpack.c.l.b16 %v1025
    %v4626 = vunpack.c.l.b16 %v1026
    %v4627 = vunpack.c.l.b16 %v1027
    %v4628 = vunpack.c.l.b16 %v1028
    %v4629 = vunpack.c.l.b16 %v1029
    %v4630 = vunpack.c.l.b16 %v1030
    %v4631 = vunpack.c.l.b16 %v1031
    %v4632 = vunpack.c.l.b16 %v1032
    %v4633 = vunpack.c.l.b16 %v1033
    %v4634 = vunpack.c.l.b16 %v1034
    %v4635 = vunpack.c.l.b16 %v1035
    %v4636 = vunpack.c.l.b16 %v1036
    %v4637 = vunpack.c.l.b16 %v1037
    %v4638 = vunpack.c.l.b16 %v1038
    %v4639 = vunpack.c.l.b16 %v1039
    %v4640 = vunpack.c.l.b16 %v1040
    %v4641 = vunpack.c.l.b16 %v1041
    %v4642 = vunpack.c.l.b16 %v1042
    %v4643 = vunpack.c.l.b16 %v1043
    %v4644 = vunpack.c.l.b16 %v1044
    %v4645 = vunpack.c.l.b16 %v1045
    %v4646 = vunpack.c.l.b16 %v1046
    %v4647 = vunpack.c.l.b16 %v1047
    %v4648 = vunpack.c.l.b16 %v1048
    %v4649 = vunpack.c.l.b16 %v1049
    %v4650 = vunpack.c.l.b16 %v1050
    %v4651 = vunpack.c.l.b16 %v1051
    %v4652 = vunpack.c.l.b16 %v1052
    %v4653 = vunpack.c.l.b16 %v1053
    %v4654 = vunpack.c.l.b16 %v1054
    %v4655 = vunpack.c.l.b16 %v1055
    %v4656 = vunpack.c.l.b16 %v1056
    %v4657 = vunpack.c.l.b16 %v1057
    %v4658 = vunpack.c.l.b16 %v1058
    %v4659 = vunpack.c.l.b16 %v1059
    %v4660 = vunpack.c.l.b16 %v1060
    %v4661 = vunpack.c.l.b16 %v1061
    %v4662 = vunpack.c.l.b16 %v1062
    %v4663 = vunpack.c.l.b16 %v1063
    %v4664 = vunpack.c.l.b16 %v1064
    %v4665 = vunpack.c.l.b16 %v1065
    %v4666 = vunpack.c.l.b16 %v1066
    %v4667 = vunpack.c.l.b16 %v1067
    %v4668 = vunpack.c.l.b16 %v1068
    %v4669 = vunpack.c.l.b16 %v1069
    %v4670 = vunpack.c.l.b16 %v1070
    %v4671 = vunpack.c.l.b16 %v1071
    %v4672 = vunpack.c.l.b16 %v1072
    %v4673 = vunpack.c.l.b16 %v1073
    %v4674 = vunpack.c.l.b16 %v1074
    %v4675 = vunpack.c.l.b16 %v1075
    %v4676 = vunpack.c.l.b16 %v1076
    %v4677 = vunpack.c.l.b16 %v1077
    %v4678 = vunpack.c.l.b16 %v1078
    %v4679 = vunpack.c.l.b16 %v1079
    %v4680 = vunpack.c.l.b16 %v1080
    %v4681 = vunpack.c.l.b16 %v1081
    %v4682 = vunpack.c.l.b16 %v1082
    %v4683 = vunpack.c.l.b16 %v1083
    %v4684 = vunpack.c.l.b16 %v1084
    %v4685 = vunpack.c.l.b16 %v1085
    %v4686 = vunpack.c.l.b16 %v1086
    %v4687 = vunpack.c.l.b16 %v1087
    %v4688 = vunpack.c.l.b16 %v1088
    %v4689 = vunpack.c.l.b16 %v1089
    %v4690 = vunpack.c.l.b16 %v1090
    %v4691 = vunpack.c.l.b16 %v1091
    %v4692 = vunpack.c.l.b16 %v1092
    %v4693 = vunpack.c.l.b16 %v1093
    %v4694 = vunpack.c.l.b16 %v1094
    %v4695 = vunpack.c.l.b16 %v1095
    %v4696 = vunpack.c.l.b16 %v1096
    %v4697 = vunpack.c.l.b16 %v1097
    %v4698 = vunpack.c.l.b16 %v1098
    %v4699 = vunpack.c.l.b16 %v1099
    %v4700 = vunpack.c.l.b16 %v1100
    %v4701 = vunpack.c.l.b16 %v1101
    %v4702 = vunpack.c.l.b16 %v1102
    %v4703 = vunpack.c.l.b16 %v1103
    %v4704 = vunpack.c.l.b16 %v1104
    %v4705 = vunpack.c.l.b16 %v1105
    %v4706 = vunpack.c.l.b16 %v1106
    %v4707 = vunpack.c.l.b16 %v1107
    %v4708 = vunpack.c.l.b16 %v1108
    %v4709 = vunpack.c.l.b16 %v1109
    %v4710 = vunpack.c.l.b16 %v1110
    %v4711 = vunpack.c.l.b16 %v1111
    %v4712 = vunpack.c.l.b16 %v1112
    %v4713 = vunpack.c.l.b16 %v1113
    %v4714 = vunpack.c.l.b16 %v1114
    %v4715 = vunpack.c.l.b16 %v1115
    %v4716 = vunpack.c.l.b16 %v1116
    %v4717 = vunpack.c.l.b16 %v1117
    %v4718 = vunpack.c.l.b16 %v1118
    %v4719 = vunpack.c.l.b16 %v1119
    %v4720 = vunpack.c.l.b16 %v1120
    %v4721 = vunpack.c.l.b16 %v1121
    %v4722 = vunpack.c.l.b16 %v1122
    %v4723 = vunpack.c.l.b16 %v1123
    %v4724 = vunpack.c.l.b16 %v1124
    %v4725 = vunpack.c.l.b16 %v1125
    %v4726 = vunpack.c.l.b16 %v1126
    %v4727 = vunpack.c.l.b16 %v1127
    %v4728 = vunpack.c.l.b16 %v1128
    %v4729 = vunpack.c.l.b16 %v1129
    %v4730 = vunpack.c.l.b16 %v1130
    %v4731 = vunpack.c.l.b16 %v1131
    %v4732 = vunpack.c.l.b16 %v1132
    %v4733 = vunpack.c.l.b16 %v1133
    %v4734 = vunpack.c.l.b16 %v1134
    %v4735 = vunpack.c.l.b16 %v1135
    %v4736 = vunpack.c.l.b16 %v1136
    %v4737 = vunpack.c.l.b16 %v1137
    %v4738 = vunpack.c.l.b16 %v1138
    %v4739 = vunpack.c.l.b16 %v1139
    %v4740 = vunpack.c.l.b16 %v1140
    %v4741 = vunpack.c.l.b16 %v1141
    %v4742 = vunpack.c.l.b16 %v1142
    %v4743 = vunpack.c.l.b16 %v1143
    %v4744 = vunpack.c.l.b16 %v1144
    %v4745 = vunpack.c.l.b16 %v1145
    %v4746 = vunpack.c.l.b16 %v1146
    %v4747 = vunpack.c.l.b16 %v1147
    %v4748 = vunpack.c.l.b16 %v1148
    %v4749 = vunpack.c.l.b16 %v1149
    %v4750 = vunpack.c.l.b16 %v1150
    %v4751 = vunpack.c.l.b16 %v1151
    %v4752 = vunpack.c.l.b16 %v1152
    %v4753 = vunpack.c.l.b16 %v1153
    %v4754 = vunpack.c.l.b16 %v1154
    %v4755 = vunpack.c.l.b16 %v1155
    %v4756 = vunpack.c.l.b16 %v1156
    %v4757 = vunpack.c.l.b16 %v1157
    %v4758 = vunpack.c.l.b16 %v1158
    %v4759 = vunpack.c.l.b16 %v1159
    %v4760 = vunpack.c.l.b16 %v1160
    %v4761 = vunpack.c.l.b16 %v1161
    %v4762 = vunpack.c.l.b16 %v1162
    %v4763 = vunpack.c.l.b16 %v1163
    %v4764 = vunpack.c.l.b16 %v1164
    %v4765 = vunpack.c.l.b16 %v1165
    %v4766 = vunpack.c.l.b16 %v1166
    %v4767 = vunpack.c.l.b16 %v1167
    %v4768 = vunpack.c.l.b16 %v1168
    %v4769 = vunpack.c.l.b16 %v1169
    %v4770 = vunpack.c.l.b16 %v1170
    %v4771 = vunpack.c.l.b16 %v1171
    %v4772 = vunpack.c.l.b16 %v1172
    %v4773 = vunpack.c.l.b16 %v1173
    %v4774 = vunpack.c.l.b16 %v1174
    %v4775 = vunpack.c.l.b16 %v1175
    %v4776 = vunpack.c.l.b16 %v1176
    %v4777 = vunpack.c.l.b16 %v1177
    %v4778 = vunpack.c.l.b16 %v1178
    %v4779 = vunpack.c.l.b16 %v1179
    %v4780 = vunpack.c.l.b16 %v1180
    %v4781 = vunpack.c.l.b16 %v1181
    %v4782 = vunpack.c.l.b16 %v1182
    %v4783 = vunpack.c.l.b16 %v1183
    %v4784 = vunpack.c.l.b16 %v1184
    %v4785 = vunpack.c.l.b16 %v1185
    %v4786 = vunpack.c.l.b16 %v1186
    %v4787 = vunpack.c.l.b16 %v1187
    %v4788 = vunpack.c.l.b16 %v1188
    %v4789 = vunpack.c.l.b16 %v1189
    %v4790 = vunpack.c.l.b16 %v1190
    %v4791 = vunpack.c.l.b16 %v1191
    %v4792 = vunpack.c.l.b16 %v1192
    %v4793 = vunpack.c.l.b16 %v1193
    %v4794 = vunpack.c.l.b16 %v1194
    %v4795 = vunpack.c.l.b16 %v1195
    %v4796 = vunpack.c.l.b16 %v1196
    %v4797 = vunpack.c.l.b16 %v1197
    %v4798 = vunpack.c.l.b16 %v1198
    %v4799 = vunpack.c.l.b16 %v1199
    %v4800 = vunpack.c.l.b16 %v1200
    %v4801 = vunpack.c.l.b16 %v1201
    %v4802 = vunpack.c.l.b16 %v1202
    %v4803 = vunpack.c.l.b16 %v1203
    %v4804 = vunpack.c.l.b16 %v1204
    %v4805 = vunpack.c.l.b16 %v1205
    %v4806 = vunpack.c.l.b16 %v1206
    %v4807 = vunpack.c.l.b16 %v1207
    %v4808 = vunpack.c.l.b16 %v1208
    %v4809 = vunpack.c.l.b16 %v1209
    %v4810 = vunpack.c.l.b16 %v1210
    %v4811 = vunpack.c.l.b16 %v1211
    %v4812 = vunpack.c.l.b16 %v1212
    %v4813 = vunpack.c.l.b16 %v1213
    %v4814 = vunpack.c.l.b16 %v1214
    %v4815 = vunpack.c.l.b16 %v1215
    %v4816 = vunpack.c.l.b16 %v1216
    %v4817 = vunpack.c.l.b16 %v1217
    %v4818 = vunpack.c.l.b16 %v1218
    %v4819 = vunpack.c.l.b16 %v1219
    %v4820 = vunpack.c.l.b16 %v1220
    %v4821 = vunpack.c.l.b16 %v1221
    %v4822 = vunpack.c.l.b16 %v1222
    %v4823 = vunpack.c.l.b16 %v1223
    %v4824 = vunpack.c.l.b16 %v1224
    %v4825 = vunpack.c.l.b16 %v1225
    %v4826 = vunpack.c.l.b16 %v1226
    %v4827 = vunpack.c.l.b16 %v1227
    %v4828 = vunpack.c.l.b16 %v1228
    %v4829 = vunpack.c.l.b16 %v1229
    %v4830 = vunpack.c.l.b16 %v1230
    %v4831 = vunpack.c.l.b16 %v1231
    %v4832 = vunpack.c.l.b16 %v1232
    %v4833 = vunpack.c.l.b16 %v1233
    %v4834 = vunpack.c.l.b16 %v1234
    %v4835 = vunpack.c.l.b16 %v1235
    %v4836 = vunpack.c.l.b16 %v1236
    %v4837 = vpack.c.b16 %v4038, %v4037
    %v4838 = vpack.c.b16 %v4040, %v4039
    %v4839 = vpack.c.b16 %v4042, %v4041
    %v4840 = vpack.c.b16 %v4044, %v4043
    %v4841 = vpack.c.b16 %v4046, %v4045
    %v4842 = vpack.c.b16 %v4048, %v4047
    %v4843 = vpack.c.b16 %v4050, %v4049
    %v4844 = vpack.c.b16 %v4052, %v4051
    %v4845 = vpack.c.b16 %v4054, %v4053
    %v4846 = vpack.c.b16 %v4056, %v4055
    %v4847 = vpack.c.b16 %v4058, %v4057
    %v4848 = vpack.c.b16 %v4060, %v4059
    %v4849 = vpack.c.b16 %v4062, %v4061
    %v4850 = vpack.c.b16 %v4064, %v4063
    %v4851 = vpack.c.b16 %v4066, %v4065
    %v4852 = vpack.c.b16 %v4068, %v4067
    %v4853 = vpack.c.b16 %v4070, %v4069
    %v4854 = vpack.c.b16 %v4072, %v4071
    %v4855 = vpack.c.b16 %v4074, %v4073
    %v4856 = vpack.c.b16 %v4076, %v4075
    %v4857 = vpack.c.b16 %v4078, %v4077
    %v4858 = vpack.c.b16 %v4080, %v4079
    %v4859 = vpack.c.b16 %v4082, %v4081
    %v4860 = vpack.c.b16 %v4084, %v4083
    %v4861 = vpack.c.b16 %v4086, %v4085
    %v4862 = vpack.c.b16 %v4088, %v4087
    %v4863 = vpack.c.b16 %v4090, %v4089
    %v4864 = vpack.c.b16 %v4092, %v4091
    %v4865 = vpack.c.b16 %v4094, %v4093
    %v4866 = vpack.c.b16 %v4096, %v4095
    %v4867 = vpack.c.b16 %v4098, %v4097
    %v4868 = vpack.c.b16 %v4100, %v4099
    %v4869 = vpack.c.b16 %v4102, %v4101
    %v4870 = vpack.c.b16 %v4104, %v4103
    %v4871 = vpack.c.b16 %v4106, %v4105
    %v4872 = vpack.c.b16 %v4108, %v4107
    %v4873 = vpack.c.b16 %v4110, %v4109
    %v4874 = vpack.c.b16 %v4112, %v4111
    %v4875 = vpack.c.b16 %v4114, %v4113
    %v4876 = vpack.c.b16 %v4116, %v4115
    %v4877 = vpack.c.b16 %v4118, %v4117
    %v4878 = vpack.c.b16 %v4120, %v4119
    %v4879 = vpack.c.b16 %v4122, %v4121
    %v4880 = vpack.c.b16 %v4124, %v4123
    %v4881 = vpack.c.b16 %v4126, %v4125
    %v4882 = vpack.c.b16 %v4128, %v4127
    %v4883 = vpack.c.b16 %v4130, %v4129
    %v4884 = vpack.c.b16 %v4132, %v4131
    %v4885 = vpack.c.b16 %v4134, %v4133
    %v4886 = vpack.c.b16 %v4136, %v4135
    %v4887 = vpack.c.b16 %v4138, %v4137
    %v4888 = vpack.c.b16 %v4140, %v4139
    %v4889 = vpack.c.b16 %v4142, %v4141
    %v4890 = vpack.c.b16 %v4144, %v4143
    %v4891 = vpack.c.b16 %v4146, %v4145
    %v4892 = vpack.c.b16 %v4148, %v4147
    %v4893 = vpack.c.b16 %v4150, %v4149
    %v4894 = vpack.c.b16 %v4152, %v4151
    %v4895 = vpack.c.b16 %v4154, %v4153
    %v4896 = vpack.c.b16 %v4156, %v4155
    %v4897 = vpack.c.b16 %v4158, %v4157
    %v4898 = vpack.c.b16 %v4160, %v4159
    %v4899 = vpack.c.b16 %v4162, %v4161
    %v4900 = vpack.c.b16 %v4164, %v4163
    %v4901 = vpack.c.b16 %v4166, %v4165
    %v4902 = vpack.c.b16 %v4168, %v4167
    %v4903 = vpack.c.b16 %v4170, %v4169
    %v4904 = vpack.c.b16 %v4172, %v4171
    %v4905 = vpack.c.b16 %v4174, %v4173
    %v4906 = vpack.c.b16 %v4176, %v4175
    %v4907 = vpack.c.b16 %v4178, %v4177
    %v4908 = vpack.c.b16 %v4180, %v4179
    %v4909 = vpack.c.b16 %v4182, %v4181
    %v4910 = vpack.c.b16 %v4184, %v4183
    %v4911 = vpack.c.b16 %v4186, %v4185
    %v4912 = vpack.c.b16 %v4188, %v4187
    %v4913 = vpack.c.b16 %v4190, %v4189
    %v4914 = vpack.c.b16 %v4192, %v4191
    %v4915 = vpack.c.b16 %v4194, %v4193
    %v4916 = vpack.c.b16 %v4196, %v4195
    %v4917 = vpack.c.b16 %v4198, %v4197
    %v4918 = vpack.c.b16 %v4200, %v4199
    %v4919 = vpack.c.b16 %v4202, %v4201
    %v4920 = vpack.c.b16 %v4204, %v4203
    %v4921 = vpack.c.b16 %v4206, %v4205
    %v4922 = vpack.c.b16 %v4208, %v4207
    %v4923 = vpack.c.b16 %v4210, %v4209
    %v4924 = vpack.c.b16 %v4212, %v4211
    %v4925 = vpack.c.b16 %v4214, %v4213
    %v4926 = vpack.c.b16 %v4216, %v4215
    %v4927 = vpack.c.b16 %v4218, %v4217
    %v4928 = vpack.c.b16 %v4220, %v4219
    %v4929 = vpack.c.b16 %v4222, %v4221
    %v4930 = vpack.c.b16 %v4224, %v4223
    %v4931 = vpack.c.b16 %v4226, %v4225
    %v4932 = vpack.c.b16 %v4228, %v4227
    %v4933 = vpack.c.b16 %v4230, %v4229
    %v4934 = vpack.c.b16 %v4232, %v4231
    %v4935 = vpack.c.b16 %v4234, %v4233
    %v4936 = vpack.c.b16 %v4236, %v4235
    %v4937 = vpack.c.b16 %v4238, %v4237
    %v4938 = vpack.c.b16 %v4240, %v4239
    %v4939 = vpack.c.b16 %v4242, %v4241
    %v4940 = vpack.c.b16 %v4244, %v4243
    %v4941 = vpack.c.b16 %v4246, %v4245
    %v4942 = vpack.c.b16 %v4248, %v4247
    %v4943 = vpack.c.b16 %v4250, %v4249
    %v4944 = vpack.c.b16 %v4252, %v4251
    %v4945 = vpack.c.b16 %v4254, %v4253
    %v4946 = vpack.c.b16 %v4256, %v4255
    %v4947 = vpack.c.b16 %v4258, %v4257
    %v4948 = vpack.c.b16 %v4260, %v4259
    %v4949 = vpack.c.b16 %v4262, %v4261
    %v4950 = vpack.c.b16 %v4264, %v4263
    %v4951 = vpack.c.b16 %v4266, %v4265
    %v4952 = vpack.c.b16 %v4268, %v4267
    %v4953 = vpack.c.b16 %v4270, %v4269
    %v4954 = vpack.c.b16 %v4272, %v4271
    %v4955 = vpack.c.b16 %v4274, %v4273
    %v4956 = vpack.c.b16 %v4276, %v4275
    %v4957 = vpack.c.b16 %v4278, %v4277
    %v4958 = vpack.c.b16 %v4280, %v4279
    %v4959 = vpack.c.b16 %v4282, %v4281
    %v4960 = vpack.c.b16 %v4284, %v4283
    %v4961 = vpack.c.b16 %v4286, %v4285
    %v4962 = vpack.c.b16 %v4288, %v4287
    %v4963 = vpack.c.b16 %v4290, %v4289
    %v4964 = vpack.c.b16 %v4292, %v4291
    %v4965 = vpack.c.b16 %v4294, %v4293
    %v4966 = vpack.c.b16 %v4296, %v4295
    %v4967 = vpack.c.b16 %v4298, %v4297
    %v4968 = vpack.c.b16 %v4300, %v4299
    %v4969 = vpack.c.b16 %v4302, %v4301
    %v4970 = vpack.c.b16 %v4304, %v4303
    %v4971 = vpack.c.b16 %v4306, %v4305
    %v4972 = vpack.c.b16 %v4308, %v4307
    %v4973 = vpack.c.b16 %v4310, %v4309
    %v4974 = vpack.c.b16 %v4312, %v4311
    %v4975 = vpack.c.b16 %v4314, %v4313
    %v4976 = vpack.c.b16 %v4316, %v4315
    %v4977 = vpack.c.b16 %v4318, %v4317
    %v4978 = vpack.c.b16 %v4320, %v4319
    %v4979 = vpack.c.b16 %v4322, %v4321
    %v4980 = vpack.c.b16 %v4324, %v4323
    %v4981 = vpack.c.b16 %v4326, %v4325
    %v4982 = vpack.c.b16 %v4328, %v4327
    %v4983 = vpack.c.b16 %v4330, %v4329
    %v4984 = vpack.c.b16 %v4332, %v4331
    %v4985 = vpack.c.b16 %v4334, %v4333
    %v4986 = vpack.c.b16 %v4336, %v4335
    %v4987 = vpack.c.b16 %v4338, %v4337
    %v4988 = vpack.c.b16 %v4340, %v4339
    %v4989 = vpack.c.b16 %v4342, %v4341
    %v4990 = vpack.c.b16 %v4344, %v4343
    %v4991 = vpack.c.b16 %v4346, %v4345
    %v4992 = vpack.c.b16 %v4348, %v4347
    %v4993 = vpack.c.b16 %v4350, %v4349
    %v4994 = vpack.c.b16 %v4352, %v4351
    %v4995 = vpack.c.b16 %v4354, %v4353
    %v4996 = vpack.c.b16 %v4356, %v4355
    %v4997 = vpack.c.b16 %v4358, %v4357
    %v4998 = vpack.c.b16 %v4360, %v4359
    %v4999 = vpack.c.b16 %v4362, %v4361
    %v5000 = vpack.c.b16 %v4364, %v4363
    %v5001 = vpack.c.b16 %v4366, %v4365
    %v5002 = vpack.c.b16 %v4368, %v4367
    %v5003 = vpack.c.b16 %v4370, %v4369
    %v5004 = vpack.c.b16 %v4372, %v4371
    %v5005 = vpack.c.b16 %v4374, %v4373
    %v5006 = vpack.c.b16 %v4376, %v4375
    %v5007 = vpack.c.b16 %v4378, %v4377
    %v5008 = vpack.c.b16 %v4380, %v4379
    %v5009 = vpack.c.b16 %v4382, %v4381
    %v5010 = vpack.c.b16 %v4384, %v4383
    %v5011 = vpack.c.b16 %v4386, %v4385
    %v5012 = vpack.c.b16 %v4388, %v4387
    %v5013 = vpack.c.b16 %v4390, %v4389
    %v5014 = vpack.c.b16 %v4392, %v4391
    %v5015 = vpack.c.b16 %v4394, %v4393
    %v5016 = vpack.c.b16 %v4396, %v4395
    %v5017 = vpack.c.b16 %v4398, %v4397
    %v5018 = vpack.c.b16 %v4400, %v4399
    %v5019 = vpack.c.b16 %v4402, %v4401
    %v5020 = vpack.c.b16 %v4404, %v4403
    %v5021 = vpack.c.b16 %v4406, %v4405
    %v5022 = vpack.c.b16 %v4408, %v4407
    %v5023 = vpack.c.b16 %v4410, %v4409
    %v5024 = vpack.c.b16 %v4412, %v4411
    %v5025 = vpack.c.b16 %v4414, %v4413
    %v5026 = vpack.c.b16 %v4416, %v4415
    %v5027 = vpack.c.b16 %v4418, %v4417
    %v5028 = vpack.c.b16 %v4420, %v4419
    %v5029 = vpack.c.b16 %v4422, %v4421
    %v5030 = vpack.c.b16 %v4424, %v4423
    %v5031 = vpack.c.b16 %v4426, %v4425
    %v5032 = vpack.c.b16 %v4428, %v4427
    %v5033 = vpack.c.b16 %v4430, %v4429
    %v5034 = vpack.c.b16 %v4432, %v4431
    %v5035 = vpack.c.b16 %v4434, %v4433
    %v5036 = vpack.c.b16 %v4436, %v4435
    %v5037 = vpack.c.b16 %v4438, %v4437
    %v5038 = vpack.c.b16 %v4440, %v4439
    %v5039 = vpack.c.b16 %v4442, %v4441
    %v5040 = vpack.c.b16 %v4444, %v4443
    %v5041 = vpack.c.b16 %v4446, %v4445
    %v5042 = vpack.c.b16 %v4448, %v4447
    %v5043 = vpack.c.b16 %v4450, %v4449
    %v5044 = vpack.c.b16 %v4452, %v4451
    %v5045 = vpack.c.b16 %v4454, %v4453
    %v5046 = vpack.c.b16 %v4456, %v4455
    %v5047 = vpack.c.b16 %v4458, %v4457
    %v5048 = vpack.c.b16 %v4460, %v4459
    %v5049 = vpack.c.b16 %v4462, %v4461
    %v5050 = vpack.c.b16 %v4464, %v4463
    %v5051 = vpack.c.b16 %v4466, %v4465
    %v5052 = vpack.c.b16 %v4468, %v4467
    %v5053 = vpack.c.b16 %v4470, %v4469
    %v5054 = vpack.c.b16 %v4472, %v4471
    %v5055 = vpack.c.b16 %v4474, %v4473
    %v5056 = vpack.c.b16 %v4476, %v4475
    %v5057 = vpack.c.b16 %v4478, %v4477
    %v5058 = vpack.c.b16 %v4480, %v4479
    %v5059 = vpack.c.b16 %v4482, %v4481
    %v5060 = vpack.c.b16 %v4484, %v4483
    %v5061 = vpack.c.b16 %v4486, %v4485
    %v5062 = vpack.c.b16 %v4488, %v4487
    %v5063 = vpack.c.b16 %v4490, %v4489
    %v5064 = vpack.c.b16 %v4492, %v4491
    %v5065 = vpack.c.b16 %v4494, %v4493
    %v5066 = vpack.c.b16 %v4496, %v4495
    %v5067 = vpack.c.b16 %v4498, %v4497
    %v5068 = vpack.c.b16 %v4500, %v4499
    %v5069 = vpack.c.b16 %v4502, %v4501
    %v5070 = vpack.c.b16 %v4504, %v4503
    %v5071 = vpack.c.b16 %v4506, %v4505
    %v5072 = vpack.c.b16 %v4508, %v4507
    %v5073 = vpack.c.b16 %v4510, %v4509
    %v5074 = vpack.c.b16 %v4512, %v4511
    %v5075 = vpack.c.b16 %v4514, %v4513
    %v5076 = vpack.c.b16 %v4516, %v4515
    %v5077 = vpack.c.b16 %v4518, %v4517
    %v5078 = vpack.c.b16 %v4520, %v4519
    %v5079 = vpack.c.b16 %v4522, %v4521
    %v5080 = vpack.c.b16 %v4524, %v4523
    %v5081 = vpack.c.b16 %v4526, %v4525
    %v5082 = vpack.c.b16 %v4528, %v4527
    %v5083 = vpack.c.b16 %v4530, %v4529
    %v5084 = vpack.c.b16 %v4532, %v4531
    %v5085 = vpack.c.b16 %v4534, %v4533
    %v5086 = vpack.c.b16 %v4536, %v4535
    %v5087 = vpack.c.b16 %v4538, %v4537
    %v5088 = vpack.c.b16 %v4540, %v4539
    %v5089 = vpack.c.b16 %v4542, %v4541
    %v5090 = vpack.c.b16 %v4544, %v4543
    %v5091 = vpack.c.b16 %v4546, %v4545
    %v5092 = vpack.c.b16 %v4548, %v4547
    %v5093 = vpack.c.b16 %v4550, %v4549
    %v5094 = vpack.c.b16 %v4552, %v4551
    %v5095 = vpack.c.b16 %v4554, %v4553
    %v5096 = vpack.c.b16 %v4556, %v4555
    %v5097 = vpack.c.b16 %v4558, %v4557
    %v5098 = vpack.c.b16 %v4560, %v4559
    %v5099 = vpack.c.b16 %v4562, %v4561
    %v5100 = vpack.c.b16 %v4564, %v4563
    %v5101 = vpack.c.b16 %v4566, %v4565
    %v5102 = vpack.c.b16 %v4568, %v4567
    %v5103 = vpack.c.b16 %v4570, %v4569
    %v5104 = vpack.c.b16 %v4572, %v4571
    %v5105 = vpack.c.b16 %v4574, %v4573
    %v5106 = vpack.c.b16 %v4576, %v4575
    %v5107 = vpack.c.b16 %v4578, %v4577
    %v5108 = vpack.c.b16 %v4580, %v4579
    %v5109 = vpack.c.b16 %v4582, %v4581
    %v5110 = vpack.c.b16 %v4584, %v4583
    %v5111 = vpack.c.b16 %v4586, %v4585
    %v5112 = vpack.c.b16 %v4588, %v4587
    %v5113 = vpack.c.b16 %v4590, %v4589
    %v5114 = vpack.c.b16 %v4592, %v4591
    %v5115 = vpack.c.b16 %v4594, %v4593
    %v5116 = vpack.c.b16 %v4596, %v4595
    %v5117 = vpack.c.b16 %v4598, %v4597
    %v5118 = vpack.c.b16 %v4600, %v4599
    %v5119 = vpack.c.b16 %v4602, %v4601
    %v5120 = vpack.c.b16 %v4604, %v4603
    %v5121 = vpack.c.b16 %v4606, %v4605
    %v5122 = vpack.c.b16 %v4608, %v4607
    %v5123 = vpack.c.b16 %v4610, %v4609
    %v5124 = vpack.c.b16 %v4612, %v4611
    %v5125 = vpack.c.b16 %v4614, %v4613
    %v5126 = vpack.c.b16 %v4616, %v4615
    %v5127 = vpack.c.b16 %v4618, %v4617
    %v5128 = vpack.c.b16 %v4620, %v4619
    %v5129 = vpack.c.b16 %v4622, %v4621
    %v5130 = vpack.c.b16 %v4624, %v4623
    %v5131 = vpack.c.b16 %v4626, %v4625
    %v5132 = vpack.c.b16 %v4628, %v4627
    %v5133 = vpack.c.b16 %v4630, %v4629
    %v5134 = vpack.c.b16 %v4632, %v4631
    %v5135 = vpack.c.b16 %v4634, %v4633
    %v5136 = vpack.c.b16 %v4636, %v4635
    %v5137 = vpack.c.b16 %v4638, %v4637
    %v5138 = vpack.c.b16 %v4640, %v4639
    %v5139 = vpack.c.b16 %v4642, %v4641
    %v5140 = vpack.c.b16 %v4644, %v4643
    %v5141 = vpack.c.b16 %v4646, %v4645
    %v5142 = vpack.c.b16 %v4648, %v4647
    %v5143 = vpack.c.b16 %v4650, %v4649
    %v5144 = vpack.c.b16 %v4652, %v4651
    %v5145 = vpack.c.b16 %v4654, %v4653
    %v5146 = vpack.c.b16 %v4656, %v4655
    %v5147 = vpack.c.b16 %v4658, %v4657
    %v5148 = vpack.c.b16 %v4660, %v4659
    %v5149 = vpack.c.b16 %v4662, %v4661
    %v5150 = vpack.c.b16 %v4664, %v4663
    %v5151 = vpack.c.b16 %v4666, %v4665
    %v5152 = vpack.c.b16 %v4668, %v4667
    %v5153 = vpack.c.b16 %v4670, %v4669
    %v5154 = vpack.c.b16 %v4672, %v4671
    %v5155 = vpack.c.b16 %v4674, %v4673
    %v5156 = vpack.c.b16 %v4676, %v4675
    %v5157 = vpack.c.b16 %v4678, %v4677
    %v5158 = vpack.c.b16 %v4680, %v4679
    %v5159 = vpack.c.b16 %v4682, %v4681
    %v5160 = vpack.c.b16 %v4684, %v4683
    %v5161 = vpack.c.b16 %v4686, %v4685
    %v5162 = vpack.c.b16 %v4688, %v4687
    %v5163 = vpack.c.b16 %v4690, %v4689
    %v5164 = vpack.c.b16 %v4692, %v4691
    %v5165 = vpack.c.b16 %v4694, %v4693
    %v5166 = vpack.c.b16 %v4696, %v4695
    %v5167 = vpack.c.b16 %v4698, %v4697
    %v5168 = vpack.c.b16 %v4700, %v4699
    %v5169 = vpack.c.b16 %v4702, %v4701
    %v5170 = vpack.c.b16 %v4704, %v4703
    %v5171 = vpack.c.b16 %v4706, %v4705
    %v5172 = vpack.c.b16 %v4708, %v4707
    %v5173 = vpack.c.b16 %v4710, %v4709
    %v5174 = vpack.c.b16 %v4712, %v4711
    %v5175 = vpack.c.b16 %v4714, %v4713
    %v5176 = vpack.c.b16 %v4716, %v4715
    %v5177 = vpack.c.b16 %v4718, %v4717
    %v5178 = vpack.c.b16 %v4720, %v4719
    %v5179 = vpack.c.b16 %v4722, %v4721
    %v5180 = vpack.c.b16 %v4724, %v4723
    %v5181 = vpack.c.b16 %v4726, %v4725
    %v5182 = vpack.c.b16 %v4728, %v4727
    %v5183 = vpack.c.b16 %v4730, %v4729
    %v5184 = vpack.c.b16 %v4732, %v4731
    %v5185 = vpack.c.b16 %v4734, %v4733
    %v5186 = vpack.c.b16 %v4736, %v4735
    %v5187 = vpack.c.b16 %v4738, %v4737
    %v5188 = vpack.c.b16 %v4740, %v4739
    %v5189 = vpack.c.b16 %v4742, %v4741
    %v5190 = vpack.c.b16 %v4744, %v4743
    %v5191 = vpack.c.b16 %v4746, %v4745
    %v5192 = vpack.c.b16 %v4748, %v4747
    %v5193 = vpack.c.b16 %v4750, %v4749
    %v5194 = vpack.c.b16 %v4752, %v4751
    %v5195 = vpack.c.b16 %v4754, %v4753
    %v5196 = vpack.c.b16 %v4756, %v4755
    %v5197 = vpack.c.b16 %v4758, %v4757
    %v5198 = vpack.c.b16 %v4760, %v4759
    %v5199 = vpack.c.b16 %v4762, %v4761
    %v5200 = vpack.c.b16 %v4764, %v4763
    %v5201 = vpack.c.b16 %v4766, %v4765
    %v5202 = vpack.c.b16 %v4768, %v4767
    %v5203 = vpack.c.b16 %v4770, %v4769
    %v5204 = vpack.c.b16 %v4772, %v4771
    %v5205 = vpack.c.b16 %v4774, %v4773
    %v5206 = vpack.c.b16 %v4776, %v4775
    %v5207 = vpack.c.b16 %v4778, %v4777
    %v5208 = vpack.c.b16 %v4780, %v4779
    %v5209 = vpack.c.b16 %v4782, %v4781
    %v5210 = vpack.c.b16 %v4784, %v4783
    %v5211 = vpack.c.b16 %v4786, %v4785
    %v5212 = vpack.c.b16 %v4788, %v4787
    %v5213 = vpack.c.b16 %v4790, %v4789
    %v5214 = vpack.c.b16 %v4792, %v4791
    %v5215 = vpack.c.b16 %v4794, %v4793
    %v5216 = vpack.c.b16 %v4796, %v4795
    %v5217 = vpack.c.b16 %v4798, %v4797
    %v5218 = vpack.c.b16 %v4800, %v4799
    %v5219 = vpack.c.b16 %v4802, %v4801
    %v5220 = vpack.c.b16 %v4804, %v4803
    %v5221 = vpack.c.b16 %v4806, %v4805
    %v5222 = vpack.c.b16 %v4808, %v4807
    %v5223 = vpack.c.b16 %v4810, %v4809
    %v5224 = vpack.c.b16 %v4812, %v4811
    %v5225 = vpack.c.b16 %v4814, %v4813
    %v5226 = vpack.c.b16 %v4816, %v4815
    %v5227 = vpack.c.b16 %v4818, %v4817
    %v5228 = vpack.c.b16 %v4820, %v4819
    %v5229 = vpack.c.b16 %v4822, %v4821
    %v5230 = vpack.c.b16 %v4824, %v4823
    %v5231 = vpack.c.b16 %v4826, %v4825
    %v5232 = vpack.c.b16 %v4828, %v4827
    %v5233 = vpack.c.b16 %v4830, %v4829
    %v5234 = vpack.c.b16 %v4832, %v4831
    %v5235 = vpack.c.b16 %v4834, %v4833
    %v5236 = vpack.c.b16 %v4836, %v4835
    %5637 = vmatprep.subr.bf16.mxu0 0
    %5638 = vmatpush1.bf16.msra.mxu0 %v4844
    %5639 = vmatprep.subr.bf16.mxu0 0
    %5640 = vmatpush1.bf16.msra.mxu0 %v4843
    %5641 = vmatprep.subr.bf16.mxu0 0
    %5642 = vmatpush1.bf16.msra.mxu0 %v4842
    %5643 = vmatprep.subr.bf16.mxu0 0
    %5644 = vmatpush1.bf16.msra.mxu0 %v4841
    %5645 = vmatprep.subr.bf16.mxu0 0
    %5646 = vmatpush1.bf16.msra.mxu0 %v4840
    %5647 = vmatprep.subr.bf16.mxu0 0
    %5648 = vmatpush1.bf16.msra.mxu0 %v4839
    %5649 = vmatprep.subr.bf16.mxu0 0
    %5650 = vmatpush1.bf16.msra.mxu0 %v4838
    %5651 = vmatprep.subr.bf16.mxu0 0
    %5652 = vmatpush1.bf16.msra.mxu0 %v4837
    %5653 = vmatprep.subr.bf16.mxu0 0
    %5654 = vmatpush2.bf16.msra.mxu0 %v4852
    %5655 = vmatprep.subr.bf16.mxu0 0
    %5656 = vmatpush2.bf16.msra.mxu0 %v4851
    %5657 = vmatprep.subr.bf16.mxu0 0
    %5658 = vmatpush2.bf16.msra.mxu0 %v4850
    %5659 = vmatprep.subr.bf16.mxu0 0
    %5660 = vmatpush2.bf16.msra.mxu0 %v4849
    %5661 = vmatprep.subr.bf16.mxu0 0
    %5662 = vmatpush2.bf16.msra.mxu0 %v4848
    %5663 = vmatprep.subr.bf16.mxu0 0
    %5664 = vmatpush2.bf16.msra.mxu0 %v4847
    %5665 = vmatprep.subr.bf16.mxu0 0
    %5666 = vmatpush2.bf16.msra.mxu0 %v4846
    %5667 = vmatprep.subr.bf16.mxu0 0
    %5668 = vmatpush2.bf16.msra.mxu0 %v4845
    %5669 = vmatprep.mubr.bf16.mxu0 %v2438
    %5670 = vmatmul.mubr.bf16.gmra.mxu0 %v2437
    %v5671 = vpop.f32.mrf.mxu0
    %v5672 = vadd.f32 0.0, %v5671
    %v5673 = vpop.f32.mrf.mxu0
    %v5674 = vpop.f32.mrf.mxu0
    %v5675 = vadd.f32 0.0, %v5674
    %v5676 = vpop.f32.mrf.mxu0
    %5677 = vmatprep.mubr.bf16.mxu0 %v2488
    %5678 = vmatmul.mubr.bf16.gmra.mxu0 %v2487
    %v5679 = vpop.f32.mrf.mxu0
    %v5680 = vadd.f32 0.0, %v5679
    %v5681 = vpop.f32.mrf.mxu0
    %v5682 = vpop.f32.mrf.mxu0
    %v5683 = vadd.f32 0.0, %v5682
    %v5684 = vpop.f32.mrf.mxu0
    %5685 = vmatprep.mubr.bf16.mxu0 %v2538
    %5686 = vmatmul.mubr.bf16.gmra.mxu0 %v2537
    %v5687 = vpop.f32.mrf.mxu0
    %v5688 = vadd.f32 0.0, %v5687
    %v5689 = vpop.f32.mrf.mxu0
    %v5690 = vpop.f32.mrf.mxu0
    %v5691 = vadd.f32 0.0, %v5690
    %v5692 = vpop.f32.mrf.mxu0
    %5693 = vmatprep.mubr.bf16.mxu0 %v2588
    %5694 = vmatmul.mubr.bf16.gmra.mxu0 %v2587
    %v5695 = vpop.f32.mrf.mxu0
    %v5696 = vadd.f32 0.0, %v5695
    %v5697 = vpop.f32.mrf.mxu0
    %v5698 = vpop.f32.mrf.mxu0
    %v5699 = vadd.f32 0.0, %v5698
    %v5700 = vpop.f32.mrf.mxu0
    %5701 = vmatprep.mubr.bf16.mxu0 %v2638
    %5702 = vmatmul.mubr.bf16.gmra.mxu0 %v2637
    %v5703 = vpop.f32.mrf.mxu0
    %v5704 = vadd.f32 0.0, %v5703
    %v5705 = vpop.f32.mrf.mxu0
    %v5706 = vpop.f32.mrf.mxu0
    %v5707 = vadd.f32 0.0, %v5706
    %v5708 = vpop.f32.mrf.mxu0
    %5709 = vmatprep.mubr.bf16.mxu0 %v2688
    %5710 = vmatmul.mubr.bf16.gmra.mxu0 %v2687
    %v5711 = vpop.f32.mrf.mxu0
    %v5712 = vadd.f32 0.0, %v5711
    %v5713 = vpop.f32.mrf.mxu0
    %v5714 = vpop.f32.mrf.mxu0
    %v5715 = vadd.f32 0.0, %v5714
    %v5716 = vpop.f32.mrf.mxu0
    %5717 = vmatprep.mubr.bf16.mxu0 %v2738
    %5718 = vmatmul.mubr.bf16.gmra.mxu0 %v2737
    %v5719 = vpop.f32.mrf.mxu0
    %v5720 = vadd.f32 0.0, %v5719
    %v5721 = vpop.f32.mrf.mxu0
    %v5722 = vpop.f32.mrf.mxu0
    %v5723 = vadd.f32 0.0, %v5722
    %v5724 = vpop.f32.mrf.mxu0
    %5725 = vmatprep.mubr.bf16.mxu0 %v2788
    %5726 = vmatmul.mubr.bf16.gmra.mxu0 %v2787
    %v5727 = vpop.f32.mrf.mxu0
    %v5728 = vadd.f32 0.0, %v5727
    %v5729 = vpop.f32.mrf.mxu0
    %v5730 = vpop.f32.mrf.mxu0
    %v5731 = vadd.f32 0.0, %v5730
    %v5732 = vpop.f32.mrf.mxu0
    %5733 = vdwg.mxu0
    %5734 = vmatprep.subr.bf16.mxu0 0
    %5735 = vmatpush1.bf16.msra.mxu0 %v4860
    %5736 = vmatprep.subr.bf16.mxu0 0
    %5737 = vmatpush1.bf16.msra.mxu0 %v4859
    %5738 = vmatprep.subr.bf16.mxu0 0
    %5739 = vmatpush1.bf16.msra.mxu0 %v4858
    %5740 = vmatprep.subr.bf16.mxu0 0
    %5741 = vmatpush1.bf16.msra.mxu0 %v4857
    %5742 = vmatprep.subr.bf16.mxu0 0
    %5743 = vmatpush1.bf16.msra.mxu0 %v4856
    %5744 = vmatprep.subr.bf16.mxu0 0
    %5745 = vmatpush1.bf16.msra.mxu0 %v4855
    %5746 = vmatprep.subr.bf16.mxu0 0
    %5747 = vmatpush1.bf16.msra.mxu0 %v4854
    %5748 = vmatprep.subr.bf16.mxu0 0
    %5749 = vmatpush1.bf16.msra.mxu0 %v4853
    %5750 = vmatprep.subr.bf16.mxu0 0
    %5751 = vmatpush2.bf16.msra.mxu0 %v4868
    %5752 = vmatprep.subr.bf16.mxu0 0
    %5753 = vmatpush2.bf16.msra.mxu0 %v4867
    %5754 = vmatprep.subr.bf16.mxu0 0
    %5755 = vmatpush2.bf16.msra.mxu0 %v4866
    %5756 = vmatprep.subr.bf16.mxu0 0
    %5757 = vmatpush2.bf16.msra.mxu0 %v4865
    %5758 = vmatprep.subr.bf16.mxu0 0
    %5759 = vmatpush2.bf16.msra.mxu0 %v4864
    %5760 = vmatprep.subr.bf16.mxu0 0
    %5761 = vmatpush2.bf16.msra.mxu0 %v4863
    %5762 = vmatprep.subr.bf16.mxu0 0
    %5763 = vmatpush2.bf16.msra.mxu0 %v4862
    %5764 = vmatprep.subr.bf16.mxu0 0
    %5765 = vmatpush2.bf16.msra.mxu0 %v4861
    %5766 = vmatprep.mubr.bf16.mxu0 %v2440
    %5767 = vmatmul.mubr.bf16.gmra.mxu0 %v2439
    %v5768 = vpop.f32.mrf.mxu0
    %v5769 = vadd.f32 %v5672, %v5768
    %v5770 = vpop.f32.mrf.mxu0
    %v5771 = vpop.f32.mrf.mxu0
    %v5772 = vadd.f32 %v5675, %v5771
    %v5773 = vpop.f32.mrf.mxu0
    %5774 = vmatprep.mubr.bf16.mxu0 %v2490
    %5775 = vmatmul.mubr.bf16.gmra.mxu0 %v2489
    %v5776 = vpop.f32.mrf.mxu0
    %v5777 = vadd.f32 %v5680, %v5776
    %v5778 = vpop.f32.mrf.mxu0
    %v5779 = vpop.f32.mrf.mxu0
    %v5780 = vadd.f32 %v5683, %v5779
    %v5781 = vpop.f32.mrf.mxu0
    %5782 = vmatprep.mubr.bf16.mxu0 %v2540
    %5783 = vmatmul.mubr.bf16.gmra.mxu0 %v2539
    %v5784 = vpop.f32.mrf.mxu0
    %v5785 = vadd.f32 %v5688, %v5784
    %v5786 = vpop.f32.mrf.mxu0
    %v5787 = vpop.f32.mrf.mxu0
    %v5788 = vadd.f32 %v5691, %v5787
    %v5789 = vpop.f32.mrf.mxu0
    %5790 = vmatprep.mubr.bf16.mxu0 %v2590
    %5791 = vmatmul.mubr.bf16.gmra.mxu0 %v2589
    %v5792 = vpop.f32.mrf.mxu0
    %v5793 = vadd.f32 %v5696, %v5792
    %v5794 = vpop.f32.mrf.mxu0
    %v5795 = vpop.f32.mrf.mxu0
    %v5796 = vadd.f32 %v5699, %v5795
    %v5797 = vpop.f32.mrf.mxu0
    %5798 = vmatprep.mubr.bf16.mxu0 %v2640
    %5799 = vmatmul.mubr.bf16.gmra.mxu0 %v2639
    %v5800 = vpop.f32.mrf.mxu0
    %v5801 = vadd.f32 %v5704, %v5800
    %v5802 = vpop.f32.mrf.mxu0
    %v5803 = vpop.f32.mrf.mxu0
    %v5804 = vadd.f32 %v5707, %v5803
    %v5805 = vpop.f32.mrf.mxu0
    %5806 = vmatprep.mubr.bf16.mxu0 %v2690
    %5807 = vmatmul.mubr.bf16.gmra.mxu0 %v2689
    %v5808 = vpop.f32.mrf.mxu0
    %v5809 = vadd.f32 %v5712, %v5808
    %v5810 = vpop.f32.mrf.mxu0
    %v5811 = vpop.f32.mrf.mxu0
    %v5812 = vadd.f32 %v5715, %v5811
    %v5813 = vpop.f32.mrf.mxu0
    %5814 = vmatprep.mubr.bf16.mxu0 %v2740
    %5815 = vmatmul.mubr.bf16.gmra.mxu0 %v2739
    %v5816 = vpop.f32.mrf.mxu0
    %v5817 = vadd.f32 %v5720, %v5816
    %v5818 = vpop.f32.mrf.mxu0
    %v5819 = vpop.f32.mrf.mxu0
    %v5820 = vadd.f32 %v5723, %v5819
    %v5821 = vpop.f32.mrf.mxu0
    %5822 = vmatprep.mubr.bf16.mxu0 %v2790
    %5823 = vmatmul.mubr.bf16.gmra.mxu0 %v2789
    %v5824 = vpop.f32.mrf.mxu0
    %v5825 = vadd.f32 %v5728, %v5824
    %v5826 = vpop.f32.mrf.mxu0
    %v5827 = vpop.f32.mrf.mxu0
    %v5828 = vadd.f32 %v5731, %v5827
    %v5829 = vpop.f32.mrf.mxu0
    %5830 = vdwg.mxu0
    %5831 = vmatprep.subr.bf16.mxu0 0
    %5832 = vmatpush1.bf16.msra.mxu0 %v4876
    %5833 = vmatprep.subr.bf16.mxu0 0
    %5834 = vmatpush1.bf16.msra.mxu0 %v4875
    %5835 = vmatprep.subr.bf16.mxu0 0
    %5836 = vmatpush1.bf16.msra.mxu0 %v4874
    %5837 = vmatprep.subr.bf16.mxu0 0
    %5838 = vmatpush1.bf16.msra.mxu0 %v4873
    %5839 = vmatprep.subr.bf16.mxu0 0
    %5840 = vmatpush1.bf16.msra.mxu0 %v4872
    %5841 = vmatprep.subr.bf16.mxu0 0
    %5842 = vmatpush1.bf16.msra.mxu0 %v4871
    %5843 = vmatprep.subr.bf16.mxu0 0
    %5844 = vmatpush1.bf16.msra.mxu0 %v4870
    %5845 = vmatprep.subr.bf16.mxu0 0
    %5846 = vmatpush1.bf16.msra.mxu0 %v4869
    %5847 = vmatprep.subr.bf16.mxu0 0
    %5848 = vmatpush2.bf16.msra.mxu0 %v4884
    %5849 = vmatprep.subr.bf16.mxu0 0
    %5850 = vmatpush2.bf16.msra.mxu0 %v4883
    %5851 = vmatprep.subr.bf16.mxu0 0
    %5852 = vmatpush2.bf16.msra.mxu0 %v4882
    %5853 = vmatprep.subr.bf16.mxu0 0
    %5854 = vmatpush2.bf16.msra.mxu0 %v4881
    %5855 = vmatprep.subr.bf16.mxu0 0
    %5856 = vmatpush2.bf16.msra.mxu0 %v4880
    %5857 = vmatprep.subr.bf16.mxu0 0
    %5858 = vmatpush2.bf16.msra.mxu0 %v4879
    %5859 = vmatprep.subr.bf16.mxu0 0
    %5860 = vmatpush2.bf16.msra.mxu0 %v4878
    %5861 = vmatprep.subr.bf16.mxu0 0
    %5862 = vmatpush2.bf16.msra.mxu0 %v4877
    %5863 = vmatprep.mubr.bf16.mxu0 %v2442
    %5864 = vmatmul.mubr.bf16.gmra.mxu0 %v2441
    %v5865 = vpop.f32.mrf.mxu0
    %v5866 = vadd.f32 %v5769, %v5865
    %v5867 = vpop.f32.mrf.mxu0
    %v5868 = vpop.f32.mrf.mxu0
    %v5869 = vadd.f32 %v5772, %v5868
    %v5870 = vpop.f32.mrf.mxu0
    %5871 = vmatprep.mubr.bf16.mxu0 %v2492
    %5872 = vmatmul.mubr.bf16.gmra.mxu0 %v2491
    %v5873 = vpop.f32.mrf.mxu0
    %v5874 = vadd.f32 %v5777, %v5873
    %v5875 = vpop.f32.mrf.mxu0
    %v5876 = vpop.f32.mrf.mxu0
    %v5877 = vadd.f32 %v5780, %v5876
    %v5878 = vpop.f32.mrf.mxu0
    %5879 = vmatprep.mubr.bf16.mxu0 %v2542
    %5880 = vmatmul.mubr.bf16.gmra.mxu0 %v2541
    %v5881 = vpop.f32.mrf.mxu0
    %v5882 = vadd.f32 %v5785, %v5881
    %v5883 = vpop.f32.mrf.mxu0
    %v5884 = vpop.f32.mrf.mxu0
    %v5885 = vadd.f32 %v5788, %v5884
    %v5886 = vpop.f32.mrf.mxu0
    %5887 = vmatprep.mubr.bf16.mxu0 %v2592
    %5888 = vmatmul.mubr.bf16.gmra.mxu0 %v2591
    %v5889 = vpop.f32.mrf.mxu0
    %v5890 = vadd.f32 %v5793, %v5889
    %v5891 = vpop.f32.mrf.mxu0
    %v5892 = vpop.f32.mrf.mxu0
    %v5893 = vadd.f32 %v5796, %v5892
    %v5894 = vpop.f32.mrf.mxu0
    %5895 = vmatprep.mubr.bf16.mxu0 %v2642
    %5896 = vmatmul.mubr.bf16.gmra.mxu0 %v2641
    %v5897 = vpop.f32.mrf.mxu0
    %v5898 = vadd.f32 %v5801, %v5897
    %v5899 = vpop.f32.mrf.mxu0
    %v5900 = vpop.f32.mrf.mxu0
    %v5901 = vadd.f32 %v5804, %v5900
    %v5902 = vpop.f32.mrf.mxu0
    %5903 = vmatprep.mubr.bf16.mxu0 %v2692
    %5904 = vmatmul.mubr.bf16.gmra.mxu0 %v2691
    %v5905 = vpop.f32.mrf.mxu0
    %v5906 = vadd.f32 %v5809, %v5905
    %v5907 = vpop.f32.mrf.mxu0
    %v5908 = vpop.f32.mrf.mxu0
    %v5909 = vadd.f32 %v5812, %v5908
    %v5910 = vpop.f32.mrf.mxu0
    %5911 = vmatprep.mubr.bf16.mxu0 %v2742
    %5912 = vmatmul.mubr.bf16.gmra.mxu0 %v2741
    %v5913 = vpop.f32.mrf.mxu0
    %v5914 = vadd.f32 %v5817, %v5913
    %v5915 = vpop.f32.mrf.mxu0
    %v5916 = vpop.f32.mrf.mxu0
    %v5917 = vadd.f32 %v5820, %v5916
    %v5918 = vpop.f32.mrf.mxu0
    %5919 = vmatprep.mubr.bf16.mxu0 %v2792
    %5920 = vmatmul.mubr.bf16.gmra.mxu0 %v2791
    %v5921 = vpop.f32.mrf.mxu0
    %v5922 = vadd.f32 %v5825, %v5921
    %v5923 = vpop.f32.mrf.mxu0
    %v5924 = vpop.f32.mrf.mxu0
    %v5925 = vadd.f32 %v5828, %v5924
    %v5926 = vpop.f32.mrf.mxu0
    %5927 = vdwg.mxu0
    %5928 = vmatprep.subr.bf16.mxu0 0
    %5929 = vmatpush1.bf16.msra.mxu0 %v4892
    %5930 = vmatprep.subr.bf16.mxu0 0
    %5931 = vmatpush1.bf16.msra.mxu0 %v4891
    %5932 = vmatprep.subr.bf16.mxu0 0
    %5933 = vmatpush1.bf16.msra.mxu0 %v4890
    %5934 = vmatprep.subr.bf16.mxu0 0
    %5935 = vmatpush1.bf16.msra.mxu0 %v4889
    %5936 = vmatprep.subr.bf16.mxu0 0
    %5937 = vmatpush1.bf16.msra.mxu0 %v4888
    %5938 = vmatprep.subr.bf16.mxu0 0
    %5939 = vmatpush1.bf16.msra.mxu0 %v4887
    %5940 = vmatprep.subr.bf16.mxu0 0
    %5941 = vmatpush1.bf16.msra.mxu0 %v4886
    %5942 = vmatprep.subr.bf16.mxu0 0
    %5943 = vmatpush1.bf16.msra.mxu0 %v4885
    %5944 = vmatprep.subr.bf16.mxu0 0
    %5945 = vmatpush2.bf16.msra.mxu0 %v4900
    %5946 = vmatprep.subr.bf16.mxu0 0
    %5947 = vmatpush2.bf16.msra.mxu0 %v4899
    %5948 = vmatprep.subr.bf16.mxu0 0
    %5949 = vmatpush2.bf16.msra.mxu0 %v4898
    %5950 = vmatprep.subr.bf16.mxu0 0
    %5951 = vmatpush2.bf16.msra.mxu0 %v4897
    %5952 = vmatprep.subr.bf16.mxu0 0
    %5953 = vmatpush2.bf16.msra.mxu0 %v4896
    %5954 = vmatprep.subr.bf16.mxu0 0
    %5955 = vmatpush2.bf16.msra.mxu0 %v4895
    %5956 = vmatprep.subr.bf16.mxu0 0
    %5957 = vmatpush2.bf16.msra.mxu0 %v4894
    %5958 = vmatprep.subr.bf16.mxu0 0
    %5959 = vmatpush2.bf16.msra.mxu0 %v4893
    %5960 = vmatprep.mubr.bf16.mxu0 %v2444
    %5961 = vmatmul.mubr.bf16.gmra.mxu0 %v2443
    %v5962 = vpop.f32.mrf.mxu0
    %v5963 = vadd.f32 %v5866, %v5962
    %v5964 = vpop.f32.mrf.mxu0
    %v5965 = vpop.f32.mrf.mxu0
    %v5966 = vadd.f32 %v5869, %v5965
    %v5967 = vpop.f32.mrf.mxu0
    %5968 = vmatprep.mubr.bf16.mxu0 %v2494
    %5969 = vmatmul.mubr.bf16.gmra.mxu0 %v2493
    %v5970 = vpop.f32.mrf.mxu0
    %v5971 = vadd.f32 %v5874, %v5970
    %v5972 = vpop.f32.mrf.mxu0
    %v5973 = vpop.f32.mrf.mxu0
    %v5974 = vadd.f32 %v5877, %v5973
    %v5975 = vpop.f32.mrf.mxu0
    %5976 = vmatprep.mubr.bf16.mxu0 %v2544
    %5977 = vmatmul.mubr.bf16.gmra.mxu0 %v2543
    %v5978 = vpop.f32.mrf.mxu0
    %v5979 = vadd.f32 %v5882, %v5978
    %v5980 = vpop.f32.mrf.mxu0
    %v5981 = vpop.f32.mrf.mxu0
    %v5982 = vadd.f32 %v5885, %v5981
    %v5983 = vpop.f32.mrf.mxu0
    %5984 = vmatprep.mubr.bf16.mxu0 %v2594
    %5985 = vmatmul.mubr.bf16.gmra.mxu0 %v2593
    %v5986 = vpop.f32.mrf.mxu0
    %v5987 = vadd.f32 %v5890, %v5986
    %v5988 = vpop.f32.mrf.mxu0
    %v5989 = vpop.f32.mrf.mxu0
    %v5990 = vadd.f32 %v5893, %v5989
    %v5991 = vpop.f32.mrf.mxu0
    %5992 = vmatprep.mubr.bf16.mxu0 %v2644
    %5993 = vmatmul.mubr.bf16.gmra.mxu0 %v2643
    %v5994 = vpop.f32.mrf.mxu0
    %v5995 = vadd.f32 %v5898, %v5994
    %v5996 = vpop.f32.mrf.mxu0
    %v5997 = vpop.f32.mrf.mxu0
    %v5998 = vadd.f32 %v5901, %v5997
    %v5999 = vpop.f32.mrf.mxu0
    %6000 = vmatprep.mubr.bf16.mxu0 %v2694
    %6001 = vmatmul.mubr.bf16.gmra.mxu0 %v2693
    %v6002 = vpop.f32.mrf.mxu0
    %v6003 = vadd.f32 %v5906, %v6002
    %v6004 = vpop.f32.mrf.mxu0
    %v6005 = vpop.f32.mrf.mxu0
    %v6006 = vadd.f32 %v5909, %v6005
    %v6007 = vpop.f32.mrf.mxu0
    %6008 = vmatprep.mubr.bf16.mxu0 %v2744
    %6009 = vmatmul.mubr.bf16.gmra.mxu0 %v2743
    %v6010 = vpop.f32.mrf.mxu0
    %v6011 = vadd.f32 %v5914, %v6010
    %v6012 = vpop.f32.mrf.mxu0
    %v6013 = vpop.f32.mrf.mxu0
    %v6014 = vadd.f32 %v5917, %v6013
    %v6015 = vpop.f32.mrf.mxu0
    %6016 = vmatprep.mubr.bf16.mxu0 %v2794
    %6017 = vmatmul.mubr.bf16.gmra.mxu0 %v2793
    %v6018 = vpop.f32.mrf.mxu0
    %v6019 = vadd.f32 %v5922, %v6018
    %v6020 = vpop.f32.mrf.mxu0
    %v6021 = vpop.f32.mrf.mxu0
    %v6022 = vadd.f32 %v5925, %v6021
    %v6023 = vpop.f32.mrf.mxu0
    %6024 = vdwg.mxu0
    %6025 = vmatprep.subr.bf16.mxu0 0
    %6026 = vmatpush1.bf16.msra.mxu0 %v4908
    %6027 = vmatprep.subr.bf16.mxu0 0
    %6028 = vmatpush1.bf16.msra.mxu0 %v4907
    %6029 = vmatprep.subr.bf16.mxu0 0
    %6030 = vmatpush1.bf16.msra.mxu0 %v4906
    %6031 = vmatprep.subr.bf16.mxu0 0
    %6032 = vmatpush1.bf16.msra.mxu0 %v4905
    %6033 = vmatprep.subr.bf16.mxu0 0
    %6034 = vmatpush1.bf16.msra.mxu0 %v4904
    %6035 = vmatprep.subr.bf16.mxu0 0
    %6036 = vmatpush1.bf16.msra.mxu0 %v4903
    %6037 = vmatprep.subr.bf16.mxu0 0
    %6038 = vmatpush1.bf16.msra.mxu0 %v4902
    %6039 = vmatprep.subr.bf16.mxu0 0
    %6040 = vmatpush1.bf16.msra.mxu0 %v4901
    %6041 = vmatprep.subr.bf16.mxu0 0
    %6042 = vmatpush2.bf16.msra.mxu0 %v4916
    %6043 = vmatprep.subr.bf16.mxu0 0
    %6044 = vmatpush2.bf16.msra.mxu0 %v4915
    %6045 = vmatprep.subr.bf16.mxu0 0
    %6046 = vmatpush2.bf16.msra.mxu0 %v4914
    %6047 = vmatprep.subr.bf16.mxu0 0
    %6048 = vmatpush2.bf16.msra.mxu0 %v4913
    %6049 = vmatprep.subr.bf16.mxu0 0
    %6050 = vmatpush2.bf16.msra.mxu0 %v4912
    %6051 = vmatprep.subr.bf16.mxu0 0
    %6052 = vmatpush2.bf16.msra.mxu0 %v4911
    %6053 = vmatprep.subr.bf16.mxu0 0
    %6054 = vmatpush2.bf16.msra.mxu0 %v4910
    %6055 = vmatprep.subr.bf16.mxu0 0
    %6056 = vmatpush2.bf16.msra.mxu0 %v4909
    %6057 = vmatprep.mubr.bf16.mxu0 %v2446
    %6058 = vmatmul.mubr.bf16.gmra.mxu0 %v2445
    %v6059 = vpop.f32.mrf.mxu0
    %v6060 = vadd.f32 %v5963, %v6059
    %v6061 = vpop.f32.mrf.mxu0
    %v6062 = vpop.f32.mrf.mxu0
    %v6063 = vadd.f32 %v5966, %v6062
    %v6064 = vpop.f32.mrf.mxu0
    %6065 = vmatprep.mubr.bf16.mxu0 %v2496
    %6066 = vmatmul.mubr.bf16.gmra.mxu0 %v2495
    %v6067 = vpop.f32.mrf.mxu0
    %v6068 = vadd.f32 %v5971, %v6067
    %v6069 = vpop.f32.mrf.mxu0
    %v6070 = vpop.f32.mrf.mxu0
    %v6071 = vadd.f32 %v5974, %v6070
    %v6072 = vpop.f32.mrf.mxu0
    %6073 = vmatprep.mubr.bf16.mxu0 %v2546
    %6074 = vmatmul.mubr.bf16.gmra.mxu0 %v2545
    %v6075 = vpop.f32.mrf.mxu0
    %v6076 = vadd.f32 %v5979, %v6075
    %v6077 = vpop.f32.mrf.mxu0
    %v6078 = vpop.f32.mrf.mxu0
    %v6079 = vadd.f32 %v5982, %v6078
    %v6080 = vpop.f32.mrf.mxu0
    %6081 = vmatprep.mubr.bf16.mxu0 %v2596
    %6082 = vmatmul.mubr.bf16.gmra.mxu0 %v2595
    %v6083 = vpop.f32.mrf.mxu0
    %v6084 = vadd.f32 %v5987, %v6083
    %v6085 = vpop.f32.mrf.mxu0
    %v6086 = vpop.f32.mrf.mxu0
    %v6087 = vadd.f32 %v5990, %v6086
    %v6088 = vpop.f32.mrf.mxu0
    %6089 = vmatprep.mubr.bf16.mxu0 %v2646
    %6090 = vmatmul.mubr.bf16.gmra.mxu0 %v2645
    %v6091 = vpop.f32.mrf.mxu0
    %v6092 = vadd.f32 %v5995, %v6091
    %v6093 = vpop.f32.mrf.mxu0
    %v6094 = vpop.f32.mrf.mxu0
    %v6095 = vadd.f32 %v5998, %v6094
    %v6096 = vpop.f32.mrf.mxu0
    %6097 = vmatprep.mubr.bf16.mxu0 %v2696
    %6098 = vmatmul.mubr.bf16.gmra.mxu0 %v2695
    %v6099 = vpop.f32.mrf.mxu0
    %v6100 = vadd.f32 %v6003, %v6099
    %v6101 = vpop.f32.mrf.mxu0
    %v6102 = vpop.f32.mrf.mxu0
    %v6103 = vadd.f32 %v6006, %v6102
    %v6104 = vpop.f32.mrf.mxu0
    %6105 = vmatprep.mubr.bf16.mxu0 %v2746
    %6106 = vmatmul.mubr.bf16.gmra.mxu0 %v2745
    %v6107 = vpop.f32.mrf.mxu0
    %v6108 = vadd.f32 %v6011, %v6107
    %v6109 = vpop.f32.mrf.mxu0
    %v6110 = vpop.f32.mrf.mxu0
    %v6111 = vadd.f32 %v6014, %v6110
    %v6112 = vpop.f32.mrf.mxu0
    %6113 = vmatprep.mubr.bf16.mxu0 %v2796
    %6114 = vmatmul.mubr.bf16.gmra.mxu0 %v2795
    %v6115 = vpop.f32.mrf.mxu0
    %v6116 = vadd.f32 %v6019, %v6115
    %v6117 = vpop.f32.mrf.mxu0
    %v6118 = vpop.f32.mrf.mxu0
    %v6119 = vadd.f32 %v6022, %v6118
    %v6120 = vpop.f32.mrf.mxu0
    %6121 = vdwg.mxu0
    %6122 = vmatprep.subr.bf16.mxu0 0
    %6123 = vmatpush1.bf16.msra.mxu0 %v4924
    %6124 = vmatprep.subr.bf16.mxu0 0
    %6125 = vmatpush1.bf16.msra.mxu0 %v4923
    %6126 = vmatprep.subr.bf16.mxu0 0
    %6127 = vmatpush1.bf16.msra.mxu0 %v4922
    %6128 = vmatprep.subr.bf16.mxu0 0
    %6129 = vmatpush1.bf16.msra.mxu0 %v4921
    %6130 = vmatprep.subr.bf16.mxu0 0
    %6131 = vmatpush1.bf16.msra.mxu0 %v4920
    %6132 = vmatprep.subr.bf16.mxu0 0
    %6133 = vmatpush1.bf16.msra.mxu0 %v4919
    %6134 = vmatprep.subr.bf16.mxu0 0
    %6135 = vmatpush1.bf16.msra.mxu0 %v4918
    %6136 = vmatprep.subr.bf16.mxu0 0
    %6137 = vmatpush1.bf16.msra.mxu0 %v4917
    %6138 = vmatprep.subr.bf16.mxu0 0
    %6139 = vmatpush2.bf16.msra.mxu0 %v4932
    %6140 = vmatprep.subr.bf16.mxu0 0
    %6141 = vmatpush2.bf16.msra.mxu0 %v4931
    %6142 = vmatprep.subr.bf16.mxu0 0
    %6143 = vmatpush2.bf16.msra.mxu0 %v4930
    %6144 = vmatprep.subr.bf16.mxu0 0
    %6145 = vmatpush2.bf16.msra.mxu0 %v4929
    %6146 = vmatprep.subr.bf16.mxu0 0
    %6147 = vmatpush2.bf16.msra.mxu0 %v4928
    %6148 = vmatprep.subr.bf16.mxu0 0
    %6149 = vmatpush2.bf16.msra.mxu0 %v4927
    %6150 = vmatprep.subr.bf16.mxu0 0
    %6151 = vmatpush2.bf16.msra.mxu0 %v4926
    %6152 = vmatprep.subr.bf16.mxu0 0
    %6153 = vmatpush2.bf16.msra.mxu0 %v4925
    %6154 = vmatprep.mubr.bf16.mxu0 %v2448
    %6155 = vmatmul.mubr.bf16.gmra.mxu0 %v2447
    %v6156 = vpop.f32.mrf.mxu0
    %v6157 = vadd.f32 %v6060, %v6156
    %v6158 = vpop.f32.mrf.mxu0
    %v6159 = vpop.f32.mrf.mxu0
    %v6160 = vadd.f32 %v6063, %v6159
    %v6161 = vpop.f32.mrf.mxu0
    %6162 = vmatprep.mubr.bf16.mxu0 %v2498
    %6163 = vmatmul.mubr.bf16.gmra.mxu0 %v2497
    %v6164 = vpop.f32.mrf.mxu0
    %v6165 = vadd.f32 %v6068, %v6164
    %v6166 = vpop.f32.mrf.mxu0
    %v6167 = vpop.f32.mrf.mxu0
    %v6168 = vadd.f32 %v6071, %v6167
    %v6169 = vpop.f32.mrf.mxu0
    %6170 = vmatprep.mubr.bf16.mxu0 %v2548
    %6171 = vmatmul.mubr.bf16.gmra.mxu0 %v2547
    %v6172 = vpop.f32.mrf.mxu0
    %v6173 = vadd.f32 %v6076, %v6172
    %v6174 = vpop.f32.mrf.mxu0
    %v6175 = vpop.f32.mrf.mxu0
    %v6176 = vadd.f32 %v6079, %v6175
    %v6177 = vpop.f32.mrf.mxu0
    %6178 = vmatprep.mubr.bf16.mxu0 %v2598
    %6179 = vmatmul.mubr.bf16.gmra.mxu0 %v2597
    %v6180 = vpop.f32.mrf.mxu0
    %v6181 = vadd.f32 %v6084, %v6180
    %v6182 = vpop.f32.mrf.mxu0
    %v6183 = vpop.f32.mrf.mxu0
    %v6184 = vadd.f32 %v6087, %v6183
    %v6185 = vpop.f32.mrf.mxu0
    %6186 = vmatprep.mubr.bf16.mxu0 %v2648
    %6187 = vmatmul.mubr.bf16.gmra.mxu0 %v2647
    %v6188 = vpop.f32.mrf.mxu0
    %v6189 = vadd.f32 %v6092, %v6188
    %v6190 = vpop.f32.mrf.mxu0
    %v6191 = vpop.f32.mrf.mxu0
    %v6192 = vadd.f32 %v6095, %v6191
    %v6193 = vpop.f32.mrf.mxu0
    %6194 = vmatprep.mubr.bf16.mxu0 %v2698
    %6195 = vmatmul.mubr.bf16.gmra.mxu0 %v2697
    %v6196 = vpop.f32.mrf.mxu0
    %v6197 = vadd.f32 %v6100, %v6196
    %v6198 = vpop.f32.mrf.mxu0
    %v6199 = vpop.f32.mrf.mxu0
    %v6200 = vadd.f32 %v6103, %v6199
    %v6201 = vpop.f32.mrf.mxu0
    %6202 = vmatprep.mubr.bf16.mxu0 %v2748
    %6203 = vmatmul.mubr.bf16.gmra.mxu0 %v2747
    %v6204 = vpop.f32.mrf.mxu0
    %v6205 = vadd.f32 %v6108, %v6204
    %v6206 = vpop.f32.mrf.mxu0
    %v6207 = vpop.f32.mrf.mxu0
    %v6208 = vadd.f32 %v6111, %v6207
    %v6209 = vpop.f32.mrf.mxu0
    %6210 = vmatprep.mubr.bf16.mxu0 %v2798
    %6211 = vmatmul.mubr.bf16.gmra.mxu0 %v2797
    %v6212 = vpop.f32.mrf.mxu0
    %v6213 = vadd.f32 %v6116, %v6212
    %v6214 = vpop.f32.mrf.mxu0
    %v6215 = vpop.f32.mrf.mxu0
    %v6216 = vadd.f32 %v6119, %v6215
    %v6217 = vpop.f32.mrf.mxu0
    %6218 = vdwg.mxu0
    %6219 = vmatprep.subr.bf16.mxu0 0
    %6220 = vmatpush1.bf16.msra.mxu0 %v4940
    %6221 = vmatprep.subr.bf16.mxu0 0
    %6222 = vmatpush1.bf16.msra.mxu0 %v4939
    %6223 = vmatprep.subr.bf16.mxu0 0
    %6224 = vmatpush1.bf16.msra.mxu0 %v4938
    %6225 = vmatprep.subr.bf16.mxu0 0
    %6226 = vmatpush1.bf16.msra.mxu0 %v4937
    %6227 = vmatprep.subr.bf16.mxu0 0
    %6228 = vmatpush1.bf16.msra.mxu0 %v4936
    %6229 = vmatprep.subr.bf16.mxu0 0
    %6230 = vmatpush1.bf16.msra.mxu0 %v4935
    %6231 = vmatprep.subr.bf16.mxu0 0
    %6232 = vmatpush1.bf16.msra.mxu0 %v4934
    %6233 = vmatprep.subr.bf16.mxu0 0
    %6234 = vmatpush1.bf16.msra.mxu0 %v4933
    %6235 = vmatprep.subr.bf16.mxu0 0
    %6236 = vmatpush2.bf16.msra.mxu0 %v4948
    %6237 = vmatprep.subr.bf16.mxu0 0
    %6238 = vmatpush2.bf16.msra.mxu0 %v4947
    %6239 = vmatprep.subr.bf16.mxu0 0
    %6240 = vmatpush2.bf16.msra.mxu0 %v4946
    %6241 = vmatprep.subr.bf16.mxu0 0
    %6242 = vmatpush2.bf16.msra.mxu0 %v4945
    %6243 = vmatprep.subr.bf16.mxu0 0
    %6244 = vmatpush2.bf16.msra.mxu0 %v4944
    %6245 = vmatprep.subr.bf16.mxu0 0
    %6246 = vmatpush2.bf16.msra.mxu0 %v4943
    %6247 = vmatprep.subr.bf16.mxu0 0
    %6248 = vmatpush2.bf16.msra.mxu0 %v4942
    %6249 = vmatprep.subr.bf16.mxu0 0
    %6250 = vmatpush2.bf16.msra.mxu0 %v4941
    %6251 = vmatprep.mubr.bf16.mxu0 %v2450
    %6252 = vmatmul.mubr.bf16.gmra.mxu0 %v2449
    %v6253 = vpop.f32.mrf.mxu0
    %v6254 = vadd.f32 %v6157, %v6253
    %v6255 = vpop.f32.mrf.mxu0
    %v6256 = vpop.f32.mrf.mxu0
    %v6257 = vadd.f32 %v6160, %v6256
    %v6258 = vpop.f32.mrf.mxu0
    %6259 = vmatprep.mubr.bf16.mxu0 %v2500
    %6260 = vmatmul.mubr.bf16.gmra.mxu0 %v2499
    %v6261 = vpop.f32.mrf.mxu0
    %v6262 = vadd.f32 %v6165, %v6261
    %v6263 = vpop.f32.mrf.mxu0
    %v6264 = vpop.f32.mrf.mxu0
    %v6265 = vadd.f32 %v6168, %v6264
    %v6266 = vpop.f32.mrf.mxu0
    %6267 = vmatprep.mubr.bf16.mxu0 %v2550
    %6268 = vmatmul.mubr.bf16.gmra.mxu0 %v2549
    %v6269 = vpop.f32.mrf.mxu0
    %v6270 = vadd.f32 %v6173, %v6269
    %v6271 = vpop.f32.mrf.mxu0
    %v6272 = vpop.f32.mrf.mxu0
    %v6273 = vadd.f32 %v6176, %v6272
    %v6274 = vpop.f32.mrf.mxu0
    %6275 = vmatprep.mubr.bf16.mxu0 %v2600
    %6276 = vmatmul.mubr.bf16.gmra.mxu0 %v2599
    %v6277 = vpop.f32.mrf.mxu0
    %v6278 = vadd.f32 %v6181, %v6277
    %v6279 = vpop.f32.mrf.mxu0
    %v6280 = vpop.f32.mrf.mxu0
    %v6281 = vadd.f32 %v6184, %v6280
    %v6282 = vpop.f32.mrf.mxu0
    %6283 = vmatprep.mubr.bf16.mxu0 %v2650
    %6284 = vmatmul.mubr.bf16.gmra.mxu0 %v2649
    %v6285 = vpop.f32.mrf.mxu0
    %v6286 = vadd.f32 %v6189, %v6285
    %v6287 = vpop.f32.mrf.mxu0
    %v6288 = vpop.f32.mrf.mxu0
    %v6289 = vadd.f32 %v6192, %v6288
    %v6290 = vpop.f32.mrf.mxu0
    %6291 = vmatprep.mubr.bf16.mxu0 %v2700
    %6292 = vmatmul.mubr.bf16.gmra.mxu0 %v2699
    %v6293 = vpop.f32.mrf.mxu0
    %v6294 = vadd.f32 %v6197, %v6293
    %v6295 = vpop.f32.mrf.mxu0
    %v6296 = vpop.f32.mrf.mxu0
    %v6297 = vadd.f32 %v6200, %v6296
    %v6298 = vpop.f32.mrf.mxu0
    %6299 = vmatprep.mubr.bf16.mxu0 %v2750
    %6300 = vmatmul.mubr.bf16.gmra.mxu0 %v2749
    %v6301 = vpop.f32.mrf.mxu0
    %v6302 = vadd.f32 %v6205, %v6301
    %v6303 = vpop.f32.mrf.mxu0
    %v6304 = vpop.f32.mrf.mxu0
    %v6305 = vadd.f32 %v6208, %v6304
    %v6306 = vpop.f32.mrf.mxu0
    %6307 = vmatprep.mubr.bf16.mxu0 %v2800
    %6308 = vmatmul.mubr.bf16.gmra.mxu0 %v2799
    %v6309 = vpop.f32.mrf.mxu0
    %v6310 = vadd.f32 %v6213, %v6309
    %v6311 = vpop.f32.mrf.mxu0
    %v6312 = vpop.f32.mrf.mxu0
    %v6313 = vadd.f32 %v6216, %v6312
    %v6314 = vpop.f32.mrf.mxu0
    %6315 = vdwg.mxu0
    %6316 = vmatprep.subr.bf16.mxu0 0
    %6317 = vmatpush1.bf16.msra.mxu0 %v4956
    %6318 = vmatprep.subr.bf16.mxu0 0
    %6319 = vmatpush1.bf16.msra.mxu0 %v4955
    %6320 = vmatprep.subr.bf16.mxu0 0
    %6321 = vmatpush1.bf16.msra.mxu0 %v4954
    %6322 = vmatprep.subr.bf16.mxu0 0
    %6323 = vmatpush1.bf16.msra.mxu0 %v4953
    %6324 = vmatprep.subr.bf16.mxu0 0
    %6325 = vmatpush1.bf16.msra.mxu0 %v4952
    %6326 = vmatprep.subr.bf16.mxu0 0
    %6327 = vmatpush1.bf16.msra.mxu0 %v4951
    %6328 = vmatprep.subr.bf16.mxu0 0
    %6329 = vmatpush1.bf16.msra.mxu0 %v4950
    %6330 = vmatprep.subr.bf16.mxu0 0
    %6331 = vmatpush1.bf16.msra.mxu0 %v4949
    %6332 = vmatprep.subr.bf16.mxu0 0
    %6333 = vmatpush2.bf16.msra.mxu0 %v4964
    %6334 = vmatprep.subr.bf16.mxu0 0
    %6335 = vmatpush2.bf16.msra.mxu0 %v4963
    %6336 = vmatprep.subr.bf16.mxu0 0
    %6337 = vmatpush2.bf16.msra.mxu0 %v4962
    %6338 = vmatprep.subr.bf16.mxu0 0
    %6339 = vmatpush2.bf16.msra.mxu0 %v4961
    %6340 = vmatprep.subr.bf16.mxu0 0
    %6341 = vmatpush2.bf16.msra.mxu0 %v4960
    %6342 = vmatprep.subr.bf16.mxu0 0
    %6343 = vmatpush2.bf16.msra.mxu0 %v4959
    %6344 = vmatprep.subr.bf16.mxu0 0
    %6345 = vmatpush2.bf16.msra.mxu0 %v4958
    %6346 = vmatprep.subr.bf16.mxu0 0
    %6347 = vmatpush2.bf16.msra.mxu0 %v4957
    %6348 = vmatprep.mubr.bf16.mxu0 %v2452
    %6349 = vmatmul.mubr.bf16.gmra.mxu0 %v2451
    %v6350 = vpop.f32.mrf.mxu0
    %v6351 = vadd.f32 %v6254, %v6350
    %v6352 = vpop.f32.mrf.mxu0
    %v6353 = vpop.f32.mrf.mxu0
    %v6354 = vadd.f32 %v6257, %v6353
    %v6355 = vpop.f32.mrf.mxu0
    %6356 = vmatprep.mubr.bf16.mxu0 %v2502
    %6357 = vmatmul.mubr.bf16.gmra.mxu0 %v2501
    %v6358 = vpop.f32.mrf.mxu0
    %v6359 = vadd.f32 %v6262, %v6358
    %v6360 = vpop.f32.mrf.mxu0
    %v6361 = vpop.f32.mrf.mxu0
    %v6362 = vadd.f32 %v6265, %v6361
    %v6363 = vpop.f32.mrf.mxu0
    %6364 = vmatprep.mubr.bf16.mxu0 %v2552
    %6365 = vmatmul.mubr.bf16.gmra.mxu0 %v2551
    %v6366 = vpop.f32.mrf.mxu0
    %v6367 = vadd.f32 %v6270, %v6366
    %v6368 = vpop.f32.mrf.mxu0
    %v6369 = vpop.f32.mrf.mxu0
    %v6370 = vadd.f32 %v6273, %v6369
    %v6371 = vpop.f32.mrf.mxu0
    %6372 = vmatprep.mubr.bf16.mxu0 %v2602
    %6373 = vmatmul.mubr.bf16.gmra.mxu0 %v2601
    %v6374 = vpop.f32.mrf.mxu0
    %v6375 = vadd.f32 %v6278, %v6374
    %v6376 = vpop.f32.mrf.mxu0
    %v6377 = vpop.f32.mrf.mxu0
    %v6378 = vadd.f32 %v6281, %v6377
    %v6379 = vpop.f32.mrf.mxu0
    %6380 = vmatprep.mubr.bf16.mxu0 %v2652
    %6381 = vmatmul.mubr.bf16.gmra.mxu0 %v2651
    %v6382 = vpop.f32.mrf.mxu0
    %v6383 = vadd.f32 %v6286, %v6382
    %v6384 = vpop.f32.mrf.mxu0
    %v6385 = vpop.f32.mrf.mxu0
    %v6386 = vadd.f32 %v6289, %v6385
    %v6387 = vpop.f32.mrf.mxu0
    %6388 = vmatprep.mubr.bf16.mxu0 %v2702
    %6389 = vmatmul.mubr.bf16.gmra.mxu0 %v2701
    %v6390 = vpop.f32.mrf.mxu0
    %v6391 = vadd.f32 %v6294, %v6390
    %v6392 = vpop.f32.mrf.mxu0
    %v6393 = vpop.f32.mrf.mxu0
    %v6394 = vadd.f32 %v6297, %v6393
    %v6395 = vpop.f32.mrf.mxu0
    %6396 = vmatprep.mubr.bf16.mxu0 %v2752
    %6397 = vmatmul.mubr.bf16.gmra.mxu0 %v2751
    %v6398 = vpop.f32.mrf.mxu0
    %v6399 = vadd.f32 %v6302, %v6398
    %v6400 = vpop.f32.mrf.mxu0
    %v6401 = vpop.f32.mrf.mxu0
    %v6402 = vadd.f32 %v6305, %v6401
    %v6403 = vpop.f32.mrf.mxu0
    %6404 = vmatprep.mubr.bf16.mxu0 %v2802
    %6405 = vmatmul.mubr.bf16.gmra.mxu0 %v2801
    %v6406 = vpop.f32.mrf.mxu0
    %v6407 = vadd.f32 %v6310, %v6406
    %v6408 = vpop.f32.mrf.mxu0
    %v6409 = vpop.f32.mrf.mxu0
    %v6410 = vadd.f32 %v6313, %v6409
    %v6411 = vpop.f32.mrf.mxu0
    %6412 = vdwg.mxu0
    %6413 = vmatprep.subr.bf16.mxu0 0
    %6414 = vmatpush1.bf16.msra.mxu0 %v4972
    %6415 = vmatprep.subr.bf16.mxu0 0
    %6416 = vmatpush1.bf16.msra.mxu0 %v4971
    %6417 = vmatprep.subr.bf16.mxu0 0
    %6418 = vmatpush1.bf16.msra.mxu0 %v4970
    %6419 = vmatprep.subr.bf16.mxu0 0
    %6420 = vmatpush1.bf16.msra.mxu0 %v4969
    %6421 = vmatprep.subr.bf16.mxu0 0
    %6422 = vmatpush1.bf16.msra.mxu0 %v4968
    %6423 = vmatprep.subr.bf16.mxu0 0
    %6424 = vmatpush1.bf16.msra.mxu0 %v4967
    %6425 = vmatprep.subr.bf16.mxu0 0
    %6426 = vmatpush1.bf16.msra.mxu0 %v4966
    %6427 = vmatprep.subr.bf16.mxu0 0
    %6428 = vmatpush1.bf16.msra.mxu0 %v4965
    %6429 = vmatprep.subr.bf16.mxu0 0
    %6430 = vmatpush2.bf16.msra.mxu0 %v4980
    %6431 = vmatprep.subr.bf16.mxu0 0
    %6432 = vmatpush2.bf16.msra.mxu0 %v4979
    %6433 = vmatprep.subr.bf16.mxu0 0
    %6434 = vmatpush2.bf16.msra.mxu0 %v4978
    %6435 = vmatprep.subr.bf16.mxu0 0
    %6436 = vmatpush2.bf16.msra.mxu0 %v4977
    %6437 = vmatprep.subr.bf16.mxu0 0
    %6438 = vmatpush2.bf16.msra.mxu0 %v4976
    %6439 = vmatprep.subr.bf16.mxu0 0
    %6440 = vmatpush2.bf16.msra.mxu0 %v4975
    %6441 = vmatprep.subr.bf16.mxu0 0
    %6442 = vmatpush2.bf16.msra.mxu0 %v4974
    %6443 = vmatprep.subr.bf16.mxu0 0
    %6444 = vmatpush2.bf16.msra.mxu0 %v4973
    %6445 = vmatprep.mubr.bf16.mxu0 %v2454
    %6446 = vmatmul.mubr.bf16.gmra.mxu0 %v2453
    %v6447 = vpop.f32.mrf.mxu0
    %v6448 = vadd.f32 %v6351, %v6447
    %v6449 = vpop.f32.mrf.mxu0
    %v6450 = vpop.f32.mrf.mxu0
    %v6451 = vadd.f32 %v6354, %v6450
    %v6452 = vpop.f32.mrf.mxu0
    %6453 = vmatprep.mubr.bf16.mxu0 %v2504
    %6454 = vmatmul.mubr.bf16.gmra.mxu0 %v2503
    %v6455 = vpop.f32.mrf.mxu0
    %v6456 = vadd.f32 %v6359, %v6455
    %v6457 = vpop.f32.mrf.mxu0
    %v6458 = vpop.f32.mrf.mxu0
    %v6459 = vadd.f32 %v6362, %v6458
    %v6460 = vpop.f32.mrf.mxu0
    %6461 = vmatprep.mubr.bf16.mxu0 %v2554
    %6462 = vmatmul.mubr.bf16.gmra.mxu0 %v2553
    %v6463 = vpop.f32.mrf.mxu0
    %v6464 = vadd.f32 %v6367, %v6463
    %v6465 = vpop.f32.mrf.mxu0
    %v6466 = vpop.f32.mrf.mxu0
    %v6467 = vadd.f32 %v6370, %v6466
    %v6468 = vpop.f32.mrf.mxu0
    %6469 = vmatprep.mubr.bf16.mxu0 %v2604
    %6470 = vmatmul.mubr.bf16.gmra.mxu0 %v2603
    %v6471 = vpop.f32.mrf.mxu0
    %v6472 = vadd.f32 %v6375, %v6471
    %v6473 = vpop.f32.mrf.mxu0
    %v6474 = vpop.f32.mrf.mxu0
    %v6475 = vadd.f32 %v6378, %v6474
    %v6476 = vpop.f32.mrf.mxu0
    %6477 = vmatprep.mubr.bf16.mxu0 %v2654
    %6478 = vmatmul.mubr.bf16.gmra.mxu0 %v2653
    %v6479 = vpop.f32.mrf.mxu0
    %v6480 = vadd.f32 %v6383, %v6479
    %v6481 = vpop.f32.mrf.mxu0
    %v6482 = vpop.f32.mrf.mxu0
    %v6483 = vadd.f32 %v6386, %v6482
    %v6484 = vpop.f32.mrf.mxu0
    %6485 = vmatprep.mubr.bf16.mxu0 %v2704
    %6486 = vmatmul.mubr.bf16.gmra.mxu0 %v2703
    %v6487 = vpop.f32.mrf.mxu0
    %v6488 = vadd.f32 %v6391, %v6487
    %v6489 = vpop.f32.mrf.mxu0
    %v6490 = vpop.f32.mrf.mxu0
    %v6491 = vadd.f32 %v6394, %v6490
    %v6492 = vpop.f32.mrf.mxu0
    %6493 = vmatprep.mubr.bf16.mxu0 %v2754
    %6494 = vmatmul.mubr.bf16.gmra.mxu0 %v2753
    %v6495 = vpop.f32.mrf.mxu0
    %v6496 = vadd.f32 %v6399, %v6495
    %v6497 = vpop.f32.mrf.mxu0
    %v6498 = vpop.f32.mrf.mxu0
    %v6499 = vadd.f32 %v6402, %v6498
    %v6500 = vpop.f32.mrf.mxu0
    %6501 = vmatprep.mubr.bf16.mxu0 %v2804
    %6502 = vmatmul.mubr.bf16.gmra.mxu0 %v2803
    %v6503 = vpop.f32.mrf.mxu0
    %v6504 = vadd.f32 %v6407, %v6503
    %v6505 = vpop.f32.mrf.mxu0
    %v6506 = vpop.f32.mrf.mxu0
    %v6507 = vadd.f32 %v6410, %v6506
    %v6508 = vpop.f32.mrf.mxu0
    %6509 = vdwg.mxu0
    %6510 = vmatprep.subr.bf16.mxu0 0
    %6511 = vmatpush1.bf16.msra.mxu0 %v4988
    %6512 = vmatprep.subr.bf16.mxu0 0
    %6513 = vmatpush1.bf16.msra.mxu0 %v4987
    %6514 = vmatprep.subr.bf16.mxu0 0
    %6515 = vmatpush1.bf16.msra.mxu0 %v4986
    %6516 = vmatprep.subr.bf16.mxu0 0
    %6517 = vmatpush1.bf16.msra.mxu0 %v4985
    %6518 = vmatprep.subr.bf16.mxu0 0
    %6519 = vmatpush1.bf16.msra.mxu0 %v4984
    %6520 = vmatprep.subr.bf16.mxu0 0
    %6521 = vmatpush1.bf16.msra.mxu0 %v4983
    %6522 = vmatprep.subr.bf16.mxu0 0
    %6523 = vmatpush1.bf16.msra.mxu0 %v4982
    %6524 = vmatprep.subr.bf16.mxu0 0
    %6525 = vmatpush1.bf16.msra.mxu0 %v4981
    %6526 = vmatprep.subr.bf16.mxu0 0
    %6527 = vmatpush2.bf16.msra.mxu0 %v4996
    %6528 = vmatprep.subr.bf16.mxu0 0
    %6529 = vmatpush2.bf16.msra.mxu0 %v4995
    %6530 = vmatprep.subr.bf16.mxu0 0
    %6531 = vmatpush2.bf16.msra.mxu0 %v4994
    %6532 = vmatprep.subr.bf16.mxu0 0
    %6533 = vmatpush2.bf16.msra.mxu0 %v4993
    %6534 = vmatprep.subr.bf16.mxu0 0
    %6535 = vmatpush2.bf16.msra.mxu0 %v4992
    %6536 = vmatprep.subr.bf16.mxu0 0
    %6537 = vmatpush2.bf16.msra.mxu0 %v4991
    %6538 = vmatprep.subr.bf16.mxu0 0
    %6539 = vmatpush2.bf16.msra.mxu0 %v4990
    %6540 = vmatprep.subr.bf16.mxu0 0
    %6541 = vmatpush2.bf16.msra.mxu0 %v4989
    %6542 = vmatprep.mubr.bf16.mxu0 %v2456
    %6543 = vmatmul.mubr.bf16.gmra.mxu0 %v2455
    %v6544 = vpop.f32.mrf.mxu0
    %v6545 = vadd.f32 %v6448, %v6544
    %v6546 = vpop.f32.mrf.mxu0
    %v6547 = vpop.f32.mrf.mxu0
    %v6548 = vadd.f32 %v6451, %v6547
    %v6549 = vpop.f32.mrf.mxu0
    %6550 = vmatprep.mubr.bf16.mxu0 %v2506
    %6551 = vmatmul.mubr.bf16.gmra.mxu0 %v2505
    %v6552 = vpop.f32.mrf.mxu0
    %v6553 = vadd.f32 %v6456, %v6552
    %v6554 = vpop.f32.mrf.mxu0
    %v6555 = vpop.f32.mrf.mxu0
    %v6556 = vadd.f32 %v6459, %v6555
    %v6557 = vpop.f32.mrf.mxu0
    %6558 = vmatprep.mubr.bf16.mxu0 %v2556
    %6559 = vmatmul.mubr.bf16.gmra.mxu0 %v2555
    %v6560 = vpop.f32.mrf.mxu0
    %v6561 = vadd.f32 %v6464, %v6560
    %v6562 = vpop.f32.mrf.mxu0
    %v6563 = vpop.f32.mrf.mxu0
    %v6564 = vadd.f32 %v6467, %v6563
    %v6565 = vpop.f32.mrf.mxu0
    %6566 = vmatprep.mubr.bf16.mxu0 %v2606
    %6567 = vmatmul.mubr.bf16.gmra.mxu0 %v2605
    %v6568 = vpop.f32.mrf.mxu0
    %v6569 = vadd.f32 %v6472, %v6568
    %v6570 = vpop.f32.mrf.mxu0
    %v6571 = vpop.f32.mrf.mxu0
    %v6572 = vadd.f32 %v6475, %v6571
    %v6573 = vpop.f32.mrf.mxu0
    %6574 = vmatprep.mubr.bf16.mxu0 %v2656
    %6575 = vmatmul.mubr.bf16.gmra.mxu0 %v2655
    %v6576 = vpop.f32.mrf.mxu0
    %v6577 = vadd.f32 %v6480, %v6576
    %v6578 = vpop.f32.mrf.mxu0
    %v6579 = vpop.f32.mrf.mxu0
    %v6580 = vadd.f32 %v6483, %v6579
    %v6581 = vpop.f32.mrf.mxu0
    %6582 = vmatprep.mubr.bf16.mxu0 %v2706
    %6583 = vmatmul.mubr.bf16.gmra.mxu0 %v2705
    %v6584 = vpop.f32.mrf.mxu0
    %v6585 = vadd.f32 %v6488, %v6584
    %v6586 = vpop.f32.mrf.mxu0
    %v6587 = vpop.f32.mrf.mxu0
    %v6588 = vadd.f32 %v6491, %v6587
    %v6589 = vpop.f32.mrf.mxu0
    %6590 = vmatprep.mubr.bf16.mxu0 %v2756
    %6591 = vmatmul.mubr.bf16.gmra.mxu0 %v2755
    %v6592 = vpop.f32.mrf.mxu0
    %v6593 = vadd.f32 %v6496, %v6592
    %v6594 = vpop.f32.mrf.mxu0
    %v6595 = vpop.f32.mrf.mxu0
    %v6596 = vadd.f32 %v6499, %v6595
    %v6597 = vpop.f32.mrf.mxu0
    %6598 = vmatprep.mubr.bf16.mxu0 %v2806
    %6599 = vmatmul.mubr.bf16.gmra.mxu0 %v2805
    %v6600 = vpop.f32.mrf.mxu0
    %v6601 = vadd.f32 %v6504, %v6600
    %v6602 = vpop.f32.mrf.mxu0
    %v6603 = vpop.f32.mrf.mxu0
    %v6604 = vadd.f32 %v6507, %v6603
    %v6605 = vpop.f32.mrf.mxu0
    %6606 = vdwg.mxu0
    %6607 = vmatprep.subr.bf16.mxu0 0
    %6608 = vmatpush1.bf16.msra.mxu0 %v5004
    %6609 = vmatprep.subr.bf16.mxu0 0
    %6610 = vmatpush1.bf16.msra.mxu0 %v5003
    %6611 = vmatprep.subr.bf16.mxu0 0
    %6612 = vmatpush1.bf16.msra.mxu0 %v5002
    %6613 = vmatprep.subr.bf16.mxu0 0
    %6614 = vmatpush1.bf16.msra.mxu0 %v5001
    %6615 = vmatprep.subr.bf16.mxu0 0
    %6616 = vmatpush1.bf16.msra.mxu0 %v5000
    %6617 = vmatprep.subr.bf16.mxu0 0
    %6618 = vmatpush1.bf16.msra.mxu0 %v4999
    %6619 = vmatprep.subr.bf16.mxu0 0
    %6620 = vmatpush1.bf16.msra.mxu0 %v4998
    %6621 = vmatprep.subr.bf16.mxu0 0
    %6622 = vmatpush1.bf16.msra.mxu0 %v4997
    %6623 = vmatprep.subr.bf16.mxu0 0
    %6624 = vmatpush2.bf16.msra.mxu0 %v5012
    %6625 = vmatprep.subr.bf16.mxu0 0
    %6626 = vmatpush2.bf16.msra.mxu0 %v5011
    %6627 = vmatprep.subr.bf16.mxu0 0
    %6628 = vmatpush2.bf16.msra.mxu0 %v5010
    %6629 = vmatprep.subr.bf16.mxu0 0
    %6630 = vmatpush2.bf16.msra.mxu0 %v5009
    %6631 = vmatprep.subr.bf16.mxu0 0
    %6632 = vmatpush2.bf16.msra.mxu0 %v5008
    %6633 = vmatprep.subr.bf16.mxu0 0
    %6634 = vmatpush2.bf16.msra.mxu0 %v5007
    %6635 = vmatprep.subr.bf16.mxu0 0
    %6636 = vmatpush2.bf16.msra.mxu0 %v5006
    %6637 = vmatprep.subr.bf16.mxu0 0
    %6638 = vmatpush2.bf16.msra.mxu0 %v5005
    %6639 = vmatprep.mubr.bf16.mxu0 %v2458
    %6640 = vmatmul.mubr.bf16.gmra.mxu0 %v2457
    %v6641 = vpop.f32.mrf.mxu0
    %v6642 = vadd.f32 %v6545, %v6641
    %v6643 = vpop.f32.mrf.mxu0
    %v6644 = vpop.f32.mrf.mxu0
    %v6645 = vadd.f32 %v6548, %v6644
    %v6646 = vpop.f32.mrf.mxu0
    %6647 = vmatprep.mubr.bf16.mxu0 %v2508
    %6648 = vmatmul.mubr.bf16.gmra.mxu0 %v2507
    %v6649 = vpop.f32.mrf.mxu0
    %v6650 = vadd.f32 %v6553, %v6649
    %v6651 = vpop.f32.mrf.mxu0
    %v6652 = vpop.f32.mrf.mxu0
    %v6653 = vadd.f32 %v6556, %v6652
    %v6654 = vpop.f32.mrf.mxu0
    %6655 = vmatprep.mubr.bf16.mxu0 %v2558
    %6656 = vmatmul.mubr.bf16.gmra.mxu0 %v2557
    %v6657 = vpop.f32.mrf.mxu0
    %v6658 = vadd.f32 %v6561, %v6657
    %v6659 = vpop.f32.mrf.mxu0
    %v6660 = vpop.f32.mrf.mxu0
    %v6661 = vadd.f32 %v6564, %v6660
    %v6662 = vpop.f32.mrf.mxu0
    %6663 = vmatprep.mubr.bf16.mxu0 %v2608
    %6664 = vmatmul.mubr.bf16.gmra.mxu0 %v2607
    %v6665 = vpop.f32.mrf.mxu0
    %v6666 = vadd.f32 %v6569, %v6665
    %v6667 = vpop.f32.mrf.mxu0
    %v6668 = vpop.f32.mrf.mxu0
    %v6669 = vadd.f32 %v6572, %v6668
    %v6670 = vpop.f32.mrf.mxu0
    %6671 = vmatprep.mubr.bf16.mxu0 %v2658
    %6672 = vmatmul.mubr.bf16.gmra.mxu0 %v2657
    %v6673 = vpop.f32.mrf.mxu0
    %v6674 = vadd.f32 %v6577, %v6673
    %v6675 = vpop.f32.mrf.mxu0
    %v6676 = vpop.f32.mrf.mxu0
    %v6677 = vadd.f32 %v6580, %v6676
    %v6678 = vpop.f32.mrf.mxu0
    %6679 = vmatprep.mubr.bf16.mxu0 %v2708
    %6680 = vmatmul.mubr.bf16.gmra.mxu0 %v2707
    %v6681 = vpop.f32.mrf.mxu0
    %v6682 = vadd.f32 %v6585, %v6681
    %v6683 = vpop.f32.mrf.mxu0
    %v6684 = vpop.f32.mrf.mxu0
    %v6685 = vadd.f32 %v6588, %v6684
    %v6686 = vpop.f32.mrf.mxu0
    %6687 = vmatprep.mubr.bf16.mxu0 %v2758
    %6688 = vmatmul.mubr.bf16.gmra.mxu0 %v2757
    %v6689 = vpop.f32.mrf.mxu0
    %v6690 = vadd.f32 %v6593, %v6689
    %v6691 = vpop.f32.mrf.mxu0
    %v6692 = vpop.f32.mrf.mxu0
    %v6693 = vadd.f32 %v6596, %v6692
    %v6694 = vpop.f32.mrf.mxu0
    %6695 = vmatprep.mubr.bf16.mxu0 %v2808
    %6696 = vmatmul.mubr.bf16.gmra.mxu0 %v2807
    %v6697 = vpop.f32.mrf.mxu0
    %v6698 = vadd.f32 %v6601, %v6697
    %v6699 = vpop.f32.mrf.mxu0
    %v6700 = vpop.f32.mrf.mxu0
    %v6701 = vadd.f32 %v6604, %v6700
    %v6702 = vpop.f32.mrf.mxu0
    %6703 = vdwg.mxu0
    %6704 = vmatprep.subr.bf16.mxu0 0
    %6705 = vmatpush1.bf16.msra.mxu0 %v5020
    %6706 = vmatprep.subr.bf16.mxu0 0
    %6707 = vmatpush1.bf16.msra.mxu0 %v5019
    %6708 = vmatprep.subr.bf16.mxu0 0
    %6709 = vmatpush1.bf16.msra.mxu0 %v5018
    %6710 = vmatprep.subr.bf16.mxu0 0
    %6711 = vmatpush1.bf16.msra.mxu0 %v5017
    %6712 = vmatprep.subr.bf16.mxu0 0
    %6713 = vmatpush1.bf16.msra.mxu0 %v5016
    %6714 = vmatprep.subr.bf16.mxu0 0
    %6715 = vmatpush1.bf16.msra.mxu0 %v5015
    %6716 = vmatprep.subr.bf16.mxu0 0
    %6717 = vmatpush1.bf16.msra.mxu0 %v5014
    %6718 = vmatprep.subr.bf16.mxu0 0
    %6719 = vmatpush1.bf16.msra.mxu0 %v5013
    %6720 = vmatprep.subr.bf16.mxu0 0
    %6721 = vmatpush2.bf16.msra.mxu0 %v5028
    %6722 = vmatprep.subr.bf16.mxu0 0
    %6723 = vmatpush2.bf16.msra.mxu0 %v5027
    %6724 = vmatprep.subr.bf16.mxu0 0
    %6725 = vmatpush2.bf16.msra.mxu0 %v5026
    %6726 = vmatprep.subr.bf16.mxu0 0
    %6727 = vmatpush2.bf16.msra.mxu0 %v5025
    %6728 = vmatprep.subr.bf16.mxu0 0
    %6729 = vmatpush2.bf16.msra.mxu0 %v5024
    %6730 = vmatprep.subr.bf16.mxu0 0
    %6731 = vmatpush2.bf16.msra.mxu0 %v5023
    %6732 = vmatprep.subr.bf16.mxu0 0
    %6733 = vmatpush2.bf16.msra.mxu0 %v5022
    %6734 = vmatprep.subr.bf16.mxu0 0
    %6735 = vmatpush2.bf16.msra.mxu0 %v5021
    %6736 = vmatprep.mubr.bf16.mxu0 %v2460
    %6737 = vmatmul.mubr.bf16.gmra.mxu0 %v2459
    %v6738 = vpop.f32.mrf.mxu0
    %v6739 = vadd.f32 %v6642, %v6738
    %v6740 = vpop.f32.mrf.mxu0
    %v6741 = vpop.f32.mrf.mxu0
    %v6742 = vadd.f32 %v6645, %v6741
    %v6743 = vpop.f32.mrf.mxu0
    %6744 = vmatprep.mubr.bf16.mxu0 %v2510
    %6745 = vmatmul.mubr.bf16.gmra.mxu0 %v2509
    %v6746 = vpop.f32.mrf.mxu0
    %v6747 = vadd.f32 %v6650, %v6746
    %v6748 = vpop.f32.mrf.mxu0
    %v6749 = vpop.f32.mrf.mxu0
    %v6750 = vadd.f32 %v6653, %v6749
    %v6751 = vpop.f32.mrf.mxu0
    %6752 = vmatprep.mubr.bf16.mxu0 %v2560
    %6753 = vmatmul.mubr.bf16.gmra.mxu0 %v2559
    %v6754 = vpop.f32.mrf.mxu0
    %v6755 = vadd.f32 %v6658, %v6754
    %v6756 = vpop.f32.mrf.mxu0
    %v6757 = vpop.f32.mrf.mxu0
    %v6758 = vadd.f32 %v6661, %v6757
    %v6759 = vpop.f32.mrf.mxu0
    %6760 = vmatprep.mubr.bf16.mxu0 %v2610
    %6761 = vmatmul.mubr.bf16.gmra.mxu0 %v2609
    %v6762 = vpop.f32.mrf.mxu0
    %v6763 = vadd.f32 %v6666, %v6762
    %v6764 = vpop.f32.mrf.mxu0
    %v6765 = vpop.f32.mrf.mxu0
    %v6766 = vadd.f32 %v6669, %v6765
    %v6767 = vpop.f32.mrf.mxu0
    %6768 = vmatprep.mubr.bf16.mxu0 %v2660
    %6769 = vmatmul.mubr.bf16.gmra.mxu0 %v2659
    %v6770 = vpop.f32.mrf.mxu0
    %v6771 = vadd.f32 %v6674, %v6770
    %v6772 = vpop.f32.mrf.mxu0
    %v6773 = vpop.f32.mrf.mxu0
    %v6774 = vadd.f32 %v6677, %v6773
    %v6775 = vpop.f32.mrf.mxu0
    %6776 = vmatprep.mubr.bf16.mxu0 %v2710
    %6777 = vmatmul.mubr.bf16.gmra.mxu0 %v2709
    %v6778 = vpop.f32.mrf.mxu0
    %v6779 = vadd.f32 %v6682, %v6778
    %v6780 = vpop.f32.mrf.mxu0
    %v6781 = vpop.f32.mrf.mxu0
    %v6782 = vadd.f32 %v6685, %v6781
    %v6783 = vpop.f32.mrf.mxu0
    %6784 = vmatprep.mubr.bf16.mxu0 %v2760
    %6785 = vmatmul.mubr.bf16.gmra.mxu0 %v2759
    %v6786 = vpop.f32.mrf.mxu0
    %v6787 = vadd.f32 %v6690, %v6786
    %v6788 = vpop.f32.mrf.mxu0
    %v6789 = vpop.f32.mrf.mxu0
    %v6790 = vadd.f32 %v6693, %v6789
    %v6791 = vpop.f32.mrf.mxu0
    %6792 = vmatprep.mubr.bf16.mxu0 %v2810
    %6793 = vmatmul.mubr.bf16.gmra.mxu0 %v2809
    %v6794 = vpop.f32.mrf.mxu0
    %v6795 = vadd.f32 %v6698, %v6794
    %v6796 = vpop.f32.mrf.mxu0
    %v6797 = vpop.f32.mrf.mxu0
    %v6798 = vadd.f32 %v6701, %v6797
    %v6799 = vpop.f32.mrf.mxu0
    %6800 = vdwg.mxu0
    %6801 = vmatprep.subr.bf16.mxu0 0
    %6802 = vmatpush1.bf16.msra.mxu0 %v5036
    %6803 = vmatprep.subr.bf16.mxu0 0
    %6804 = vmatpush1.bf16.msra.mxu0 %v5035
    %6805 = vmatprep.subr.bf16.mxu0 0
    %6806 = vmatpush1.bf16.msra.mxu0 %v5034
    %6807 = vmatprep.subr.bf16.mxu0 0
    %6808 = vmatpush1.bf16.msra.mxu0 %v5033
    %6809 = vmatprep.subr.bf16.mxu0 0
    %6810 = vmatpush1.bf16.msra.mxu0 %v5032
    %6811 = vmatprep.subr.bf16.mxu0 0
    %6812 = vmatpush1.bf16.msra.mxu0 %v5031
    %6813 = vmatprep.subr.bf16.mxu0 0
    %6814 = vmatpush1.bf16.msra.mxu0 %v5030
    %6815 = vmatprep.subr.bf16.mxu0 0
    %6816 = vmatpush1.bf16.msra.mxu0 %v5029
    %6817 = vmatprep.subr.bf16.mxu0 0
    %6818 = vmatpush2.bf16.msra.mxu0 %v5044
    %6819 = vmatprep.subr.bf16.mxu0 0
    %6820 = vmatpush2.bf16.msra.mxu0 %v5043
    %6821 = vmatprep.subr.bf16.mxu0 0
    %6822 = vmatpush2.bf16.msra.mxu0 %v5042
    %6823 = vmatprep.subr.bf16.mxu0 0
    %6824 = vmatpush2.bf16.msra.mxu0 %v5041
    %6825 = vmatprep.subr.bf16.mxu0 0
    %6826 = vmatpush2.bf16.msra.mxu0 %v5040
    %6827 = vmatprep.subr.bf16.mxu0 0
    %6828 = vmatpush2.bf16.msra.mxu0 %v5039
    %6829 = vmatprep.subr.bf16.mxu0 0
    %6830 = vmatpush2.bf16.msra.mxu0 %v5038
    %6831 = vmatprep.subr.bf16.mxu0 0
    %6832 = vmatpush2.bf16.msra.mxu0 %v5037
    %6833 = vmatprep.mubr.bf16.mxu0 %v2462
    %6834 = vmatmul.mubr.bf16.gmra.mxu0 %v2461
    %v6835 = vpop.f32.mrf.mxu0
    %v6836 = vadd.f32 %v6739, %v6835
    %v6837 = vpop.f32.mrf.mxu0
    %v6838 = vpop.f32.mrf.mxu0
    %v6839 = vadd.f32 %v6742, %v6838
    %v6840 = vpop.f32.mrf.mxu0
    %6841 = vmatprep.mubr.bf16.mxu0 %v2512
    %6842 = vmatmul.mubr.bf16.gmra.mxu0 %v2511
    %v6843 = vpop.f32.mrf.mxu0
    %v6844 = vadd.f32 %v6747, %v6843
    %v6845 = vpop.f32.mrf.mxu0
    %v6846 = vpop.f32.mrf.mxu0
    %v6847 = vadd.f32 %v6750, %v6846
    %v6848 = vpop.f32.mrf.mxu0
    %6849 = vmatprep.mubr.bf16.mxu0 %v2562
    %6850 = vmatmul.mubr.bf16.gmra.mxu0 %v2561
    %v6851 = vpop.f32.mrf.mxu0
    %v6852 = vadd.f32 %v6755, %v6851
    %v6853 = vpop.f32.mrf.mxu0
    %v6854 = vpop.f32.mrf.mxu0
    %v6855 = vadd.f32 %v6758, %v6854
    %v6856 = vpop.f32.mrf.mxu0
    %6857 = vmatprep.mubr.bf16.mxu0 %v2612
    %6858 = vmatmul.mubr.bf16.gmra.mxu0 %v2611
    %v6859 = vpop.f32.mrf.mxu0
    %v6860 = vadd.f32 %v6763, %v6859
    %v6861 = vpop.f32.mrf.mxu0
    %v6862 = vpop.f32.mrf.mxu0
    %v6863 = vadd.f32 %v6766, %v6862
    %v6864 = vpop.f32.mrf.mxu0
    %6865 = vmatprep.mubr.bf16.mxu0 %v2662
    %6866 = vmatmul.mubr.bf16.gmra.mxu0 %v2661
    %v6867 = vpop.f32.mrf.mxu0
    %v6868 = vadd.f32 %v6771, %v6867
    %v6869 = vpop.f32.mrf.mxu0
    %v6870 = vpop.f32.mrf.mxu0
    %v6871 = vadd.f32 %v6774, %v6870
    %v6872 = vpop.f32.mrf.mxu0
    %6873 = vmatprep.mubr.bf16.mxu0 %v2712
    %6874 = vmatmul.mubr.bf16.gmra.mxu0 %v2711
    %v6875 = vpop.f32.mrf.mxu0
    %v6876 = vadd.f32 %v6779, %v6875
    %v6877 = vpop.f32.mrf.mxu0
    %v6878 = vpop.f32.mrf.mxu0
    %v6879 = vadd.f32 %v6782, %v6878
    %v6880 = vpop.f32.mrf.mxu0
    %6881 = vmatprep.mubr.bf16.mxu0 %v2762
    %6882 = vmatmul.mubr.bf16.gmra.mxu0 %v2761
    %v6883 = vpop.f32.mrf.mxu0
    %v6884 = vadd.f32 %v6787, %v6883
    %v6885 = vpop.f32.mrf.mxu0
    %v6886 = vpop.f32.mrf.mxu0
    %v6887 = vadd.f32 %v6790, %v6886
    %v6888 = vpop.f32.mrf.mxu0
    %6889 = vmatprep.mubr.bf16.mxu0 %v2812
    %6890 = vmatmul.mubr.bf16.gmra.mxu0 %v2811
    %v6891 = vpop.f32.mrf.mxu0
    %v6892 = vadd.f32 %v6795, %v6891
    %v6893 = vpop.f32.mrf.mxu0
    %v6894 = vpop.f32.mrf.mxu0
    %v6895 = vadd.f32 %v6798, %v6894
    %v6896 = vpop.f32.mrf.mxu0
    %6897 = vdwg.mxu0
    %6898 = vmatprep.subr.bf16.mxu0 0
    %6899 = vmatpush1.bf16.msra.mxu0 %v5052
    %6900 = vmatprep.subr.bf16.mxu0 0
    %6901 = vmatpush1.bf16.msra.mxu0 %v5051
    %6902 = vmatprep.subr.bf16.mxu0 0
    %6903 = vmatpush1.bf16.msra.mxu0 %v5050
    %6904 = vmatprep.subr.bf16.mxu0 0
    %6905 = vmatpush1.bf16.msra.mxu0 %v5049
    %6906 = vmatprep.subr.bf16.mxu0 0
    %6907 = vmatpush1.bf16.msra.mxu0 %v5048
    %6908 = vmatprep.subr.bf16.mxu0 0
    %6909 = vmatpush1.bf16.msra.mxu0 %v5047
    %6910 = vmatprep.subr.bf16.mxu0 0
    %6911 = vmatpush1.bf16.msra.mxu0 %v5046
    %6912 = vmatprep.subr.bf16.mxu0 0
    %6913 = vmatpush1.bf16.msra.mxu0 %v5045
    %6914 = vmatprep.subr.bf16.mxu0 0
    %6915 = vmatpush2.bf16.msra.mxu0 %v5060
    %6916 = vmatprep.subr.bf16.mxu0 0
    %6917 = vmatpush2.bf16.msra.mxu0 %v5059
    %6918 = vmatprep.subr.bf16.mxu0 0
    %6919 = vmatpush2.bf16.msra.mxu0 %v5058
    %6920 = vmatprep.subr.bf16.mxu0 0
    %6921 = vmatpush2.bf16.msra.mxu0 %v5057
    %6922 = vmatprep.subr.bf16.mxu0 0
    %6923 = vmatpush2.bf16.msra.mxu0 %v5056
    %6924 = vmatprep.subr.bf16.mxu0 0
    %6925 = vmatpush2.bf16.msra.mxu0 %v5055
    %6926 = vmatprep.subr.bf16.mxu0 0
    %6927 = vmatpush2.bf16.msra.mxu0 %v5054
    %6928 = vmatprep.subr.bf16.mxu0 0
    %6929 = vmatpush2.bf16.msra.mxu0 %v5053
    %6930 = vmatprep.mubr.bf16.mxu0 %v2464
    %6931 = vmatmul.mubr.bf16.gmra.mxu0 %v2463
    %v6932 = vpop.f32.mrf.mxu0
    %v6933 = vadd.f32 %v6836, %v6932
    %v6934 = vpop.f32.mrf.mxu0
    %v6935 = vpop.f32.mrf.mxu0
    %v6936 = vadd.f32 %v6839, %v6935
    %v6937 = vpop.f32.mrf.mxu0
    %6938 = vmatprep.mubr.bf16.mxu0 %v2514
    %6939 = vmatmul.mubr.bf16.gmra.mxu0 %v2513
    %v6940 = vpop.f32.mrf.mxu0
    %v6941 = vadd.f32 %v6844, %v6940
    %v6942 = vpop.f32.mrf.mxu0
    %v6943 = vpop.f32.mrf.mxu0
    %v6944 = vadd.f32 %v6847, %v6943
    %v6945 = vpop.f32.mrf.mxu0
    %6946 = vmatprep.mubr.bf16.mxu0 %v2564
    %6947 = vmatmul.mubr.bf16.gmra.mxu0 %v2563
    %v6948 = vpop.f32.mrf.mxu0
    %v6949 = vadd.f32 %v6852, %v6948
    %v6950 = vpop.f32.mrf.mxu0
    %v6951 = vpop.f32.mrf.mxu0
    %v6952 = vadd.f32 %v6855, %v6951
    %v6953 = vpop.f32.mrf.mxu0
    %6954 = vmatprep.mubr.bf16.mxu0 %v2614
    %6955 = vmatmul.mubr.bf16.gmra.mxu0 %v2613
    %v6956 = vpop.f32.mrf.mxu0
    %v6957 = vadd.f32 %v6860, %v6956
    %v6958 = vpop.f32.mrf.mxu0
    %v6959 = vpop.f32.mrf.mxu0
    %v6960 = vadd.f32 %v6863, %v6959
    %v6961 = vpop.f32.mrf.mxu0
    %6962 = vmatprep.mubr.bf16.mxu0 %v2664
    %6963 = vmatmul.mubr.bf16.gmra.mxu0 %v2663
    %v6964 = vpop.f32.mrf.mxu0
    %v6965 = vadd.f32 %v6868, %v6964
    %v6966 = vpop.f32.mrf.mxu0
    %v6967 = vpop.f32.mrf.mxu0
    %v6968 = vadd.f32 %v6871, %v6967
    %v6969 = vpop.f32.mrf.mxu0
    %6970 = vmatprep.mubr.bf16.mxu0 %v2714
    %6971 = vmatmul.mubr.bf16.gmra.mxu0 %v2713
    %v6972 = vpop.f32.mrf.mxu0
    %v6973 = vadd.f32 %v6876, %v6972
    %v6974 = vpop.f32.mrf.mxu0
    %v6975 = vpop.f32.mrf.mxu0
    %v6976 = vadd.f32 %v6879, %v6975
    %v6977 = vpop.f32.mrf.mxu0
    %6978 = vmatprep.mubr.bf16.mxu0 %v2764
    %6979 = vmatmul.mubr.bf16.gmra.mxu0 %v2763
    %v6980 = vpop.f32.mrf.mxu0
    %v6981 = vadd.f32 %v6884, %v6980
    %v6982 = vpop.f32.mrf.mxu0
    %v6983 = vpop.f32.mrf.mxu0
    %v6984 = vadd.f32 %v6887, %v6983
    %v6985 = vpop.f32.mrf.mxu0
    %6986 = vmatprep.mubr.bf16.mxu0 %v2814
    %6987 = vmatmul.mubr.bf16.gmra.mxu0 %v2813
    %v6988 = vpop.f32.mrf.mxu0
    %v6989 = vadd.f32 %v6892, %v6988
    %v6990 = vpop.f32.mrf.mxu0
    %v6991 = vpop.f32.mrf.mxu0
    %v6992 = vadd.f32 %v6895, %v6991
    %v6993 = vpop.f32.mrf.mxu0
    %6994 = vdwg.mxu0
    %6995 = vmatprep.subr.bf16.mxu0 0
    %6996 = vmatpush1.bf16.msra.mxu0 %v5068
    %6997 = vmatprep.subr.bf16.mxu0 0
    %6998 = vmatpush1.bf16.msra.mxu0 %v5067
    %6999 = vmatprep.subr.bf16.mxu0 0
    %7000 = vmatpush1.bf16.msra.mxu0 %v5066
    %7001 = vmatprep.subr.bf16.mxu0 0
    %7002 = vmatpush1.bf16.msra.mxu0 %v5065
    %7003 = vmatprep.subr.bf16.mxu0 0
    %7004 = vmatpush1.bf16.msra.mxu0 %v5064
    %7005 = vmatprep.subr.bf16.mxu0 0
    %7006 = vmatpush1.bf16.msra.mxu0 %v5063
    %7007 = vmatprep.subr.bf16.mxu0 0
    %7008 = vmatpush1.bf16.msra.mxu0 %v5062
    %7009 = vmatprep.subr.bf16.mxu0 0
    %7010 = vmatpush1.bf16.msra.mxu0 %v5061
    %7011 = vmatprep.subr.bf16.mxu0 0
    %7012 = vmatpush2.bf16.msra.mxu0 %v5076
    %7013 = vmatprep.subr.bf16.mxu0 0
    %7014 = vmatpush2.bf16.msra.mxu0 %v5075
    %7015 = vmatprep.subr.bf16.mxu0 0
    %7016 = vmatpush2.bf16.msra.mxu0 %v5074
    %7017 = vmatprep.subr.bf16.mxu0 0
    %7018 = vmatpush2.bf16.msra.mxu0 %v5073
    %7019 = vmatprep.subr.bf16.mxu0 0
    %7020 = vmatpush2.bf16.msra.mxu0 %v5072
    %7021 = vmatprep.subr.bf16.mxu0 0
    %7022 = vmatpush2.bf16.msra.mxu0 %v5071
    %7023 = vmatprep.subr.bf16.mxu0 0
    %7024 = vmatpush2.bf16.msra.mxu0 %v5070
    %7025 = vmatprep.subr.bf16.mxu0 0
    %7026 = vmatpush2.bf16.msra.mxu0 %v5069
    %7027 = vmatprep.mubr.bf16.mxu0 %v2466
    %7028 = vmatmul.mubr.bf16.gmra.mxu0 %v2465
    %v7029 = vpop.f32.mrf.mxu0
    %v7030 = vadd.f32 %v6933, %v7029
    %v7031 = vpop.f32.mrf.mxu0
    %v7032 = vpop.f32.mrf.mxu0
    %v7033 = vadd.f32 %v6936, %v7032
    %v7034 = vpop.f32.mrf.mxu0
    %7035 = vmatprep.mubr.bf16.mxu0 %v2516
    %7036 = vmatmul.mubr.bf16.gmra.mxu0 %v2515
    %v7037 = vpop.f32.mrf.mxu0
    %v7038 = vadd.f32 %v6941, %v7037
    %v7039 = vpop.f32.mrf.mxu0
    %v7040 = vpop.f32.mrf.mxu0
    %v7041 = vadd.f32 %v6944, %v7040
    %v7042 = vpop.f32.mrf.mxu0
    %7043 = vmatprep.mubr.bf16.mxu0 %v2566
    %7044 = vmatmul.mubr.bf16.gmra.mxu0 %v2565
    %v7045 = vpop.f32.mrf.mxu0
    %v7046 = vadd.f32 %v6949, %v7045
    %v7047 = vpop.f32.mrf.mxu0
    %v7048 = vpop.f32.mrf.mxu0
    %v7049 = vadd.f32 %v6952, %v7048
    %v7050 = vpop.f32.mrf.mxu0
    %7051 = vmatprep.mubr.bf16.mxu0 %v2616
    %7052 = vmatmul.mubr.bf16.gmra.mxu0 %v2615
    %v7053 = vpop.f32.mrf.mxu0
    %v7054 = vadd.f32 %v6957, %v7053
    %v7055 = vpop.f32.mrf.mxu0
    %v7056 = vpop.f32.mrf.mxu0
    %v7057 = vadd.f32 %v6960, %v7056
    %v7058 = vpop.f32.mrf.mxu0
    %7059 = vmatprep.mubr.bf16.mxu0 %v2666
    %7060 = vmatmul.mubr.bf16.gmra.mxu0 %v2665
    %v7061 = vpop.f32.mrf.mxu0
    %v7062 = vadd.f32 %v6965, %v7061
    %v7063 = vpop.f32.mrf.mxu0
    %v7064 = vpop.f32.mrf.mxu0
    %v7065 = vadd.f32 %v6968, %v7064
    %v7066 = vpop.f32.mrf.mxu0
    %7067 = vmatprep.mubr.bf16.mxu0 %v2716
    %7068 = vmatmul.mubr.bf16.gmra.mxu0 %v2715
    %v7069 = vpop.f32.mrf.mxu0
    %v7070 = vadd.f32 %v6973, %v7069
    %v7071 = vpop.f32.mrf.mxu0
    %v7072 = vpop.f32.mrf.mxu0
    %v7073 = vadd.f32 %v6976, %v7072
    %v7074 = vpop.f32.mrf.mxu0
    %7075 = vmatprep.mubr.bf16.mxu0 %v2766
    %7076 = vmatmul.mubr.bf16.gmra.mxu0 %v2765
    %v7077 = vpop.f32.mrf.mxu0
    %v7078 = vadd.f32 %v6981, %v7077
    %v7079 = vpop.f32.mrf.mxu0
    %v7080 = vpop.f32.mrf.mxu0
    %v7081 = vadd.f32 %v6984, %v7080
    %v7082 = vpop.f32.mrf.mxu0
    %7083 = vmatprep.mubr.bf16.mxu0 %v2816
    %7084 = vmatmul.mubr.bf16.gmra.mxu0 %v2815
    %v7085 = vpop.f32.mrf.mxu0
    %v7086 = vadd.f32 %v6989, %v7085
    %v7087 = vpop.f32.mrf.mxu0
    %v7088 = vpop.f32.mrf.mxu0
    %v7089 = vadd.f32 %v6992, %v7088
    %v7090 = vpop.f32.mrf.mxu0
    %7091 = vdwg.mxu0
    %7092 = vmatprep.subr.bf16.mxu0 0
    %7093 = vmatpush1.bf16.msra.mxu0 %v5084
    %7094 = vmatprep.subr.bf16.mxu0 0
    %7095 = vmatpush1.bf16.msra.mxu0 %v5083
    %7096 = vmatprep.subr.bf16.mxu0 0
    %7097 = vmatpush1.bf16.msra.mxu0 %v5082
    %7098 = vmatprep.subr.bf16.mxu0 0
    %7099 = vmatpush1.bf16.msra.mxu0 %v5081
    %7100 = vmatprep.subr.bf16.mxu0 0
    %7101 = vmatpush1.bf16.msra.mxu0 %v5080
    %7102 = vmatprep.subr.bf16.mxu0 0
    %7103 = vmatpush1.bf16.msra.mxu0 %v5079
    %7104 = vmatprep.subr.bf16.mxu0 0
    %7105 = vmatpush1.bf16.msra.mxu0 %v5078
    %7106 = vmatprep.subr.bf16.mxu0 0
    %7107 = vmatpush1.bf16.msra.mxu0 %v5077
    %7108 = vmatprep.subr.bf16.mxu0 0
    %7109 = vmatpush2.bf16.msra.mxu0 %v5092
    %7110 = vmatprep.subr.bf16.mxu0 0
    %7111 = vmatpush2.bf16.msra.mxu0 %v5091
    %7112 = vmatprep.subr.bf16.mxu0 0
    %7113 = vmatpush2.bf16.msra.mxu0 %v5090
    %7114 = vmatprep.subr.bf16.mxu0 0
    %7115 = vmatpush2.bf16.msra.mxu0 %v5089
    %7116 = vmatprep.subr.bf16.mxu0 0
    %7117 = vmatpush2.bf16.msra.mxu0 %v5088
    %7118 = vmatprep.subr.bf16.mxu0 0
    %7119 = vmatpush2.bf16.msra.mxu0 %v5087
    %7120 = vmatprep.subr.bf16.mxu0 0
    %7121 = vmatpush2.bf16.msra.mxu0 %v5086
    %7122 = vmatprep.subr.bf16.mxu0 0
    %7123 = vmatpush2.bf16.msra.mxu0 %v5085
    %7124 = vmatprep.mubr.bf16.mxu0 %v2468
    %7125 = vmatmul.mubr.bf16.gmra.mxu0 %v2467
    %v7126 = vpop.f32.mrf.mxu0
    %v7127 = vadd.f32 %v7030, %v7126
    %v7128 = vpop.f32.mrf.mxu0
    %v7129 = vpop.f32.mrf.mxu0
    %v7130 = vadd.f32 %v7033, %v7129
    %v7131 = vpop.f32.mrf.mxu0
    %7132 = vmatprep.mubr.bf16.mxu0 %v2518
    %7133 = vmatmul.mubr.bf16.gmra.mxu0 %v2517
    %v7134 = vpop.f32.mrf.mxu0
    %v7135 = vadd.f32 %v7038, %v7134
    %v7136 = vpop.f32.mrf.mxu0
    %v7137 = vpop.f32.mrf.mxu0
    %v7138 = vadd.f32 %v7041, %v7137
    %v7139 = vpop.f32.mrf.mxu0
    %7140 = vmatprep.mubr.bf16.mxu0 %v2568
    %7141 = vmatmul.mubr.bf16.gmra.mxu0 %v2567
    %v7142 = vpop.f32.mrf.mxu0
    %v7143 = vadd.f32 %v7046, %v7142
    %v7144 = vpop.f32.mrf.mxu0
    %v7145 = vpop.f32.mrf.mxu0
    %v7146 = vadd.f32 %v7049, %v7145
    %v7147 = vpop.f32.mrf.mxu0
    %7148 = vmatprep.mubr.bf16.mxu0 %v2618
    %7149 = vmatmul.mubr.bf16.gmra.mxu0 %v2617
    %v7150 = vpop.f32.mrf.mxu0
    %v7151 = vadd.f32 %v7054, %v7150
    %v7152 = vpop.f32.mrf.mxu0
    %v7153 = vpop.f32.mrf.mxu0
    %v7154 = vadd.f32 %v7057, %v7153
    %v7155 = vpop.f32.mrf.mxu0
    %7156 = vmatprep.mubr.bf16.mxu0 %v2668
    %7157 = vmatmul.mubr.bf16.gmra.mxu0 %v2667
    %v7158 = vpop.f32.mrf.mxu0
    %v7159 = vadd.f32 %v7062, %v7158
    %v7160 = vpop.f32.mrf.mxu0
    %v7161 = vpop.f32.mrf.mxu0
    %v7162 = vadd.f32 %v7065, %v7161
    %v7163 = vpop.f32.mrf.mxu0
    %7164 = vmatprep.mubr.bf16.mxu0 %v2718
    %7165 = vmatmul.mubr.bf16.gmra.mxu0 %v2717
    %v7166 = vpop.f32.mrf.mxu0
    %v7167 = vadd.f32 %v7070, %v7166
    %v7168 = vpop.f32.mrf.mxu0
    %v7169 = vpop.f32.mrf.mxu0
    %v7170 = vadd.f32 %v7073, %v7169
    %v7171 = vpop.f32.mrf.mxu0
    %7172 = vmatprep.mubr.bf16.mxu0 %v2768
    %7173 = vmatmul.mubr.bf16.gmra.mxu0 %v2767
    %v7174 = vpop.f32.mrf.mxu0
    %v7175 = vadd.f32 %v7078, %v7174
    %v7176 = vpop.f32.mrf.mxu0
    %v7177 = vpop.f32.mrf.mxu0
    %v7178 = vadd.f32 %v7081, %v7177
    %v7179 = vpop.f32.mrf.mxu0
    %7180 = vmatprep.mubr.bf16.mxu0 %v2818
    %7181 = vmatmul.mubr.bf16.gmra.mxu0 %v2817
    %v7182 = vpop.f32.mrf.mxu0
    %v7183 = vadd.f32 %v7086, %v7182
    %v7184 = vpop.f32.mrf.mxu0
    %v7185 = vpop.f32.mrf.mxu0
    %v7186 = vadd.f32 %v7089, %v7185
    %v7187 = vpop.f32.mrf.mxu0
    %7188 = vdwg.mxu0
    %7189 = vmatprep.subr.bf16.mxu0 0
    %7190 = vmatpush1.bf16.msra.mxu0 %v5100
    %7191 = vmatprep.subr.bf16.mxu0 0
    %7192 = vmatpush1.bf16.msra.mxu0 %v5099
    %7193 = vmatprep.subr.bf16.mxu0 0
    %7194 = vmatpush1.bf16.msra.mxu0 %v5098
    %7195 = vmatprep.subr.bf16.mxu0 0
    %7196 = vmatpush1.bf16.msra.mxu0 %v5097
    %7197 = vmatprep.subr.bf16.mxu0 0
    %7198 = vmatpush1.bf16.msra.mxu0 %v5096
    %7199 = vmatprep.subr.bf16.mxu0 0
    %7200 = vmatpush1.bf16.msra.mxu0 %v5095
    %7201 = vmatprep.subr.bf16.mxu0 0
    %7202 = vmatpush1.bf16.msra.mxu0 %v5094
    %7203 = vmatprep.subr.bf16.mxu0 0
    %7204 = vmatpush1.bf16.msra.mxu0 %v5093
    %7205 = vmatprep.subr.bf16.mxu0 0
    %7206 = vmatpush2.bf16.msra.mxu0 %v5108
    %7207 = vmatprep.subr.bf16.mxu0 0
    %7208 = vmatpush2.bf16.msra.mxu0 %v5107
    %7209 = vmatprep.subr.bf16.mxu0 0
    %7210 = vmatpush2.bf16.msra.mxu0 %v5106
    %7211 = vmatprep.subr.bf16.mxu0 0
    %7212 = vmatpush2.bf16.msra.mxu0 %v5105
    %7213 = vmatprep.subr.bf16.mxu0 0
    %7214 = vmatpush2.bf16.msra.mxu0 %v5104
    %7215 = vmatprep.subr.bf16.mxu0 0
    %7216 = vmatpush2.bf16.msra.mxu0 %v5103
    %7217 = vmatprep.subr.bf16.mxu0 0
    %7218 = vmatpush2.bf16.msra.mxu0 %v5102
    %7219 = vmatprep.subr.bf16.mxu0 0
    %7220 = vmatpush2.bf16.msra.mxu0 %v5101
    %7221 = vmatprep.mubr.bf16.mxu0 %v2470
    %7222 = vmatmul.mubr.bf16.gmra.mxu0 %v2469
    %v7223 = vpop.f32.mrf.mxu0
    %v7224 = vadd.f32 %v7127, %v7223
    %v7225 = vpop.f32.mrf.mxu0
    %v7226 = vpop.f32.mrf.mxu0
    %v7227 = vadd.f32 %v7130, %v7226
    %v7228 = vpop.f32.mrf.mxu0
    %7229 = vmatprep.mubr.bf16.mxu0 %v2520
    %7230 = vmatmul.mubr.bf16.gmra.mxu0 %v2519
    %v7231 = vpop.f32.mrf.mxu0
    %v7232 = vadd.f32 %v7135, %v7231
    %v7233 = vpop.f32.mrf.mxu0
    %v7234 = vpop.f32.mrf.mxu0
    %v7235 = vadd.f32 %v7138, %v7234
    %v7236 = vpop.f32.mrf.mxu0
    %7237 = vmatprep.mubr.bf16.mxu0 %v2570
    %7238 = vmatmul.mubr.bf16.gmra.mxu0 %v2569
    %v7239 = vpop.f32.mrf.mxu0
    %v7240 = vadd.f32 %v7143, %v7239
    %v7241 = vpop.f32.mrf.mxu0
    %v7242 = vpop.f32.mrf.mxu0
    %v7243 = vadd.f32 %v7146, %v7242
    %v7244 = vpop.f32.mrf.mxu0
    %7245 = vmatprep.mubr.bf16.mxu0 %v2620
    %7246 = vmatmul.mubr.bf16.gmra.mxu0 %v2619
    %v7247 = vpop.f32.mrf.mxu0
    %v7248 = vadd.f32 %v7151, %v7247
    %v7249 = vpop.f32.mrf.mxu0
    %v7250 = vpop.f32.mrf.mxu0
    %v7251 = vadd.f32 %v7154, %v7250
    %v7252 = vpop.f32.mrf.mxu0
    %7253 = vmatprep.mubr.bf16.mxu0 %v2670
    %7254 = vmatmul.mubr.bf16.gmra.mxu0 %v2669
    %v7255 = vpop.f32.mrf.mxu0
    %v7256 = vadd.f32 %v7159, %v7255
    %v7257 = vpop.f32.mrf.mxu0
    %v7258 = vpop.f32.mrf.mxu0
    %v7259 = vadd.f32 %v7162, %v7258
    %v7260 = vpop.f32.mrf.mxu0
    %7261 = vmatprep.mubr.bf16.mxu0 %v2720
    %7262 = vmatmul.mubr.bf16.gmra.mxu0 %v2719
    %v7263 = vpop.f32.mrf.mxu0
    %v7264 = vadd.f32 %v7167, %v7263
    %v7265 = vpop.f32.mrf.mxu0
    %v7266 = vpop.f32.mrf.mxu0
    %v7267 = vadd.f32 %v7170, %v7266
    %v7268 = vpop.f32.mrf.mxu0
    %7269 = vmatprep.mubr.bf16.mxu0 %v2770
    %7270 = vmatmul.mubr.bf16.gmra.mxu0 %v2769
    %v7271 = vpop.f32.mrf.mxu0
    %v7272 = vadd.f32 %v7175, %v7271
    %v7273 = vpop.f32.mrf.mxu0
    %v7274 = vpop.f32.mrf.mxu0
    %v7275 = vadd.f32 %v7178, %v7274
    %v7276 = vpop.f32.mrf.mxu0
    %7277 = vmatprep.mubr.bf16.mxu0 %v2820
    %7278 = vmatmul.mubr.bf16.gmra.mxu0 %v2819
    %v7279 = vpop.f32.mrf.mxu0
    %v7280 = vadd.f32 %v7183, %v7279
    %v7281 = vpop.f32.mrf.mxu0
    %v7282 = vpop.f32.mrf.mxu0
    %v7283 = vadd.f32 %v7186, %v7282
    %v7284 = vpop.f32.mrf.mxu0
    %7285 = vdwg.mxu0
    %7286 = vmatprep.subr.bf16.mxu0 0
    %7287 = vmatpush1.bf16.msra.mxu0 %v5116
    %7288 = vmatprep.subr.bf16.mxu0 0
    %7289 = vmatpush1.bf16.msra.mxu0 %v5115
    %7290 = vmatprep.subr.bf16.mxu0 0
    %7291 = vmatpush1.bf16.msra.mxu0 %v5114
    %7292 = vmatprep.subr.bf16.mxu0 0
    %7293 = vmatpush1.bf16.msra.mxu0 %v5113
    %7294 = vmatprep.subr.bf16.mxu0 0
    %7295 = vmatpush1.bf16.msra.mxu0 %v5112
    %7296 = vmatprep.subr.bf16.mxu0 0
    %7297 = vmatpush1.bf16.msra.mxu0 %v5111
    %7298 = vmatprep.subr.bf16.mxu0 0
    %7299 = vmatpush1.bf16.msra.mxu0 %v5110
    %7300 = vmatprep.subr.bf16.mxu0 0
    %7301 = vmatpush1.bf16.msra.mxu0 %v5109
    %7302 = vmatprep.subr.bf16.mxu0 0
    %7303 = vmatpush2.bf16.msra.mxu0 %v5124
    %7304 = vmatprep.subr.bf16.mxu0 0
    %7305 = vmatpush2.bf16.msra.mxu0 %v5123
    %7306 = vmatprep.subr.bf16.mxu0 0
    %7307 = vmatpush2.bf16.msra.mxu0 %v5122
    %7308 = vmatprep.subr.bf16.mxu0 0
    %7309 = vmatpush2.bf16.msra.mxu0 %v5121
    %7310 = vmatprep.subr.bf16.mxu0 0
    %7311 = vmatpush2.bf16.msra.mxu0 %v5120
    %7312 = vmatprep.subr.bf16.mxu0 0
    %7313 = vmatpush2.bf16.msra.mxu0 %v5119
    %7314 = vmatprep.subr.bf16.mxu0 0
    %7315 = vmatpush2.bf16.msra.mxu0 %v5118
    %7316 = vmatprep.subr.bf16.mxu0 0
    %7317 = vmatpush2.bf16.msra.mxu0 %v5117
    %7318 = vmatprep.mubr.bf16.mxu0 %v2472
    %7319 = vmatmul.mubr.bf16.gmra.mxu0 %v2471
    %v7320 = vpop.f32.mrf.mxu0
    %v7321 = vadd.f32 %v7224, %v7320
    %v7322 = vpop.f32.mrf.mxu0
    %v7323 = vpop.f32.mrf.mxu0
    %v7324 = vadd.f32 %v7227, %v7323
    %v7325 = vpop.f32.mrf.mxu0
    %7326 = vmatprep.mubr.bf16.mxu0 %v2522
    %7327 = vmatmul.mubr.bf16.gmra.mxu0 %v2521
    %v7328 = vpop.f32.mrf.mxu0
    %v7329 = vadd.f32 %v7232, %v7328
    %v7330 = vpop.f32.mrf.mxu0
    %v7331 = vpop.f32.mrf.mxu0
    %v7332 = vadd.f32 %v7235, %v7331
    %v7333 = vpop.f32.mrf.mxu0
    %7334 = vmatprep.mubr.bf16.mxu0 %v2572
    %7335 = vmatmul.mubr.bf16.gmra.mxu0 %v2571
    %v7336 = vpop.f32.mrf.mxu0
    %v7337 = vadd.f32 %v7240, %v7336
    %v7338 = vpop.f32.mrf.mxu0
    %v7339 = vpop.f32.mrf.mxu0
    %v7340 = vadd.f32 %v7243, %v7339
    %v7341 = vpop.f32.mrf.mxu0
    %7342 = vmatprep.mubr.bf16.mxu0 %v2622
    %7343 = vmatmul.mubr.bf16.gmra.mxu0 %v2621
    %v7344 = vpop.f32.mrf.mxu0
    %v7345 = vadd.f32 %v7248, %v7344
    %v7346 = vpop.f32.mrf.mxu0
    %v7347 = vpop.f32.mrf.mxu0
    %v7348 = vadd.f32 %v7251, %v7347
    %v7349 = vpop.f32.mrf.mxu0
    %7350 = vmatprep.mubr.bf16.mxu0 %v2672
    %7351 = vmatmul.mubr.bf16.gmra.mxu0 %v2671
    %v7352 = vpop.f32.mrf.mxu0
    %v7353 = vadd.f32 %v7256, %v7352
    %v7354 = vpop.f32.mrf.mxu0
    %v7355 = vpop.f32.mrf.mxu0
    %v7356 = vadd.f32 %v7259, %v7355
    %v7357 = vpop.f32.mrf.mxu0
    %7358 = vmatprep.mubr.bf16.mxu0 %v2722
    %7359 = vmatmul.mubr.bf16.gmra.mxu0 %v2721
    %v7360 = vpop.f32.mrf.mxu0
    %v7361 = vadd.f32 %v7264, %v7360
    %v7362 = vpop.f32.mrf.mxu0
    %v7363 = vpop.f32.mrf.mxu0
    %v7364 = vadd.f32 %v7267, %v7363
    %v7365 = vpop.f32.mrf.mxu0
    %7366 = vmatprep.mubr.bf16.mxu0 %v2772
    %7367 = vmatmul.mubr.bf16.gmra.mxu0 %v2771
    %v7368 = vpop.f32.mrf.mxu0
    %v7369 = vadd.f32 %v7272, %v7368
    %v7370 = vpop.f32.mrf.mxu0
    %v7371 = vpop.f32.mrf.mxu0
    %v7372 = vadd.f32 %v7275, %v7371
    %v7373 = vpop.f32.mrf.mxu0
    %7374 = vmatprep.mubr.bf16.mxu0 %v2822
    %7375 = vmatmul.mubr.bf16.gmra.mxu0 %v2821
    %v7376 = vpop.f32.mrf.mxu0
    %v7377 = vadd.f32 %v7280, %v7376
    %v7378 = vpop.f32.mrf.mxu0
    %v7379 = vpop.f32.mrf.mxu0
    %v7380 = vadd.f32 %v7283, %v7379
    %v7381 = vpop.f32.mrf.mxu0
    %7382 = vdwg.mxu0
    %7383 = vmatprep.subr.bf16.mxu0 0
    %7384 = vmatpush1.bf16.msra.mxu0 %v5132
    %7385 = vmatprep.subr.bf16.mxu0 0
    %7386 = vmatpush1.bf16.msra.mxu0 %v5131
    %7387 = vmatprep.subr.bf16.mxu0 0
    %7388 = vmatpush1.bf16.msra.mxu0 %v5130
    %7389 = vmatprep.subr.bf16.mxu0 0
    %7390 = vmatpush1.bf16.msra.mxu0 %v5129
    %7391 = vmatprep.subr.bf16.mxu0 0
    %7392 = vmatpush1.bf16.msra.mxu0 %v5128
    %7393 = vmatprep.subr.bf16.mxu0 0
    %7394 = vmatpush1.bf16.msra.mxu0 %v5127
    %7395 = vmatprep.subr.bf16.mxu0 0
    %7396 = vmatpush1.bf16.msra.mxu0 %v5126
    %7397 = vmatprep.subr.bf16.mxu0 0
    %7398 = vmatpush1.bf16.msra.mxu0 %v5125
    %7399 = vmatprep.subr.bf16.mxu0 0
    %7400 = vmatpush2.bf16.msra.mxu0 %v5140
    %7401 = vmatprep.subr.bf16.mxu0 0
    %7402 = vmatpush2.bf16.msra.mxu0 %v5139
    %7403 = vmatprep.subr.bf16.mxu0 0
    %7404 = vmatpush2.bf16.msra.mxu0 %v5138
    %7405 = vmatprep.subr.bf16.mxu0 0
    %7406 = vmatpush2.bf16.msra.mxu0 %v5137
    %7407 = vmatprep.subr.bf16.mxu0 0
    %7408 = vmatpush2.bf16.msra.mxu0 %v5136
    %7409 = vmatprep.subr.bf16.mxu0 0
    %7410 = vmatpush2.bf16.msra.mxu0 %v5135
    %7411 = vmatprep.subr.bf16.mxu0 0
    %7412 = vmatpush2.bf16.msra.mxu0 %v5134
    %7413 = vmatprep.subr.bf16.mxu0 0
    %7414 = vmatpush2.bf16.msra.mxu0 %v5133
    %7415 = vmatprep.mubr.bf16.mxu0 %v2474
    %7416 = vmatmul.mubr.bf16.gmra.mxu0 %v2473
    %v7417 = vpop.f32.mrf.mxu0
    %v7418 = vadd.f32 %v7321, %v7417
    %v7419 = vpop.f32.mrf.mxu0
    %v7420 = vpop.f32.mrf.mxu0
    %v7421 = vadd.f32 %v7324, %v7420
    %v7422 = vpop.f32.mrf.mxu0
    %7423 = vmatprep.mubr.bf16.mxu0 %v2524
    %7424 = vmatmul.mubr.bf16.gmra.mxu0 %v2523
    %v7425 = vpop.f32.mrf.mxu0
    %v7426 = vadd.f32 %v7329, %v7425
    %v7427 = vpop.f32.mrf.mxu0
    %v7428 = vpop.f32.mrf.mxu0
    %v7429 = vadd.f32 %v7332, %v7428
    %v7430 = vpop.f32.mrf.mxu0
    %7431 = vmatprep.mubr.bf16.mxu0 %v2574
    %7432 = vmatmul.mubr.bf16.gmra.mxu0 %v2573
    %v7433 = vpop.f32.mrf.mxu0
    %v7434 = vadd.f32 %v7337, %v7433
    %v7435 = vpop.f32.mrf.mxu0
    %v7436 = vpop.f32.mrf.mxu0
    %v7437 = vadd.f32 %v7340, %v7436
    %v7438 = vpop.f32.mrf.mxu0
    %7439 = vmatprep.mubr.bf16.mxu0 %v2624
    %7440 = vmatmul.mubr.bf16.gmra.mxu0 %v2623
    %v7441 = vpop.f32.mrf.mxu0
    %v7442 = vadd.f32 %v7345, %v7441
    %v7443 = vpop.f32.mrf.mxu0
    %v7444 = vpop.f32.mrf.mxu0
    %v7445 = vadd.f32 %v7348, %v7444
    %v7446 = vpop.f32.mrf.mxu0
    %7447 = vmatprep.mubr.bf16.mxu0 %v2674
    %7448 = vmatmul.mubr.bf16.gmra.mxu0 %v2673
    %v7449 = vpop.f32.mrf.mxu0
    %v7450 = vadd.f32 %v7353, %v7449
    %v7451 = vpop.f32.mrf.mxu0
    %v7452 = vpop.f32.mrf.mxu0
    %v7453 = vadd.f32 %v7356, %v7452
    %v7454 = vpop.f32.mrf.mxu0
    %7455 = vmatprep.mubr.bf16.mxu0 %v2724
    %7456 = vmatmul.mubr.bf16.gmra.mxu0 %v2723
    %v7457 = vpop.f32.mrf.mxu0
    %v7458 = vadd.f32 %v7361, %v7457
    %v7459 = vpop.f32.mrf.mxu0
    %v7460 = vpop.f32.mrf.mxu0
    %v7461 = vadd.f32 %v7364, %v7460
    %v7462 = vpop.f32.mrf.mxu0
    %7463 = vmatprep.mubr.bf16.mxu0 %v2774
    %7464 = vmatmul.mubr.bf16.gmra.mxu0 %v2773
    %v7465 = vpop.f32.mrf.mxu0
    %v7466 = vadd.f32 %v7369, %v7465
    %v7467 = vpop.f32.mrf.mxu0
    %v7468 = vpop.f32.mrf.mxu0
    %v7469 = vadd.f32 %v7372, %v7468
    %v7470 = vpop.f32.mrf.mxu0
    %7471 = vmatprep.mubr.bf16.mxu0 %v2824
    %7472 = vmatmul.mubr.bf16.gmra.mxu0 %v2823
    %v7473 = vpop.f32.mrf.mxu0
    %v7474 = vadd.f32 %v7377, %v7473
    %v7475 = vpop.f32.mrf.mxu0
    %v7476 = vpop.f32.mrf.mxu0
    %v7477 = vadd.f32 %v7380, %v7476
    %v7478 = vpop.f32.mrf.mxu0
    %7479 = vdwg.mxu0
    %7480 = vmatprep.subr.bf16.mxu0 0
    %7481 = vmatpush1.bf16.msra.mxu0 %v5148
    %7482 = vmatprep.subr.bf16.mxu0 0
    %7483 = vmatpush1.bf16.msra.mxu0 %v5147
    %7484 = vmatprep.subr.bf16.mxu0 0
    %7485 = vmatpush1.bf16.msra.mxu0 %v5146
    %7486 = vmatprep.subr.bf16.mxu0 0
    %7487 = vmatpush1.bf16.msra.mxu0 %v5145
    %7488 = vmatprep.subr.bf16.mxu0 0
    %7489 = vmatpush1.bf16.msra.mxu0 %v5144
    %7490 = vmatprep.subr.bf16.mxu0 0
    %7491 = vmatpush1.bf16.msra.mxu0 %v5143
    %7492 = vmatprep.subr.bf16.mxu0 0
    %7493 = vmatpush1.bf16.msra.mxu0 %v5142
    %7494 = vmatprep.subr.bf16.mxu0 0
    %7495 = vmatpush1.bf16.msra.mxu0 %v5141
    %7496 = vmatprep.subr.bf16.mxu0 0
    %7497 = vmatpush2.bf16.msra.mxu0 %v5156
    %7498 = vmatprep.subr.bf16.mxu0 0
    %7499 = vmatpush2.bf16.msra.mxu0 %v5155
    %7500 = vmatprep.subr.bf16.mxu0 0
    %7501 = vmatpush2.bf16.msra.mxu0 %v5154
    %7502 = vmatprep.subr.bf16.mxu0 0
    %7503 = vmatpush2.bf16.msra.mxu0 %v5153
    %7504 = vmatprep.subr.bf16.mxu0 0
    %7505 = vmatpush2.bf16.msra.mxu0 %v5152
    %7506 = vmatprep.subr.bf16.mxu0 0
    %7507 = vmatpush2.bf16.msra.mxu0 %v5151
    %7508 = vmatprep.subr.bf16.mxu0 0
    %7509 = vmatpush2.bf16.msra.mxu0 %v5150
    %7510 = vmatprep.subr.bf16.mxu0 0
    %7511 = vmatpush2.bf16.msra.mxu0 %v5149
    %7512 = vmatprep.mubr.bf16.mxu0 %v2476
    %7513 = vmatmul.mubr.bf16.gmra.mxu0 %v2475
    %v7514 = vpop.f32.mrf.mxu0
    %v7515 = vadd.f32 %v7418, %v7514
    %v7516 = vpop.f32.mrf.mxu0
    %v7517 = vpop.f32.mrf.mxu0
    %v7518 = vadd.f32 %v7421, %v7517
    %v7519 = vpop.f32.mrf.mxu0
    %7520 = vmatprep.mubr.bf16.mxu0 %v2526
    %7521 = vmatmul.mubr.bf16.gmra.mxu0 %v2525
    %v7522 = vpop.f32.mrf.mxu0
    %v7523 = vadd.f32 %v7426, %v7522
    %v7524 = vpop.f32.mrf.mxu0
    %v7525 = vpop.f32.mrf.mxu0
    %v7526 = vadd.f32 %v7429, %v7525
    %v7527 = vpop.f32.mrf.mxu0
    %7528 = vmatprep.mubr.bf16.mxu0 %v2576
    %7529 = vmatmul.mubr.bf16.gmra.mxu0 %v2575
    %v7530 = vpop.f32.mrf.mxu0
    %v7531 = vadd.f32 %v7434, %v7530
    %v7532 = vpop.f32.mrf.mxu0
    %v7533 = vpop.f32.mrf.mxu0
    %v7534 = vadd.f32 %v7437, %v7533
    %v7535 = vpop.f32.mrf.mxu0
    %7536 = vmatprep.mubr.bf16.mxu0 %v2626
    %7537 = vmatmul.mubr.bf16.gmra.mxu0 %v2625
    %v7538 = vpop.f32.mrf.mxu0
    %v7539 = vadd.f32 %v7442, %v7538
    %v7540 = vpop.f32.mrf.mxu0
    %v7541 = vpop.f32.mrf.mxu0
    %v7542 = vadd.f32 %v7445, %v7541
    %v7543 = vpop.f32.mrf.mxu0
    %7544 = vmatprep.mubr.bf16.mxu0 %v2676
    %7545 = vmatmul.mubr.bf16.gmra.mxu0 %v2675
    %v7546 = vpop.f32.mrf.mxu0
    %v7547 = vadd.f32 %v7450, %v7546
    %v7548 = vpop.f32.mrf.mxu0
    %v7549 = vpop.f32.mrf.mxu0
    %v7550 = vadd.f32 %v7453, %v7549
    %v7551 = vpop.f32.mrf.mxu0
    %7552 = vmatprep.mubr.bf16.mxu0 %v2726
    %7553 = vmatmul.mubr.bf16.gmra.mxu0 %v2725
    %v7554 = vpop.f32.mrf.mxu0
    %v7555 = vadd.f32 %v7458, %v7554
    %v7556 = vpop.f32.mrf.mxu0
    %v7557 = vpop.f32.mrf.mxu0
    %v7558 = vadd.f32 %v7461, %v7557
    %v7559 = vpop.f32.mrf.mxu0
    %7560 = vmatprep.mubr.bf16.mxu0 %v2776
    %7561 = vmatmul.mubr.bf16.gmra.mxu0 %v2775
    %v7562 = vpop.f32.mrf.mxu0
    %v7563 = vadd.f32 %v7466, %v7562
    %v7564 = vpop.f32.mrf.mxu0
    %v7565 = vpop.f32.mrf.mxu0
    %v7566 = vadd.f32 %v7469, %v7565
    %v7567 = vpop.f32.mrf.mxu0
    %7568 = vmatprep.mubr.bf16.mxu0 %v2826
    %7569 = vmatmul.mubr.bf16.gmra.mxu0 %v2825
    %v7570 = vpop.f32.mrf.mxu0
    %v7571 = vadd.f32 %v7474, %v7570
    %v7572 = vpop.f32.mrf.mxu0
    %v7573 = vpop.f32.mrf.mxu0
    %v7574 = vadd.f32 %v7477, %v7573
    %v7575 = vpop.f32.mrf.mxu0
    %7576 = vdwg.mxu0
    %7577 = vmatprep.subr.bf16.mxu0 0
    %7578 = vmatpush1.bf16.msra.mxu0 %v5164
    %7579 = vmatprep.subr.bf16.mxu0 0
    %7580 = vmatpush1.bf16.msra.mxu0 %v5163
    %7581 = vmatprep.subr.bf16.mxu0 0
    %7582 = vmatpush1.bf16.msra.mxu0 %v5162
    %7583 = vmatprep.subr.bf16.mxu0 0
    %7584 = vmatpush1.bf16.msra.mxu0 %v5161
    %7585 = vmatprep.subr.bf16.mxu0 0
    %7586 = vmatpush1.bf16.msra.mxu0 %v5160
    %7587 = vmatprep.subr.bf16.mxu0 0
    %7588 = vmatpush1.bf16.msra.mxu0 %v5159
    %7589 = vmatprep.subr.bf16.mxu0 0
    %7590 = vmatpush1.bf16.msra.mxu0 %v5158
    %7591 = vmatprep.subr.bf16.mxu0 0
    %7592 = vmatpush1.bf16.msra.mxu0 %v5157
    %7593 = vmatprep.subr.bf16.mxu0 0
    %7594 = vmatpush2.bf16.msra.mxu0 %v5172
    %7595 = vmatprep.subr.bf16.mxu0 0
    %7596 = vmatpush2.bf16.msra.mxu0 %v5171
    %7597 = vmatprep.subr.bf16.mxu0 0
    %7598 = vmatpush2.bf16.msra.mxu0 %v5170
    %7599 = vmatprep.subr.bf16.mxu0 0
    %7600 = vmatpush2.bf16.msra.mxu0 %v5169
    %7601 = vmatprep.subr.bf16.mxu0 0
    %7602 = vmatpush2.bf16.msra.mxu0 %v5168
    %7603 = vmatprep.subr.bf16.mxu0 0
    %7604 = vmatpush2.bf16.msra.mxu0 %v5167
    %7605 = vmatprep.subr.bf16.mxu0 0
    %7606 = vmatpush2.bf16.msra.mxu0 %v5166
    %7607 = vmatprep.subr.bf16.mxu0 0
    %7608 = vmatpush2.bf16.msra.mxu0 %v5165
    %7609 = vmatprep.mubr.bf16.mxu0 %v2478
    %7610 = vmatmul.mubr.bf16.gmra.mxu0 %v2477
    %v7611 = vpop.f32.mrf.mxu0
    %v7612 = vadd.f32 %v7515, %v7611
    %v7613 = vpop.f32.mrf.mxu0
    %v7614 = vpop.f32.mrf.mxu0
    %v7615 = vadd.f32 %v7518, %v7614
    %v7616 = vpop.f32.mrf.mxu0
    %7617 = vmatprep.mubr.bf16.mxu0 %v2528
    %7618 = vmatmul.mubr.bf16.gmra.mxu0 %v2527
    %v7619 = vpop.f32.mrf.mxu0
    %v7620 = vadd.f32 %v7523, %v7619
    %v7621 = vpop.f32.mrf.mxu0
    %v7622 = vpop.f32.mrf.mxu0
    %v7623 = vadd.f32 %v7526, %v7622
    %v7624 = vpop.f32.mrf.mxu0
    %7625 = vmatprep.mubr.bf16.mxu0 %v2578
    %7626 = vmatmul.mubr.bf16.gmra.mxu0 %v2577
    %v7627 = vpop.f32.mrf.mxu0
    %v7628 = vadd.f32 %v7531, %v7627
    %v7629 = vpop.f32.mrf.mxu0
    %v7630 = vpop.f32.mrf.mxu0
    %v7631 = vadd.f32 %v7534, %v7630
    %v7632 = vpop.f32.mrf.mxu0
    %7633 = vmatprep.mubr.bf16.mxu0 %v2628
    %7634 = vmatmul.mubr.bf16.gmra.mxu0 %v2627
    %v7635 = vpop.f32.mrf.mxu0
    %v7636 = vadd.f32 %v7539, %v7635
    %v7637 = vpop.f32.mrf.mxu0
    %v7638 = vpop.f32.mrf.mxu0
    %v7639 = vadd.f32 %v7542, %v7638
    %v7640 = vpop.f32.mrf.mxu0
    %7641 = vmatprep.mubr.bf16.mxu0 %v2678
    %7642 = vmatmul.mubr.bf16.gmra.mxu0 %v2677
    %v7643 = vpop.f32.mrf.mxu0
    %v7644 = vadd.f32 %v7547, %v7643
    %v7645 = vpop.f32.mrf.mxu0
    %v7646 = vpop.f32.mrf.mxu0
    %v7647 = vadd.f32 %v7550, %v7646
    %v7648 = vpop.f32.mrf.mxu0
    %7649 = vmatprep.mubr.bf16.mxu0 %v2728
    %7650 = vmatmul.mubr.bf16.gmra.mxu0 %v2727
    %v7651 = vpop.f32.mrf.mxu0
    %v7652 = vadd.f32 %v7555, %v7651
    %v7653 = vpop.f32.mrf.mxu0
    %v7654 = vpop.f32.mrf.mxu0
    %v7655 = vadd.f32 %v7558, %v7654
    %v7656 = vpop.f32.mrf.mxu0
    %7657 = vmatprep.mubr.bf16.mxu0 %v2778
    %7658 = vmatmul.mubr.bf16.gmra.mxu0 %v2777
    %v7659 = vpop.f32.mrf.mxu0
    %v7660 = vadd.f32 %v7563, %v7659
    %v7661 = vpop.f32.mrf.mxu0
    %v7662 = vpop.f32.mrf.mxu0
    %v7663 = vadd.f32 %v7566, %v7662
    %v7664 = vpop.f32.mrf.mxu0
    %7665 = vmatprep.mubr.bf16.mxu0 %v2828
    %7666 = vmatmul.mubr.bf16.gmra.mxu0 %v2827
    %v7667 = vpop.f32.mrf.mxu0
    %v7668 = vadd.f32 %v7571, %v7667
    %v7669 = vpop.f32.mrf.mxu0
    %v7670 = vpop.f32.mrf.mxu0
    %v7671 = vadd.f32 %v7574, %v7670
    %v7672 = vpop.f32.mrf.mxu0
    %7673 = vdwg.mxu0
    %7674 = vmatprep.subr.bf16.mxu0 0
    %7675 = vmatpush1.bf16.msra.mxu0 %v5180
    %7676 = vmatprep.subr.bf16.mxu0 0
    %7677 = vmatpush1.bf16.msra.mxu0 %v5179
    %7678 = vmatprep.subr.bf16.mxu0 0
    %7679 = vmatpush1.bf16.msra.mxu0 %v5178
    %7680 = vmatprep.subr.bf16.mxu0 0
    %7681 = vmatpush1.bf16.msra.mxu0 %v5177
    %7682 = vmatprep.subr.bf16.mxu0 0
    %7683 = vmatpush1.bf16.msra.mxu0 %v5176
    %7684 = vmatprep.subr.bf16.mxu0 0
    %7685 = vmatpush1.bf16.msra.mxu0 %v5175
    %7686 = vmatprep.subr.bf16.mxu0 0
    %7687 = vmatpush1.bf16.msra.mxu0 %v5174
    %7688 = vmatprep.subr.bf16.mxu0 0
    %7689 = vmatpush1.bf16.msra.mxu0 %v5173
    %7690 = vmatprep.subr.bf16.mxu0 0
    %7691 = vmatpush2.bf16.msra.mxu0 %v5188
    %7692 = vmatprep.subr.bf16.mxu0 0
    %7693 = vmatpush2.bf16.msra.mxu0 %v5187
    %7694 = vmatprep.subr.bf16.mxu0 0
    %7695 = vmatpush2.bf16.msra.mxu0 %v5186
    %7696 = vmatprep.subr.bf16.mxu0 0
    %7697 = vmatpush2.bf16.msra.mxu0 %v5185
    %7698 = vmatprep.subr.bf16.mxu0 0
    %7699 = vmatpush2.bf16.msra.mxu0 %v5184
    %7700 = vmatprep.subr.bf16.mxu0 0
    %7701 = vmatpush2.bf16.msra.mxu0 %v5183
    %7702 = vmatprep.subr.bf16.mxu0 0
    %7703 = vmatpush2.bf16.msra.mxu0 %v5182
    %7704 = vmatprep.subr.bf16.mxu0 0
    %7705 = vmatpush2.bf16.msra.mxu0 %v5181
    %7706 = vmatprep.mubr.bf16.mxu0 %v2480
    %7707 = vmatmul.mubr.bf16.gmra.mxu0 %v2479
    %v7708 = vpop.f32.mrf.mxu0
    %v7709 = vadd.f32 %v7612, %v7708
    %v7710 = vpop.f32.mrf.mxu0
    %v7711 = vpop.f32.mrf.mxu0
    %v7712 = vadd.f32 %v7615, %v7711
    %v7713 = vpop.f32.mrf.mxu0
    %7714 = vmatprep.mubr.bf16.mxu0 %v2530
    %7715 = vmatmul.mubr.bf16.gmra.mxu0 %v2529
    %v7716 = vpop.f32.mrf.mxu0
    %v7717 = vadd.f32 %v7620, %v7716
    %v7718 = vpop.f32.mrf.mxu0
    %v7719 = vpop.f32.mrf.mxu0
    %v7720 = vadd.f32 %v7623, %v7719
    %v7721 = vpop.f32.mrf.mxu0
    %7722 = vmatprep.mubr.bf16.mxu0 %v2580
    %7723 = vmatmul.mubr.bf16.gmra.mxu0 %v2579
    %v7724 = vpop.f32.mrf.mxu0
    %v7725 = vadd.f32 %v7628, %v7724
    %v7726 = vpop.f32.mrf.mxu0
    %v7727 = vpop.f32.mrf.mxu0
    %v7728 = vadd.f32 %v7631, %v7727
    %v7729 = vpop.f32.mrf.mxu0
    %7730 = vmatprep.mubr.bf16.mxu0 %v2630
    %7731 = vmatmul.mubr.bf16.gmra.mxu0 %v2629
    %v7732 = vpop.f32.mrf.mxu0
    %v7733 = vadd.f32 %v7636, %v7732
    %v7734 = vpop.f32.mrf.mxu0
    %v7735 = vpop.f32.mrf.mxu0
    %v7736 = vadd.f32 %v7639, %v7735
    %v7737 = vpop.f32.mrf.mxu0
    %7738 = vmatprep.mubr.bf16.mxu0 %v2680
    %7739 = vmatmul.mubr.bf16.gmra.mxu0 %v2679
    %v7740 = vpop.f32.mrf.mxu0
    %v7741 = vadd.f32 %v7644, %v7740
    %v7742 = vpop.f32.mrf.mxu0
    %v7743 = vpop.f32.mrf.mxu0
    %v7744 = vadd.f32 %v7647, %v7743
    %v7745 = vpop.f32.mrf.mxu0
    %7746 = vmatprep.mubr.bf16.mxu0 %v2730
    %7747 = vmatmul.mubr.bf16.gmra.mxu0 %v2729
    %v7748 = vpop.f32.mrf.mxu0
    %v7749 = vadd.f32 %v7652, %v7748
    %v7750 = vpop.f32.mrf.mxu0
    %v7751 = vpop.f32.mrf.mxu0
    %v7752 = vadd.f32 %v7655, %v7751
    %v7753 = vpop.f32.mrf.mxu0
    %7754 = vmatprep.mubr.bf16.mxu0 %v2780
    %7755 = vmatmul.mubr.bf16.gmra.mxu0 %v2779
    %v7756 = vpop.f32.mrf.mxu0
    %v7757 = vadd.f32 %v7660, %v7756
    %v7758 = vpop.f32.mrf.mxu0
    %v7759 = vpop.f32.mrf.mxu0
    %v7760 = vadd.f32 %v7663, %v7759
    %v7761 = vpop.f32.mrf.mxu0
    %7762 = vmatprep.mubr.bf16.mxu0 %v2830
    %7763 = vmatmul.mubr.bf16.gmra.mxu0 %v2829
    %v7764 = vpop.f32.mrf.mxu0
    %v7765 = vadd.f32 %v7668, %v7764
    %v7766 = vpop.f32.mrf.mxu0
    %v7767 = vpop.f32.mrf.mxu0
    %v7768 = vadd.f32 %v7671, %v7767
    %v7769 = vpop.f32.mrf.mxu0
    %7770 = vdwg.mxu0
    %7771 = vmatprep.subr.bf16.mxu0 0
    %7772 = vmatpush1.bf16.msra.mxu0 %v5196
    %7773 = vmatprep.subr.bf16.mxu0 0
    %7774 = vmatpush1.bf16.msra.mxu0 %v5195
    %7775 = vmatprep.subr.bf16.mxu0 0
    %7776 = vmatpush1.bf16.msra.mxu0 %v5194
    %7777 = vmatprep.subr.bf16.mxu0 0
    %7778 = vmatpush1.bf16.msra.mxu0 %v5193
    %7779 = vmatprep.subr.bf16.mxu0 0
    %7780 = vmatpush1.bf16.msra.mxu0 %v5192
    %7781 = vmatprep.subr.bf16.mxu0 0
    %7782 = vmatpush1.bf16.msra.mxu0 %v5191
    %7783 = vmatprep.subr.bf16.mxu0 0
    %7784 = vmatpush1.bf16.msra.mxu0 %v5190
    %7785 = vmatprep.subr.bf16.mxu0 0
    %7786 = vmatpush1.bf16.msra.mxu0 %v5189
    %7787 = vmatprep.subr.bf16.mxu0 0
    %7788 = vmatpush2.bf16.msra.mxu0 %v5204
    %7789 = vmatprep.subr.bf16.mxu0 0
    %7790 = vmatpush2.bf16.msra.mxu0 %v5203
    %7791 = vmatprep.subr.bf16.mxu0 0
    %7792 = vmatpush2.bf16.msra.mxu0 %v5202
    %7793 = vmatprep.subr.bf16.mxu0 0
    %7794 = vmatpush2.bf16.msra.mxu0 %v5201
    %7795 = vmatprep.subr.bf16.mxu0 0
    %7796 = vmatpush2.bf16.msra.mxu0 %v5200
    %7797 = vmatprep.subr.bf16.mxu0 0
    %7798 = vmatpush2.bf16.msra.mxu0 %v5199
    %7799 = vmatprep.subr.bf16.mxu0 0
    %7800 = vmatpush2.bf16.msra.mxu0 %v5198
    %7801 = vmatprep.subr.bf16.mxu0 0
    %7802 = vmatpush2.bf16.msra.mxu0 %v5197
    %7803 = vmatprep.mubr.bf16.mxu0 %v2482
    %7804 = vmatmul.mubr.bf16.gmra.mxu0 %v2481
    %v7805 = vpop.f32.mrf.mxu0
    %v7806 = vadd.f32 %v7709, %v7805
    %v7807 = vpop.f32.mrf.mxu0
    %v7808 = vpop.f32.mrf.mxu0
    %v7809 = vadd.f32 %v7712, %v7808
    %v7810 = vpop.f32.mrf.mxu0
    %7811 = vmatprep.mubr.bf16.mxu0 %v2532
    %7812 = vmatmul.mubr.bf16.gmra.mxu0 %v2531
    %v7813 = vpop.f32.mrf.mxu0
    %v7814 = vadd.f32 %v7717, %v7813
    %v7815 = vpop.f32.mrf.mxu0
    %v7816 = vpop.f32.mrf.mxu0
    %v7817 = vadd.f32 %v7720, %v7816
    %v7818 = vpop.f32.mrf.mxu0
    %7819 = vmatprep.mubr.bf16.mxu0 %v2582
    %7820 = vmatmul.mubr.bf16.gmra.mxu0 %v2581
    %v7821 = vpop.f32.mrf.mxu0
    %v7822 = vadd.f32 %v7725, %v7821
    %v7823 = vpop.f32.mrf.mxu0
    %v7824 = vpop.f32.mrf.mxu0
    %v7825 = vadd.f32 %v7728, %v7824
    %v7826 = vpop.f32.mrf.mxu0
    %7827 = vmatprep.mubr.bf16.mxu0 %v2632
    %7828 = vmatmul.mubr.bf16.gmra.mxu0 %v2631
    %v7829 = vpop.f32.mrf.mxu0
    %v7830 = vadd.f32 %v7733, %v7829
    %v7831 = vpop.f32.mrf.mxu0
    %v7832 = vpop.f32.mrf.mxu0
    %v7833 = vadd.f32 %v7736, %v7832
    %v7834 = vpop.f32.mrf.mxu0
    %7835 = vmatprep.mubr.bf16.mxu0 %v2682
    %7836 = vmatmul.mubr.bf16.gmra.mxu0 %v2681
    %v7837 = vpop.f32.mrf.mxu0
    %v7838 = vadd.f32 %v7741, %v7837
    %v7839 = vpop.f32.mrf.mxu0
    %v7840 = vpop.f32.mrf.mxu0
    %v7841 = vadd.f32 %v7744, %v7840
    %v7842 = vpop.f32.mrf.mxu0
    %7843 = vmatprep.mubr.bf16.mxu0 %v2732
    %7844 = vmatmul.mubr.bf16.gmra.mxu0 %v2731
    %v7845 = vpop.f32.mrf.mxu0
    %v7846 = vadd.f32 %v7749, %v7845
    %v7847 = vpop.f32.mrf.mxu0
    %v7848 = vpop.f32.mrf.mxu0
    %v7849 = vadd.f32 %v7752, %v7848
    %v7850 = vpop.f32.mrf.mxu0
    %7851 = vmatprep.mubr.bf16.mxu0 %v2782
    %7852 = vmatmul.mubr.bf16.gmra.mxu0 %v2781
    %v7853 = vpop.f32.mrf.mxu0
    %v7854 = vadd.f32 %v7757, %v7853
    %v7855 = vpop.f32.mrf.mxu0
    %v7856 = vpop.f32.mrf.mxu0
    %v7857 = vadd.f32 %v7760, %v7856
    %v7858 = vpop.f32.mrf.mxu0
    %7859 = vmatprep.mubr.bf16.mxu0 %v2832
    %7860 = vmatmul.mubr.bf16.gmra.mxu0 %v2831
    %v7861 = vpop.f32.mrf.mxu0
    %v7862 = vadd.f32 %v7765, %v7861
    %v7863 = vpop.f32.mrf.mxu0
    %v7864 = vpop.f32.mrf.mxu0
    %v7865 = vadd.f32 %v7768, %v7864
    %v7866 = vpop.f32.mrf.mxu0
    %7867 = vdwg.mxu0
    %7868 = vmatprep.subr.bf16.mxu0 0
    %7869 = vmatpush1.bf16.msra.mxu0 %v5212
    %7870 = vmatprep.subr.bf16.mxu0 0
    %7871 = vmatpush1.bf16.msra.mxu0 %v5211
    %7872 = vmatprep.subr.bf16.mxu0 0
    %7873 = vmatpush1.bf16.msra.mxu0 %v5210
    %7874 = vmatprep.subr.bf16.mxu0 0
    %7875 = vmatpush1.bf16.msra.mxu0 %v5209
    %7876 = vmatprep.subr.bf16.mxu0 0
    %7877 = vmatpush1.bf16.msra.mxu0 %v5208
    %7878 = vmatprep.subr.bf16.mxu0 0
    %7879 = vmatpush1.bf16.msra.mxu0 %v5207
    %7880 = vmatprep.subr.bf16.mxu0 0
    %7881 = vmatpush1.bf16.msra.mxu0 %v5206
    %7882 = vmatprep.subr.bf16.mxu0 0
    %7883 = vmatpush1.bf16.msra.mxu0 %v5205
    %7884 = vmatprep.subr.bf16.mxu0 0
    %7885 = vmatpush2.bf16.msra.mxu0 %v5220
    %7886 = vmatprep.subr.bf16.mxu0 0
    %7887 = vmatpush2.bf16.msra.mxu0 %v5219
    %7888 = vmatprep.subr.bf16.mxu0 0
    %7889 = vmatpush2.bf16.msra.mxu0 %v5218
    %7890 = vmatprep.subr.bf16.mxu0 0
    %7891 = vmatpush2.bf16.msra.mxu0 %v5217
    %7892 = vmatprep.subr.bf16.mxu0 0
    %7893 = vmatpush2.bf16.msra.mxu0 %v5216
    %7894 = vmatprep.subr.bf16.mxu0 0
    %7895 = vmatpush2.bf16.msra.mxu0 %v5215
    %7896 = vmatprep.subr.bf16.mxu0 0
    %7897 = vmatpush2.bf16.msra.mxu0 %v5214
    %7898 = vmatprep.subr.bf16.mxu0 0
    %7899 = vmatpush2.bf16.msra.mxu0 %v5213
    %7900 = vmatprep.mubr.bf16.mxu0 %v2484
    %7901 = vmatmul.mubr.bf16.gmra.mxu0 %v2483
    %v7902 = vpop.f32.mrf.mxu0
    %v7903 = vadd.f32 %v7806, %v7902
    %v7904 = vpop.f32.mrf.mxu0
    %v7905 = vpop.f32.mrf.mxu0
    %v7906 = vadd.f32 %v7809, %v7905
    %v7907 = vpop.f32.mrf.mxu0
    %7908 = vmatprep.mubr.bf16.mxu0 %v2534
    %7909 = vmatmul.mubr.bf16.gmra.mxu0 %v2533
    %v7910 = vpop.f32.mrf.mxu0
    %v7911 = vadd.f32 %v7814, %v7910
    %v7912 = vpop.f32.mrf.mxu0
    %v7913 = vpop.f32.mrf.mxu0
    %v7914 = vadd.f32 %v7817, %v7913
    %v7915 = vpop.f32.mrf.mxu0
    %7916 = vmatprep.mubr.bf16.mxu0 %v2584
    %7917 = vmatmul.mubr.bf16.gmra.mxu0 %v2583
    %v7918 = vpop.f32.mrf.mxu0
    %v7919 = vadd.f32 %v7822, %v7918
    %v7920 = vpop.f32.mrf.mxu0
    %v7921 = vpop.f32.mrf.mxu0
    %v7922 = vadd.f32 %v7825, %v7921
    %v7923 = vpop.f32.mrf.mxu0
    %7924 = vmatprep.mubr.bf16.mxu0 %v2634
    %7925 = vmatmul.mubr.bf16.gmra.mxu0 %v2633
    %v7926 = vpop.f32.mrf.mxu0
    %v7927 = vadd.f32 %v7830, %v7926
    %v7928 = vpop.f32.mrf.mxu0
    %v7929 = vpop.f32.mrf.mxu0
    %v7930 = vadd.f32 %v7833, %v7929
    %v7931 = vpop.f32.mrf.mxu0
    %7932 = vmatprep.mubr.bf16.mxu0 %v2684
    %7933 = vmatmul.mubr.bf16.gmra.mxu0 %v2683
    %v7934 = vpop.f32.mrf.mxu0
    %v7935 = vadd.f32 %v7838, %v7934
    %v7936 = vpop.f32.mrf.mxu0
    %v7937 = vpop.f32.mrf.mxu0
    %v7938 = vadd.f32 %v7841, %v7937
    %v7939 = vpop.f32.mrf.mxu0
    %7940 = vmatprep.mubr.bf16.mxu0 %v2734
    %7941 = vmatmul.mubr.bf16.gmra.mxu0 %v2733
    %v7942 = vpop.f32.mrf.mxu0
    %v7943 = vadd.f32 %v7846, %v7942
    %v7944 = vpop.f32.mrf.mxu0
    %v7945 = vpop.f32.mrf.mxu0
    %v7946 = vadd.f32 %v7849, %v7945
    %v7947 = vpop.f32.mrf.mxu0
    %7948 = vmatprep.mubr.bf16.mxu0 %v2784
    %7949 = vmatmul.mubr.bf16.gmra.mxu0 %v2783
    %v7950 = vpop.f32.mrf.mxu0
    %v7951 = vadd.f32 %v7854, %v7950
    %v7952 = vpop.f32.mrf.mxu0
    %v7953 = vpop.f32.mrf.mxu0
    %v7954 = vadd.f32 %v7857, %v7953
    %v7955 = vpop.f32.mrf.mxu0
    %7956 = vmatprep.mubr.bf16.mxu0 %v2834
    %7957 = vmatmul.mubr.bf16.gmra.mxu0 %v2833
    %v7958 = vpop.f32.mrf.mxu0
    %v7959 = vadd.f32 %v7862, %v7958
    %v7960 = vpop.f32.mrf.mxu0
    %v7961 = vpop.f32.mrf.mxu0
    %v7962 = vadd.f32 %v7865, %v7961
    %v7963 = vpop.f32.mrf.mxu0
    %7964 = vdwg.mxu0
    %7965 = vmatprep.subr.bf16.mxu0 0
    %7966 = vmatpush1.bf16.msra.mxu0 %v5228
    %7967 = vmatprep.subr.bf16.mxu0 0
    %7968 = vmatpush1.bf16.msra.mxu0 %v5227
    %7969 = vmatprep.subr.bf16.mxu0 0
    %7970 = vmatpush1.bf16.msra.mxu0 %v5226
    %7971 = vmatprep.subr.bf16.mxu0 0
    %7972 = vmatpush1.bf16.msra.mxu0 %v5225
    %7973 = vmatprep.subr.bf16.mxu0 0
    %7974 = vmatpush1.bf16.msra.mxu0 %v5224
    %7975 = vmatprep.subr.bf16.mxu0 0
    %7976 = vmatpush1.bf16.msra.mxu0 %v5223
    %7977 = vmatprep.subr.bf16.mxu0 0
    %7978 = vmatpush1.bf16.msra.mxu0 %v5222
    %7979 = vmatprep.subr.bf16.mxu0 0
    %7980 = vmatpush1.bf16.msra.mxu0 %v5221
    %7981 = vmatprep.subr.bf16.mxu0 0
    %7982 = vmatpush2.bf16.msra.mxu0 %v5236
    %7983 = vmatprep.subr.bf16.mxu0 0
    %7984 = vmatpush2.bf16.msra.mxu0 %v5235
    %7985 = vmatprep.subr.bf16.mxu0 0
    %7986 = vmatpush2.bf16.msra.mxu0 %v5234
    %7987 = vmatprep.subr.bf16.mxu0 0
    %7988 = vmatpush2.bf16.msra.mxu0 %v5233
    %7989 = vmatprep.subr.bf16.mxu0 0
    %7990 = vmatpush2.bf16.msra.mxu0 %v5232
    %7991 = vmatprep.subr.bf16.mxu0 0
    %7992 = vmatpush2.bf16.msra.mxu0 %v5231
    %7993 = vmatprep.subr.bf16.mxu0 0
    %7994 = vmatpush2.bf16.msra.mxu0 %v5230
    %7995 = vmatprep.subr.bf16.mxu0 0
    %7996 = vmatpush2.bf16.msra.mxu0 %v5229
    %7997 = vmatprep.mubr.bf16.mxu0 %v2486
    %7998 = vmatmul.mubr.bf16.gmra.mxu0 %v2485
    %v7999 = vpop.f32.mrf.mxu0
    %v8000 = vadd.f32 %v7903, %v7999
    %v8001 = vpop.f32.mrf.mxu0
    %v8002 = vpop.f32.mrf.mxu0
    %v8003 = vadd.f32 %v7906, %v8002
    %v8004 = vpop.f32.mrf.mxu0
    %8005 = vmatprep.mubr.bf16.mxu0 %v2536
    %8006 = vmatmul.mubr.bf16.gmra.mxu0 %v2535
    %v8007 = vpop.f32.mrf.mxu0
    %v8008 = vadd.f32 %v7911, %v8007
    %v8009 = vpop.f32.mrf.mxu0
    %v8010 = vpop.f32.mrf.mxu0
    %v8011 = vadd.f32 %v7914, %v8010
    %v8012 = vpop.f32.mrf.mxu0
    %8013 = vmatprep.mubr.bf16.mxu0 %v2586
    %8014 = vmatmul.mubr.bf16.gmra.mxu0 %v2585
    %v8015 = vpop.f32.mrf.mxu0
    %v8016 = vadd.f32 %v7919, %v8015
    %v8017 = vpop.f32.mrf.mxu0
    %v8018 = vpop.f32.mrf.mxu0
    %v8019 = vadd.f32 %v7922, %v8018
    %v8020 = vpop.f32.mrf.mxu0
    %8021 = vmatprep.mubr.bf16.mxu0 %v2636
    %8022 = vmatmul.mubr.bf16.gmra.mxu0 %v2635
    %v8023 = vpop.f32.mrf.mxu0
    %v8024 = vadd.f32 %v7927, %v8023
    %v8025 = vpop.f32.mrf.mxu0
    %v8026 = vpop.f32.mrf.mxu0
    %v8027 = vadd.f32 %v7930, %v8026
    %v8028 = vpop.f32.mrf.mxu0
    %8029 = vmatprep.mubr.bf16.mxu0 %v2686
    %8030 = vmatmul.mubr.bf16.gmra.mxu0 %v2685
    %v8031 = vpop.f32.mrf.mxu0
    %v8032 = vadd.f32 %v7935, %v8031
    %v8033 = vpop.f32.mrf.mxu0
    %v8034 = vpop.f32.mrf.mxu0
    %v8035 = vadd.f32 %v7938, %v8034
    %v8036 = vpop.f32.mrf.mxu0
    %8037 = vmatprep.mubr.bf16.mxu0 %v2736
    %8038 = vmatmul.mubr.bf16.gmra.mxu0 %v2735
    %v8039 = vpop.f32.mrf.mxu0
    %v8040 = vadd.f32 %v7943, %v8039
    %v8041 = vpop.f32.mrf.mxu0
    %v8042 = vpop.f32.mrf.mxu0
    %v8043 = vadd.f32 %v7946, %v8042
    %v8044 = vpop.f32.mrf.mxu0
    %8045 = vmatprep.mubr.bf16.mxu0 %v2786
    %8046 = vmatmul.mubr.bf16.gmra.mxu0 %v2785
    %v8047 = vpop.f32.mrf.mxu0
    %v8048 = vadd.f32 %v7951, %v8047
    %v8049 = vpop.f32.mrf.mxu0
    %v8050 = vpop.f32.mrf.mxu0
    %v8051 = vadd.f32 %v7954, %v8050
    %v8052 = vpop.f32.mrf.mxu0
    %8053 = vmatprep.mubr.bf16.mxu0 %v2836
    %8054 = vmatmul.mubr.bf16.gmra.mxu0 %v2835
    %v8055 = vpop.f32.mrf.mxu0
    %v8056 = vadd.f32 %v7959, %v8055
    %v8057 = vpop.f32.mrf.mxu0
    %v8058 = vpop.f32.mrf.mxu0
    %v8059 = vadd.f32 %v7962, %v8058
    %v8060 = vpop.f32.mrf.mxu0
    %8061 = vdwg.mxu0
    %v8062 = vld [vmem:[%s1 + $0x8] sm:$0xf]
    %v8063 = vld [vmem:[%s1 + $0xc] sm:$0xf]
    %v8064 = vld [vmem:[%s1 + $0x18] sm:$0xf]
    %v8065 = vld [vmem:[%s1 + $0x1c] sm:$0xf]
    %v8066 = vld [vmem:[%s1 + $0x28] sm:$0xf]
    %v8067 = vld [vmem:[%s1 + $0x2c] sm:$0xf]
    %v8068 = vld [vmem:[%s1 + $0x38] sm:$0xf]
    %v8069 = vld [vmem:[%s1 + $0x3c] sm:$0xf]
    %v8070 = vunpack.c.l.bf16 %v8062
    %v8071 = vunpack.c.l.bf16 %v8063
    %v8072 = vunpack.c.l.bf16 %v8064
    %v8073 = vunpack.c.l.bf16 %v8065
    %v8074 = vunpack.c.l.bf16 %v8066
    %v8075 = vunpack.c.l.bf16 %v8067
    %v8076 = vunpack.c.l.bf16 %v8068
    %v8077 = vunpack.c.l.bf16 %v8069
    %vm8078 = vcmask 261120
    %v8079 = vsel %vm8078, %v8000, 0.0
    %v8080 = vsel %vm8078, %v8003, 0.0
    %v8081 = vadd.f32 %v8079, %v8080
    %v8082 = vsel %vm8078, %v8008, 0.0
    %v8083 = vadd.f32 %v8081, %v8082
    %v8084 = vsel %vm8078, %v8011, 0.0
    %v8085 = vadd.f32 %v8083, %v8084
    %v8086 = vsel %vm8078, %v8016, 0.0
    %v8087 = vadd.f32 %v8085, %v8086
    %v8088 = vsel %vm8078, %v8019, 0.0
    %v8089 = vadd.f32 %v8087, %v8088
    %v8090 = vsel %vm8078, %v8024, 0.0
    %v8091 = vadd.f32 %v8089, %v8090
    %v8092 = vsel %vm8078, %v8027, 0.0
    %v8093 = vadd.f32 %v8091, %v8092
    %v8094 = vsel %vm8078, %v8032, 0.0
    %v8095 = vadd.f32 %v8093, %v8094
    %v8096 = vsel %vm8078, %v8035, 0.0
    %v8097 = vadd.f32 %v8095, %v8096
    %v8098 = vsel %vm8078, %v8040, 0.0
    %v8099 = vadd.f32 %v8097, %v8098
    %v8100 = vsel %vm8078, %v8043, 0.0
    %v8101 = vadd.f32 %v8099, %v8100
    %v8102 = vsel %vm8078, %v8048, 0.0
    %v8103 = vadd.f32 %v8101, %v8102
    %v8104 = vsel %vm8078, %v8051, 0.0
    %v8105 = vadd.f32 %v8103, %v8104
    %v8106 = vsel %vm8078, %v8056, 0.0
    %v8107 = vadd.f32 %v8105, %v8106
    %v8108 = vsel %vm8078, %v8059, 0.0
    %v8109 = vadd.f32 %v8107, %v8108
    %v8110 = vrot.slane %v8109, 4
    %v8111 = vadd.f32 %v8109, %v8110
    %v8112 = vrot.slane %v8111, 2
    %v8113 = vadd.f32 %v8111, %v8112
    %v8114 = vrot.slane %v8113, 1
    %v8115 = vadd.f32 %v8113, %v8114
    %v8116 = vrcp.pop 128.0
    %v8117 = vmul.f32 %v8115, %v8116
    %v8118 = vsub.f32 %v8000, %v8117
    %v8119 = vsub.f32 %v8003, %v8117
    %v8120 = vsub.f32 %v8008, %v8117
    %v8121 = vsub.f32 %v8011, %v8117
    %v8122 = vsub.f32 %v8016, %v8117
    %v8123 = vsub.f32 %v8019, %v8117
    %v8124 = vsub.f32 %v8024, %v8117
    %v8125 = vsub.f32 %v8027, %v8117
    %v8126 = vsub.f32 %v8032, %v8117
    %v8127 = vsub.f32 %v8035, %v8117
    %v8128 = vsub.f32 %v8040, %v8117
    %v8129 = vsub.f32 %v8043, %v8117
    %v8130 = vsub.f32 %v8048, %v8117
    %v8131 = vsub.f32 %v8051, %v8117
    %v8132 = vsub.f32 %v8056, %v8117
    %v8133 = vsub.f32 %v8059, %v8117
    %v8134 = vmul.f32 %v8118, %v8118
    %v8135 = vmul.f32 %v8119, %v8119
    %v8136 = vmul.f32 %v8120, %v8120
    %v8137 = vmul.f32 %v8121, %v8121
    %v8138 = vmul.f32 %v8122, %v8122
    %v8139 = vmul.f32 %v8123, %v8123
    %v8140 = vmul.f32 %v8124, %v8124
    %v8141 = vmul.f32 %v8125, %v8125
    %v8142 = vmul.f32 %v8126, %v8126
    %v8143 = vmul.f32 %v8127, %v8127
    %v8144 = vmul.f32 %v8128, %v8128
    %v8145 = vmul.f32 %v8129, %v8129
    %v8146 = vmul.f32 %v8130, %v8130
    %v8147 = vmul.f32 %v8131, %v8131
    %v8148 = vmul.f32 %v8132, %v8132
    %v8149 = vmul.f32 %v8133, %v8133
    %v8150 = vsel %vm8078, %v8134, 0.0
    %v8151 = vsel %vm8078, %v8135, 0.0
    %v8152 = vadd.f32 %v8150, %v8151
    %v8153 = vsel %vm8078, %v8136, 0.0
    %v8154 = vadd.f32 %v8152, %v8153
    %v8155 = vsel %vm8078, %v8137, 0.0
    %v8156 = vadd.f32 %v8154, %v8155
    %v8157 = vsel %vm8078, %v8138, 0.0
    %v8158 = vadd.f32 %v8156, %v8157
    %v8159 = vsel %vm8078, %v8139, 0.0
    %v8160 = vadd.f32 %v8158, %v8159
    %v8161 = vsel %vm8078, %v8140, 0.0
    %v8162 = vadd.f32 %v8160, %v8161
    %v8163 = vsel %vm8078, %v8141, 0.0
    %v8164 = vadd.f32 %v8162, %v8163
    %v8165 = vsel %vm8078, %v8142, 0.0
    %v8166 = vadd.f32 %v8164, %v8165
    %v8167 = vsel %vm8078, %v8143, 0.0
    %v8168 = vadd.f32 %v8166, %v8167
    %v8169 = vsel %vm8078, %v8144, 0.0
    %v8170 = vadd.f32 %v8168, %v8169
    %v8171 = vsel %vm8078, %v8145, 0.0
    %v8172 = vadd.f32 %v8170, %v8171
    %v8173 = vsel %vm8078, %v8146, 0.0
    %v8174 = vadd.f32 %v8172, %v8173
    %v8175 = vsel %vm8078, %v8147, 0.0
    %v8176 = vadd.f32 %v8174, %v8175
    %v8177 = vsel %vm8078, %v8148, 0.0
    %v8178 = vadd.f32 %v8176, %v8177
    %v8179 = vsel %vm8078, %v8149, 0.0
    %v8180 = vadd.f32 %v8178, %v8179
    %v8181 = vrot.slane %v8180, 4
    %v8182 = vadd.f32 %v8180, %v8181
    %v8183 = vrot.slane %v8182, 2
    %v8184 = vadd.f32 %v8182, %v8183
    %v8185 = vrot.slane %v8184, 1
    %v8186 = vadd.f32 %v8184, %v8185
    %v8187 = vmul.f32 %v8186, %v8116
    %v8188 = vadd.f32 %v8187, 1e-05
    %v8189 = vrsqrt.pop %v8188
    %v8190 = vmul.f32 %v8120, %v8189
    %v8191 = vmul.f32 %v8121, %v8189
    %v8192 = vmul.f32 %v8124, %v8189
    %v8193 = vmul.f32 %v8125, %v8189
    %v8194 = vmul.f32 %v8128, %v8189
    %v8195 = vmul.f32 %v8129, %v8189
    %v8196 = vmul.f32 %v8132, %v8189
    %v8197 = vmul.f32 %v8133, %v8189
    %v8198 = vld [vmem:[%s3] sm:$0x1]
    %v8199 = vlaneseq
    %v8200 = vshrl.u32 %v8199, 7
    %v8201 = vsub.s32 0, %v8200
    %v8202 = vrot.slane %v8198, %v8201
    %v8203 = vmul.f32 %v8190, %v8202
    %v8204 = vmul.f32 %v8191, %v8202
    %v8205 = vmul.f32 %v8192, %v8202
    %v8206 = vmul.f32 %v8193, %v8202
    %v8207 = vmul.f32 %v8194, %v8202
    %v8208 = vmul.f32 %v8195, %v8202
    %v8209 = vmul.f32 %v8196, %v8202
    %v8210 = vmul.f32 %v8197, %v8202
    %v8211 = vld [vmem:[%s3 + $0x1] sm:$0x1]
    %v8212 = vlaneseq
    %v8213 = vshrl.u32 %v8212, 7
    %v8214 = vsub.s32 0, %v8213
    %v8215 = vrot.slane %v8211, %v8214
    %v8216 = vadd.f32 %v8203, %v8215
    %v8217 = vadd.f32 %v8204, %v8215
    %v8218 = vadd.f32 %v8205, %v8215
    %v8219 = vadd.f32 %v8206, %v8215
    %v8220 = vadd.f32 %v8207, %v8215
    %v8221 = vadd.f32 %v8208, %v8215
    %v8222 = vadd.f32 %v8209, %v8215
    %v8223 = vadd.f32 %v8210, %v8215
    %v8224 = vadd.f32 %v8216, %v8070
    %v8225 = vadd.f32 %v8217, %v8071
    %v8226 = vadd.f32 %v8218, %v8072
    %v8227 = vadd.f32 %v8219, %v8073
    %v8228 = vadd.f32 %v8220, %v8074
    %v8229 = vadd.f32 %v8221, %v8075
    %v8230 = vadd.f32 %v8222, %v8076
    %v8231 = vadd.f32 %v8223, %v8077
    %v8232 = vmul.f32 %v8224, 0.5
    %v8233 = vmul.f32 %v8225, 0.5
    %v8234 = vmul.f32 %v8226, 0.5
    %v8235 = vmul.f32 %v8227, 0.5
    %v8236 = vmul.f32 %v8228, 0.5
    %v8237 = vmul.f32 %v8229, 0.5
    %v8238 = vmul.f32 %v8230, 0.5
    %v8239 = vmul.f32 %v8231, 0.5
    %vm8240 = vcmp.ge.f32.partialorder %v8232, 1.0
    %vm8241 = vcmp.ge.f32.partialorder %v8233, 1.0
    %vm8242 = vcmp.ge.f32.partialorder %v8234, 1.0
    %vm8243 = vcmp.ge.f32.partialorder %v8235, 1.0
    %vm8244 = vcmp.ge.f32.partialorder %v8236, 1.0
    %vm8245 = vcmp.ge.f32.partialorder %v8237, 1.0
    %vm8246 = vcmp.ge.f32.partialorder %v8238, 1.0
    %vm8247 = vcmp.ge.f32.partialorder %v8239, 1.0
    %v8248 = vsel %vm8240, 1, 0
    %v8249 = vsel %vm8241, 1, 0
    %v8250 = vsel %vm8242, 1, 0
    %v8251 = vsel %vm8243, 1, 0
    %v8252 = vsel %vm8244, 1, 0
    %v8253 = vsel %vm8245, 1, 0
    %v8254 = vsel %vm8246, 1, 0
    %v8255 = vsel %vm8247, 1, 0
    %v8256 = vcvt.s32.f32 %v8248
    %v8257 = vcvt.s32.f32 %v8249
    %v8258 = vcvt.s32.f32 %v8250
    %v8259 = vcvt.s32.f32 %v8251
    %v8260 = vcvt.s32.f32 %v8252
    %v8261 = vcvt.s32.f32 %v8253
    %v8262 = vcvt.s32.f32 %v8254
    %v8263 = vcvt.s32.f32 %v8255
    %v8264 = vpack.c.bf16 %v8257, %v8256
    %v8265 = vpack.c.bf16 %v8259, %v8258
    %v8266 = vpack.c.bf16 %v8261, %v8260
    %v8267 = vpack.c.bf16 %v8263, %v8262
    %v8269 = vrot.slane %v8264, 1
    %v8272 = vshll.u32 %v8266, 16
    %v8274 = vrot.slane %v8272, 1
    %vm8276 = vcmask 1040384
    %vm8277 = vsmask.f32 256
    %vm8278 = vmand %vm8276, %vm8277
    %v8279 = vsel %vm8278, %v8269, %v8274
    %v8280 = vrot.slane %v8264, 3
    %v8282 = vrot.slane %v8272, 3
    %v8284 = vsel %vm8278, %v8280, %v8282
    %v8286 = vrot.slane %v8265, 1
    %v8289 = vshll.u32 %v8267, 16
    %v8291 = vrot.slane %v8289, 1
    %v8293 = vsel %vm8278, %v8286, %v8291
    %v8294 = vrot.slane %v8265, 3
    %v8296 = vrot.slane %v8289, 3
    %v8298 = vsel %vm8278, %v8294, %v8296
    %8300 = vrot.lane.b32.xlu0 %v8284, 32
    %v8301 = vpop.permute.xlu0 %8300
    %8303 = vrot.lane.b32.xlu0 %v8293, 64
    %v8304 = vpop.permute.xlu0 %8303
    %8306 = vrot.lane.b32.xlu0 %v8298, 96
    %v8307 = vpop.permute.xlu0 %8306
    %v8310 = vsel %vm8078, %v8279, %v8301
    %vm8311 = vcmask 523264
    %v8313 = vsel %vm8311, %v8310, %v8304
    %vm8314 = vcmask 785408
    %v8316 = vsel %vm8314, %v8313, %v8307
    %v8318 = vld [vmem:[%s4] sm:$0xf]
    %v8319 = vld [vmem:[%s4 + $0x4] sm:$0xf]
    %v8320 = vld [vmem:[%s4 + $0x8] sm:$0xf]
    %v8321 = vld [vmem:[%s4 + $0xc] sm:$0xf]
    %v8322 = vld [vmem:[%s4 + $0x10] sm:$0xf]
    %v8323 = vld [vmem:[%s4 + $0x14] sm:$0xf]
    %v8324 = vld [vmem:[%s4 + $0x18] sm:$0xf]
    %v8325 = vld [vmem:[%s4 + $0x1c] sm:$0xf]
    %v8326 = vld [vmem:[%s4 + $0x20] sm:$0xf]
    %v8327 = vld [vmem:[%s4 + $0x24] sm:$0xf]
    %v8328 = vld [vmem:[%s4 + $0x28] sm:$0xf]
    %v8329 = vld [vmem:[%s4 + $0x2c] sm:$0xf]
    %v8330 = vld [vmem:[%s4 + $0x30] sm:$0xf]
    %v8331 = vld [vmem:[%s4 + $0x34] sm:$0xf]
    %v8332 = vld [vmem:[%s4 + $0x38] sm:$0xf]
    %v8333 = vld [vmem:[%s4 + $0x3c] sm:$0xf]
    %v8350 = vunpack.c.l.b16 %v8318
    %v8351 = vunpack.c.l.b16 %v8319
    %v8352 = vunpack.c.l.b16 %v8320
    %v8353 = vunpack.c.l.b16 %v8321
    %v8354 = vunpack.c.l.b16 %v8322
    %v8355 = vunpack.c.l.b16 %v8323
    %v8356 = vunpack.c.l.b16 %v8324
    %v8357 = vunpack.c.l.b16 %v8325
    %v8358 = vunpack.c.l.b16 %v8326
    %v8359 = vunpack.c.l.b16 %v8327
    %v8360 = vunpack.c.l.b16 %v8328
    %v8361 = vunpack.c.l.b16 %v8329
    %v8362 = vunpack.c.l.b16 %v8330
    %v8363 = vunpack.c.l.b16 %v8331
    %v8364 = vunpack.c.l.b16 %v8332
    %v8365 = vunpack.c.l.b16 %v8333
    %v8366 = vpack.c.b16 %v8351, %v8350
    %v8367 = vpack.c.b16 %v8353, %v8352
    %v8368 = vpack.c.b16 %v8355, %v8354
    %v8369 = vpack.c.b16 %v8357, %v8356
    %v8370 = vpack.c.b16 %v8359, %v8358
    %v8371 = vpack.c.b16 %v8361, %v8360
    %v8372 = vpack.c.b16 %v8363, %v8362
    %v8373 = vpack.c.b16 %v8365, %v8364
    %8382 = vmatprep.subr.bf16.mxu0 0
    %8383 = vmatpush1.bf16.msra.mxu0 %v8373
    %8384 = vmatprep.subr.bf16.mxu0 0
    %8385 = vmatpush1.bf16.msra.mxu0 %v8372
    %8386 = vmatprep.subr.bf16.mxu0 0
    %8387 = vmatpush1.bf16.msra.mxu0 %v8371
    %8388 = vmatprep.subr.bf16.mxu0 0
    %8389 = vmatpush1.bf16.msra.mxu0 %v8370
    %8390 = vmatprep.subr.bf16.mxu0 0
    %8391 = vmatpush1.bf16.msra.mxu0 %v8369
    %8392 = vmatprep.subr.bf16.mxu0 0
    %8393 = vmatpush1.bf16.msra.mxu0 %v8368
    %8394 = vmatprep.subr.bf16.mxu0 0
    %8395 = vmatpush1.bf16.msra.mxu0 %v8367
    %8396 = vmatprep.subr.bf16.mxu0 0
    %8397 = vmatpush1.bf16.msra.mxu0 %v8366
    %8398 = vmatprep.subr.bf16.mxu0 0
    %8399 = vmatpush2.bf16.msra.mxu0 0
    %8400 = vmatprep.subr.bf16.mxu0 0
    %8401 = vmatpush2.bf16.msra.mxu0 0
    %8402 = vmatprep.subr.bf16.mxu0 0
    %8403 = vmatpush2.bf16.msra.mxu0 0
    %8404 = vmatprep.subr.bf16.mxu0 0
    %8405 = vmatpush2.bf16.msra.mxu0 0
    %8406 = vmatprep.subr.bf16.mxu0 0
    %8407 = vmatpush2.bf16.msra.mxu0 0
    %8408 = vmatprep.subr.bf16.mxu0 0
    %8409 = vmatpush2.bf16.msra.mxu0 0
    %8410 = vmatprep.subr.bf16.mxu0 0
    %8411 = vmatpush2.bf16.msra.mxu0 0
    %8412 = vmatprep.subr.bf16.mxu0 0
    %8413 = vmatpush2.bf16.msra.mxu0 0
    %8414 = vmatprep.mubr.bf16.mxu0 0
    %8415 = vmatmul.mubr.bf16.gmra.mxu0 %v8316
    %v8416 = vpop.f32.mrf.mxu0
    %v8417 = vadd.f32 0.0, %v8416
    %v8418 = vpop.f32.mrf.mxu0
    %v8419 = vpop.f32.mrf.mxu0
    %v8420 = vpop.f32.mrf.mxu0
    %8421 = vdwg.mxu0
    %v8422 = vmax.bf16 %v8279, %v8284
    %v8423 = vmax.bf16 %v8293, %v8298
    %v8424 = vmax.bf16 %v8422, %v8423
    %v8426 = vshrl.u32 %v8264, 16
    %v8428 = vrot.slane %v8426, 1
    %v8431 = vrot.slane %v8266, 1
    %v8433 = vsel %vm8278, %v8428, %v8431
    %v8434 = vrot.slane %v8426, 3
    %v8436 = vrot.slane %v8266, 3
    %v8438 = vsel %vm8278, %v8434, %v8436
    %v8440 = vshrl.u32 %v8265, 16
    %v8442 = vrot.slane %v8440, 1
    %v8445 = vrot.slane %v8267, 1
    %v8447 = vsel %vm8278, %v8442, %v8445
    %v8448 = vrot.slane %v8440, 3
    %v8450 = vrot.slane %v8267, 3
    %v8452 = vsel %vm8278, %v8448, %v8450
    %8454 = vrot.lane.b32.xlu0 %v8438, 32
    %v8455 = vpop.permute.xlu0 %8454
    %8457 = vrot.lane.b32.xlu0 %v8447, 64
    %v8458 = vpop.permute.xlu0 %8457
    %8460 = vrot.lane.b32.xlu0 %v8452, 96
    %v8461 = vpop.permute.xlu0 %8460
    %v8464 = vsel %vm8078, %v8433, %v8455
    %v8466 = vsel %vm8311, %v8464, %v8458
    %v8468 = vsel %vm8314, %v8466, %v8461
    %s8470 = scalar_lea.vmem %s4, 64
    %v8471 = vld [vmem:[%s8470] sm:$0xf]
    %v8472 = vld [vmem:[%s8470 + $0x4] sm:$0xf]
    %v8473 = vld [vmem:[%s8470 + $0x8] sm:$0xf]
    %v8474 = vld [vmem:[%s8470 + $0xc] sm:$0xf]
    %v8475 = vld [vmem:[%s8470 + $0x10] sm:$0xf]
    %v8476 = vld [vmem:[%s8470 + $0x14] sm:$0xf]
    %v8477 = vld [vmem:[%s8470 + $0x18] sm:$0xf]
    %v8478 = vld [vmem:[%s8470 + $0x1c] sm:$0xf]
    %v8479 = vld [vmem:[%s8470 + $0x20] sm:$0xf]
    %v8480 = vld [vmem:[%s8470 + $0x24] sm:$0xf]
    %v8481 = vld [vmem:[%s8470 + $0x28] sm:$0xf]
    %v8482 = vld [vmem:[%s8470 + $0x2c] sm:$0xf]
    %v8483 = vld [vmem:[%s8470 + $0x30] sm:$0xf]
    %v8484 = vld [vmem:[%s8470 + $0x34] sm:$0xf]
    %v8485 = vld [vmem:[%s8470 + $0x38] sm:$0xf]
    %v8486 = vld [vmem:[%s8470 + $0x3c] sm:$0xf]
    %v8503 = vunpack.c.l.b16 %v8471
    %v8504 = vunpack.c.l.b16 %v8472
    %v8505 = vunpack.c.l.b16 %v8473
    %v8506 = vunpack.c.l.b16 %v8474
    %v8507 = vunpack.c.l.b16 %v8475
    %v8508 = vunpack.c.l.b16 %v8476
    %v8509 = vunpack.c.l.b16 %v8477
    %v8510 = vunpack.c.l.b16 %v8478
    %v8511 = vunpack.c.l.b16 %v8479
    %v8512 = vunpack.c.l.b16 %v8480
    %v8513 = vunpack.c.l.b16 %v8481
    %v8514 = vunpack.c.l.b16 %v8482
    %v8515 = vunpack.c.l.b16 %v8483
    %v8516 = vunpack.c.l.b16 %v8484
    %v8517 = vunpack.c.l.b16 %v8485
    %v8518 = vunpack.c.l.b16 %v8486
    %v8519 = vpack.c.b16 %v8504, %v8503
    %v8520 = vpack.c.b16 %v8506, %v8505
    %v8521 = vpack.c.b16 %v8508, %v8507
    %v8522 = vpack.c.b16 %v8510, %v8509
    %v8523 = vpack.c.b16 %v8512, %v8511
    %v8524 = vpack.c.b16 %v8514, %v8513
    %v8525 = vpack.c.b16 %v8516, %v8515
    %v8526 = vpack.c.b16 %v8518, %v8517
    %8535 = vmatprep.subr.bf16.mxu0 0
    %8536 = vmatpush1.bf16.msra.mxu0 %v8526
    %8537 = vmatprep.subr.bf16.mxu0 0
    %8538 = vmatpush1.bf16.msra.mxu0 %v8525
    %8539 = vmatprep.subr.bf16.mxu0 0
    %8540 = vmatpush1.bf16.msra.mxu0 %v8524
    %8541 = vmatprep.subr.bf16.mxu0 0
    %8542 = vmatpush1.bf16.msra.mxu0 %v8523
    %8543 = vmatprep.subr.bf16.mxu0 0
    %8544 = vmatpush1.bf16.msra.mxu0 %v8522
    %8545 = vmatprep.subr.bf16.mxu0 0
    %8546 = vmatpush1.bf16.msra.mxu0 %v8521
    %8547 = vmatprep.subr.bf16.mxu0 0
    %8548 = vmatpush1.bf16.msra.mxu0 %v8520
    %8549 = vmatprep.subr.bf16.mxu0 0
    %8550 = vmatpush1.bf16.msra.mxu0 %v8519
    %8551 = vmatprep.subr.bf16.mxu0 0
    %8552 = vmatpush2.bf16.msra.mxu0 0
    %8553 = vmatprep.subr.bf16.mxu0 0
    %8554 = vmatpush2.bf16.msra.mxu0 0
    %8555 = vmatprep.subr.bf16.mxu0 0
    %8556 = vmatpush2.bf16.msra.mxu0 0
    %8557 = vmatprep.subr.bf16.mxu0 0
    %8558 = vmatpush2.bf16.msra.mxu0 0
    %8559 = vmatprep.subr.bf16.mxu0 0
    %8560 = vmatpush2.bf16.msra.mxu0 0
    %8561 = vmatprep.subr.bf16.mxu0 0
    %8562 = vmatpush2.bf16.msra.mxu0 0
    %8563 = vmatprep.subr.bf16.mxu0 0
    %8564 = vmatpush2.bf16.msra.mxu0 0
    %8565 = vmatprep.subr.bf16.mxu0 0
    %8566 = vmatpush2.bf16.msra.mxu0 0
    %8567 = vmatprep.mubr.bf16.mxu0 0
    %8568 = vmatmul.mubr.bf16.gmra.mxu0 %v8468
    %v8569 = vpop.f32.mrf.mxu0
    %v8570 = vadd.f32 0.0, %v8569
    %v8571 = vpop.f32.mrf.mxu0
    %v8572 = vpop.f32.mrf.mxu0
    %v8573 = vpop.f32.mrf.mxu0
    %8574 = vdwg.mxu0
    %v8575 = vmax.bf16 %v8433, %v8438
    %v8576 = vmax.bf16 %v8447, %v8452
    %v8577 = vmax.bf16 %v8575, %v8576
    %v8578 = vrot.slane %v8264, 5
    %v8580 = vrot.slane %v8272, 5
    %v8582 = vsel %vm8278, %v8578, %v8580
    %v8583 = vrot.slane %v8264, 7
    %v8585 = vrot.slane %v8272, 7
    %v8587 = vsel %vm8278, %v8583, %v8585
    %v8588 = vrot.slane %v8265, 5
    %v8590 = vrot.slane %v8289, 5
    %v8592 = vsel %vm8278, %v8588, %v8590
    %v8593 = vrot.slane %v8265, 7
    %v8595 = vrot.slane %v8289, 7
    %v8597 = vsel %vm8278, %v8593, %v8595
    %8599 = vrot.lane.b32.xlu0 %v8587, 32
    %v8600 = vpop.permute.xlu0 %8599
    %8602 = vrot.lane.b32.xlu0 %v8592, 64
    %v8603 = vpop.permute.xlu0 %8602
    %8605 = vrot.lane.b32.xlu0 %v8597, 96
    %v8606 = vpop.permute.xlu0 %8605
    %v8609 = vsel %vm8078, %v8582, %v8600
    %v8611 = vsel %vm8311, %v8609, %v8603
    %v8613 = vsel %vm8314, %v8611, %v8606
    %s8615 = scalar_lea.vmem %s4, 128
    %v8616 = vld [vmem:[%s8615] sm:$0xf]
    %v8617 = vld [vmem:[%s8615 + $0x4] sm:$0xf]
    %v8618 = vld [vmem:[%s8615 + $0x8] sm:$0xf]
    %v8619 = vld [vmem:[%s8615 + $0xc] sm:$0xf]
    %v8620 = vld [vmem:[%s8615 + $0x10] sm:$0xf]
    %v8621 = vld [vmem:[%s8615 + $0x14] sm:$0xf]
    %v8622 = vld [vmem:[%s8615 + $0x18] sm:$0xf]
    %v8623 = vld [vmem:[%s8615 + $0x1c] sm:$0xf]
    %v8624 = vld [vmem:[%s8615 + $0x20] sm:$0xf]
    %v8625 = vld [vmem:[%s8615 + $0x24] sm:$0xf]
    %v8626 = vld [vmem:[%s8615 + $0x28] sm:$0xf]
    %v8627 = vld [vmem:[%s8615 + $0x2c] sm:$0xf]
    %v8628 = vld [vmem:[%s8615 + $0x30] sm:$0xf]
    %v8629 = vld [vmem:[%s8615 + $0x34] sm:$0xf]
    %v8630 = vld [vmem:[%s8615 + $0x38] sm:$0xf]
    %v8631 = vld [vmem:[%s8615 + $0x3c] sm:$0xf]
    %v8648 = vunpack.c.l.b16 %v8616
    %v8649 = vunpack.c.l.b16 %v8617
    %v8650 = vunpack.c.l.b16 %v8618
    %v8651 = vunpack.c.l.b16 %v8619
    %v8652 = vunpack.c.l.b16 %v8620
    %v8653 = vunpack.c.l.b16 %v8621
    %v8654 = vunpack.c.l.b16 %v8622
    %v8655 = vunpack.c.l.b16 %v8623
    %v8656 = vunpack.c.l.b16 %v8624
    %v8657 = vunpack.c.l.b16 %v8625
    %v8658 = vunpack.c.l.b16 %v8626
    %v8659 = vunpack.c.l.b16 %v8627
    %v8660 = vunpack.c.l.b16 %v8628
    %v8661 = vunpack.c.l.b16 %v8629
    %v8662 = vunpack.c.l.b16 %v8630
    %v8663 = vunpack.c.l.b16 %v8631
    %v8664 = vpack.c.b16 %v8649, %v8648
    %v8665 = vpack.c.b16 %v8651, %v8650
    %v8666 = vpack.c.b16 %v8653, %v8652
    %v8667 = vpack.c.b16 %v8655, %v8654
    %v8668 = vpack.c.b16 %v8657, %v8656
    %v8669 = vpack.c.b16 %v8659, %v8658
    %v8670 = vpack.c.b16 %v8661, %v8660
    %v8671 = vpack.c.b16 %v8663, %v8662
    %8680 = vmatprep.subr.bf16.mxu0 0
    %8681 = vmatpush1.bf16.msra.mxu0 %v8671
    %8682 = vmatprep.subr.bf16.mxu0 0
    %8683 = vmatpush1.bf16.msra.mxu0 %v8670
    %8684 = vmatprep.subr.bf16.mxu0 0
    %8685 = vmatpush1.bf16.msra.mxu0 %v8669
    %8686 = vmatprep.subr.bf16.mxu0 0
    %8687 = vmatpush1.bf16.msra.mxu0 %v8668
    %8688 = vmatprep.subr.bf16.mxu0 0
    %8689 = vmatpush1.bf16.msra.mxu0 %v8667
    %8690 = vmatprep.subr.bf16.mxu0 0
    %8691 = vmatpush1.bf16.msra.mxu0 %v8666
    %8692 = vmatprep.subr.bf16.mxu0 0
    %8693 = vmatpush1.bf16.msra.mxu0 %v8665
    %8694 = vmatprep.subr.bf16.mxu0 0
    %8695 = vmatpush1.bf16.msra.mxu0 %v8664
    %8696 = vmatprep.subr.bf16.mxu0 0
    %8697 = vmatpush2.bf16.msra.mxu0 0
    %8698 = vmatprep.subr.bf16.mxu0 0
    %8699 = vmatpush2.bf16.msra.mxu0 0
    %8700 = vmatprep.subr.bf16.mxu0 0
    %8701 = vmatpush2.bf16.msra.mxu0 0
    %8702 = vmatprep.subr.bf16.mxu0 0
    %8703 = vmatpush2.bf16.msra.mxu0 0
    %8704 = vmatprep.subr.bf16.mxu0 0
    %8705 = vmatpush2.bf16.msra.mxu0 0
    %8706 = vmatprep.subr.bf16.mxu0 0
    %8707 = vmatpush2.bf16.msra.mxu0 0
    %8708 = vmatprep.subr.bf16.mxu0 0
    %8709 = vmatpush2.bf16.msra.mxu0 0
    %8710 = vmatprep.subr.bf16.mxu0 0
    %8711 = vmatpush2.bf16.msra.mxu0 0
    %8712 = vmatprep.mubr.bf16.mxu0 0
    %8713 = vmatmul.mubr.bf16.gmra.mxu0 %v8613
    %v8714 = vpop.f32.mrf.mxu0
    %v8715 = vadd.f32 0.0, %v8714
    %v8716 = vpop.f32.mrf.mxu0
    %v8717 = vpop.f32.mrf.mxu0
    %v8718 = vpop.f32.mrf.mxu0
    %8719 = vdwg.mxu0
    %v8720 = vmax.bf16 %v8582, %v8587
    %v8721 = vmax.bf16 %v8592, %v8597
    %v8722 = vmax.bf16 %v8720, %v8721
    %v8723 = vrot.slane %v8426, 5
    %v8725 = vrot.slane %v8266, 5
    %v8727 = vsel %vm8278, %v8723, %v8725
    %v8728 = vrot.slane %v8426, 7
    %v8730 = vrot.slane %v8266, 7
    %v8732 = vsel %vm8278, %v8728, %v8730
    %v8733 = vrot.slane %v8440, 5
    %v8735 = vrot.slane %v8267, 5
    %v8737 = vsel %vm8278, %v8733, %v8735
    %v8738 = vrot.slane %v8440, 7
    %v8740 = vrot.slane %v8267, 7
    %v8742 = vsel %vm8278, %v8738, %v8740
    %8744 = vrot.lane.b32.xlu0 %v8732, 32
    %v8745 = vpop.permute.xlu0 %8744
    %8747 = vrot.lane.b32.xlu0 %v8737, 64
    %v8748 = vpop.permute.xlu0 %8747
    %8750 = vrot.lane.b32.xlu0 %v8742, 96
    %v8751 = vpop.permute.xlu0 %8750
    %v8754 = vsel %vm8078, %v8727, %v8745
    %v8756 = vsel %vm8311, %v8754, %v8748
    %v8758 = vsel %vm8314, %v8756, %v8751
    %s8760 = scalar_lea.vmem %s4, 192
    %v8761 = vld [vmem:[%s8760] sm:$0xf]
    %v8762 = vld [vmem:[%s8760 + $0x4] sm:$0xf]
    %v8763 = vld [vmem:[%s8760 + $0x8] sm:$0xf]
    %v8764 = vld [vmem:[%s8760 + $0xc] sm:$0xf]
    %v8765 = vld [vmem:[%s8760 + $0x10] sm:$0xf]
    %v8766 = vld [vmem:[%s8760 + $0x14] sm:$0xf]
    %v8767 = vld [vmem:[%s8760 + $0x18] sm:$0xf]
    %v8768 = vld [vmem:[%s8760 + $0x1c] sm:$0xf]
    %v8769 = vld [vmem:[%s8760 + $0x20] sm:$0xf]
    %v8770 = vld [vmem:[%s8760 + $0x24] sm:$0xf]
    %v8771 = vld [vmem:[%s8760 + $0x28] sm:$0xf]
    %v8772 = vld [vmem:[%s8760 + $0x2c] sm:$0xf]
    %v8773 = vld [vmem:[%s8760 + $0x30] sm:$0xf]
    %v8774 = vld [vmem:[%s8760 + $0x34] sm:$0xf]
    %v8775 = vld [vmem:[%s8760 + $0x38] sm:$0xf]
    %v8776 = vld [vmem:[%s8760 + $0x3c] sm:$0xf]
    %v8793 = vunpack.c.l.b16 %v8761
    %v8794 = vunpack.c.l.b16 %v8762
    %v8795 = vunpack.c.l.b16 %v8763
    %v8796 = vunpack.c.l.b16 %v8764
    %v8797 = vunpack.c.l.b16 %v8765
    %v8798 = vunpack.c.l.b16 %v8766
    %v8799 = vunpack.c.l.b16 %v8767
    %v8800 = vunpack.c.l.b16 %v8768
    %v8801 = vunpack.c.l.b16 %v8769
    %v8802 = vunpack.c.l.b16 %v8770
    %v8803 = vunpack.c.l.b16 %v8771
    %v8804 = vunpack.c.l.b16 %v8772
    %v8805 = vunpack.c.l.b16 %v8773
    %v8806 = vunpack.c.l.b16 %v8774
    %v8807 = vunpack.c.l.b16 %v8775
    %v8808 = vunpack.c.l.b16 %v8776
    %v8809 = vpack.c.b16 %v8794, %v8793
    %v8810 = vpack.c.b16 %v8796, %v8795
    %v8811 = vpack.c.b16 %v8798, %v8797
    %v8812 = vpack.c.b16 %v8800, %v8799
    %v8813 = vpack.c.b16 %v8802, %v8801
    %v8814 = vpack.c.b16 %v8804, %v8803
    %v8815 = vpack.c.b16 %v8806, %v8805
    %v8816 = vpack.c.b16 %v8808, %v8807
    %8825 = vmatprep.subr.bf16.mxu0 0
    %8826 = vmatpush1.bf16.msra.mxu0 %v8816
    %8827 = vmatprep.subr.bf16.mxu0 0
    %8828 = vmatpush1.bf16.msra.mxu0 %v8815
    %8829 = vmatprep.subr.bf16.mxu0 0
    %8830 = vmatpush1.bf16.msra.mxu0 %v8814
    %8831 = vmatprep.subr.bf16.mxu0 0
    %8832 = vmatpush1.bf16.msra.mxu0 %v8813
    %8833 = vmatprep.subr.bf16.mxu0 0
    %8834 = vmatpush1.bf16.msra.mxu0 %v8812
    %8835 = vmatprep.subr.bf16.mxu0 0
    %8836 = vmatpush1.bf16.msra.mxu0 %v8811
    %8837 = vmatprep.subr.bf16.mxu0 0
    %8838 = vmatpush1.bf16.msra.mxu0 %v8810
    %8839 = vmatprep.subr.bf16.mxu0 0
    %8840 = vmatpush1.bf16.msra.mxu0 %v8809
    %8841 = vmatprep.subr.bf16.mxu0 0
    %8842 = vmatpush2.bf16.msra.mxu0 0
    %8843 = vmatprep.subr.bf16.mxu0 0
    %8844 = vmatpush2.bf16.msra.mxu0 0
    %8845 = vmatprep.subr.bf16.mxu0 0
    %8846 = vmatpush2.bf16.msra.mxu0 0
    %8847 = vmatprep.subr.bf16.mxu0 0
    %8848 = vmatpush2.bf16.msra.mxu0 0
    %8849 = vmatprep.subr.bf16.mxu0 0
    %8850 = vmatpush2.bf16.msra.mxu0 0
    %8851 = vmatprep.subr.bf16.mxu0 0
    %8852 = vmatpush2.bf16.msra.mxu0 0
    %8853 = vmatprep.subr.bf16.mxu0 0
    %8854 = vmatpush2.bf16.msra.mxu0 0
    %8855 = vmatprep.subr.bf16.mxu0 0
    %8856 = vmatpush2.bf16.msra.mxu0 0
    %8857 = vmatprep.mubr.bf16.mxu0 0
    %8858 = vmatmul.mubr.bf16.gmra.mxu0 %v8758
    %v8859 = vpop.f32.mrf.mxu0
    %v8860 = vadd.f32 0.0, %v8859
    %v8861 = vpop.f32.mrf.mxu0
    %v8862 = vpop.f32.mrf.mxu0
    %v8863 = vpop.f32.mrf.mxu0
    %8864 = vdwg.mxu0
    %v8865 = vmax.bf16 %v8727, %v8732
    %v8866 = vmax.bf16 %v8737, %v8742
    %v8867 = vmax.bf16 %v8865, %v8866
    %v8869 = vrot.slane %v8570, 6
    %v8872 = vrot.slane %v8715, 4
    %v8875 = vrot.slane %v8860, 2
    %vm8877 = vcmask 1041408
    %v8878 = vsel %vm8877, %v8417, %v8869
    %vm8879 = vcmask 1043456
    %v8880 = vsel %vm8879, %v8878, %v8872
    %vm8881 = vcmask 1045504
    %v8882 = vsel %vm8881, %v8880, %v8875
    %v8884 = vrot.slane %v8577, 7
    %v8886 = vrot.slane %v8722, 6
    %v8888 = vrot.slane %v8867, 5
    %vm8889 = vcmask 1040384
    %v8892 = vsel %vm8889, %v8424, %v8884
    %v8894 = vsel %vm8877, %v8892, %v8886
    %vm8895 = vcmask 1042432
    %v8897 = vsel %vm8895, %v8894, %v8888
    %v8898 = vlaneseq
    %v8899 = vshrl.u32 %v8898, 7
    %v8900 = vadd.s32 %v8899, 8
    %v8901 = vadd.s32 %v8899, 16
    %v8902 = vadd.s32 %v8899, 24
    %v8903 = vlaneseq
    %v8904 = vand.u32 %v8903, 127
    %v8905 = vmul.u32 %v8899, 2
    %v8906 = vmul.u32 %v8900, 2
    %v8907 = vmul.u32 %v8901, 2
    %v8908 = vmul.u32 %v8902, 2
    %vm8909 = vcmp.eq.s32.totalorder %v8904, %v8905
    %vm8910 = vcmp.eq.s32.totalorder %v8904, %v8906
    %vm8911 = vcmp.eq.s32.totalorder %v8904, %v8907
    %vm8912 = vcmp.eq.s32.totalorder %v8904, %v8908
    %v8913 = vadd.s32 %v8905, 1
    %v8914 = vadd.s32 %v8906, 1
    %v8915 = vadd.s32 %v8907, 1
    %v8916 = vadd.s32 %v8908, 1
    %vm8917 = vcmp.eq.s32.totalorder %v8904, %v8913
    %vm8918 = vcmp.eq.s32.totalorder %v8904, %v8914
    %vm8919 = vcmp.eq.s32.totalorder %v8904, %v8915
    %vm8920 = vcmp.eq.s32.totalorder %v8904, %v8916
    %vm8921 = vmor %vm8909, %vm8917
    %vm8922 = vmor %vm8910, %vm8918
    %vm8923 = vmor %vm8911, %vm8919
    %vm8924 = vmor %vm8912, %vm8920
    %v8925 = vsel %vm8921, 1, 0
    %v8926 = vsel %vm8922, 1, 0
    %v8927 = vsel %vm8923, 1, 0
    %v8928 = vsel %vm8924, 1, 0
    %v8929 = vcvt.s32.f32 %v8925
    %v8930 = vcvt.s32.f32 %v8926
    %v8931 = vcvt.s32.f32 %v8927
    %v8932 = vcvt.s32.f32 %v8928
    %v8933 = vpack.c.bf16 %v8930, %v8929
    %v8934 = vpack.c.bf16 %v8932, %v8931
    %v8935 = vsel %vm8078, %v8897, 0
    %8937 = vmatprep.subr.bf16.mxu0 0
    %8938 = vmatpush1.bf16.msra.mxu0 0
    %8939 = vmatprep.subr.bf16.mxu0 0
    %8940 = vmatpush1.bf16.msra.mxu0 0
    %8941 = vmatprep.subr.bf16.mxu0 0
    %8942 = vmatpush1.bf16.msra.mxu0 0
    %8943 = vmatprep.subr.bf16.mxu0 0
    %8944 = vmatpush1.bf16.msra.mxu0 0
    %8945 = vmatprep.subr.bf16.mxu0 0
    %8946 = vmatpush1.bf16.msra.mxu0 0
    %8947 = vmatprep.subr.bf16.mxu0 0
    %8948 = vmatpush1.bf16.msra.mxu0 0
    %8949 = vmatprep.subr.bf16.mxu0 0
    %8950 = vmatpush1.bf16.msra.mxu0 %v8934
    %8951 = vmatprep.subr.bf16.mxu0 0
    %8952 = vmatpush1.bf16.msra.mxu0 %v8933
    %8953 = vmatprep.subr.bf16.mxu0 0
    %8954 = vmatpush2.bf16.msra.mxu0 0
    %8955 = vmatprep.subr.bf16.mxu0 0
    %8956 = vmatpush2.bf16.msra.mxu0 0
    %8957 = vmatprep.subr.bf16.mxu0 0
    %8958 = vmatpush2.bf16.msra.mxu0 0
    %8959 = vmatprep.subr.bf16.mxu0 0
    %8960 = vmatpush2.bf16.msra.mxu0 0
    %8961 = vmatprep.subr.bf16.mxu0 0
    %8962 = vmatpush2.bf16.msra.mxu0 0
    %8963 = vmatprep.subr.bf16.mxu0 0
    %8964 = vmatpush2.bf16.msra.mxu0 0
    %8965 = vmatprep.subr.bf16.mxu0 0
    %8966 = vmatpush2.bf16.msra.mxu0 0
    %8967 = vmatprep.subr.bf16.mxu0 0
    %8968 = vmatpush2.bf16.msra.mxu0 0
    %8969 = vmatprep.mubr.bf16.mxu0 0
    %8970 = vmatmul.mubr.bf16.gmra.mxu0 %v8935
    %v8971 = vpop.f32.mrf.mxu0
    %v8972 = vadd.f32 0.0, %v8971
    %v8973 = vpop.f32.mrf.mxu0
    %v8974 = vpop.f32.mrf.mxu0
    %v8975 = vpop.f32.mrf.mxu0
    %8976 = vdwg.mxu0
    %v8977 = vsel %vm8311, %v8882, 0.0
    %v8978 = vrot.slane %v8977, 4
    %v8979 = vadd.f32 %v8977, %v8978
    %v8980 = vrot.slane %v8979, 2
    %v8981 = vadd.f32 %v8979, %v8980
    %v8982 = vrot.slane %v8981, 1
    %v8983 = vadd.f32 %v8981, %v8982
    %v8984 = vrcp.pop 8.0
    %v8985 = vmul.f32 %v8983, %v8984
    %v8986 = vsub.f32 %v8882, %v8985
    %v8987 = vmul.f32 %v8986, %v8986
    %v8988 = vsel %vm8311, %v8987, 0.0
    %v8989 = vrot.slane %v8988, 4
    %v8990 = vadd.f32 %v8988, %v8989
    %v8991 = vrot.slane %v8990, 2
    %v8992 = vadd.f32 %v8990, %v8991
    %v8993 = vrot.slane %v8992, 1
    %v8994 = vadd.f32 %v8992, %v8993
    %v8995 = vmul.f32 %v8994, %v8984
    %v8996 = vadd.f32 %v8995, 1e-05
    %v8997 = vrsqrt.pop %v8996
    %v8998 = vmul.f32 %v8986, %v8997
    %v8999 = vld [vmem:[%s5] sm:$0x1]
    %v9000 = vlaneseq
    %v9001 = vshrl.u32 %v9000, 7
    %v9002 = vsub.s32 0, %v9001
    %v9003 = vrot.slane %v8999, %v9002
    %v9004 = vmul.f32 %v8998, %v9003
    %v9005 = vld [vmem:[%s5 + $0x1] sm:$0x1]
    %v9006 = vlaneseq
    %v9007 = vshrl.u32 %v9006, 7
    %v9008 = vsub.s32 0, %v9007
    %v9009 = vrot.slane %v9005, %v9008
    %v9010 = vadd.f32 %v9004, %v9009
    %v9011 = vadd.f32 %v9010, %v8972
    %v9012 = vmul.f32 %v9011, 0.5
    %vm9013 = vcmp.ge.f32.partialorder %v9012, 1.0
    %v9014 = vsel %vm9013, 1, 0
    %v9015 = vcvt.s32.f32 %v9014
    %v9016 = vpack.c.bf16 %v9015, %v9015
    %v9017 = vld [vmem:[%s6] sm:$0xf]
    %v9018 = vld [vmem:[%s6 + $0x4] sm:$0xf]
    %v9019 = vld [vmem:[%s6 + $0x8] sm:$0xf]
    %v9020 = vld [vmem:[%s6 + $0xc] sm:$0xf]
    %v9021 = vld [vmem:[%s6 + $0x10] sm:$0xf]
    %v9022 = vld [vmem:[%s6 + $0x14] sm:$0xf]
    %v9023 = vld [vmem:[%s6 + $0x18] sm:$0xf]
    %v9024 = vld [vmem:[%s6 + $0x1c] sm:$0xf]
    %v9033 = vunpack.c.l.b16 %v9017
    %v9034 = vunpack.c.l.b16 %v9018
    %v9035 = vunpack.c.l.b16 %v9019
    %v9036 = vunpack.c.l.b16 %v9020
    %v9037 = vunpack.c.l.b16 %v9021
    %v9038 = vunpack.c.l.b16 %v9022
    %v9039 = vunpack.c.l.b16 %v9023
    %v9040 = vunpack.c.l.b16 %v9024
    %v9041 = vpack.c.b16 %v9034, %v9033
    %v9042 = vpack.c.b16 %v9036, %v9035
    %v9043 = vpack.c.b16 %v9038, %v9037
    %v9044 = vpack.c.b16 %v9040, %v9039
    %v9050 = vsel %vm8311, %v9016, 0
    %9052 = vmatprep.subr.bf16.mxu0 0
    %9053 = vmatpush1.bf16.msra.mxu0 0
    %9054 = vmatprep.subr.bf16.mxu0 0
    %9055 = vmatpush1.bf16.msra.mxu0 0
    %9056 = vmatprep.subr.bf16.mxu0 0
    %9057 = vmatpush1.bf16.msra.mxu0 0
    %9058 = vmatprep.subr.bf16.mxu0 0
    %9059 = vmatpush1.bf16.msra.mxu0 0
    %9060 = vmatprep.subr.bf16.mxu0 0
    %9061 = vmatpush1.bf16.msra.mxu0 %v9044
    %9062 = vmatprep.subr.bf16.mxu0 0
    %9063 = vmatpush1.bf16.msra.mxu0 %v9043
    %9064 = vmatprep.subr.bf16.mxu0 0
    %9065 = vmatpush1.bf16.msra.mxu0 %v9042
    %9066 = vmatprep.subr.bf16.mxu0 0
    %9067 = vmatpush1.bf16.msra.mxu0 %v9041
    %9068 = vmatprep.subr.bf16.mxu0 0
    %9069 = vmatpush2.bf16.msra.mxu0 0
    %9070 = vmatprep.subr.bf16.mxu0 0
    %9071 = vmatpush2.bf16.msra.mxu0 0
    %9072 = vmatprep.subr.bf16.mxu0 0
    %9073 = vmatpush2.bf16.msra.mxu0 0
    %9074 = vmatprep.subr.bf16.mxu0 0
    %9075 = vmatpush2.bf16.msra.mxu0 0
    %9076 = vmatprep.subr.bf16.mxu0 0
    %9077 = vmatpush2.bf16.msra.mxu0 0
    %9078 = vmatprep.subr.bf16.mxu0 0
    %9079 = vmatpush2.bf16.msra.mxu0 0
    %9080 = vmatprep.subr.bf16.mxu0 0
    %9081 = vmatpush2.bf16.msra.mxu0 0
    %9082 = vmatprep.subr.bf16.mxu0 0
    %9083 = vmatpush2.bf16.msra.mxu0 0
    %9084 = vmatprep.mubr.bf16.mxu0 0
    %9085 = vmatmul.mubr.bf16.gmra.mxu0 %v9050
    %v9086 = vpop.f32.mrf.mxu0
    %v9087 = vadd.f32 0.0, %v9086
    %v9088 = vpop.f32.mrf.mxu0
    %v9089 = vpop.f32.mrf.mxu0
    %v9090 = vpop.f32.mrf.mxu0
    %9091 = vdwg.mxu0
    %v9092 = vadd.s32 %v8899, 32
    %v9093 = vadd.s32 %v8899, 40
    %v9094 = vadd.s32 %v8899, 48
    %v9095 = vadd.s32 %v8899, 56
    %v9096 = vmul.u32 %v9092, 2
    %v9097 = vmul.u32 %v9093, 2
    %v9098 = vmul.u32 %v9094, 2
    %v9099 = vmul.u32 %v9095, 2
    %vm9100 = vcmp.eq.s32.totalorder %v8904, %v9096
    %vm9101 = vcmp.eq.s32.totalorder %v8904, %v9097
    %vm9102 = vcmp.eq.s32.totalorder %v8904, %v9098
    %vm9103 = vcmp.eq.s32.totalorder %v8904, %v9099
    %v9104 = vadd.s32 %v9096, 1
    %v9105 = vadd.s32 %v9097, 1
    %v9106 = vadd.s32 %v9098, 1
    %v9107 = vadd.s32 %v9099, 1
    %vm9108 = vcmp.eq.s32.totalorder %v8904, %v9104
    %vm9109 = vcmp.eq.s32.totalorder %v8904, %v9105
    %vm9110 = vcmp.eq.s32.totalorder %v8904, %v9106
    %vm9111 = vcmp.eq.s32.totalorder %v8904, %v9107
    %vm9112 = vmor %vm9100, %vm9108
    %vm9113 = vmor %vm9101, %vm9109
    %vm9114 = vmor %vm9102, %vm9110
    %vm9115 = vmor %vm9103, %vm9111
    %v9116 = vsel %vm9112, 1, 0
    %v9117 = vsel %vm9113, 1, 0
    %v9118 = vsel %vm9114, 1, 0
    %v9119 = vsel %vm9115, 1, 0
    %v9120 = vcvt.s32.f32 %v9116
    %v9121 = vcvt.s32.f32 %v9117
    %v9122 = vcvt.s32.f32 %v9118
    %v9123 = vcvt.s32.f32 %v9119
    %v9124 = vpack.c.bf16 %v9121, %v9120
    %v9125 = vpack.c.bf16 %v9123, %v9122
    %9126 = vmatprep.subr.bf16.mxu0 0
    %9127 = vmatpush1.bf16.msra.mxu0 0
    %9128 = vmatprep.subr.bf16.mxu0 0
    %9129 = vmatpush1.bf16.msra.mxu0 0
    %9130 = vmatprep.subr.bf16.mxu0 0
    %9131 = vmatpush1.bf16.msra.mxu0 0
    %9132 = vmatprep.subr.bf16.mxu0 0
    %9133 = vmatpush1.bf16.msra.mxu0 0
    %9134 = vmatprep.subr.bf16.mxu0 0
    %9135 = vmatpush1.bf16.msra.mxu0 %v9125
    %9136 = vmatprep.subr.bf16.mxu0 0
    %9137 = vmatpush1.bf16.msra.mxu0 %v9124
    %9138 = vmatprep.subr.bf16.mxu0 0
    %9139 = vmatpush1.bf16.msra.mxu0 %v8934
    %9140 = vmatprep.subr.bf16.mxu0 0
    %9141 = vmatpush1.bf16.msra.mxu0 %v8933
    %9142 = vmatprep.subr.bf16.mxu0 0
    %9143 = vmatpush2.bf16.msra.mxu0 0
    %9144 = vmatprep.subr.bf16.mxu0 0
    %9145 = vmatpush2.bf16.msra.mxu0 0
    %9146 = vmatprep.subr.bf16.mxu0 0
    %9147 = vmatpush2.bf16.msra.mxu0 0
    %9148 = vmatprep.subr.bf16.mxu0 0
    %9149 = vmatpush2.bf16.msra.mxu0 0
    %9150 = vmatprep.subr.bf16.mxu0 0
    %9151 = vmatpush2.bf16.msra.mxu0 0
    %9152 = vmatprep.subr.bf16.mxu0 0
    %9153 = vmatpush2.bf16.msra.mxu0 0
    %9154 = vmatprep.subr.bf16.mxu0 0
    %9155 = vmatpush2.bf16.msra.mxu0 0
    %9156 = vmatprep.subr.bf16.mxu0 0
    %9157 = vmatpush2.bf16.msra.mxu0 0
    %9158 = vmatprep.mubr.bf16.mxu0 0
    %9159 = vmatmul.mubr.bf16.gmra.mxu0 %v9050
    %v9160 = vpop.f32.mrf.mxu0
    %v9161 = vadd.f32 0.0, %v9160
    %v9162 = vpop.f32.mrf.mxu0
    %v9163 = vpop.f32.mrf.mxu0
    %v9164 = vpop.f32.mrf.mxu0
    %9165 = vdwg.mxu0
    %v9166 = vsel %vm8877, %v9087, 0.0
    %v9167 = vrot.slane %v9166, 4
    %v9168 = vadd.f32 %v9166, %v9167
    %v9169 = vrot.slane %v9168, 2
    %v9170 = vadd.f32 %v9168, %v9169
    %v9171 = vrot.slane %v9170, 1
    %v9172 = vadd.f32 %v9170, %v9171
    %v9173 = vrcp.pop 2.0
    %v9174 = vmul.f32 %v9172, %v9173
    %v9175 = vsub.f32 %v9087, %v9174
    %v9176 = vmul.f32 %v9175, %v9175
    %v9177 = vsel %vm8877, %v9176, 0.0
    %v9178 = vrot.slane %v9177, 4
    %v9179 = vadd.f32 %v9177, %v9178
    %v9180 = vrot.slane %v9179, 2
    %v9181 = vadd.f32 %v9179, %v9180
    %v9182 = vrot.slane %v9181, 1
    %v9183 = vadd.f32 %v9181, %v9182
    %v9184 = vmul.f32 %v9183, %v9173
    %v9185 = vadd.f32 %v9184, 1e-05
    %v9186 = vrsqrt.pop %v9185
    %v9187 = vmul.f32 %v9175, %v9186
    %v9188 = vld [vmem:[%s7] sm:$0x1]
    %v9189 = vlaneseq
    %v9190 = vshrl.u32 %v9189, 7
    %v9191 = vsub.s32 0, %v9190
    %v9192 = vrot.slane %v9188, %v9191
    %v9193 = vmul.f32 %v9187, %v9192
    %v9194 = vld [vmem:[%s7 + $0x1] sm:$0x1]
    %v9195 = vlaneseq
    %v9196 = vshrl.u32 %v9195, 7
    %v9197 = vsub.s32 0, %v9196
    %v9198 = vrot.slane %v9194, %v9197
    %v9199 = vadd.f32 %v9193, %v9198
    %v9200 = vadd.f32 %v9199, %v9161
    %v9201 = vmul.f32 %v9200, 0.5
    %vm9202 = vcmp.ge.f32.partialorder %v9201, 1.0
    %v9203 = vsel %vm9202, 1, 0
    %v9204 = vcvt.s32.f32 %v9203
    %v9205 = vpack.c.bf16 %v9204, %v9204
    %v9206 = vld [vmem:[%s8] sm:$0xf]
    %v9207 = vld [vmem:[%s8 + $0x4] sm:$0xf]
    %v9208 = vld [vmem:[%s8 + $0x8] sm:$0xf]
    %v9209 = vld [vmem:[%s8 + $0xc] sm:$0xf]
    %v9210 = vld [vmem:[%s8 + $0x10] sm:$0xf]
    %v9211 = vld [vmem:[%s8 + $0x14] sm:$0xf]
    %v9212 = vld [vmem:[%s8 + $0x18] sm:$0xf]
    %v9213 = vld [vmem:[%s8 + $0x1c] sm:$0xf]
    %v9214 = vld [vmem:[%s8 + $0x20] sm:$0xf]
    %v9215 = vld [vmem:[%s8 + $0x24] sm:$0xf]
    %v9216 = vld [vmem:[%s8 + $0x28] sm:$0xf]
    %v9217 = vld [vmem:[%s8 + $0x2c] sm:$0xf]
    %v9218 = vld [vmem:[%s8 + $0x30] sm:$0xf]
    %v9219 = vld [vmem:[%s8 + $0x34] sm:$0xf]
    %v9220 = vld [vmem:[%s8 + $0x38] sm:$0xf]
    %v9221 = vld [vmem:[%s8 + $0x3c] sm:$0xf]
    %v9238 = vunpack.c.l.b16 %v9206
    %v9239 = vunpack.c.l.b16 %v9207
    %v9240 = vunpack.c.l.b16 %v9208
    %v9241 = vunpack.c.l.b16 %v9209
    %v9242 = vunpack.c.l.b16 %v9210
    %v9243 = vunpack.c.l.b16 %v9211
    %v9244 = vunpack.c.l.b16 %v9212
    %v9245 = vunpack.c.l.b16 %v9213
    %v9246 = vunpack.c.l.b16 %v9214
    %v9247 = vunpack.c.l.b16 %v9215
    %v9248 = vunpack.c.l.b16 %v9216
    %v9249 = vunpack.c.l.b16 %v9217
    %v9250 = vunpack.c.l.b16 %v9218
    %v9251 = vunpack.c.l.b16 %v9219
    %v9252 = vunpack.c.l.b16 %v9220
    %v9253 = vunpack.c.l.b16 %v9221
    %v9254 = vpack.c.b16 %v9239, %v9238
    %v9255 = vpack.c.b16 %v9241, %v9240
    %v9256 = vpack.c.b16 %v9243, %v9242
    %v9257 = vpack.c.b16 %v9245, %v9244
    %v9258 = vpack.c.b16 %v9247, %v9246
    %v9259 = vpack.c.b16 %v9249, %v9248
    %v9260 = vpack.c.b16 %v9251, %v9250
    %v9261 = vpack.c.b16 %v9253, %v9252
    %9270 = vmatprep.subr.bf16.mxu0 0
    %9271 = vmatpush1.bf16.msra.mxu0 %v9261
    %9272 = vmatprep.subr.bf16.mxu0 0
    %9273 = vmatpush1.bf16.msra.mxu0 %v9260
    %9274 = vmatprep.subr.bf16.mxu0 0
    %9275 = vmatpush1.bf16.msra.mxu0 %v9259
    %9276 = vmatprep.subr.bf16.mxu0 0
    %9277 = vmatpush1.bf16.msra.mxu0 %v9258
    %9278 = vmatprep.subr.bf16.mxu0 0
    %9279 = vmatpush1.bf16.msra.mxu0 %v9257
    %9280 = vmatprep.subr.bf16.mxu0 0
    %9281 = vmatpush1.bf16.msra.mxu0 %v9256
    %9282 = vmatprep.subr.bf16.mxu0 0
    %9283 = vmatpush1.bf16.msra.mxu0 %v9255
    %9284 = vmatprep.subr.bf16.mxu0 0
    %9285 = vmatpush1.bf16.msra.mxu0 %v9254
    %9286 = vmatprep.subr.bf16.mxu0 0
    %9287 = vmatpush2.bf16.msra.mxu0 0
    %9288 = vmatprep.subr.bf16.mxu0 0
    %9289 = vmatpush2.bf16.msra.mxu0 0
    %9290 = vmatprep.subr.bf16.mxu0 0
    %9291 = vmatpush2.bf16.msra.mxu0 0
    %9292 = vmatprep.subr.bf16.mxu0 0
    %9293 = vmatpush2.bf16.msra.mxu0 0
    %9294 = vmatprep.subr.bf16.mxu0 0
    %9295 = vmatpush2.bf16.msra.mxu0 0
    %9296 = vmatprep.subr.bf16.mxu0 0
    %9297 = vmatpush2.bf16.msra.mxu0 0
    %9298 = vmatprep.subr.bf16.mxu0 0
    %9299 = vmatpush2.bf16.msra.mxu0 0
    %9300 = vmatprep.subr.bf16.mxu0 0
    %9301 = vmatpush2.bf16.msra.mxu0 0
    %9302 = vmatprep.mubr.bf16.mxu0 0
    %9303 = vmatmul.mubr.bf16.gmra.mxu0 %v9205
    %v9304 = vpop.f32.mrf.mxu0
    %v9305 = vadd.f32 0.0, %v9304
    %v9306 = vpop.f32.mrf.mxu0
    %v9307 = vpop.f32.mrf.mxu0
    %v9308 = vpop.f32.mrf.mxu0
    %9309 = vdwg.mxu0
    %v9310 = vunpack.c.l.bf16 %v9205
    %v9311 = vsel %vm8877, %v9305, 0.0
    %v9312 = vrot.slane %v9311, 4
    %v9313 = vadd.f32 %v9311, %v9312
    %v9314 = vrot.slane %v9313, 2
    %v9315 = vadd.f32 %v9313, %v9314
    %v9316 = vrot.slane %v9315, 1
    %v9317 = vadd.f32 %v9315, %v9316
    %v9318 = vmul.f32 %v9317, %v9173
    %v9319 = vsub.f32 %v9305, %v9318
    %v9320 = vmul.f32 %v9319, %v9319
    %v9321 = vsel %vm8877, %v9320, 0.0
    %v9322 = vrot.slane %v9321, 4
    %v9323 = vadd.f32 %v9321, %v9322
    %v9324 = vrot.slane %v9323, 2
    %v9325 = vadd.f32 %v9323, %v9324
    %v9326 = vrot.slane %v9325, 1
    %v9327 = vadd.f32 %v9325, %v9326
    %v9328 = vmul.f32 %v9327, %v9173
    %v9329 = vadd.f32 %v9328, 1e-05
    %v9330 = vrsqrt.pop %v9329
    %v9331 = vmul.f32 %v9319, %v9330
    %v9332 = vld [vmem:[%s9] sm:$0x1]
    %v9333 = vlaneseq
    %v9334 = vshrl.u32 %v9333, 7
    %v9335 = vsub.s32 0, %v9334
    %v9336 = vrot.slane %v9332, %v9335
    %v9337 = vmul.f32 %v9331, %v9336
    %v9338 = vld [vmem:[%s9 + $0x1] sm:$0x1]
    %v9339 = vlaneseq
    %v9340 = vshrl.u32 %v9339, 7
    %v9341 = vsub.s32 0, %v9340
    %v9342 = vrot.slane %v9338, %v9341
    %v9343 = vadd.f32 %v9337, %v9342
    %v9344 = vadd.f32 %v9343, %v9310
    %v9345 = vmul.f32 %v9344, 0.5
    %vm9346 = vcmp.ge.f32.partialorder %v9345, 1.0
    %v9347 = vsel %vm9346, 1, 0
    %v9348 = vcvt.s32.f32 %v9347
    %v9349 = vpack.c.bf16 %v9348, %v9348
    %v9350 = vunpack.c.l.bf16 %v9349
    %9351 = vst [vmem:[#allocation2] sm:$0x3] %v9350
    // Predicated region
    $region42: #{temporal_conv_net.1} parent=1 // pred_check
      _
    $region43: #{temporal_conv_net.1} parent=1 // pred_check_branch
      %9353 = sbr.rel (0) target = $region45
    $region44: #{temporal_conv_net.1} parent=1 // pred_region
      %s9355 = ssub.s32 32, 32
      %9356 = vsyncadd [#allocation3], %s9355
      %s9358 = sshll.u32 [#allocation2], 4
      %s9359 = int_to_ptr.vmem [resolvable:$true] %s9358
      %9361 = dma.vmem_to_hbm [thread:$0]  %s9359, 32, %s10, [#allocation3]
    $region45: #{temporal_conv_net.1} parent=1 // pred_fallthru
      _
    // Predicated region
    $region46: #{temporal_conv_net.1} parent=1 // pred_check
      _
    $region47: #{temporal_conv_net.1} parent=1 // pred_check_branch
      %9363 = sbr.rel (0) target = $region49
    $region48: #{temporal_conv_net.1} parent=1 // pred_region
      %9364 = dma.done [#allocation3], 32
    $region49: #{temporal_conv_net.1} parent=1 // pred_fallthru
      _
    %9365 = vsyncpa [#allocation3], 1

</llo_original>
